<compile_context>
chip_gen: v7x
topology: tpu7x:2x2x1
jax: 0.10.0
libtpu: 0.0.40
codegen_flags: <defaults>
</compile_context>

<pallas_src>
import functools

import jax
import jax.numpy as jnp
from jax.experimental import pallas as pl
from jax.experimental.pallas import tpu as pltpu

EPS = 1e-5


# ----------------------------------------------------------------------------
# Chip heuristics (best-effort; any failure falls back to safe defaults)
# ----------------------------------------------------------------------------
def _device_kind():
    try:
        return jax.devices()[0].device_kind.lower()
    except Exception:  # pragma: no cover
        return ""


def _mxu_k_threshold():
    # v5e MXU contraction dim is 128; v6e/v7x are 256-wide, so full im2col
    # (K = 9*Cin) pays off for larger Cin there.
    k = _device_kind()
    return 128 if ("v5 lite" in k or "v5e" in k or "v5lite" in k) else 256


def _is_v7x():
    # v7x's MRB accumulates matmul results in place -> concat-free accumulation.
    return "v7" in _device_kind()


# ----------------------------------------------------------------------------
# One conv layer's math (pure function of loaded values / refs), used inside
# the fused conv-stack kernel.
# ----------------------------------------------------------------------------
def _conv_in_relu_layer(read, cin, H, W, w_ref, g_ref, b_ref,
                        k_thresh, many_dots):
    # read(dy, dx) -> (H, W, cin) bf16 window of the zero-padded activation.
    def tap(dy, dx):
        return read(dy, dx).reshape(H * W, cin)

    if cin < k_thresh:
        # Full im2col: one MXU matmul with K = 9*cin.
        xs = jnp.concatenate(
            [tap(dy, dx) for dy in range(3) for dx in range(3)], axis=-1)
        acc = jnp.dot(xs, w_ref[...], preferred_element_type=jnp.float32)
    elif many_dots:
        # v7x: MRB accumulates in place; 9 plain K=cin dots, no xs concat.
        acc = None
        for dy in range(3):
            for dx in range(3):
                r = (dy * 3 + dx) * cin
                d = jnp.dot(tap(dy, dx), w_ref[r:r + cin, :],
                            preferred_element_type=jnp.float32)
                acc = d if acc is None else acc + d
    else:
        # v5e/v6e large-cin fallback: 3 dots of K = 3*cin; acc seeded by the
        # first dot (no zero-fill + add).
        acc = None
        for dy in range(3):
            xs = jnp.concatenate([tap(dy, dx) for dx in range(3)], axis=-1)
            d = jnp.dot(xs, w_ref[dy * 3 * cin:(dy + 1) * 3 * cin, :],
                        preferred_element_type=jnp.float32)
            acc = d if acc is None else acc + d

    # InstanceNorm2d (training mode): per-sample, per-channel stats over H*W.
    # Centered two-pass variance (biased), clamped >= 0 (NaN guard), f32 math.
    mean = jnp.mean(acc, axis=0, keepdims=True)
    xc = acc - mean
    var = jnp.maximum(jnp.mean(xc * xc, axis=0, keepdims=True), 0.0)
    y = xc * jax.lax.rsqrt(var + EPS)
    y = y * g_ref[...] + b_ref[...]
    return jnp.maximum(y, 0.0)  # (H*W, Cout) f32, ReLU applied


# ----------------------------------------------------------------------------
# Kernel 1: the WHOLE conv stack for one sample
#   Conv3x3+IN+ReLU  x num_layers, activations ping-ponging in VMEM scratch,
#   global average pool fused into the last layer's epilogue.
# ----------------------------------------------------------------------------
def conv_stack_kernel(xp_ref, *rest, H, W, Cin0, C, num_layers,
                      k_thresh, many_dots):
    # rest = (w0,g0,b0, w1,g1,b1, ..., pooled_out_ref, buf0[, buf1])
    out_ref = rest[3 * num_layers]
    bufs = list(rest[3 * num_layers + 1:])

    # Zero only the 1-pixel halo frame of each ping-pong buffer (interiors are
    # fully overwritten by each layer's store, so the halo stays zero).
    for buf in bufs:
        z_row = jnp.zeros((1, W + 2, C), buf.dtype)
        buf[0:1, :, :] = z_row
        buf[H + 1:H + 2, :, :] = z_row
        z_col = jnp.zeros((H + 2, 1, C), buf.dtype)
        buf[:, 0:1, :] = z_col
        buf[:, W + 1:W + 2, :] = z_col

    # Layer 0 reads the zero-padded HBM-pipelined input block.
    read = lambda dy, dx: xp_ref[0, dy:dy + H, dx:dx + W, :]
    cin = Cin0
    for li in range(num_layers):
        w_ref, g_ref, b_ref = rest[3 * li], rest[3 * li + 1], rest[3 * li + 2]
        y = _conv_in_relu_layer(read, cin, H, W, w_ref, g_ref, b_ref,
                                k_thresh, many_dots)
        if li == num_layers - 1:
            # Fused AdaptiveAvgPool2d(1) + Flatten: emit (1, 1, C) per sample so
            # the MLP head never touches a full spatial activation.
            out_ref[...] = jnp.mean(y, axis=0, keepdims=True).reshape(
                1, 1, C).astype(out_ref.dtype)
        else:
            dst = bufs[li % 2]
            # Interior-only store into the padded scratch (halo already zero).
            dst[1:H + 1, 1:W + 1, :] = y.reshape(H, W, C).astype(dst.dtype)
            read = (lambda d: (lambda dy, dx: d[dy:dy + H, dx:dx + W, :]))(dst)
        cin = C


def conv_stack(xp, conv_ws, in_gs, in_bs):
    # xp: (N, H+2, W+2, Cin0) zero-padded NHWC activation (bf16)
    # conv_ws[i]: (3, 3, Cin_i, C) HWIO conv weights (f32; cast+reshaped here)
    N, Hp, Wp, Cin0 = xp.shape
    H, W = Hp - 2, Wp - 2
    C = conv_ws[0].shape[-1]
    num_layers = len(conv_ws)
    n_bufs = min(2, num_layers - 1)

    w_flat = [w.reshape(-1, C).astype(jnp.bfloat16) for w in conv_ws]

    in_specs = [pl.BlockSpec((1, Hp, Wp, Cin0), lambda n: (n, 0, 0, 0))]
    operands = [xp]
    for w, g, b in zip(w_flat, in_gs, in_bs):
        # Constant block index -> weights/affine params stay resident; the DMA
        # is issued once, not per grid step.
        in_specs += [
            pl.BlockSpec(w.shape, lambda n: (0, 0)),
            pl.BlockSpec(g.shape, lambda n: (0, 0)),
            pl.BlockSpec(b.shape, lambda n: (0, 0)),
        ]
        operands += [w, g, b]

    scratch_shapes = [pltpu.VMEM((Hp, Wp, C), jnp.bfloat16)
                      for _ in range(n_bufs)]

    # Rough VMEM working-set estimate; only raise the scoped limit when the
    # default would not cover it (never triggers at the demo shapes).
    est_bytes = (n_bufs * Hp * Wp * C * 2          # ping-pong activations (bf16)
                 + 2 * Hp * Wp * Cin0 * 2          # double-buffered input block
                 + sum(int(w.size) for w in w_flat) * 2 * 2  # resident weights
                 + 8 * H * W * C * 4)              # f32 acc/xc/y temporaries
    ckwargs = dict(dimension_semantics=("parallel",))  # batch across TCs
    if est_bytes > 24 * 1024 * 1024:
        ckwargs["vmem_limit_bytes"] = min(int(est_bytes * 3 // 2),
                                          96 * 1024 * 1024)

    kernel = functools.partial(
        conv_stack_kernel, H=H, W=W, Cin0=Cin0, C=C, num_layers=num_layers,
        k_thresh=_mxu_k_threshold(), many_dots=_is_v7x())

    pooled = pl.pallas_call(
        kernel,
        out_shape=jax.ShapeDtypeStruct((N, 1, C), jnp.float32),
        grid=(N,),
        in_specs=in_specs,
        out_specs=pl.BlockSpec((1, 1, C), lambda n: (n, 0, 0)),
        scratch_shapes=scratch_shapes,
        compiler_params=pltpu.CompilerParams(**ckwargs),
    )(*operands)
    return pooled.reshape(N, C)


# ----------------------------------------------------------------------------
# Kernel 2: 3-layer MLP head on the already-pooled (N, C) features
#           + EMA split into (p_gamma, p_beta)
# ----------------------------------------------------------------------------
def head_kernel(p_ref, w1_ref, b1_ref, w2_ref, b2_ref, w3_ref, b3_ref,
                gamma_ref, beta_ref, *, C):
    pooled = p_ref[...].astype(jnp.float32)  # (N, C); pool fused upstream
    h = jnp.maximum(
        jnp.dot(pooled, w1_ref[...], preferred_element_type=jnp.float32)
        + b1_ref[...], 0.0)
    h = jnp.maximum(
        jnp.dot(h, w2_ref[...], preferred_element_type=jnp.float32)
        + b2_ref[...], 0.0)
    out = jnp.dot(h, w3_ref[...], preferred_element_type=jnp.float32) + b3_ref[...]
    # p_gamma = 0.95 * 0.0 + 0.05 * out[..., :C]; p_beta likewise (fresh module).
    gamma_ref[...] = 0.05 * out[:, :C]
    beta_ref[...] = 0.05 * out[:, C:]


def head(pooled, w1, b1, w2, b2, w3, b3):
    N, C = pooled.shape
    kernel = functools.partial(head_kernel, C=C)
    vmem = pl.BlockSpec(memory_space=pltpu.MemorySpace.VMEM)
    return pl.pallas_call(
        kernel,
        out_shape=(jax.ShapeDtypeStruct((N, C), jnp.float32),
                   jax.ShapeDtypeStruct((N, C), jnp.float32)),
        in_specs=[vmem] * 7,
        out_specs=(vmem, vmem),
    )(pooled, w1, b1, w2, b2, w3, b3)


# ----------------------------------------------------------------------------
# Parameter construction (deterministic, synthetic) and full forward
# ----------------------------------------------------------------------------
def init_params(key, in_channels, out_channels, num_conv):
    params = {}
    conv_ws, in_gs, in_bs = [], [], []
    cin = in_channels
    for _ in range(num_conv + 1):
        key, sub = jax.random.split(key)
        fan_in = 3 * 3 * cin
        w = jax.random.normal(sub, (3, 3, cin, out_channels), jnp.float32)
        w = w * (1.0 / jnp.sqrt(fan_in))
        conv_ws.append(w)
        # PyTorch InstanceNorm2d(affine=True) default init: weight=1, bias=0
        in_gs.append(jnp.ones((1, out_channels), jnp.float32))
        in_bs.append(jnp.zeros((1, out_channels), jnp.float32))
        cin = out_channels
    params["conv_w"], params["in_g"], params["in_b"] = conv_ws, in_gs, in_bs

    def linear(key, fin, fout):
        k1, k2 = jax.random.split(key)
        bound = 1.0 / jnp.sqrt(fin)
        w = jax.random.uniform(k1, (fin, fout), jnp.float32, -bound, bound)
        b = jax.random.uniform(k2, (1, fout), jnp.float32, -bound, bound)
        return w, b

    key, k1, k2, k3 = jax.random.split(key, 4)
    params["w1"], params["b1"] = linear(k1, out_channels, out_channels)
    params["w2"], params["b2"] = linear(k2, out_channels, out_channels)
    params["w3"], params["b3"] = linear(k3, out_channels, 2 * out_channels)
    return params


def style_encoder_forward(x_nchw, params):
    # x_nchw: (N, Cin, H, W) to match the PyTorch interface -> convert to NHWC,
    # zero-pad once; the whole conv stack then runs in a single pallas_call.
    x = jnp.transpose(x_nchw, (0, 2, 3, 1)).astype(jnp.bfloat16)
    xp = jnp.pad(x, ((0, 0), (1, 1), (1, 1), (0, 0)))
    pooled = conv_stack(xp, params["conv_w"], params["in_g"], params["in_b"])
    return head(pooled,
                params["w1"], params["b1"],
                params["w2"], params["b2"],
                params["w3"], params["b3"])


if __name__ == "__main__":
    # Small, module-consistent shapes: batch=2, in_channels=4, spatial=16x16,
    # out_channels=32, num_conv=2 (reference defaults are 3 / 256 / 6).
    IN_CH, OUT_CH, NUM_CONV = 4, 32, 2
    key = jax.random.PRNGKey(0)
    kx, kp = jax.random.split(key)

    x = jax.random.normal(kx, (2, IN_CH, 16, 16), jnp.float32)  # NCHW like PyTorch
    params = init_params(kp, IN_CH, OUT_CH, NUM_CONV)

    p_gamma, p_beta = style_encoder_forward(x, params)
    jax.block_until_ready((p_gamma, p_beta))

    assert p_gamma.shape == (2, OUT_CH) and p_beta.shape == (2, OUT_CH)
    assert bool(jnp.all(jnp.isfinite(p_gamma))) and bool(jnp.all(jnp.isfinite(p_beta)))
    print("KERNEL_OK")
</pallas_src>

<mosaic_0001>
module attributes {stable_mosaic.version = 11 : i64} {
  func.func @conv_stack_kernel(%arg0: i32, %arg1: memref<1x18x18x4xbf16, #tpu.memory_space<vmem>>, %arg2: memref<36x32xbf16, #tpu.memory_space<vmem>>, %arg3: memref<1x32xf32, #tpu.memory_space<vmem>>, %arg4: memref<1x32xf32, #tpu.memory_space<vmem>>, %arg5: memref<288x32xbf16, #tpu.memory_space<vmem>>, %arg6: memref<1x32xf32, #tpu.memory_space<vmem>>, %arg7: memref<1x32xf32, #tpu.memory_space<vmem>>, %arg8: memref<288x32xbf16, #tpu.memory_space<vmem>>, %arg9: memref<1x32xf32, #tpu.memory_space<vmem>>, %arg10: memref<1x32xf32, #tpu.memory_space<vmem>>, %arg11: memref<1x1x32xf32, #tpu.memory_space<vmem>>, %arg12: memref<18x18x32xbf16, #tpu.memory_space<vmem>>, %arg13: memref<18x18x32xbf16, #tpu.memory_space<vmem>>) attributes {dimension_semantics = [#tpu.dimension_semantics<parallel>], iteration_bounds = array<i64: 2>, scalar_prefetch = 0 : i64, scratch_operands = 2 : i64, tpu.core_type = #tpu.core_type<tc>, window_params = [{transform_indices = @transform_0, window_bounds = array<i64: 1, 18, 18, 4>}, {pipeline_mode = #tpu.pipeline_mode<synchronous>, transform_indices = @transform_1, window_bounds = array<i64: 36, 32>}, {pipeline_mode = #tpu.pipeline_mode<synchronous>, transform_indices = @transform_2, window_bounds = array<i64: 1, 32>}, {pipeline_mode = #tpu.pipeline_mode<synchronous>, transform_indices = @transform_3, window_bounds = array<i64: 1, 32>}, {pipeline_mode = #tpu.pipeline_mode<synchronous>, transform_indices = @transform_4, window_bounds = array<i64: 288, 32>}, {pipeline_mode = #tpu.pipeline_mode<synchronous>, transform_indices = @transform_5, window_bounds = array<i64: 1, 32>}, {pipeline_mode = #tpu.pipeline_mode<synchronous>, transform_indices = @transform_6, window_bounds = array<i64: 1, 32>}, {pipeline_mode = #tpu.pipeline_mode<synchronous>, transform_indices = @transform_7, window_bounds = array<i64: 288, 32>}, {pipeline_mode = #tpu.pipeline_mode<synchronous>, transform_indices = @transform_8, window_bounds = array<i64: 1, 32>}, {pipeline_mode = #tpu.pipeline_mode<synchronous>, transform_indices = @transform_9, window_bounds = array<i64: 1, 32>}, {transform_indices = @transform_10, window_bounds = array<i64: 1, 1, 32>}]} {
    %cst = arith.constant 0.000000e+00 : bf16
    %0 = vector.broadcast %cst : bf16 to vector<1x18x32xbf16>
    %c0 = arith.constant 0 : index
    %c0_0 = arith.constant 0 : index
    %c0_1 = arith.constant 0 : index
    %1 = vector.load %arg12[%c0, %c0_0, %c0_1] : memref<18x18x32xbf16, #tpu.memory_space<vmem>>, vector<1x18x32xbf16>
    tpu.vector_store %arg12[%c0, %c0_0, %c0_1], %0 {strides = array<i32>} : memref<18x18x32xbf16, #tpu.memory_space<vmem>>, vector<1x18x32xbf16>,
    %c17 = arith.constant 17 : index
    %c0_2 = arith.constant 0 : index
    %c0_3 = arith.constant 0 : index
    %2 = vector.load %arg12[%c17, %c0_2, %c0_3] : memref<18x18x32xbf16, #tpu.memory_space<vmem>>, vector<1x18x32xbf16>
    tpu.vector_store %arg12[%c17, %c0_2, %c0_3], %0 {strides = array<i32>} : memref<18x18x32xbf16, #tpu.memory_space<vmem>>, vector<1x18x32xbf16>,
    %cst_4 = arith.constant 0.000000e+00 : bf16
    %3 = vector.broadcast %cst_4 : bf16 to vector<18x1x32xbf16>
    %c0_5 = arith.constant 0 : index
    %c0_6 = arith.constant 0 : index
    %c0_7 = arith.constant 0 : index
    %4 = vector.load %arg12[%c0_5, %c0_6, %c0_7] : memref<18x18x32xbf16, #tpu.memory_space<vmem>>, vector<18x1x32xbf16>
    tpu.vector_store %arg12[%c0_5, %c0_6, %c0_7], %3 {strides = array<i32>} : memref<18x18x32xbf16, #tpu.memory_space<vmem>>, vector<18x1x32xbf16>,
    %c0_8 = arith.constant 0 : index
    %c17_9 = arith.constant 17 : index
    %c0_10 = arith.constant 0 : index
    %5 = vector.load %arg12[%c0_8, %c17_9, %c0_10] : memref<18x18x32xbf16, #tpu.memory_space<vmem>>, vector<18x1x32xbf16>
    tpu.vector_store %arg12[%c0_8, %c17_9, %c0_10], %3 {strides = array<i32>} : memref<18x18x32xbf16, #tpu.memory_space<vmem>>, vector<18x1x32xbf16>,
    %cst_11 = arith.constant 0.000000e+00 : bf16
    %6 = vector.broadcast %cst_11 : bf16 to vector<1x18x32xbf16>
    %c0_12 = arith.constant 0 : index
    %c0_13 = arith.constant 0 : index
    %c0_14 = arith.constant 0 : index
    %7 = vector.load %arg13[%c0_12, %c0_13, %c0_14] : memref<18x18x32xbf16, #tpu.memory_space<vmem>>, vector<1x18x32xbf16>
    tpu.vector_store %arg13[%c0_12, %c0_13, %c0_14], %6 {strides = array<i32>} : memref<18x18x32xbf16, #tpu.memory_space<vmem>>, vector<1x18x32xbf16>,
    %c17_15 = arith.constant 17 : index
    %c0_16 = arith.constant 0 : index
    %c0_17 = arith.constant 0 : index
    %8 = vector.load %arg13[%c17_15, %c0_16, %c0_17] : memref<18x18x32xbf16, #tpu.memory_space<vmem>>, vector<1x18x32xbf16>
    tpu.vector_store %arg13[%c17_15, %c0_16, %c0_17], %6 {strides = array<i32>} : memref<18x18x32xbf16, #tpu.memory_space<vmem>>, vector<1x18x32xbf16>,
    %cst_18 = arith.constant 0.000000e+00 : bf16
    %9 = vector.broadcast %cst_18 : bf16 to vector<18x1x32xbf16>
    %c0_19 = arith.constant 0 : index
    %c0_20 = arith.constant 0 : index
    %c0_21 = arith.constant 0 : index
    %10 = vector.load %arg13[%c0_19, %c0_20, %c0_21] : memref<18x18x32xbf16, #tpu.memory_space<vmem>>, vector<18x1x32xbf16>
    tpu.vector_store %arg13[%c0_19, %c0_20, %c0_21], %9 {strides = array<i32>} : memref<18x18x32xbf16, #tpu.memory_space<vmem>>, vector<18x1x32xbf16>,
    %c0_22 = arith.constant 0 : index
    %c17_23 = arith.constant 17 : index
    %c0_24 = arith.constant 0 : index
    %11 = vector.load %arg13[%c0_22, %c17_23, %c0_24] : memref<18x18x32xbf16, #tpu.memory_space<vmem>>, vector<18x1x32xbf16>
    tpu.vector_store %arg13[%c0_22, %c17_23, %c0_24], %9 {strides = array<i32>} : memref<18x18x32xbf16, #tpu.memory_space<vmem>>, vector<18x1x32xbf16>,
    %c0_25 = arith.constant 0 : index
    %c0_26 = arith.constant 0 : index
    %c0_27 = arith.constant 0 : index
    %c0_28 = arith.constant 0 : index
    %12 = vector.load %arg1[%c0_25, %c0_26, %c0_27, %c0_28] : memref<1x18x18x4xbf16, #tpu.memory_space<vmem>>, vector<1x16x16x4xbf16>
    %13 = vector.shape_cast %12 : vector<1x16x16x4xbf16> to vector<16x16x4xbf16>
    %14 = vector.shape_cast %13 : vector<16x16x4xbf16> to vector<256x4xbf16>
    %c0_29 = arith.constant 0 : index
    %c0_30 = arith.constant 0 : index
    %c1 = arith.constant 1 : index
    %c0_31 = arith.constant 0 : index
    %15 = vector.load %arg1[%c0_29, %c0_30, %c1, %c0_31] : memref<1x18x18x4xbf16, #tpu.memory_space<vmem>>, vector<1x16x16x4xbf16>
    %16 = vector.shape_cast %15 : vector<1x16x16x4xbf16> to vector<16x16x4xbf16>
    %17 = vector.shape_cast %16 : vector<16x16x4xbf16> to vector<256x4xbf16>
    %c0_32 = arith.constant 0 : index
    %c0_33 = arith.constant 0 : index
    %c2 = arith.constant 2 : index
    %c0_34 = arith.constant 0 : index
    %18 = vector.load %arg1[%c0_32, %c0_33, %c2, %c0_34] : memref<1x18x18x4xbf16, #tpu.memory_space<vmem>>, vector<1x16x16x4xbf16>
    %19 = vector.shape_cast %18 : vector<1x16x16x4xbf16> to vector<16x16x4xbf16>
    %20 = vector.shape_cast %19 : vector<16x16x4xbf16> to vector<256x4xbf16>
    %c0_35 = arith.constant 0 : index
    %c1_36 = arith.constant 1 : index
    %c0_37 = arith.constant 0 : index
    %c0_38 = arith.constant 0 : index
    %21 = vector.load %arg1[%c0_35, %c1_36, %c0_37, %c0_38] : memref<1x18x18x4xbf16, #tpu.memory_space<vmem>>, vector<1x16x16x4xbf16>
    %22 = vector.shape_cast %21 : vector<1x16x16x4xbf16> to vector<16x16x4xbf16>
    %23 = vector.shape_cast %22 : vector<16x16x4xbf16> to vector<256x4xbf16>
    %c0_39 = arith.constant 0 : index
    %c1_40 = arith.constant 1 : index
    %c1_41 = arith.constant 1 : index
    %c0_42 = arith.constant 0 : index
    %24 = vector.load %arg1[%c0_39, %c1_40, %c1_41, %c0_42] : memref<1x18x18x4xbf16, #tpu.memory_space<vmem>>, vector<1x16x16x4xbf16>
    %25 = vector.shape_cast %24 : vector<1x16x16x4xbf16> to vector<16x16x4xbf16>
    %26 = vector.shape_cast %25 : vector<16x16x4xbf16> to vector<256x4xbf16>
    %c0_43 = arith.constant 0 : index
    %c1_44 = arith.constant 1 : index
    %c2_45 = arith.constant 2 : index
    %c0_46 = arith.constant 0 : index
    %27 = vector.load %arg1[%c0_43, %c1_44, %c2_45, %c0_46] : memref<1x18x18x4xbf16, #tpu.memory_space<vmem>>, vector<1x16x16x4xbf16>
    %28 = vector.shape_cast %27 : vector<1x16x16x4xbf16> to vector<16x16x4xbf16>
    %29 = vector.shape_cast %28 : vector<16x16x4xbf16> to vector<256x4xbf16>
    %c0_47 = arith.constant 0 : index
    %c2_48 = arith.constant 2 : index
    %c0_49 = arith.constant 0 : index
    %c0_50 = arith.constant 0 : index
    %30 = vector.load %arg1[%c0_47, %c2_48, %c0_49, %c0_50] : memref<1x18x18x4xbf16, #tpu.memory_space<vmem>>, vector<1x16x16x4xbf16>
    %31 = vector.shape_cast %30 : vector<1x16x16x4xbf16> to vector<16x16x4xbf16>
    %32 = vector.shape_cast %31 : vector<16x16x4xbf16> to vector<256x4xbf16>
    %c0_51 = arith.constant 0 : index
    %c2_52 = arith.constant 2 : index
    %c1_53 = arith.constant 1 : index
    %c0_54 = arith.constant 0 : index
    %33 = vector.load %arg1[%c0_51, %c2_52, %c1_53, %c0_54] : memref<1x18x18x4xbf16, #tpu.memory_space<vmem>>, vector<1x16x16x4xbf16>
    %34 = vector.shape_cast %33 : vector<1x16x16x4xbf16> to vector<16x16x4xbf16>
    %35 = vector.shape_cast %34 : vector<16x16x4xbf16> to vector<256x4xbf16>
    %c0_55 = arith.constant 0 : index
    %c2_56 = arith.constant 2 : index
    %c2_57 = arith.constant 2 : index
    %c0_58 = arith.constant 0 : index
    %36 = vector.load %arg1[%c0_55, %c2_56, %c2_57, %c0_58] : memref<1x18x18x4xbf16, #tpu.memory_space<vmem>>, vector<1x16x16x4xbf16>
    %37 = vector.shape_cast %36 : vector<1x16x16x4xbf16> to vector<16x16x4xbf16>
    %38 = vector.shape_cast %37 : vector<16x16x4xbf16> to vector<256x4xbf16>
    %39 = tpu.concatenate %14, %17, %20, %23, %26, %29, %32, %35, %38 in 1 : vector<256x4xbf16>, vector<256x4xbf16>, vector<256x4xbf16>, vector<256x4xbf16>, vector<256x4xbf16>, vector<256x4xbf16>, vector<256x4xbf16>, vector<256x4xbf16>, vector<256x4xbf16> -> vector<256x36xbf16>
    %c0_59 = arith.constant 0 : index
    %c0_60 = arith.constant 0 : index
    %40 = vector.load %arg2[%c0_59, %c0_60] : memref<36x32xbf16, #tpu.memory_space<vmem>>, vector<36x32xbf16>
    %cst_61 = arith.constant dense<0.000000e+00> : vector<256x32xf32>
    %41 = tpu.matmul %39, %40, %cst_61 {dimension_numbers = #tpu.dot_dimension_numbers<[1], [0], [0], [1], [0, 0, 1, 1], [], []>} : vector<256x36xbf16>, vector<36x32xbf16>, vector<256x32xf32> -> vector<256x32xf32>
    %cst_62 = arith.constant dense<0.000000e+00> : vector<32xf32>
    %42 = vector.multi_reduction <add>, %41, %cst_62 [0] : vector<256x32xf32> to vector<32xf32>
    %43 = vector.shape_cast %42 : vector<32xf32> to vector<1x32xf32>
    %cst_63 = arith.constant 2.560000e+02 : f32
    %44 = vector.broadcast %cst_63 : f32 to vector<1x32xf32>
    %45 = arith.divf %43, %44 : vector<1x32xf32>
    %46 = vector.broadcast %45 : vector<1x32xf32> to vector<256x32xf32>
    %47 = arith.subf %41, %46 : vector<256x32xf32>
    %48 = arith.mulf %47, %47 : vector<256x32xf32>
    %cst_64 = arith.constant dense<0.000000e+00> : vector<32xf32>
    %49 = vector.multi_reduction <add>, %48, %cst_64 [0] : vector<256x32xf32> to vector<32xf32>
    %50 = vector.shape_cast %49 : vector<32xf32> to vector<1x32xf32>
    %cst_65 = arith.constant 2.560000e+02 : f32
    %51 = vector.broadcast %cst_65 : f32 to vector<1x32xf32>
    %52 = arith.divf %50, %51 : vector<1x32xf32>
    %cst_66 = arith.constant 0.000000e+00 : f32
    %53 = vector.broadcast %cst_66 : f32 to vector<1x32xf32>
    %54 = arith.maximumf %52, %53 : vector<1x32xf32>
    %cst_67 = arith.constant 9.99999974E-6 : f32
    %55 = vector.broadcast %cst_67 : f32 to vector<1x32xf32>
    %56 = arith.addf %54, %55 : vector<1x32xf32>
    %57 = math.rsqrt %56 : vector<1x32xf32>
    %58 = vector.broadcast %57 : vector<1x32xf32> to vector<256x32xf32>
    %59 = arith.mulf %47, %58 : vector<256x32xf32>
    %c0_68 = arith.constant 0 : index
    %c0_69 = arith.constant 0 : index
    %60 = vector.load %arg3[%c0_68, %c0_69] : memref<1x32xf32, #tpu.memory_space<vmem>>, vector<1x32xf32>
    %61 = vector.broadcast %60 : vector<1x32xf32> to vector<256x32xf32>
    %62 = arith.mulf %59, %61 : vector<256x32xf32>
    %c0_70 = arith.constant 0 : index
    %c0_71 = arith.constant 0 : index
    %63 = vector.load %arg4[%c0_70, %c0_71] : memref<1x32xf32, #tpu.memory_space<vmem>>, vector<1x32xf32>
    %64 = vector.broadcast %63 : vector<1x32xf32> to vector<256x32xf32>
    %65 = arith.addf %62, %64 : vector<256x32xf32>
    %cst_72 = arith.constant 0.000000e+00 : f32
    %66 = vector.broadcast %cst_72 : f32 to vector<256x32xf32>
    %67 = arith.maximumf %65, %66 : vector<256x32xf32>
    %68 = vector.shape_cast %67 : vector<256x32xf32> to vector<16x16x32xf32>
    %69 = arith.truncf %68 : vector<16x16x32xf32> to vector<16x16x32xbf16>
    %c1_73 = arith.constant 1 : index
    %c1_74 = arith.constant 1 : index
    %c0_75 = arith.constant 0 : index
    %70 = vector.load %arg12[%c1_73, %c1_74, %c0_75] : memref<18x18x32xbf16, #tpu.memory_space<vmem>>, vector<16x16x32xbf16>
    tpu.vector_store %arg12[%c1_73, %c1_74, %c0_75], %69 {strides = array<i32>} : memref<18x18x32xbf16, #tpu.memory_space<vmem>>, vector<16x16x32xbf16>,
    %c0_76 = arith.constant 0 : index
    %c0_77 = arith.constant 0 : index
    %c0_78 = arith.constant 0 : index
    %71 = vector.load %arg12[%c0_76, %c0_77, %c0_78] : memref<18x18x32xbf16, #tpu.memory_space<vmem>>, vector<16x16x32xbf16>
    %72 = vector.shape_cast %71 : vector<16x16x32xbf16> to vector<256x32xbf16>
    %c0_79 = arith.constant 0 : index
    %c1_80 = arith.constant 1 : index
    %c0_81 = arith.constant 0 : index
    %73 = vector.load %arg12[%c0_79, %c1_80, %c0_81] : memref<18x18x32xbf16, #tpu.memory_space<vmem>>, vector<16x16x32xbf16>
    %74 = vector.shape_cast %73 : vector<16x16x32xbf16> to vector<256x32xbf16>
    %c0_82 = arith.constant 0 : index
    %c2_83 = arith.constant 2 : index
    %c0_84 = arith.constant 0 : index
    %75 = vector.load %arg12[%c0_82, %c2_83, %c0_84] : memref<18x18x32xbf16, #tpu.memory_space<vmem>>, vector<16x16x32xbf16>
    %76 = vector.shape_cast %75 : vector<16x16x32xbf16> to vector<256x32xbf16>
    %c1_85 = arith.constant 1 : index
    %c0_86 = arith.constant 0 : index
    %c0_87 = arith.constant 0 : index
    %77 = vector.load %arg12[%c1_85, %c0_86, %c0_87] : memref<18x18x32xbf16, #tpu.memory_space<vmem>>, vector<16x16x32xbf16>
    %78 = vector.shape_cast %77 : vector<16x16x32xbf16> to vector<256x32xbf16>
    %c1_88 = arith.constant 1 : index
    %c1_89 = arith.constant 1 : index
    %c0_90 = arith.constant 0 : index
    %79 = vector.load %arg12[%c1_88, %c1_89, %c0_90] : memref<18x18x32xbf16, #tpu.memory_space<vmem>>, vector<16x16x32xbf16>
    %80 = vector.shape_cast %79 : vector<16x16x32xbf16> to vector<256x32xbf16>
    %c1_91 = arith.constant 1 : index
    %c2_92 = arith.constant 2 : index
    %c0_93 = arith.constant 0 : index
    %81 = vector.load %arg12[%c1_91, %c2_92, %c0_93] : memref<18x18x32xbf16, #tpu.memory_space<vmem>>, vector<16x16x32xbf16>
    %82 = vector.shape_cast %81 : vector<16x16x32xbf16> to vector<256x32xbf16>
    %c2_94 = arith.constant 2 : index
    %c0_95 = arith.constant 0 : index
    %c0_96 = arith.constant 0 : index
    %83 = vector.load %arg12[%c2_94, %c0_95, %c0_96] : memref<18x18x32xbf16, #tpu.memory_space<vmem>>, vector<16x16x32xbf16>
    %84 = vector.shape_cast %83 : vector<16x16x32xbf16> to vector<256x32xbf16>
    %c2_97 = arith.constant 2 : index
    %c1_98 = arith.constant 1 : index
    %c0_99 = arith.constant 0 : index
    %85 = vector.load %arg12[%c2_97, %c1_98, %c0_99] : memref<18x18x32xbf16, #tpu.memory_space<vmem>>, vector<16x16x32xbf16>
    %86 = vector.shape_cast %85 : vector<16x16x32xbf16> to vector<256x32xbf16>
    %c2_100 = arith.constant 2 : index
    %c2_101 = arith.constant 2 : index
    %c0_102 = arith.constant 0 : index
    %87 = vector.load %arg12[%c2_100, %c2_101, %c0_102] : memref<18x18x32xbf16, #tpu.memory_space<vmem>>, vector<16x16x32xbf16>
    %88 = vector.shape_cast %87 : vector<16x16x32xbf16> to vector<256x32xbf16>
    %89 = tpu.concatenate %72, %74, %76, %78, %80, %82, %84, %86, %88 in 1 : vector<256x32xbf16>, vector<256x32xbf16>, vector<256x32xbf16>, vector<256x32xbf16>, vector<256x32xbf16>, vector<256x32xbf16>, vector<256x32xbf16>, vector<256x32xbf16>, vector<256x32xbf16> -> vector<256x288xbf16>
    %c0_103 = arith.constant 0 : index
    %c0_104 = arith.constant 0 : index
    %90 = vector.load %arg5[%c0_103, %c0_104] : memref<288x32xbf16, #tpu.memory_space<vmem>>, vector<288x32xbf16>
    %cst_105 = arith.constant dense<0.000000e+00> : vector<256x32xf32>
    %91 = tpu.matmul %89, %90, %cst_105 {dimension_numbers = #tpu.dot_dimension_numbers<[1], [0], [0], [1], [0, 0, 1, 1], [], []>} : vector<256x288xbf16>, vector<288x32xbf16>, vector<256x32xf32> -> vector<256x32xf32>
    %cst_106 = arith.constant dense<0.000000e+00> : vector<32xf32>
    %92 = vector.multi_reduction <add>, %91, %cst_106 [0] : vector<256x32xf32> to vector<32xf32>
    %93 = vector.shape_cast %92 : vector<32xf32> to vector<1x32xf32>
    %cst_107 = arith.constant 2.560000e+02 : f32
    %94 = vector.broadcast %cst_107 : f32 to vector<1x32xf32>
    %95 = arith.divf %93, %94 : vector<1x32xf32>
    %96 = vector.broadcast %95 : vector<1x32xf32> to vector<256x32xf32>
    %97 = arith.subf %91, %96 : vector<256x32xf32>
    %98 = arith.mulf %97, %97 : vector<256x32xf32>
    %cst_108 = arith.constant dense<0.000000e+00> : vector<32xf32>
    %99 = vector.multi_reduction <add>, %98, %cst_108 [0] : vector<256x32xf32> to vector<32xf32>
    %100 = vector.shape_cast %99 : vector<32xf32> to vector<1x32xf32>
    %cst_109 = arith.constant 2.560000e+02 : f32
    %101 = vector.broadcast %cst_109 : f32 to vector<1x32xf32>
    %102 = arith.divf %100, %101 : vector<1x32xf32>
    %cst_110 = arith.constant 0.000000e+00 : f32
    %103 = vector.broadcast %cst_110 : f32 to vector<1x32xf32>
    %104 = arith.maximumf %102, %103 : vector<1x32xf32>
    %cst_111 = arith.constant 9.99999974E-6 : f32
    %105 = vector.broadcast %cst_111 : f32 to vector<1x32xf32>
    %106 = arith.addf %104, %105 : vector<1x32xf32>
    %107 = math.rsqrt %106 : vector<1x32xf32>
    %108 = vector.broadcast %107 : vector<1x32xf32> to vector<256x32xf32>
    %109 = arith.mulf %97, %108 : vector<256x32xf32>
    %c0_112 = arith.constant 0 : index
    %c0_113 = arith.constant 0 : index
    %110 = vector.load %arg6[%c0_112, %c0_113] : memref<1x32xf32, #tpu.memory_space<vmem>>, vector<1x32xf32>
    %111 = vector.broadcast %110 : vector<1x32xf32> to vector<256x32xf32>
    %112 = arith.mulf %109, %111 : vector<256x32xf32>
    %c0_114 = arith.constant 0 : index
    %c0_115 = arith.constant 0 : index
    %113 = vector.load %arg7[%c0_114, %c0_115] : memref<1x32xf32, #tpu.memory_space<vmem>>, vector<1x32xf32>
    %114 = vector.broadcast %113 : vector<1x32xf32> to vector<256x32xf32>
    %115 = arith.addf %112, %114 : vector<256x32xf32>
    %cst_116 = arith.constant 0.000000e+00 : f32
    %116 = vector.broadcast %cst_116 : f32 to vector<256x32xf32>
    %117 = arith.maximumf %115, %116 : vector<256x32xf32>
    %118 = vector.shape_cast %117 : vector<256x32xf32> to vector<16x16x32xf32>
    %119 = arith.truncf %118 : vector<16x16x32xf32> to vector<16x16x32xbf16>
    %c1_117 = arith.constant 1 : index
    %c1_118 = arith.constant 1 : index
    %c0_119 = arith.constant 0 : index
    %120 = vector.load %arg13[%c1_117, %c1_118, %c0_119] : memref<18x18x32xbf16, #tpu.memory_space<vmem>>, vector<16x16x32xbf16>
    tpu.vector_store %arg13[%c1_117, %c1_118, %c0_119], %119 {strides = array<i32>} : memref<18x18x32xbf16, #tpu.memory_space<vmem>>, vector<16x16x32xbf16>,
    %c0_120 = arith.constant 0 : index
    %c0_121 = arith.constant 0 : index
    %c0_122 = arith.constant 0 : index
    %121 = vector.load %arg13[%c0_120, %c0_121, %c0_122] : memref<18x18x32xbf16, #tpu.memory_space<vmem>>, vector<16x16x32xbf16>
    %122 = vector.shape_cast %121 : vector<16x16x32xbf16> to vector<256x32xbf16>
    %c0_123 = arith.constant 0 : index
    %c1_124 = arith.constant 1 : index
    %c0_125 = arith.constant 0 : index
    %123 = vector.load %arg13[%c0_123, %c1_124, %c0_125] : memref<18x18x32xbf16, #tpu.memory_space<vmem>>, vector<16x16x32xbf16>
    %124 = vector.shape_cast %123 : vector<16x16x32xbf16> to vector<256x32xbf16>
    %c0_126 = arith.constant 0 : index
    %c2_127 = arith.constant 2 : index
    %c0_128 = arith.constant 0 : index
    %125 = vector.load %arg13[%c0_126, %c2_127, %c0_128] : memref<18x18x32xbf16, #tpu.memory_space<vmem>>, vector<16x16x32xbf16>
    %126 = vector.shape_cast %125 : vector<16x16x32xbf16> to vector<256x32xbf16>
    %c1_129 = arith.constant 1 : index
    %c0_130 = arith.constant 0 : index
    %c0_131 = arith.constant 0 : index
    %127 = vector.load %arg13[%c1_129, %c0_130, %c0_131] : memref<18x18x32xbf16, #tpu.memory_space<vmem>>, vector<16x16x32xbf16>
    %128 = vector.shape_cast %127 : vector<16x16x32xbf16> to vector<256x32xbf16>
    %c1_132 = arith.constant 1 : index
    %c1_133 = arith.constant 1 : index
    %c0_134 = arith.constant 0 : index
    %129 = vector.load %arg13[%c1_132, %c1_133, %c0_134] : memref<18x18x32xbf16, #tpu.memory_space<vmem>>, vector<16x16x32xbf16>
    %130 = vector.shape_cast %129 : vector<16x16x32xbf16> to vector<256x32xbf16>
    %c1_135 = arith.constant 1 : index
    %c2_136 = arith.constant 2 : index
    %c0_137 = arith.constant 0 : index
    %131 = vector.load %arg13[%c1_135, %c2_136, %c0_137] : memref<18x18x32xbf16, #tpu.memory_space<vmem>>, vector<16x16x32xbf16>
    %132 = vector.shape_cast %131 : vector<16x16x32xbf16> to vector<256x32xbf16>
    %c2_138 = arith.constant 2 : index
    %c0_139 = arith.constant 0 : index
    %c0_140 = arith.constant 0 : index
    %133 = vector.load %arg13[%c2_138, %c0_139, %c0_140] : memref<18x18x32xbf16, #tpu.memory_space<vmem>>, vector<16x16x32xbf16>
    %134 = vector.shape_cast %133 : vector<16x16x32xbf16> to vector<256x32xbf16>
    %c2_141 = arith.constant 2 : index
    %c1_142 = arith.constant 1 : index
    %c0_143 = arith.constant 0 : index
    %135 = vector.load %arg13[%c2_141, %c1_142, %c0_143] : memref<18x18x32xbf16, #tpu.memory_space<vmem>>, vector<16x16x32xbf16>
    %136 = vector.shape_cast %135 : vector<16x16x32xbf16> to vector<256x32xbf16>
    %c2_144 = arith.constant 2 : index
    %c2_145 = arith.constant 2 : index
    %c0_146 = arith.constant 0 : index
    %137 = vector.load %arg13[%c2_144, %c2_145, %c0_146] : memref<18x18x32xbf16, #tpu.memory_space<vmem>>, vector<16x16x32xbf16>
    %138 = vector.shape_cast %137 : vector<16x16x32xbf16> to vector<256x32xbf16>
    %139 = tpu.concatenate %122, %124, %126, %128, %130, %132, %134, %136, %138 in 1 : vector<256x32xbf16>, vector<256x32xbf16>, vector<256x32xbf16>, vector<256x32xbf16>, vector<256x32xbf16>, vector<256x32xbf16>, vector<256x32xbf16>, vector<256x32xbf16>, vector<256x32xbf16> -> vector<256x288xbf16>
    %c0_147 = arith.constant 0 : index
    %c0_148 = arith.constant 0 : index
    %140 = vector.load %arg8[%c0_147, %c0_148] : memref<288x32xbf16, #tpu.memory_space<vmem>>, vector<288x32xbf16>
    %cst_149 = arith.constant dense<0.000000e+00> : vector<256x32xf32>
    %141 = tpu.matmul %139, %140, %cst_149 {dimension_numbers = #tpu.dot_dimension_numbers<[1], [0], [0], [1], [0, 0, 1, 1], [], []>} : vector<256x288xbf16>, vector<288x32xbf16>, vector<256x32xf32> -> vector<256x32xf32>
    %cst_150 = arith.constant dense<0.000000e+00> : vector<32xf32>
    %142 = vector.multi_reduction <add>, %141, %cst_150 [0] : vector<256x32xf32> to vector<32xf32>
    %143 = vector.shape_cast %142 : vector<32xf32> to vector<1x32xf32>
    %cst_151 = arith.constant 2.560000e+02 : f32
    %144 = vector.broadcast %cst_151 : f32 to vector<1x32xf32>
    %145 = arith.divf %143, %144 : vector<1x32xf32>
    %146 = vector.broadcast %145 : vector<1x32xf32> to vector<256x32xf32>
    %147 = arith.subf %141, %146 : vector<256x32xf32>
    %148 = arith.mulf %147, %147 : vector<256x32xf32>
    %cst_152 = arith.constant dense<0.000000e+00> : vector<32xf32>
    %149 = vector.multi_reduction <add>, %148, %cst_152 [0] : vector<256x32xf32> to vector<32xf32>
    %150 = vector.shape_cast %149 : vector<32xf32> to vector<1x32xf32>
    %cst_153 = arith.constant 2.560000e+02 : f32
    %151 = vector.broadcast %cst_153 : f32 to vector<1x32xf32>
    %152 = arith.divf %150, %151 : vector<1x32xf32>
    %cst_154 = arith.constant 0.000000e+00 : f32
    %153 = vector.broadcast %cst_154 : f32 to vector<1x32xf32>
    %154 = arith.maximumf %152, %153 : vector<1x32xf32>
    %cst_155 = arith.constant 9.99999974E-6 : f32
    %155 = vector.broadcast %cst_155 : f32 to vector<1x32xf32>
    %156 = arith.addf %154, %155 : vector<1x32xf32>
    %157 = math.rsqrt %156 : vector<1x32xf32>
    %158 = vector.broadcast %157 : vector<1x32xf32> to vector<256x32xf32>
    %159 = arith.mulf %147, %158 : vector<256x32xf32>
    %c0_156 = arith.constant 0 : index
    %c0_157 = arith.constant 0 : index
    %160 = vector.load %arg9[%c0_156, %c0_157] : memref<1x32xf32, #tpu.memory_space<vmem>>, vector<1x32xf32>
    %161 = vector.broadcast %160 : vector<1x32xf32> to vector<256x32xf32>
    %162 = arith.mulf %159, %161 : vector<256x32xf32>
    %c0_158 = arith.constant 0 : index
    %c0_159 = arith.constant 0 : index
    %163 = vector.load %arg10[%c0_158, %c0_159] : memref<1x32xf32, #tpu.memory_space<vmem>>, vector<1x32xf32>
    %164 = vector.broadcast %163 : vector<1x32xf32> to vector<256x32xf32>
    %165 = arith.addf %162, %164 : vector<256x32xf32>
    %cst_160 = arith.constant 0.000000e+00 : f32
    %166 = vector.broadcast %cst_160 : f32 to vector<256x32xf32>
    %167 = arith.maximumf %165, %166 : vector<256x32xf32>
    %cst_161 = arith.constant dense<0.000000e+00> : vector<32xf32>
    %168 = vector.multi_reduction <add>, %167, %cst_161 [0] : vector<256x32xf32> to vector<32xf32>
    %169 = vector.shape_cast %168 : vector<32xf32> to vector<1x32xf32>
    %cst_162 = arith.constant 2.560000e+02 : f32
    %170 = vector.broadcast %cst_162 : f32 to vector<1x32xf32>
    %171 = arith.divf %169, %170 : vector<1x32xf32>
    %172 = vector.shape_cast %171 : vector<1x32xf32> to vector<1x1x32xf32>
    %c0_163 = arith.constant 0 : index
    %c0_164 = arith.constant 0 : index
    %c0_165 = arith.constant 0 : index
    %173 = vector.load %arg11[%c0_163, %c0_164, %c0_165] : memref<1x1x32xf32, #tpu.memory_space<vmem>>, vector<1x1x32xf32>
    tpu.vector_store %arg11[%c0_163, %c0_164, %c0_165], %172 {strides = array<i32>} : memref<1x1x32xf32, #tpu.memory_space<vmem>>, vector<1x1x32xf32>,
    return
  }
  func.func @transform_0(%arg0: i32) -> (i32, i32, i32, i32) {
    %c0_i32 = arith.constant 0 : i32
    %c0_i32_0 = arith.constant 0 : i32
    %c0_i32_1 = arith.constant 0 : i32
    %c0_i32_2 = arith.constant 0 : i32
    return %arg0, %c0_i32, %c0_i32_0, %c0_i32_1 : i32, i32, i32, i32
  }
  func.func @transform_1(%arg0: i32) -> (i32, i32) {
    %c0_i32 = arith.constant 0 : i32
    %c0_i32_0 = arith.constant 0 : i32
    %c0_i32_1 = arith.constant 0 : i32
    return %c0_i32, %c0_i32_0 : i32, i32
  }
  func.func @transform_2(%arg0: i32) -> (i32, i32) {
    %c0_i32 = arith.constant 0 : i32
    %c0_i32_0 = arith.constant 0 : i32
    %c0_i32_1 = arith.constant 0 : i32
    return %c0_i32, %c0_i32_0 : i32, i32
  }
  func.func @transform_3(%arg0: i32) -> (i32, i32) {
    %c0_i32 = arith.constant 0 : i32
    %c0_i32_0 = arith.constant 0 : i32
    %c0_i32_1 = arith.constant 0 : i32
    return %c0_i32, %c0_i32_0 : i32, i32
  }
  func.func @transform_4(%arg0: i32) -> (i32, i32) {
    %c0_i32 = arith.constant 0 : i32
    %c0_i32_0 = arith.constant 0 : i32
    %c0_i32_1 = arith.constant 0 : i32
    return %c0_i32, %c0_i32_0 : i32, i32
  }
  func.func @transform_5(%arg0: i32) -> (i32, i32) {
    %c0_i32 = arith.constant 0 : i32
    %c0_i32_0 = arith.constant 0 : i32
    %c0_i32_1 = arith.constant 0 : i32
    return %c0_i32, %c0_i32_0 : i32, i32
  }
  func.func @transform_6(%arg0: i32) -> (i32, i32) {
    %c0_i32 = arith.constant 0 : i32
    %c0_i32_0 = arith.constant 0 : i32
    %c0_i32_1 = arith.constant 0 : i32
    return %c0_i32, %c0_i32_0 : i32, i32
  }
  func.func @transform_7(%arg0: i32) -> (i32, i32) {
    %c0_i32 = arith.constant 0 : i32
    %c0_i32_0 = arith.constant 0 : i32
    %c0_i32_1 = arith.constant 0 : i32
    return %c0_i32, %c0_i32_0 : i32, i32
  }
  func.func @transform_8(%arg0: i32) -> (i32, i32) {
    %c0_i32 = arith.constant 0 : i32
    %c0_i32_0 = arith.constant 0 : i32
    %c0_i32_1 = arith.constant 0 : i32
    return %c0_i32, %c0_i32_0 : i32, i32
  }
  func.func @transform_9(%arg0: i32) -> (i32, i32) {
    %c0_i32 = arith.constant 0 : i32
    %c0_i32_0 = arith.constant 0 : i32
    %c0_i32_1 = arith.constant 0 : i32
    return %c0_i32, %c0_i32_0 : i32, i32
  }
  func.func @transform_10(%arg0: i32) -> (i32, i32, i32) {
    %c0_i32 = arith.constant 0 : i32
    %c0_i32_0 = arith.constant 0 : i32
    %c0_i32_1 = arith.constant 0 : i32
    return %arg0, %c0_i32, %c0_i32_0 : i32, i32, i32
  }
}

</mosaic_0001>

<llo_original>
// kernel: tpu_custom_call.1
$region0: #{tpu_custom_call.1}
  #allocation0 [shape = 'u32[]', space=smem, size = 0x4, offset = 0x4, fixed_abs, tag = 'smem constant byte address 0x4 - core index']
  #allocation1 [shape = 'u32[144,128]{1,0:T(1,128)}', space=vmem, size = 0x12000, scoped, tag = 'internal scratch']
  #allocation2 [shape = 'bf16[18,18,32]{2,1,0:T(8,128)(2,1)}', space=vmem, size = 0x1b000, scoped, tag = 'scratch operand']
  #allocation3 [shape = 'bf16[18,18,32]{2,1,0:T(8,128)(2,1)}', space=vmem, size = 0x1b000, scoped, tag = 'scratch operand']
  %s0 = inlined_call_operand.vmem [shape: bf16[2,18,18,4], index: 0, kind: input, shape index: {}]
  %s1 = inlined_call_operand.vmem [shape: bf16[36,32], index: 1, kind: input, shape index: {}]
  %s2 = inlined_call_operand.vmem [shape: f32[1,32], index: 2, kind: input, shape index: {}]
  %s3 = inlined_call_operand.vmem [shape: f32[1,32], index: 3, kind: input, shape index: {}]
  %s4 = inlined_call_operand.vmem [shape: bf16[288,32], index: 4, kind: input, shape index: {}]
  %s5 = inlined_call_operand.vmem [shape: f32[1,32], index: 5, kind: input, shape index: {}]
  %s6 = inlined_call_operand.vmem [shape: f32[1,32], index: 6, kind: input, shape index: {}]
  %s7 = inlined_call_operand.vmem [shape: bf16[288,32], index: 7, kind: input, shape index: {}]
  %s8 = inlined_call_operand.vmem [shape: f32[1,32], index: 8, kind: input, shape index: {}]
  %s9 = inlined_call_operand.vmem [shape: f32[1,32], index: 9, kind: input, shape index: {}]
  %s10 = inlined_call_operand.hbm [shape: f32[2,1,32], index: 10, kind: output, shape index: {}]
  %s11 = sld [smem:[#allocation0]]
  $region73: #{tpu_custom_call.1} parent=0
    _
  %s13 = ssub.s32 1, %s11
  %s14 = scalar_select 0, %s13, %s11
  $region1: #{tpu_custom_call.1} parent=0
    #allocation4 [shape = 'u8[1024]{0}', space=vmem, size = 0x400, scoped, tag = 'output window, operand 0']
    #allocation5 [shape = 's32[2]{0}', space=sflag, size = 0x8, scoped, tag = 'scoped memory for tpu_custom_call.1']
    %15 = vsyncpa [#allocation5], 0
    %s16 = scalar_lea.sflag [#allocation5], 1
    %17 = vsyncpa %s16, 0
    loop: start=0, step=1, limit=4
    $region2: #{tpu_custom_call.1} parent=1 // loop_pre_header
      _
    $region3: #{tpu_custom_call.1} parent=1 // loop_header
      %s19 = sphi 0, %s23
      %p20 = scmp.ge.s32.totalorder %s19, 4
      %s29 = sphi 0, %s31
      %s32 = sphi 0, %s29
      %s33 = sphi 0, %s32
      %s49 = sphi 0, %s33
      %s53 = sphi 0, %s53
      %s55 = sphi 0, %s53
      %s56 = sphi 0, %s55
      %s70 = sphi 0, %s56
      %s74 = sphi 0, %s74
      %s76 = sphi 0, %s74
      %s77 = sphi 0, %s76
      %s91 = sphi 0, %s77
      %s95 = sphi 0, %s95
      %s97 = sphi 0, %s95
      %s98 = sphi 0, %s97
      %s112 = sphi 0, %s98
      %s116 = sphi 0, %s116
      %s118 = sphi 0, %s116
      %s119 = sphi 0, %s118
      %s133 = sphi 0, %s119
      %s137 = sphi 0, %s137
      %s139 = sphi 0, %s137
      %s140 = sphi 0, %s139
      %s154 = sphi 0, %s140
      %s158 = sphi 0, %s158
      %s160 = sphi 0, %s158
      %s161 = sphi 0, %s160
      %s175 = sphi 0, %s161
      %s179 = sphi 0, %s179
      %s181 = sphi 0, %s179
      %s182 = sphi 0, %s181
      %s196 = sphi 0, %s182
      %s200 = sphi 0, %s200
      %s202 = sphi 0, %s200
      %s203 = sphi 0, %s202
      %s217 = sphi 0, %s203
      %s221 = sphi 0, %s221
      %s223 = sphi 0, %s221
      %s224 = sphi 0, %s223
      %s238 = sphi 0, %s224
      %s244 = sphi 0, %s246
      %s247 = sphi 0, %s244
      %s248 = sphi 0, %s247
      %s264 = sphi 0, %s248
    $region4: #{tpu_custom_call.1} parent=1 // loop_header_branch
      %22 = sbr.rel (%p20) target = $region8
    $region5: #{tpu_custom_call.1} parent=1 // loop_body
      %s24 = ssub.s32 %s19, 1
      %s25 = ssub.s32 %s19, 2
      %s26 = sadd.s32 %s19, 1
      %s27 = ssub.s32 %s19, %s26
      %p28 = scmp.eq.s32.totalorder %s27, 0
      %s30 = sadd.s32 %s29, 1
      %s31 = scalar_select %p28, %s29, %s30
      %p34 = pneg %p28
      %p35 = scmp.eq.s32.totalorder %s19, 1
      %p36 = por %p34, %p35
      %p37 = scmp.ne.s32.totalorder %s29, %s32
      %p38 = scmp.eq.s32.totalorder %s19, 0
      %p39 = por %p37, %p38
      %p40 = scmp.ne.s32.totalorder %s29, %s32
      %p41 = scmp.eq.s32.totalorder %s24, 1
      %p42 = por %p40, %p41
      %p43 = scmp.ne.s32.totalorder %s32, %s33
      %p44 = scmp.eq.s32.totalorder %s24, 0
      %p45 = por %p43, %p44
      %p46 = scmp.ne.s32.totalorder %s32, %s33
      %p47 = scmp.eq.s32.totalorder %s25, 1
      %p48 = por %p46, %p47
      %p50 = scmp.ne.s32.totalorder %s33, %s49
      %p51 = scmp.eq.s32.totalorder %s25, 0
      %p52 = por %p50, %p51
      %s54 = sadd.s32 %s53, 1
      %p57 = scmp.eq.s32.totalorder %s19, 1
      %p58 = scmp.ne.s32.totalorder %s53, %s55
      %p59 = scmp.eq.s32.totalorder %s19, 0
      %p60 = por %p58, %p59
      %p61 = scmp.ne.s32.totalorder %s53, %s55
      %p62 = scmp.eq.s32.totalorder %s24, 1
      %p63 = por %p61, %p62
      %p64 = scmp.ne.s32.totalorder %s55, %s56
      %p65 = scmp.eq.s32.totalorder %s24, 0
      %p66 = por %p64, %p65
      %p67 = scmp.ne.s32.totalorder %s55, %s56
      %p68 = scmp.eq.s32.totalorder %s25, 1
      %p69 = por %p67, %p68
      %p71 = scmp.ne.s32.totalorder %s56, %s70
      %p72 = scmp.eq.s32.totalorder %s25, 0
      %p73 = por %p71, %p72
      %s75 = sadd.s32 %s74, 1
      %p78 = scmp.eq.s32.totalorder %s19, 1
      %p79 = scmp.ne.s32.totalorder %s74, %s76
      %p80 = scmp.eq.s32.totalorder %s19, 0
      %p81 = por %p79, %p80
      %p82 = scmp.ne.s32.totalorder %s74, %s76
      %p83 = scmp.eq.s32.totalorder %s24, 1
      %p84 = por %p82, %p83
      %p85 = scmp.ne.s32.totalorder %s76, %s77
      %p86 = scmp.eq.s32.totalorder %s24, 0
      %p87 = por %p85, %p86
      %p88 = scmp.ne.s32.totalorder %s76, %s77
      %p89 = scmp.eq.s32.totalorder %s25, 1
      %p90 = por %p88, %p89
      %p92 = scmp.ne.s32.totalorder %s77, %s91
      %p93 = scmp.eq.s32.totalorder %s25, 0
      %p94 = por %p92, %p93
      %s96 = sadd.s32 %s95, 1
      %p99 = scmp.eq.s32.totalorder %s19, 1
      %p100 = scmp.ne.s32.totalorder %s95, %s97
      %p101 = scmp.eq.s32.totalorder %s19, 0
      %p102 = por %p100, %p101
      %p103 = scmp.ne.s32.totalorder %s95, %s97
      %p104 = scmp.eq.s32.totalorder %s24, 1
      %p105 = por %p103, %p104
      %p106 = scmp.ne.s32.totalorder %s97, %s98
      %p107 = scmp.eq.s32.totalorder %s24, 0
      %p108 = por %p106, %p107
      %p109 = scmp.ne.s32.totalorder %s97, %s98
      %p110 = scmp.eq.s32.totalorder %s25, 1
      %p111 = por %p109, %p110
      %p113 = scmp.ne.s32.totalorder %s98, %s112
      %p114 = scmp.eq.s32.totalorder %s25, 0
      %p115 = por %p113, %p114
      %s117 = sadd.s32 %s116, 1
      %p120 = scmp.eq.s32.totalorder %s19, 1
      %p121 = scmp.ne.s32.totalorder %s116, %s118
      %p122 = scmp.eq.s32.totalorder %s19, 0
      %p123 = por %p121, %p122
      %p124 = scmp.ne.s32.totalorder %s116, %s118
      %p125 = scmp.eq.s32.totalorder %s24, 1
      %p126 = por %p124, %p125
      %p127 = scmp.ne.s32.totalorder %s118, %s119
      %p128 = scmp.eq.s32.totalorder %s24, 0
      %p129 = por %p127, %p128
      %p130 = scmp.ne.s32.totalorder %s118, %s119
      %p131 = scmp.eq.s32.totalorder %s25, 1
      %p132 = por %p130, %p131
      %p134 = scmp.ne.s32.totalorder %s119, %s133
      %p135 = scmp.eq.s32.totalorder %s25, 0
      %p136 = por %p134, %p135
      %s138 = sadd.s32 %s137, 1
      %p141 = scmp.eq.s32.totalorder %s19, 1
      %p142 = scmp.ne.s32.totalorder %s137, %s139
      %p143 = scmp.eq.s32.totalorder %s19, 0
      %p144 = por %p142, %p143
      %p145 = scmp.ne.s32.totalorder %s137, %s139
      %p146 = scmp.eq.s32.totalorder %s24, 1
      %p147 = por %p145, %p146
      %p148 = scmp.ne.s32.totalorder %s139, %s140
      %p149 = scmp.eq.s32.totalorder %s24, 0
      %p150 = por %p148, %p149
      %p151 = scmp.ne.s32.totalorder %s139, %s140
      %p152 = scmp.eq.s32.totalorder %s25, 1
      %p153 = por %p151, %p152
      %p155 = scmp.ne.s32.totalorder %s140, %s154
      %p156 = scmp.eq.s32.totalorder %s25, 0
      %p157 = por %p155, %p156
      %s159 = sadd.s32 %s158, 1
      %p162 = scmp.eq.s32.totalorder %s19, 1
      %p163 = scmp.ne.s32.totalorder %s158, %s160
      %p164 = scmp.eq.s32.totalorder %s19, 0
      %p165 = por %p163, %p164
      %p166 = scmp.ne.s32.totalorder %s158, %s160
      %p167 = scmp.eq.s32.totalorder %s24, 1
      %p168 = por %p166, %p167
      %p169 = scmp.ne.s32.totalorder %s160, %s161
      %p170 = scmp.eq.s32.totalorder %s24, 0
      %p171 = por %p169, %p170
      %p172 = scmp.ne.s32.totalorder %s160, %s161
      %p173 = scmp.eq.s32.totalorder %s25, 1
      %p174 = por %p172, %p173
      %p176 = scmp.ne.s32.totalorder %s161, %s175
      %p177 = scmp.eq.s32.totalorder %s25, 0
      %p178 = por %p176, %p177
      %s180 = sadd.s32 %s179, 1
      %p183 = scmp.eq.s32.totalorder %s19, 1
      %p184 = scmp.ne.s32.totalorder %s179, %s181
      %p185 = scmp.eq.s32.totalorder %s19, 0
      %p186 = por %p184, %p185
      %p187 = scmp.ne.s32.totalorder %s179, %s181
      %p188 = scmp.eq.s32.totalorder %s24, 1
      %p189 = por %p187, %p188
      %p190 = scmp.ne.s32.totalorder %s181, %s182
      %p191 = scmp.eq.s32.totalorder %s24, 0
      %p192 = por %p190, %p191
      %p193 = scmp.ne.s32.totalorder %s181, %s182
      %p194 = scmp.eq.s32.totalorder %s25, 1
      %p195 = por %p193, %p194
      %p197 = scmp.ne.s32.totalorder %s182, %s196
      %p198 = scmp.eq.s32.totalorder %s25, 0
      %p199 = por %p197, %p198
      %s201 = sadd.s32 %s200, 1
      %p204 = scmp.eq.s32.totalorder %s19, 1
      %p205 = scmp.ne.s32.totalorder %s200, %s202
      %p206 = scmp.eq.s32.totalorder %s19, 0
      %p207 = por %p205, %p206
      %p208 = scmp.ne.s32.totalorder %s200, %s202
      %p209 = scmp.eq.s32.totalorder %s24, 1
      %p210 = por %p208, %p209
      %p211 = scmp.ne.s32.totalorder %s202, %s203
      %p212 = scmp.eq.s32.totalorder %s24, 0
      %p213 = por %p211, %p212
      %p214 = scmp.ne.s32.totalorder %s202, %s203
      %p215 = scmp.eq.s32.totalorder %s25, 1
      %p216 = por %p214, %p215
      %p218 = scmp.ne.s32.totalorder %s203, %s217
      %p219 = scmp.eq.s32.totalorder %s25, 0
      %p220 = por %p218, %p219
      %s222 = sadd.s32 %s221, 1
      %p225 = scmp.eq.s32.totalorder %s19, 1
      %p226 = scmp.ne.s32.totalorder %s221, %s223
      %p227 = scmp.eq.s32.totalorder %s19, 0
      %p228 = por %p226, %p227
      %p229 = scmp.ne.s32.totalorder %s221, %s223
      %p230 = scmp.eq.s32.totalorder %s24, 1
      %p231 = por %p229, %p230
      %p232 = scmp.ne.s32.totalorder %s223, %s224
      %p233 = scmp.eq.s32.totalorder %s24, 0
      %p234 = por %p232, %p233
      %p235 = scmp.ne.s32.totalorder %s223, %s224
      %p236 = scmp.eq.s32.totalorder %s25, 1
      %p237 = por %p235, %p236
      %p239 = scmp.ne.s32.totalorder %s224, %s238
      %p240 = scmp.eq.s32.totalorder %s25, 0
      %p241 = por %p239, %p240
      %s242 = ssub.s32 %s19, %s26
      %p243 = scmp.eq.s32.totalorder %s242, 0
      %s245 = sadd.s32 %s244, 1
      %s246 = scalar_select %p243, %s244, %s245
      %p249 = pneg %p243
      %p250 = scmp.eq.s32.totalorder %s19, 1
      %p251 = por %p249, %p250
      %p252 = scmp.ne.s32.totalorder %s244, %s247
      %p253 = scmp.eq.s32.totalorder %s19, 0
      %p254 = por %p252, %p253
      %p255 = scmp.ne.s32.totalorder %s244, %s247
      %p256 = scmp.eq.s32.totalorder %s24, 1
      %p257 = por %p255, %p256
      %p258 = scmp.ne.s32.totalorder %s247, %s248
      %p259 = scmp.eq.s32.totalorder %s24, 0
      %p260 = por %p258, %p259
      %p261 = scmp.ne.s32.totalorder %s247, %s248
      %p262 = scmp.eq.s32.totalorder %s25, 1
      %p263 = por %p261, %p262
      %p265 = scmp.ne.s32.totalorder %s248, %s264
      %p266 = scmp.eq.s32.totalorder %s25, 0
      %p267 = por %p265, %p266
      %p268 = scmp.le.s32.totalorder 1, %s19
      %p269 = scmp.lt.s32.totalorder %s19, 3
      %p270 = pnand %p268, %p269
      %p271 = pneg %p270
      // Predicated region
      $region9: #{tpu_custom_call.1} parent=5 // pred_check
        _
      $region10: #{tpu_custom_call.1} parent=5 // pred_check_branch
        %273 = sbr.rel (%p270) target = $region12
      $region11: #{tpu_custom_call.1} parent=5 // pred_region
        %s274 = ssub.s32 %s19, 1
        // Predicated region
        $region13: #{tpu_custom_call.1} parent=11 // pred_check
          %p275 = pneg %p66
        $region14: #{tpu_custom_call.1} parent=11 // pred_check_branch
          %277 = sbr.rel (%p275) target = $region16
        $region15: #{tpu_custom_call.1} parent=11 // pred_region
          _
        $region16: #{tpu_custom_call.1} parent=11 // pred_fallthru
          _
        // Predicated region
        $region17: #{tpu_custom_call.1} parent=11 // pred_check
          %p278 = pneg %p87
        $region18: #{tpu_custom_call.1} parent=11 // pred_check_branch
          %280 = sbr.rel (%p278) target = $region20
        $region19: #{tpu_custom_call.1} parent=11 // pred_region
          _
        $region20: #{tpu_custom_call.1} parent=11 // pred_fallthru
          _
        // Predicated region
        $region21: #{tpu_custom_call.1} parent=11 // pred_check
          %p281 = pneg %p108
        $region22: #{tpu_custom_call.1} parent=11 // pred_check_branch
          %283 = sbr.rel (%p281) target = $region24
        $region23: #{tpu_custom_call.1} parent=11 // pred_region
          _
        $region24: #{tpu_custom_call.1} parent=11 // pred_fallthru
          _
        // Predicated region
        $region25: #{tpu_custom_call.1} parent=11 // pred_check
          %p284 = pneg %p129
        $region26: #{tpu_custom_call.1} parent=11 // pred_check_branch
          %286 = sbr.rel (%p284) target = $region28
        $region27: #{tpu_custom_call.1} parent=11 // pred_region
          _
        $region28: #{tpu_custom_call.1} parent=11 // pred_fallthru
          _
        // Predicated region
        $region29: #{tpu_custom_call.1} parent=11 // pred_check
          %p287 = pneg %p150
        $region30: #{tpu_custom_call.1} parent=11 // pred_check_branch
          %289 = sbr.rel (%p287) target = $region32
        $region31: #{tpu_custom_call.1} parent=11 // pred_region
          _
        $region32: #{tpu_custom_call.1} parent=11 // pred_fallthru
          _
        // Predicated region
        $region33: #{tpu_custom_call.1} parent=11 // pred_check
          %p290 = pneg %p171
        $region34: #{tpu_custom_call.1} parent=11 // pred_check_branch
          %292 = sbr.rel (%p290) target = $region36
        $region35: #{tpu_custom_call.1} parent=11 // pred_region
          _
        $region36: #{tpu_custom_call.1} parent=11 // pred_fallthru
          _
        // Predicated region
        $region37: #{tpu_custom_call.1} parent=11 // pred_check
          %p293 = pneg %p192
        $region38: #{tpu_custom_call.1} parent=11 // pred_check_branch
          %295 = sbr.rel (%p293) target = $region40
        $region39: #{tpu_custom_call.1} parent=11 // pred_region
          _
        $region40: #{tpu_custom_call.1} parent=11 // pred_fallthru
          _
        // Predicated region
        $region41: #{tpu_custom_call.1} parent=11 // pred_check
          %p296 = pneg %p213
        $region42: #{tpu_custom_call.1} parent=11 // pred_check_branch
          %298 = sbr.rel (%p296) target = $region44
        $region43: #{tpu_custom_call.1} parent=11 // pred_region
          _
        $region44: #{tpu_custom_call.1} parent=11 // pred_fallthru
          _
        // Predicated region
        $region45: #{tpu_custom_call.1} parent=11 // pred_check
          %p299 = pneg %p234
        $region46: #{tpu_custom_call.1} parent=11 // pred_check_branch
          %301 = sbr.rel (%p299) target = $region48
        $region47: #{tpu_custom_call.1} parent=11 // pred_region
          _
        $region48: #{tpu_custom_call.1} parent=11 // pred_fallthru
          _
      $region12: #{tpu_custom_call.1} parent=5 // pred_fallthru
        _
      %p302 = scmp.lt.s32.totalorder %s19, 2
      // Predicated region
      $region49: #{tpu_custom_call.1} parent=5 // pred_check
        %p303 = pneg %p302
      $region50: #{tpu_custom_call.1} parent=5 // pred_check_branch
        %305 = sbr.rel (%p303) target = $region52
      $region51: #{tpu_custom_call.1} parent=5 // pred_region
        // Predicated region
        $region53: #{tpu_custom_call.1} parent=51 // pred_check
          %p306 = pneg %p39
        $region54: #{tpu_custom_call.1} parent=51 // pred_check_branch
          %308 = sbr.rel (%p306) target = $region56
        $region55: #{tpu_custom_call.1} parent=51 // pred_region
          %p309 = scmp.lt.s32.totalorder %s19, 1
          %s310 = scalar_select %p309, %s19, 1
          %s311 = smul.addr %s310, 54
          %s312 = smul.addr %s311, 4
          %s313 = scalar_lea.vmem %s0, %s312
        $region56: #{tpu_custom_call.1} parent=51 // pred_fallthru
          _
      $region52: #{tpu_custom_call.1} parent=5 // pred_fallthru
        _
      %p314 = scmp.le.s32.totalorder 1, %s19
      %p315 = scmp.lt.s32.totalorder %s19, 3
      %p316 = pnand %p314, %p315
      %p317 = pneg %p316
      // Predicated region
      $region57: #{tpu_custom_call.1} parent=5 // pred_check
        _
      $region58: #{tpu_custom_call.1} parent=5 // pred_check_branch
        %319 = sbr.rel (%p316) target = $region60
      $region59: #{tpu_custom_call.1} parent=5 // pred_region
        %s320 = ssub.s32 %s19, 1
        %p321 = scmp.lt.s32.totalorder %s24, 1
        %s322 = scalar_select %p321, %s24, 1
        %s323 = smul.addr %s322, 54
        %s324 = smul.addr %s323, 4
        %s325 = scalar_lea.vmem %s0, %s324
        %p326 = pneg %p45
        %p327 = pneg %p42
        %p328 = pneg %p66
        %p329 = pneg %p63
        %p330 = pneg %p87
        %p331 = pneg %p84
        %p332 = pneg %p108
        %p333 = pneg %p105
        %p334 = pneg %p129
        %p335 = pneg %p126
        %p336 = pneg %p150
        %p337 = pneg %p147
        %p338 = pneg %p171
        %p339 = pneg %p168
        %p340 = pneg %p192
        %p341 = pneg %p189
        %p342 = pneg %p213
        %p343 = pneg %p210
        %p344 = pneg %p234
        %p345 = pneg %p231
        %p346 = pneg %p260
        %p347 = pneg %p257
        %s348 = sand.u32 %s247, 1
        %s349 = scalar_lea.sflag [#allocation5], %s348
        %s350 = sand.u32 %s247, 1
        %s351 = scalar_lea.vmem [#allocation4], %s350
        %p352 = scmp.lt.s32.totalorder %s24, 1
        %s353 = scalar_select %p352, %s24, 1
        %s354 = smul.addr %s353, 54
        %s355 = smul.addr %s354, 4
        %s356 = scalar_lea.vmem %s0, %s355
        %vm358 = vcmask 257024
        %359 = vst.msk [vmem:[#allocation2] sm:$0xf] %vm358, 0
        %360 = vst.msk [vmem:[#allocation2 + $0x4] sm:$0xf] %vm358, 0
        %vm361 = vcmask 253952
        %362 = vst.msk [vmem:[#allocation2 + $0x8] sm:$0x1] %vm361, 0
        %s363 = scalar_lea.vmem [#allocation2], 204
        %364 = vst.msk [vmem:[%s363] sm:$0xf] %vm358, 0
        %365 = vst.msk [vmem:[%s363 + $0x4] sm:$0xf] %vm358, 0
        %366 = vst.msk [vmem:[%s363 + $0x8] sm:$0x1] %vm361, 0
        %vm367 = vcmask 253952
        %vm368 = vsmask.f32 256
        %vm369 = vmand %vm367, %vm368
        %v370 = vld [vmem:[#allocation2] sm:$0x1]
        %v371 = vsel %vm369, 0, %v370
        %372 = vst [vmem:[#allocation2] sm:$0x1] %v371
        %v373 = vld [vmem:[#allocation2 + $0xc] sm:$0x1]
        %v374 = vsel %vm369, 0, %v373
        %375 = vst [vmem:[#allocation2 + $0xc] sm:$0x1] %v374
        %v376 = vld [vmem:[#allocation2 + $0x18] sm:$0x1]
        %v377 = vsel %vm369, 0, %v376
        %378 = vst [vmem:[#allocation2 + $0x18] sm:$0x1] %v377
        %v379 = vld [vmem:[#allocation2 + $0x24] sm:$0x1]
        %v380 = vsel %vm369, 0, %v379
        %381 = vst [vmem:[#allocation2 + $0x24] sm:$0x1] %v380
        %v382 = vld [vmem:[#allocation2 + $0x30] sm:$0x1]
        %v383 = vsel %vm369, 0, %v382
        %384 = vst [vmem:[#allocation2 + $0x30] sm:$0x1] %v383
        %v385 = vld [vmem:[#allocation2 + $0x3c] sm:$0x1]
        %v386 = vsel %vm369, 0, %v385
        %387 = vst [vmem:[#allocation2 + $0x3c] sm:$0x1] %v386
        %v388 = vld [vmem:[#allocation2 + $0x48] sm:$0x1]
        %v389 = vsel %vm369, 0, %v388
        %390 = vst [vmem:[#allocation2 + $0x48] sm:$0x1] %v389
        %v391 = vld [vmem:[#allocation2 + $0x54] sm:$0x1]
        %v392 = vsel %vm369, 0, %v391
        %393 = vst [vmem:[#allocation2 + $0x54] sm:$0x1] %v392
        %v394 = vld [vmem:[#allocation2 + $0x60] sm:$0x1]
        %v395 = vsel %vm369, 0, %v394
        %396 = vst [vmem:[#allocation2 + $0x60] sm:$0x1] %v395
        %v397 = vld [vmem:[#allocation2 + $0x6c] sm:$0x1]
        %v398 = vsel %vm369, 0, %v397
        %399 = vst [vmem:[#allocation2 + $0x6c] sm:$0x1] %v398
        %v400 = vld [vmem:[#allocation2 + $0x78] sm:$0x1]
        %v401 = vsel %vm369, 0, %v400
        %402 = vst [vmem:[#allocation2 + $0x78] sm:$0x1] %v401
        %v403 = vld [vmem:[#allocation2 + $0x84] sm:$0x1]
        %v404 = vsel %vm369, 0, %v403
        %405 = vst [vmem:[#allocation2 + $0x84] sm:$0x1] %v404
        %v406 = vld [vmem:[#allocation2 + $0x90] sm:$0x1]
        %v407 = vsel %vm369, 0, %v406
        %408 = vst [vmem:[#allocation2 + $0x90] sm:$0x1] %v407
        %v409 = vld [vmem:[#allocation2 + $0x9c] sm:$0x1]
        %v410 = vsel %vm369, 0, %v409
        %411 = vst [vmem:[#allocation2 + $0x9c] sm:$0x1] %v410
        %v412 = vld [vmem:[#allocation2 + $0xa8] sm:$0x1]
        %v413 = vsel %vm369, 0, %v412
        %414 = vst [vmem:[#allocation2 + $0xa8] sm:$0x1] %v413
        %v415 = vld [vmem:[#allocation2 + $0xb4] sm:$0x1]
        %v416 = vsel %vm369, 0, %v415
        %417 = vst [vmem:[#allocation2 + $0xb4] sm:$0x1] %v416
        %v418 = vld [vmem:[#allocation2 + $0xc0] sm:$0x1]
        %v419 = vsel %vm369, 0, %v418
        %420 = vst [vmem:[#allocation2 + $0xc0] sm:$0x1] %v419
        %v421 = vld [vmem:[#allocation2 + $0xcc] sm:$0x1]
        %v422 = vsel %vm369, 0, %v421
        %423 = vst [vmem:[#allocation2 + $0xcc] sm:$0x1] %v422
        %vm424 = vsmask.f32 7938
        %vm425 = vmand %vm367, %vm424
        %v426 = vld [vmem:[#allocation2 + $0x8] sm:$0x1]
        %v427 = vsel %vm425, 0, %v426
        %428 = vst [vmem:[#allocation2 + $0x8] sm:$0x1] %v427
        %v429 = vld [vmem:[#allocation2 + $0x14] sm:$0x1]
        %v430 = vsel %vm425, 0, %v429
        %431 = vst [vmem:[#allocation2 + $0x14] sm:$0x1] %v430
        %v432 = vld [vmem:[#allocation2 + $0x20] sm:$0x1]
        %v433 = vsel %vm425, 0, %v432
        %434 = vst [vmem:[#allocation2 + $0x20] sm:$0x1] %v433
        %v435 = vld [vmem:[#allocation2 + $0x2c] sm:$0x1]
        %v436 = vsel %vm425, 0, %v435
        %437 = vst [vmem:[#allocation2 + $0x2c] sm:$0x1] %v436
        %v438 = vld [vmem:[#allocation2 + $0x38] sm:$0x1]
        %v439 = vsel %vm425, 0, %v438
        %440 = vst [vmem:[#allocation2 + $0x38] sm:$0x1] %v439
        %v441 = vld [vmem:[#allocation2 + $0x44] sm:$0x1]
        %v442 = vsel %vm425, 0, %v441
        %443 = vst [vmem:[#allocation2 + $0x44] sm:$0x1] %v442
        %v444 = vld [vmem:[#allocation2 + $0x50] sm:$0x1]
        %v445 = vsel %vm425, 0, %v444
        %446 = vst [vmem:[#allocation2 + $0x50] sm:$0x1] %v445
        %v447 = vld [vmem:[#allocation2 + $0x5c] sm:$0x1]
        %v448 = vsel %vm425, 0, %v447
        %449 = vst [vmem:[#allocation2 + $0x5c] sm:$0x1] %v448
        %v450 = vld [vmem:[#allocation2 + $0x68] sm:$0x1]
        %v451 = vsel %vm425, 0, %v450
        %452 = vst [vmem:[#allocation2 + $0x68] sm:$0x1] %v451
        %v453 = vld [vmem:[#allocation2 + $0x74] sm:$0x1]
        %v454 = vsel %vm425, 0, %v453
        %455 = vst [vmem:[#allocation2 + $0x74] sm:$0x1] %v454
        %v456 = vld [vmem:[#allocation2 + $0x80] sm:$0x1]
        %v457 = vsel %vm425, 0, %v456
        %458 = vst [vmem:[#allocation2 + $0x80] sm:$0x1] %v457
        %v459 = vld [vmem:[#allocation2 + $0x8c] sm:$0x1]
        %v460 = vsel %vm425, 0, %v459
        %461 = vst [vmem:[#allocation2 + $0x8c] sm:$0x1] %v460
        %v462 = vld [vmem:[#allocation2 + $0x98] sm:$0x1]
        %v463 = vsel %vm425, 0, %v462
        %464 = vst [vmem:[#allocation2 + $0x98] sm:$0x1] %v463
        %v465 = vld [vmem:[#allocation2 + $0xa4] sm:$0x1]
        %v466 = vsel %vm425, 0, %v465
        %467 = vst [vmem:[#allocation2 + $0xa4] sm:$0x1] %v466
        %v468 = vld [vmem:[#allocation2 + $0xb0] sm:$0x1]
        %v469 = vsel %vm425, 0, %v468
        %470 = vst [vmem:[#allocation2 + $0xb0] sm:$0x1] %v469
        %v471 = vld [vmem:[#allocation2 + $0xbc] sm:$0x1]
        %v472 = vsel %vm425, 0, %v471
        %473 = vst [vmem:[#allocation2 + $0xbc] sm:$0x1] %v472
        %v474 = vld [vmem:[#allocation2 + $0xc8] sm:$0x1]
        %v475 = vsel %vm425, 0, %v474
        %476 = vst [vmem:[#allocation2 + $0xc8] sm:$0x1] %v475
        %v477 = vld [vmem:[#allocation2 + $0xd4] sm:$0x1]
        %v478 = vsel %vm425, 0, %v477
        %479 = vst [vmem:[#allocation2 + $0xd4] sm:$0x1] %v478
        %480 = vst.msk [vmem:[#allocation3] sm:$0xf] %vm358, 0
        %481 = vst.msk [vmem:[#allocation3 + $0x4] sm:$0xf] %vm358, 0
        %482 = vst.msk [vmem:[#allocation3 + $0x8] sm:$0x1] %vm361, 0
        %s483 = scalar_lea.vmem [#allocation3], 204
        %484 = vst.msk [vmem:[%s483] sm:$0xf] %vm358, 0
        %485 = vst.msk [vmem:[%s483 + $0x4] sm:$0xf] %vm358, 0
        %486 = vst.msk [vmem:[%s483 + $0x8] sm:$0x1] %vm361, 0
        %v487 = vld [vmem:[#allocation3] sm:$0x1]
        %v488 = vsel %vm369, 0, %v487
        %489 = vst [vmem:[#allocation3] sm:$0x1] %v488
        %v490 = vld [vmem:[#allocation3 + $0xc] sm:$0x1]
        %v491 = vsel %vm369, 0, %v490
        %492 = vst [vmem:[#allocation3 + $0xc] sm:$0x1] %v491
        %v493 = vld [vmem:[#allocation3 + $0x18] sm:$0x1]
        %v494 = vsel %vm369, 0, %v493
        %495 = vst [vmem:[#allocation3 + $0x18] sm:$0x1] %v494
        %v496 = vld [vmem:[#allocation3 + $0x24] sm:$0x1]
        %v497 = vsel %vm369, 0, %v496
        %498 = vst [vmem:[#allocation3 + $0x24] sm:$0x1] %v497
        %v499 = vld [vmem:[#allocation3 + $0x30] sm:$0x1]
        %v500 = vsel %vm369, 0, %v499
        %501 = vst [vmem:[#allocation3 + $0x30] sm:$0x1] %v500
        %v502 = vld [vmem:[#allocation3 + $0x3c] sm:$0x1]
        %v503 = vsel %vm369, 0, %v502
        %504 = vst [vmem:[#allocation3 + $0x3c] sm:$0x1] %v503
        %v505 = vld [vmem:[#allocation3 + $0x48] sm:$0x1]
        %v506 = vsel %vm369, 0, %v505
        %507 = vst [vmem:[#allocation3 + $0x48] sm:$0x1] %v506
        %v508 = vld [vmem:[#allocation3 + $0x54] sm:$0x1]
        %v509 = vsel %vm369, 0, %v508
        %510 = vst [vmem:[#allocation3 + $0x54] sm:$0x1] %v509
        %v511 = vld [vmem:[#allocation3 + $0x60] sm:$0x1]
        %v512 = vsel %vm369, 0, %v511
        %513 = vst [vmem:[#allocation3 + $0x60] sm:$0x1] %v512
        %v514 = vld [vmem:[#allocation3 + $0x6c] sm:$0x1]
        %v515 = vsel %vm369, 0, %v514
        %516 = vst [vmem:[#allocation3 + $0x6c] sm:$0x1] %v515
        %v517 = vld [vmem:[#allocation3 + $0x78] sm:$0x1]
        %v518 = vsel %vm369, 0, %v517
        %519 = vst [vmem:[#allocation3 + $0x78] sm:$0x1] %v518
        %v520 = vld [vmem:[#allocation3 + $0x84] sm:$0x1]
        %v521 = vsel %vm369, 0, %v520
        %522 = vst [vmem:[#allocation3 + $0x84] sm:$0x1] %v521
        %v523 = vld [vmem:[#allocation3 + $0x90] sm:$0x1]
        %v524 = vsel %vm369, 0, %v523
        %525 = vst [vmem:[#allocation3 + $0x90] sm:$0x1] %v524
        %v526 = vld [vmem:[#allocation3 + $0x9c] sm:$0x1]
        %v527 = vsel %vm369, 0, %v526
        %528 = vst [vmem:[#allocation3 + $0x9c] sm:$0x1] %v527
        %v529 = vld [vmem:[#allocation3 + $0xa8] sm:$0x1]
        %v530 = vsel %vm369, 0, %v529
        %531 = vst [vmem:[#allocation3 + $0xa8] sm:$0x1] %v530
        %v532 = vld [vmem:[#allocation3 + $0xb4] sm:$0x1]
        %v533 = vsel %vm369, 0, %v532
        %534 = vst [vmem:[#allocation3 + $0xb4] sm:$0x1] %v533
        %v535 = vld [vmem:[#allocation3 + $0xc0] sm:$0x1]
        %v536 = vsel %vm369, 0, %v535
        %537 = vst [vmem:[#allocation3 + $0xc0] sm:$0x1] %v536
        %v538 = vld [vmem:[#allocation3 + $0xcc] sm:$0x1]
        %v539 = vsel %vm369, 0, %v538
        %540 = vst [vmem:[#allocation3 + $0xcc] sm:$0x1] %v539
        %v541 = vld [vmem:[#allocation3 + $0x8] sm:$0x1]
        %v542 = vsel %vm425, 0, %v541
        %543 = vst [vmem:[#allocation3 + $0x8] sm:$0x1] %v542
        %v544 = vld [vmem:[#allocation3 + $0x14] sm:$0x1]
        %v545 = vsel %vm425, 0, %v544
        %546 = vst [vmem:[#allocation3 + $0x14] sm:$0x1] %v545
        %v547 = vld [vmem:[#allocation3 + $0x20] sm:$0x1]
        %v548 = vsel %vm425, 0, %v547
        %549 = vst [vmem:[#allocation3 + $0x20] sm:$0x1] %v548
        %v550 = vld [vmem:[#allocation3 + $0x2c] sm:$0x1]
        %v551 = vsel %vm425, 0, %v550
        %552 = vst [vmem:[#allocation3 + $0x2c] sm:$0x1] %v551
        %v553 = vld [vmem:[#allocation3 + $0x38] sm:$0x1]
        %v554 = vsel %vm425, 0, %v553
        %555 = vst [vmem:[#allocation3 + $0x38] sm:$0x1] %v554
        %v556 = vld [vmem:[#allocation3 + $0x44] sm:$0x1]
        %v557 = vsel %vm425, 0, %v556
        %558 = vst [vmem:[#allocation3 + $0x44] sm:$0x1] %v557
        %v559 = vld [vmem:[#allocation3 + $0x50] sm:$0x1]
        %v560 = vsel %vm425, 0, %v559
        %561 = vst [vmem:[#allocation3 + $0x50] sm:$0x1] %v560
        %v562 = vld [vmem:[#allocation3 + $0x5c] sm:$0x1]
        %v563 = vsel %vm425, 0, %v562
        %564 = vst [vmem:[#allocation3 + $0x5c] sm:$0x1] %v563
        %v565 = vld [vmem:[#allocation3 + $0x68] sm:$0x1]
        %v566 = vsel %vm425, 0, %v565
        %567 = vst [vmem:[#allocation3 + $0x68] sm:$0x1] %v566
        %v568 = vld [vmem:[#allocation3 + $0x74] sm:$0x1]
        %v569 = vsel %vm425, 0, %v568
        %570 = vst [vmem:[#allocation3 + $0x74] sm:$0x1] %v569
        %v571 = vld [vmem:[#allocation3 + $0x80] sm:$0x1]
        %v572 = vsel %vm425, 0, %v571
        %573 = vst [vmem:[#allocation3 + $0x80] sm:$0x1] %v572
        %v574 = vld [vmem:[#allocation3 + $0x8c] sm:$0x1]
        %v575 = vsel %vm425, 0, %v574
        %576 = vst [vmem:[#allocation3 + $0x8c] sm:$0x1] %v575
        %v577 = vld [vmem:[#allocation3 + $0x98] sm:$0x1]
        %v578 = vsel %vm425, 0, %v577
        %579 = vst [vmem:[#allocation3 + $0x98] sm:$0x1] %v578
        %v580 = vld [vmem:[#allocation3 + $0xa4] sm:$0x1]
        %v581 = vsel %vm425, 0, %v580
        %582 = vst [vmem:[#allocation3 + $0xa4] sm:$0x1] %v581
        %v583 = vld [vmem:[#allocation3 + $0xb0] sm:$0x1]
        %v584 = vsel %vm425, 0, %v583
        %585 = vst [vmem:[#allocation3 + $0xb0] sm:$0x1] %v584
        %v586 = vld [vmem:[#allocation3 + $0xbc] sm:$0x1]
        %v587 = vsel %vm425, 0, %v586
        %588 = vst [vmem:[#allocation3 + $0xbc] sm:$0x1] %v587
        %v589 = vld [vmem:[#allocation3 + $0xc8] sm:$0x1]
        %v590 = vsel %vm425, 0, %v589
        %591 = vst [vmem:[#allocation3 + $0xc8] sm:$0x1] %v590
        %v592 = vld [vmem:[#allocation3 + $0xd4] sm:$0x1]
        %v593 = vsel %vm425, 0, %v592
        %594 = vst [vmem:[#allocation3 + $0xd4] sm:$0x1] %v593
        %v595 = vld [vmem:[%s356] sm:$0xf]
        %v596 = vld [vmem:[%s356 + $0x4] sm:$0xf]
        %v597 = vld [vmem:[%s356 + $0xc] sm:$0xf]
        %v598 = vld [vmem:[%s356 + $0x10] sm:$0xf]
        %v599 = vld [vmem:[%s356 + $0x18] sm:$0xf]
        %v600 = vld [vmem:[%s356 + $0x1c] sm:$0xf]
        %v601 = vld [vmem:[%s356 + $0x24] sm:$0xf]
        %v602 = vld [vmem:[%s356 + $0x28] sm:$0xf]
        %v603 = vld [vmem:[%s356 + $0x30] sm:$0xf]
        %v604 = vld [vmem:[%s356 + $0x34] sm:$0xf]
        %v605 = vld [vmem:[%s356 + $0x3c] sm:$0xf]
        %v606 = vld [vmem:[%s356 + $0x40] sm:$0xf]
        %v607 = vld [vmem:[%s356 + $0x48] sm:$0xf]
        %v608 = vld [vmem:[%s356 + $0x4c] sm:$0xf]
        %v609 = vld [vmem:[%s356 + $0x54] sm:$0xf]
        %v610 = vld [vmem:[%s356 + $0x58] sm:$0xf]
        %v611 = vld [vmem:[%s356 + $0x60] sm:$0xf]
        %v612 = vld [vmem:[%s356 + $0x64] sm:$0xf]
        %v613 = vld [vmem:[%s356 + $0x6c] sm:$0xf]
        %v614 = vld [vmem:[%s356 + $0x70] sm:$0xf]
        %v615 = vld [vmem:[%s356 + $0x78] sm:$0xf]
        %v616 = vld [vmem:[%s356 + $0x7c] sm:$0xf]
        %v617 = vld [vmem:[%s356 + $0x84] sm:$0xf]
        %v618 = vld [vmem:[%s356 + $0x88] sm:$0xf]
        %v619 = vld [vmem:[%s356 + $0x90] sm:$0xf]
        %v620 = vld [vmem:[%s356 + $0x94] sm:$0xf]
        %v621 = vld [vmem:[%s356 + $0x9c] sm:$0xf]
        %v622 = vld [vmem:[%s356 + $0xa0] sm:$0xf]
        %v623 = vld [vmem:[%s356 + $0xa8] sm:$0xf]
        %v624 = vld [vmem:[%s356 + $0xac] sm:$0xf]
        %v625 = vld [vmem:[%s356 + $0xb4] sm:$0xf]
        %v626 = vld [vmem:[%s356 + $0xb8] sm:$0xf]
        %v627 = vld [vmem:[%s356 + $0x8] sm:$0x1]
        %v628 = vld [vmem:[%s356 + $0x14] sm:$0x1]
        %v629 = vld [vmem:[%s356 + $0x20] sm:$0x1]
        %v630 = vld [vmem:[%s356 + $0x2c] sm:$0x1]
        %v631 = vld [vmem:[%s356 + $0x38] sm:$0x1]
        %v632 = vld [vmem:[%s356 + $0x44] sm:$0x1]
        %v633 = vld [vmem:[%s356 + $0x50] sm:$0x1]
        %v634 = vld [vmem:[%s356 + $0x5c] sm:$0x1]
        %v635 = vld [vmem:[%s356 + $0x68] sm:$0x1]
        %v636 = vld [vmem:[%s356 + $0x74] sm:$0x1]
        %v637 = vld [vmem:[%s356 + $0x80] sm:$0x1]
        %v638 = vld [vmem:[%s356 + $0x8c] sm:$0x1]
        %v639 = vld [vmem:[%s356 + $0x98] sm:$0x1]
        %v640 = vld [vmem:[%s356 + $0xa4] sm:$0x1]
        %v641 = vld [vmem:[%s356 + $0xb0] sm:$0x1]
        %v642 = vld [vmem:[%s356 + $0xbc] sm:$0x1]
        %vm643 = vsmask.f32 3328
        %vm644 = vsmask.f32 7440
        %vm645 = vmor %vm643, %vm644
        %v647 = vshrl.u32 %v595, 16
        %v649 = vrot.slane %v647, 4
        %v650 = vshll.u32 %v595, 16
        %v652 = vrot.slane %v650, 5
        %v653 = vor.u32 %v649, %v652
        %v654 = vrot.slane %v653, 4
        %v656 = vshll.u32 %v596, 16
        %v658 = vrot.slane %v656, 5
        %v659 = vsel %vm645, %v654, %v658
        %v660 = vshrl.u32 %v596, 16
        %v662 = vrot.slane %v660, 4
        %v663 = vor.u32 %v662, %v658
        %v664 = vrot.slane %v663, 4
        %v666 = vshll.u32 %v627, 16
        %v668 = vrot.slane %v666, 5
        %v669 = vsel %vm645, %v664, %v668
        %v671 = vshrl.u32 %v597, 16
        %v673 = vrot.slane %v671, 4
        %v674 = vshll.u32 %v597, 16
        %v676 = vrot.slane %v674, 5
        %v677 = vor.u32 %v673, %v676
        %v678 = vrot.slane %v677, 4
        %v680 = vshll.u32 %v598, 16
        %v682 = vrot.slane %v680, 5
        %v683 = vsel %vm645, %v678, %v682
        %v684 = vshrl.u32 %v598, 16
        %v686 = vrot.slane %v684, 4
        %v687 = vor.u32 %v686, %v682
        %v688 = vrot.slane %v687, 4
        %v690 = vshll.u32 %v628, 16
        %v692 = vrot.slane %v690, 5
        %v693 = vsel %vm645, %v688, %v692
        %v695 = vshrl.u32 %v599, 16
        %v697 = vrot.slane %v695, 4
        %v698 = vshll.u32 %v599, 16
        %v700 = vrot.slane %v698, 5
        %v701 = vor.u32 %v697, %v700
        %v702 = vrot.slane %v701, 4
        %v704 = vshll.u32 %v600, 16
        %v706 = vrot.slane %v704, 5
        %v707 = vsel %vm645, %v702, %v706
        %v708 = vshrl.u32 %v600, 16
        %v710 = vrot.slane %v708, 4
        %v711 = vor.u32 %v710, %v706
        %v712 = vrot.slane %v711, 4
        %v714 = vshll.u32 %v629, 16
        %v716 = vrot.slane %v714, 5
        %v717 = vsel %vm645, %v712, %v716
        %v719 = vshrl.u32 %v601, 16
        %v721 = vrot.slane %v719, 4
        %v722 = vshll.u32 %v601, 16
        %v724 = vrot.slane %v722, 5
        %v725 = vor.u32 %v721, %v724
        %v726 = vrot.slane %v725, 4
        %v728 = vshll.u32 %v602, 16
        %v730 = vrot.slane %v728, 5
        %v731 = vsel %vm645, %v726, %v730
        %v732 = vshrl.u32 %v602, 16
        %v734 = vrot.slane %v732, 4
        %v735 = vor.u32 %v734, %v730
        %v736 = vrot.slane %v735, 4
        %v738 = vshll.u32 %v630, 16
        %v740 = vrot.slane %v738, 5
        %v741 = vsel %vm645, %v736, %v740
        %v743 = vshrl.u32 %v603, 16
        %v745 = vrot.slane %v743, 4
        %v746 = vshll.u32 %v603, 16
        %v748 = vrot.slane %v746, 5
        %v749 = vor.u32 %v745, %v748
        %v750 = vrot.slane %v749, 4
        %v752 = vshll.u32 %v604, 16
        %v754 = vrot.slane %v752, 5
        %v755 = vsel %vm645, %v750, %v754
        %v756 = vshrl.u32 %v604, 16
        %v758 = vrot.slane %v756, 4
        %v759 = vor.u32 %v758, %v754
        %v760 = vrot.slane %v759, 4
        %v762 = vshll.u32 %v631, 16
        %v764 = vrot.slane %v762, 5
        %v765 = vsel %vm645, %v760, %v764
        %v767 = vshrl.u32 %v605, 16
        %v769 = vrot.slane %v767, 4
        %v770 = vshll.u32 %v605, 16
        %v772 = vrot.slane %v770, 5
        %v773 = vor.u32 %v769, %v772
        %v774 = vrot.slane %v773, 4
        %v776 = vshll.u32 %v606, 16
        %v778 = vrot.slane %v776, 5
        %v779 = vsel %vm645, %v774, %v778
        %v780 = vshrl.u32 %v606, 16
        %v782 = vrot.slane %v780, 4
        %v783 = vor.u32 %v782, %v778
        %v784 = vrot.slane %v783, 4
        %v786 = vshll.u32 %v632, 16
        %v788 = vrot.slane %v786, 5
        %v789 = vsel %vm645, %v784, %v788
        %v791 = vshrl.u32 %v607, 16
        %v793 = vrot.slane %v791, 4
        %v794 = vshll.u32 %v607, 16
        %v796 = vrot.slane %v794, 5
        %v797 = vor.u32 %v793, %v796
        %v798 = vrot.slane %v797, 4
        %v800 = vshll.u32 %v608, 16
        %v802 = vrot.slane %v800, 5
        %v803 = vsel %vm645, %v798, %v802
        %v804 = vshrl.u32 %v608, 16
        %v806 = vrot.slane %v804, 4
        %v807 = vor.u32 %v806, %v802
        %v808 = vrot.slane %v807, 4
        %v810 = vshll.u32 %v633, 16
        %v812 = vrot.slane %v810, 5
        %v813 = vsel %vm645, %v808, %v812
        %v815 = vshrl.u32 %v609, 16
        %v817 = vrot.slane %v815, 4
        %v818 = vshll.u32 %v609, 16
        %v820 = vrot.slane %v818, 5
        %v821 = vor.u32 %v817, %v820
        %v822 = vrot.slane %v821, 4
        %v824 = vshll.u32 %v610, 16
        %v826 = vrot.slane %v824, 5
        %v827 = vsel %vm645, %v822, %v826
        %v828 = vshrl.u32 %v610, 16
        %v830 = vrot.slane %v828, 4
        %v831 = vor.u32 %v830, %v826
        %v832 = vrot.slane %v831, 4
        %v834 = vshll.u32 %v634, 16
        %v836 = vrot.slane %v834, 5
        %v837 = vsel %vm645, %v832, %v836
        %v839 = vshrl.u32 %v611, 16
        %v841 = vrot.slane %v839, 4
        %v842 = vshll.u32 %v611, 16
        %v844 = vrot.slane %v842, 5
        %v845 = vor.u32 %v841, %v844
        %v846 = vrot.slane %v845, 4
        %v848 = vshll.u32 %v612, 16
        %v850 = vrot.slane %v848, 5
        %v851 = vsel %vm645, %v846, %v850
        %v852 = vshrl.u32 %v612, 16
        %v854 = vrot.slane %v852, 4
        %v855 = vor.u32 %v854, %v850
        %v856 = vrot.slane %v855, 4
        %v858 = vshll.u32 %v635, 16
        %v860 = vrot.slane %v858, 5
        %v861 = vsel %vm645, %v856, %v860
        %v863 = vshrl.u32 %v613, 16
        %v865 = vrot.slane %v863, 4
        %v866 = vshll.u32 %v613, 16
        %v868 = vrot.slane %v866, 5
        %v869 = vor.u32 %v865, %v868
        %v870 = vrot.slane %v869, 4
        %v872 = vshll.u32 %v614, 16
        %v874 = vrot.slane %v872, 5
        %v875 = vsel %vm645, %v870, %v874
        %v876 = vshrl.u32 %v614, 16
        %v878 = vrot.slane %v876, 4
        %v879 = vor.u32 %v878, %v874
        %v880 = vrot.slane %v879, 4
        %v882 = vshll.u32 %v636, 16
        %v884 = vrot.slane %v882, 5
        %v885 = vsel %vm645, %v880, %v884
        %v887 = vshrl.u32 %v615, 16
        %v889 = vrot.slane %v887, 4
        %v890 = vshll.u32 %v615, 16
        %v892 = vrot.slane %v890, 5
        %v893 = vor.u32 %v889, %v892
        %v894 = vrot.slane %v893, 4
        %v896 = vshll.u32 %v616, 16
        %v898 = vrot.slane %v896, 5
        %v899 = vsel %vm645, %v894, %v898
        %v900 = vshrl.u32 %v616, 16
        %v902 = vrot.slane %v900, 4
        %v903 = vor.u32 %v902, %v898
        %v904 = vrot.slane %v903, 4
        %v906 = vshll.u32 %v637, 16
        %v908 = vrot.slane %v906, 5
        %v909 = vsel %vm645, %v904, %v908
        %v911 = vshrl.u32 %v617, 16
        %v913 = vrot.slane %v911, 4
        %v914 = vshll.u32 %v617, 16
        %v916 = vrot.slane %v914, 5
        %v917 = vor.u32 %v913, %v916
        %v918 = vrot.slane %v917, 4
        %v920 = vshll.u32 %v618, 16
        %v922 = vrot.slane %v920, 5
        %v923 = vsel %vm645, %v918, %v922
        %v924 = vshrl.u32 %v618, 16
        %v926 = vrot.slane %v924, 4
        %v927 = vor.u32 %v926, %v922
        %v928 = vrot.slane %v927, 4
        %v930 = vshll.u32 %v638, 16
        %v932 = vrot.slane %v930, 5
        %v933 = vsel %vm645, %v928, %v932
        %v935 = vshrl.u32 %v619, 16
        %v937 = vrot.slane %v935, 4
        %v938 = vshll.u32 %v619, 16
        %v940 = vrot.slane %v938, 5
        %v941 = vor.u32 %v937, %v940
        %v942 = vrot.slane %v941, 4
        %v944 = vshll.u32 %v620, 16
        %v946 = vrot.slane %v944, 5
        %v947 = vsel %vm645, %v942, %v946
        %v948 = vshrl.u32 %v620, 16
        %v950 = vrot.slane %v948, 4
        %v951 = vor.u32 %v950, %v946
        %v952 = vrot.slane %v951, 4
        %v954 = vshll.u32 %v639, 16
        %v956 = vrot.slane %v954, 5
        %v957 = vsel %vm645, %v952, %v956
        %v959 = vshrl.u32 %v621, 16
        %v961 = vrot.slane %v959, 4
        %v962 = vshll.u32 %v621, 16
        %v964 = vrot.slane %v962, 5
        %v965 = vor.u32 %v961, %v964
        %v966 = vrot.slane %v965, 4
        %v968 = vshll.u32 %v622, 16
        %v970 = vrot.slane %v968, 5
        %v971 = vsel %vm645, %v966, %v970
        %v972 = vshrl.u32 %v622, 16
        %v974 = vrot.slane %v972, 4
        %v975 = vor.u32 %v974, %v970
        %v976 = vrot.slane %v975, 4
        %v978 = vshll.u32 %v640, 16
        %v980 = vrot.slane %v978, 5
        %v981 = vsel %vm645, %v976, %v980
        %v983 = vshrl.u32 %v623, 16
        %v985 = vrot.slane %v983, 4
        %v986 = vshll.u32 %v623, 16
        %v988 = vrot.slane %v986, 5
        %v989 = vor.u32 %v985, %v988
        %v990 = vrot.slane %v989, 4
        %v992 = vshll.u32 %v624, 16
        %v994 = vrot.slane %v992, 5
        %v995 = vsel %vm645, %v990, %v994
        %v996 = vshrl.u32 %v624, 16
        %v998 = vrot.slane %v996, 4
        %v999 = vor.u32 %v998, %v994
        %v1000 = vrot.slane %v999, 4
        %v1002 = vshll.u32 %v641, 16
        %v1004 = vrot.slane %v1002, 5
        %v1005 = vsel %vm645, %v1000, %v1004
        %v1007 = vshrl.u32 %v625, 16
        %v1009 = vrot.slane %v1007, 4
        %v1010 = vshll.u32 %v625, 16
        %v1012 = vrot.slane %v1010, 5
        %v1013 = vor.u32 %v1009, %v1012
        %v1014 = vrot.slane %v1013, 4
        %v1016 = vshll.u32 %v626, 16
        %v1018 = vrot.slane %v1016, 5
        %v1019 = vsel %vm645, %v1014, %v1018
        %v1020 = vshrl.u32 %v626, 16
        %v1022 = vrot.slane %v1020, 4
        %v1023 = vor.u32 %v1022, %v1018
        %v1024 = vrot.slane %v1023, 4
        %v1026 = vshll.u32 %v642, 16
        %v1028 = vrot.slane %v1026, 5
        %v1029 = vsel %vm645, %v1024, %v1028
        %v1030 = vld [vmem:[%s356] sm:$0xe]
        %v1031 = vld [vmem:[%s356 + $0xc] sm:$0xe]
        %v1032 = vld [vmem:[%s356 + $0x18] sm:$0xe]
        %v1033 = vld [vmem:[%s356 + $0x24] sm:$0xe]
        %v1034 = vld [vmem:[%s356 + $0x30] sm:$0xe]
        %v1035 = vld [vmem:[%s356 + $0x3c] sm:$0xe]
        %v1036 = vld [vmem:[%s356 + $0x48] sm:$0xe]
        %v1037 = vld [vmem:[%s356 + $0x54] sm:$0xe]
        %v1038 = vld [vmem:[%s356 + $0x60] sm:$0xe]
        %v1039 = vld [vmem:[%s356 + $0x6c] sm:$0xe]
        %v1040 = vld [vmem:[%s356 + $0x78] sm:$0xe]
        %v1041 = vld [vmem:[%s356 + $0x84] sm:$0xe]
        %v1042 = vld [vmem:[%s356 + $0x90] sm:$0xe]
        %v1043 = vld [vmem:[%s356 + $0x9c] sm:$0xe]
        %v1044 = vld [vmem:[%s356 + $0xa8] sm:$0xe]
        %v1045 = vld [vmem:[%s356 + $0xb4] sm:$0xe]
        %vm1094 = vcmask 1042432
        %vm1095 = vcmask 1046532
        %vm1096 = vmor %vm1094, %vm1095
        %v1097 = vrot.slane %v1030, 5
        %v1098 = vrot.slane %v1097, 4
        %v1099 = vrot.slane %v596, 5
        %v1100 = vsel %vm1096, %v1098, %v1099
        %v1101 = vrot.slane %v1099, 4
        %v1102 = vrot.slane %v627, 5
        %v1103 = vsel %vm1096, %v1101, %v1102
        %v1104 = vrot.slane %v1031, 5
        %v1105 = vrot.slane %v1104, 4
        %v1106 = vrot.slane %v598, 5
        %v1107 = vsel %vm1096, %v1105, %v1106
        %v1108 = vrot.slane %v1106, 4
        %v1109 = vrot.slane %v628, 5
        %v1110 = vsel %vm1096, %v1108, %v1109
        %v1111 = vrot.slane %v1032, 5
        %v1112 = vrot.slane %v1111, 4
        %v1113 = vrot.slane %v600, 5
        %v1114 = vsel %vm1096, %v1112, %v1113
        %v1115 = vrot.slane %v1113, 4
        %v1116 = vrot.slane %v629, 5
        %v1117 = vsel %vm1096, %v1115, %v1116
        %v1118 = vrot.slane %v1033, 5
        %v1119 = vrot.slane %v1118, 4
        %v1120 = vrot.slane %v602, 5
        %v1121 = vsel %vm1096, %v1119, %v1120
        %v1122 = vrot.slane %v1120, 4
        %v1123 = vrot.slane %v630, 5
        %v1124 = vsel %vm1096, %v1122, %v1123
        %v1125 = vrot.slane %v1034, 5
        %v1126 = vrot.slane %v1125, 4
        %v1127 = vrot.slane %v604, 5
        %v1128 = vsel %vm1096, %v1126, %v1127
        %v1129 = vrot.slane %v1127, 4
        %v1130 = vrot.slane %v631, 5
        %v1131 = vsel %vm1096, %v1129, %v1130
        %v1132 = vrot.slane %v1035, 5
        %v1133 = vrot.slane %v1132, 4
        %v1134 = vrot.slane %v606, 5
        %v1135 = vsel %vm1096, %v1133, %v1134
        %v1136 = vrot.slane %v1134, 4
        %v1137 = vrot.slane %v632, 5
        %v1138 = vsel %vm1096, %v1136, %v1137
        %v1139 = vrot.slane %v1036, 5
        %v1140 = vrot.slane %v1139, 4
        %v1141 = vrot.slane %v608, 5
        %v1142 = vsel %vm1096, %v1140, %v1141
        %v1143 = vrot.slane %v1141, 4
        %v1144 = vrot.slane %v633, 5
        %v1145 = vsel %vm1096, %v1143, %v1144
        %v1146 = vrot.slane %v1037, 5
        %v1147 = vrot.slane %v1146, 4
        %v1148 = vrot.slane %v610, 5
        %v1149 = vsel %vm1096, %v1147, %v1148
        %v1150 = vrot.slane %v1148, 4
        %v1151 = vrot.slane %v634, 5
        %v1152 = vsel %vm1096, %v1150, %v1151
        %v1153 = vrot.slane %v1038, 5
        %v1154 = vrot.slane %v1153, 4
        %v1155 = vrot.slane %v612, 5
        %v1156 = vsel %vm1096, %v1154, %v1155
        %v1157 = vrot.slane %v1155, 4
        %v1158 = vrot.slane %v635, 5
        %v1159 = vsel %vm1096, %v1157, %v1158
        %v1160 = vrot.slane %v1039, 5
        %v1161 = vrot.slane %v1160, 4
        %v1162 = vrot.slane %v614, 5
        %v1163 = vsel %vm1096, %v1161, %v1162
        %v1164 = vrot.slane %v1162, 4
        %v1165 = vrot.slane %v636, 5
        %v1166 = vsel %vm1096, %v1164, %v1165
        %v1167 = vrot.slane %v1040, 5
        %v1168 = vrot.slane %v1167, 4
        %v1169 = vrot.slane %v616, 5
        %v1170 = vsel %vm1096, %v1168, %v1169
        %v1171 = vrot.slane %v1169, 4
        %v1172 = vrot.slane %v637, 5
        %v1173 = vsel %vm1096, %v1171, %v1172
        %v1174 = vrot.slane %v1041, 5
        %v1175 = vrot.slane %v1174, 4
        %v1176 = vrot.slane %v618, 5
        %v1177 = vsel %vm1096, %v1175, %v1176
        %v1178 = vrot.slane %v1176, 4
        %v1179 = vrot.slane %v638, 5
        %v1180 = vsel %vm1096, %v1178, %v1179
        %v1181 = vrot.slane %v1042, 5
        %v1182 = vrot.slane %v1181, 4
        %v1183 = vrot.slane %v620, 5
        %v1184 = vsel %vm1096, %v1182, %v1183
        %v1185 = vrot.slane %v1183, 4
        %v1186 = vrot.slane %v639, 5
        %v1187 = vsel %vm1096, %v1185, %v1186
        %v1188 = vrot.slane %v1043, 5
        %v1189 = vrot.slane %v1188, 4
        %v1190 = vrot.slane %v622, 5
        %v1191 = vsel %vm1096, %v1189, %v1190
        %v1192 = vrot.slane %v1190, 4
        %v1193 = vrot.slane %v640, 5
        %v1194 = vsel %vm1096, %v1192, %v1193
        %v1195 = vrot.slane %v1044, 5
        %v1196 = vrot.slane %v1195, 4
        %v1197 = vrot.slane %v624, 5
        %v1198 = vsel %vm1096, %v1196, %v1197
        %v1199 = vrot.slane %v1197, 4
        %v1200 = vrot.slane %v641, 5
        %v1201 = vsel %vm1096, %v1199, %v1200
        %v1202 = vrot.slane %v1045, 5
        %v1203 = vrot.slane %v1202, 4
        %v1204 = vrot.slane %v626, 5
        %v1205 = vsel %vm1096, %v1203, %v1204
        %v1206 = vrot.slane %v1204, 4
        %v1207 = vrot.slane %v642, 5
        %v1208 = vsel %vm1096, %v1206, %v1207
        %s1209 = scalar_lea.vmem %s356, 12
        %v1210 = vld [vmem:[%s1209] sm:$0xf]
        %v1211 = vld [vmem:[%s1209 + $0x4] sm:$0xf]
        %v1212 = vld [vmem:[%s1209 + $0xc] sm:$0xf]
        %v1213 = vld [vmem:[%s1209 + $0x10] sm:$0xf]
        %v1214 = vld [vmem:[%s1209 + $0x18] sm:$0xf]
        %v1215 = vld [vmem:[%s1209 + $0x1c] sm:$0xf]
        %v1216 = vld [vmem:[%s1209 + $0x24] sm:$0xf]
        %v1217 = vld [vmem:[%s1209 + $0x28] sm:$0xf]
        %v1218 = vld [vmem:[%s1209 + $0x30] sm:$0xf]
        %v1219 = vld [vmem:[%s1209 + $0x34] sm:$0xf]
        %v1220 = vld [vmem:[%s1209 + $0x3c] sm:$0xf]
        %v1221 = vld [vmem:[%s1209 + $0x40] sm:$0xf]
        %v1222 = vld [vmem:[%s1209 + $0x48] sm:$0xf]
        %v1223 = vld [vmem:[%s1209 + $0x4c] sm:$0xf]
        %v1224 = vld [vmem:[%s1209 + $0x54] sm:$0xf]
        %v1225 = vld [vmem:[%s1209 + $0x58] sm:$0xf]
        %v1226 = vld [vmem:[%s1209 + $0x60] sm:$0xf]
        %v1227 = vld [vmem:[%s1209 + $0x64] sm:$0xf]
        %v1228 = vld [vmem:[%s1209 + $0x6c] sm:$0xf]
        %v1229 = vld [vmem:[%s1209 + $0x70] sm:$0xf]
        %v1230 = vld [vmem:[%s1209 + $0x78] sm:$0xf]
        %v1231 = vld [vmem:[%s1209 + $0x7c] sm:$0xf]
        %v1232 = vld [vmem:[%s1209 + $0x84] sm:$0xf]
        %v1233 = vld [vmem:[%s1209 + $0x88] sm:$0xf]
        %v1234 = vld [vmem:[%s1209 + $0x90] sm:$0xf]
        %v1235 = vld [vmem:[%s1209 + $0x94] sm:$0xf]
        %v1236 = vld [vmem:[%s1209 + $0x9c] sm:$0xf]
        %v1237 = vld [vmem:[%s1209 + $0xa0] sm:$0xf]
        %v1238 = vld [vmem:[%s1209 + $0xa8] sm:$0xf]
        %v1239 = vld [vmem:[%s1209 + $0xac] sm:$0xf]
        %v1240 = vld [vmem:[%s1209 + $0xb4] sm:$0xf]
        %v1241 = vld [vmem:[%s1209 + $0xb8] sm:$0xf]
        %v1242 = vld [vmem:[%s1209 + $0x8] sm:$0x1]
        %v1243 = vld [vmem:[%s1209 + $0x14] sm:$0x1]
        %v1244 = vld [vmem:[%s1209 + $0x20] sm:$0x1]
        %v1245 = vld [vmem:[%s1209 + $0x2c] sm:$0x1]
        %v1246 = vld [vmem:[%s1209 + $0x38] sm:$0x1]
        %v1247 = vld [vmem:[%s1209 + $0x44] sm:$0x1]
        %v1248 = vld [vmem:[%s1209 + $0x50] sm:$0x1]
        %v1249 = vld [vmem:[%s1209 + $0x5c] sm:$0x1]
        %v1250 = vld [vmem:[%s1209 + $0x68] sm:$0x1]
        %v1251 = vld [vmem:[%s1209 + $0x74] sm:$0x1]
        %v1252 = vld [vmem:[%s1209 + $0x80] sm:$0x1]
        %v1253 = vld [vmem:[%s1209 + $0x8c] sm:$0x1]
        %v1254 = vld [vmem:[%s1209 + $0x98] sm:$0x1]
        %v1255 = vld [vmem:[%s1209 + $0xa4] sm:$0x1]
        %v1256 = vld [vmem:[%s1209 + $0xb0] sm:$0x1]
        %v1257 = vld [vmem:[%s1209 + $0xbc] sm:$0x1]
        %v1259 = vshrl.u32 %v1210, 16
        %v1261 = vrot.slane %v1259, 4
        %v1262 = vshll.u32 %v1210, 16
        %v1264 = vrot.slane %v1262, 5
        %v1265 = vor.u32 %v1261, %v1264
        %v1266 = vrot.slane %v1265, 4
        %v1268 = vshll.u32 %v1211, 16
        %v1270 = vrot.slane %v1268, 5
        %v1271 = vsel %vm645, %v1266, %v1270
        %v1272 = vshrl.u32 %v1211, 16
        %v1274 = vrot.slane %v1272, 4
        %v1275 = vor.u32 %v1274, %v1270
        %v1276 = vrot.slane %v1275, 4
        %v1278 = vshll.u32 %v1242, 16
        %v1280 = vrot.slane %v1278, 5
        %v1281 = vsel %vm645, %v1276, %v1280
        %v1283 = vshrl.u32 %v1212, 16
        %v1285 = vrot.slane %v1283, 4
        %v1286 = vshll.u32 %v1212, 16
        %v1288 = vrot.slane %v1286, 5
        %v1289 = vor.u32 %v1285, %v1288
        %v1290 = vrot.slane %v1289, 4
        %v1292 = vshll.u32 %v1213, 16
        %v1294 = vrot.slane %v1292, 5
        %v1295 = vsel %vm645, %v1290, %v1294
        %v1296 = vshrl.u32 %v1213, 16
        %v1298 = vrot.slane %v1296, 4
        %v1299 = vor.u32 %v1298, %v1294
        %v1300 = vrot.slane %v1299, 4
        %v1302 = vshll.u32 %v1243, 16
        %v1304 = vrot.slane %v1302, 5
        %v1305 = vsel %vm645, %v1300, %v1304
        %v1307 = vshrl.u32 %v1214, 16
        %v1309 = vrot.slane %v1307, 4
        %v1310 = vshll.u32 %v1214, 16
        %v1312 = vrot.slane %v1310, 5
        %v1313 = vor.u32 %v1309, %v1312
        %v1314 = vrot.slane %v1313, 4
        %v1316 = vshll.u32 %v1215, 16
        %v1318 = vrot.slane %v1316, 5
        %v1319 = vsel %vm645, %v1314, %v1318
        %v1320 = vshrl.u32 %v1215, 16
        %v1322 = vrot.slane %v1320, 4
        %v1323 = vor.u32 %v1322, %v1318
        %v1324 = vrot.slane %v1323, 4
        %v1326 = vshll.u32 %v1244, 16
        %v1328 = vrot.slane %v1326, 5
        %v1329 = vsel %vm645, %v1324, %v1328
        %v1331 = vshrl.u32 %v1216, 16
        %v1333 = vrot.slane %v1331, 4
        %v1334 = vshll.u32 %v1216, 16
        %v1336 = vrot.slane %v1334, 5
        %v1337 = vor.u32 %v1333, %v1336
        %v1338 = vrot.slane %v1337, 4
        %v1340 = vshll.u32 %v1217, 16
        %v1342 = vrot.slane %v1340, 5
        %v1343 = vsel %vm645, %v1338, %v1342
        %v1344 = vshrl.u32 %v1217, 16
        %v1346 = vrot.slane %v1344, 4
        %v1347 = vor.u32 %v1346, %v1342
        %v1348 = vrot.slane %v1347, 4
        %v1350 = vshll.u32 %v1245, 16
        %v1352 = vrot.slane %v1350, 5
        %v1353 = vsel %vm645, %v1348, %v1352
        %v1355 = vshrl.u32 %v1218, 16
        %v1357 = vrot.slane %v1355, 4
        %v1358 = vshll.u32 %v1218, 16
        %v1360 = vrot.slane %v1358, 5
        %v1361 = vor.u32 %v1357, %v1360
        %v1362 = vrot.slane %v1361, 4
        %v1364 = vshll.u32 %v1219, 16
        %v1366 = vrot.slane %v1364, 5
        %v1367 = vsel %vm645, %v1362, %v1366
        %v1368 = vshrl.u32 %v1219, 16
        %v1370 = vrot.slane %v1368, 4
        %v1371 = vor.u32 %v1370, %v1366
        %v1372 = vrot.slane %v1371, 4
        %v1374 = vshll.u32 %v1246, 16
        %v1376 = vrot.slane %v1374, 5
        %v1377 = vsel %vm645, %v1372, %v1376
        %v1379 = vshrl.u32 %v1220, 16
        %v1381 = vrot.slane %v1379, 4
        %v1382 = vshll.u32 %v1220, 16
        %v1384 = vrot.slane %v1382, 5
        %v1385 = vor.u32 %v1381, %v1384
        %v1386 = vrot.slane %v1385, 4
        %v1388 = vshll.u32 %v1221, 16
        %v1390 = vrot.slane %v1388, 5
        %v1391 = vsel %vm645, %v1386, %v1390
        %v1392 = vshrl.u32 %v1221, 16
        %v1394 = vrot.slane %v1392, 4
        %v1395 = vor.u32 %v1394, %v1390
        %v1396 = vrot.slane %v1395, 4
        %v1398 = vshll.u32 %v1247, 16
        %v1400 = vrot.slane %v1398, 5
        %v1401 = vsel %vm645, %v1396, %v1400
        %v1403 = vshrl.u32 %v1222, 16
        %v1405 = vrot.slane %v1403, 4
        %v1406 = vshll.u32 %v1222, 16
        %v1408 = vrot.slane %v1406, 5
        %v1409 = vor.u32 %v1405, %v1408
        %v1410 = vrot.slane %v1409, 4
        %v1412 = vshll.u32 %v1223, 16
        %v1414 = vrot.slane %v1412, 5
        %v1415 = vsel %vm645, %v1410, %v1414
        %v1416 = vshrl.u32 %v1223, 16
        %v1418 = vrot.slane %v1416, 4
        %v1419 = vor.u32 %v1418, %v1414
        %v1420 = vrot.slane %v1419, 4
        %v1422 = vshll.u32 %v1248, 16
        %v1424 = vrot.slane %v1422, 5
        %v1425 = vsel %vm645, %v1420, %v1424
        %v1427 = vshrl.u32 %v1224, 16
        %v1429 = vrot.slane %v1427, 4
        %v1430 = vshll.u32 %v1224, 16
        %v1432 = vrot.slane %v1430, 5
        %v1433 = vor.u32 %v1429, %v1432
        %v1434 = vrot.slane %v1433, 4
        %v1436 = vshll.u32 %v1225, 16
        %v1438 = vrot.slane %v1436, 5
        %v1439 = vsel %vm645, %v1434, %v1438
        %v1440 = vshrl.u32 %v1225, 16
        %v1442 = vrot.slane %v1440, 4
        %v1443 = vor.u32 %v1442, %v1438
        %v1444 = vrot.slane %v1443, 4
        %v1446 = vshll.u32 %v1249, 16
        %v1448 = vrot.slane %v1446, 5
        %v1449 = vsel %vm645, %v1444, %v1448
        %v1451 = vshrl.u32 %v1226, 16
        %v1453 = vrot.slane %v1451, 4
        %v1454 = vshll.u32 %v1226, 16
        %v1456 = vrot.slane %v1454, 5
        %v1457 = vor.u32 %v1453, %v1456
        %v1458 = vrot.slane %v1457, 4
        %v1460 = vshll.u32 %v1227, 16
        %v1462 = vrot.slane %v1460, 5
        %v1463 = vsel %vm645, %v1458, %v1462
        %v1464 = vshrl.u32 %v1227, 16
        %v1466 = vrot.slane %v1464, 4
        %v1467 = vor.u32 %v1466, %v1462
        %v1468 = vrot.slane %v1467, 4
        %v1470 = vshll.u32 %v1250, 16
        %v1472 = vrot.slane %v1470, 5
        %v1473 = vsel %vm645, %v1468, %v1472
        %v1475 = vshrl.u32 %v1228, 16
        %v1477 = vrot.slane %v1475, 4
        %v1478 = vshll.u32 %v1228, 16
        %v1480 = vrot.slane %v1478, 5
        %v1481 = vor.u32 %v1477, %v1480
        %v1482 = vrot.slane %v1481, 4
        %v1484 = vshll.u32 %v1229, 16
        %v1486 = vrot.slane %v1484, 5
        %v1487 = vsel %vm645, %v1482, %v1486
        %v1488 = vshrl.u32 %v1229, 16
        %v1490 = vrot.slane %v1488, 4
        %v1491 = vor.u32 %v1490, %v1486
        %v1492 = vrot.slane %v1491, 4
        %v1494 = vshll.u32 %v1251, 16
        %v1496 = vrot.slane %v1494, 5
        %v1497 = vsel %vm645, %v1492, %v1496
        %v1499 = vshrl.u32 %v1230, 16
        %v1501 = vrot.slane %v1499, 4
        %v1502 = vshll.u32 %v1230, 16
        %v1504 = vrot.slane %v1502, 5
        %v1505 = vor.u32 %v1501, %v1504
        %v1506 = vrot.slane %v1505, 4
        %v1508 = vshll.u32 %v1231, 16
        %v1510 = vrot.slane %v1508, 5
        %v1511 = vsel %vm645, %v1506, %v1510
        %v1512 = vshrl.u32 %v1231, 16
        %v1514 = vrot.slane %v1512, 4
        %v1515 = vor.u32 %v1514, %v1510
        %v1516 = vrot.slane %v1515, 4
        %v1518 = vshll.u32 %v1252, 16
        %v1520 = vrot.slane %v1518, 5
        %v1521 = vsel %vm645, %v1516, %v1520
        %v1523 = vshrl.u32 %v1232, 16
        %v1525 = vrot.slane %v1523, 4
        %v1526 = vshll.u32 %v1232, 16
        %v1528 = vrot.slane %v1526, 5
        %v1529 = vor.u32 %v1525, %v1528
        %v1530 = vrot.slane %v1529, 4
        %v1532 = vshll.u32 %v1233, 16
        %v1534 = vrot.slane %v1532, 5
        %v1535 = vsel %vm645, %v1530, %v1534
        %v1536 = vshrl.u32 %v1233, 16
        %v1538 = vrot.slane %v1536, 4
        %v1539 = vor.u32 %v1538, %v1534
        %v1540 = vrot.slane %v1539, 4
        %v1542 = vshll.u32 %v1253, 16
        %v1544 = vrot.slane %v1542, 5
        %v1545 = vsel %vm645, %v1540, %v1544
        %v1547 = vshrl.u32 %v1234, 16
        %v1549 = vrot.slane %v1547, 4
        %v1550 = vshll.u32 %v1234, 16
        %v1552 = vrot.slane %v1550, 5
        %v1553 = vor.u32 %v1549, %v1552
        %v1554 = vrot.slane %v1553, 4
        %v1556 = vshll.u32 %v1235, 16
        %v1558 = vrot.slane %v1556, 5
        %v1559 = vsel %vm645, %v1554, %v1558
        %v1560 = vshrl.u32 %v1235, 16
        %v1562 = vrot.slane %v1560, 4
        %v1563 = vor.u32 %v1562, %v1558
        %v1564 = vrot.slane %v1563, 4
        %v1566 = vshll.u32 %v1254, 16
        %v1568 = vrot.slane %v1566, 5
        %v1569 = vsel %vm645, %v1564, %v1568
        %v1571 = vshrl.u32 %v1236, 16
        %v1573 = vrot.slane %v1571, 4
        %v1574 = vshll.u32 %v1236, 16
        %v1576 = vrot.slane %v1574, 5
        %v1577 = vor.u32 %v1573, %v1576
        %v1578 = vrot.slane %v1577, 4
        %v1580 = vshll.u32 %v1237, 16
        %v1582 = vrot.slane %v1580, 5
        %v1583 = vsel %vm645, %v1578, %v1582
        %v1584 = vshrl.u32 %v1237, 16
        %v1586 = vrot.slane %v1584, 4
        %v1587 = vor.u32 %v1586, %v1582
        %v1588 = vrot.slane %v1587, 4
        %v1590 = vshll.u32 %v1255, 16
        %v1592 = vrot.slane %v1590, 5
        %v1593 = vsel %vm645, %v1588, %v1592
        %v1595 = vshrl.u32 %v1238, 16
        %v1597 = vrot.slane %v1595, 4
        %v1598 = vshll.u32 %v1238, 16
        %v1600 = vrot.slane %v1598, 5
        %v1601 = vor.u32 %v1597, %v1600
        %v1602 = vrot.slane %v1601, 4
        %v1604 = vshll.u32 %v1239, 16
        %v1606 = vrot.slane %v1604, 5
        %v1607 = vsel %vm645, %v1602, %v1606
        %v1608 = vshrl.u32 %v1239, 16
        %v1610 = vrot.slane %v1608, 4
        %v1611 = vor.u32 %v1610, %v1606
        %v1612 = vrot.slane %v1611, 4
        %v1614 = vshll.u32 %v1256, 16
        %v1616 = vrot.slane %v1614, 5
        %v1617 = vsel %vm645, %v1612, %v1616
        %v1619 = vshrl.u32 %v1240, 16
        %v1621 = vrot.slane %v1619, 4
        %v1622 = vshll.u32 %v1240, 16
        %v1624 = vrot.slane %v1622, 5
        %v1625 = vor.u32 %v1621, %v1624
        %v1626 = vrot.slane %v1625, 4
        %v1628 = vshll.u32 %v1241, 16
        %v1630 = vrot.slane %v1628, 5
        %v1631 = vsel %vm645, %v1626, %v1630
        %v1632 = vshrl.u32 %v1241, 16
        %v1634 = vrot.slane %v1632, 4
        %v1635 = vor.u32 %v1634, %v1630
        %v1636 = vrot.slane %v1635, 4
        %v1638 = vshll.u32 %v1257, 16
        %v1640 = vrot.slane %v1638, 5
        %v1641 = vsel %vm645, %v1636, %v1640
        %v1642 = vld [vmem:[%s1209] sm:$0xe]
        %v1643 = vld [vmem:[%s1209 + $0xc] sm:$0xe]
        %v1644 = vld [vmem:[%s1209 + $0x18] sm:$0xe]
        %v1645 = vld [vmem:[%s1209 + $0x24] sm:$0xe]
        %v1646 = vld [vmem:[%s1209 + $0x30] sm:$0xe]
        %v1647 = vld [vmem:[%s1209 + $0x3c] sm:$0xe]
        %v1648 = vld [vmem:[%s1209 + $0x48] sm:$0xe]
        %v1649 = vld [vmem:[%s1209 + $0x54] sm:$0xe]
        %v1650 = vld [vmem:[%s1209 + $0x60] sm:$0xe]
        %v1651 = vld [vmem:[%s1209 + $0x6c] sm:$0xe]
        %v1652 = vld [vmem:[%s1209 + $0x78] sm:$0xe]
        %v1653 = vld [vmem:[%s1209 + $0x84] sm:$0xe]
        %v1654 = vld [vmem:[%s1209 + $0x90] sm:$0xe]
        %v1655 = vld [vmem:[%s1209 + $0x9c] sm:$0xe]
        %v1656 = vld [vmem:[%s1209 + $0xa8] sm:$0xe]
        %v1657 = vld [vmem:[%s1209 + $0xb4] sm:$0xe]
        %v1706 = vrot.slane %v1642, 5
        %v1707 = vrot.slane %v1706, 4
        %v1708 = vrot.slane %v1211, 5
        %v1709 = vsel %vm1096, %v1707, %v1708
        %v1710 = vrot.slane %v1708, 4
        %v1711 = vrot.slane %v1242, 5
        %v1712 = vsel %vm1096, %v1710, %v1711
        %v1713 = vrot.slane %v1643, 5
        %v1714 = vrot.slane %v1713, 4
        %v1715 = vrot.slane %v1213, 5
        %v1716 = vsel %vm1096, %v1714, %v1715
        %v1717 = vrot.slane %v1715, 4
        %v1718 = vrot.slane %v1243, 5
        %v1719 = vsel %vm1096, %v1717, %v1718
        %v1720 = vrot.slane %v1644, 5
        %v1721 = vrot.slane %v1720, 4
        %v1722 = vrot.slane %v1215, 5
        %v1723 = vsel %vm1096, %v1721, %v1722
        %v1724 = vrot.slane %v1722, 4
        %v1725 = vrot.slane %v1244, 5
        %v1726 = vsel %vm1096, %v1724, %v1725
        %v1727 = vrot.slane %v1645, 5
        %v1728 = vrot.slane %v1727, 4
        %v1729 = vrot.slane %v1217, 5
        %v1730 = vsel %vm1096, %v1728, %v1729
        %v1731 = vrot.slane %v1729, 4
        %v1732 = vrot.slane %v1245, 5
        %v1733 = vsel %vm1096, %v1731, %v1732
        %v1734 = vrot.slane %v1646, 5
        %v1735 = vrot.slane %v1734, 4
        %v1736 = vrot.slane %v1219, 5
        %v1737 = vsel %vm1096, %v1735, %v1736
        %v1738 = vrot.slane %v1736, 4
        %v1739 = vrot.slane %v1246, 5
        %v1740 = vsel %vm1096, %v1738, %v1739
        %v1741 = vrot.slane %v1647, 5
        %v1742 = vrot.slane %v1741, 4
        %v1743 = vrot.slane %v1221, 5
        %v1744 = vsel %vm1096, %v1742, %v1743
        %v1745 = vrot.slane %v1743, 4
        %v1746 = vrot.slane %v1247, 5
        %v1747 = vsel %vm1096, %v1745, %v1746
        %v1748 = vrot.slane %v1648, 5
        %v1749 = vrot.slane %v1748, 4
        %v1750 = vrot.slane %v1223, 5
        %v1751 = vsel %vm1096, %v1749, %v1750
        %v1752 = vrot.slane %v1750, 4
        %v1753 = vrot.slane %v1248, 5
        %v1754 = vsel %vm1096, %v1752, %v1753
        %v1755 = vrot.slane %v1649, 5
        %v1756 = vrot.slane %v1755, 4
        %v1757 = vrot.slane %v1225, 5
        %v1758 = vsel %vm1096, %v1756, %v1757
        %v1759 = vrot.slane %v1757, 4
        %v1760 = vrot.slane %v1249, 5
        %v1761 = vsel %vm1096, %v1759, %v1760
        %v1762 = vrot.slane %v1650, 5
        %v1763 = vrot.slane %v1762, 4
        %v1764 = vrot.slane %v1227, 5
        %v1765 = vsel %vm1096, %v1763, %v1764
        %v1766 = vrot.slane %v1764, 4
        %v1767 = vrot.slane %v1250, 5
        %v1768 = vsel %vm1096, %v1766, %v1767
        %v1769 = vrot.slane %v1651, 5
        %v1770 = vrot.slane %v1769, 4
        %v1771 = vrot.slane %v1229, 5
        %v1772 = vsel %vm1096, %v1770, %v1771
        %v1773 = vrot.slane %v1771, 4
        %v1774 = vrot.slane %v1251, 5
        %v1775 = vsel %vm1096, %v1773, %v1774
        %v1776 = vrot.slane %v1652, 5
        %v1777 = vrot.slane %v1776, 4
        %v1778 = vrot.slane %v1231, 5
        %v1779 = vsel %vm1096, %v1777, %v1778
        %v1780 = vrot.slane %v1778, 4
        %v1781 = vrot.slane %v1252, 5
        %v1782 = vsel %vm1096, %v1780, %v1781
        %v1783 = vrot.slane %v1653, 5
        %v1784 = vrot.slane %v1783, 4
        %v1785 = vrot.slane %v1233, 5
        %v1786 = vsel %vm1096, %v1784, %v1785
        %v1787 = vrot.slane %v1785, 4
        %v1788 = vrot.slane %v1253, 5
        %v1789 = vsel %vm1096, %v1787, %v1788
        %v1790 = vrot.slane %v1654, 5
        %v1791 = vrot.slane %v1790, 4
        %v1792 = vrot.slane %v1235, 5
        %v1793 = vsel %vm1096, %v1791, %v1792
        %v1794 = vrot.slane %v1792, 4
        %v1795 = vrot.slane %v1254, 5
        %v1796 = vsel %vm1096, %v1794, %v1795
        %v1797 = vrot.slane %v1655, 5
        %v1798 = vrot.slane %v1797, 4
        %v1799 = vrot.slane %v1237, 5
        %v1800 = vsel %vm1096, %v1798, %v1799
        %v1801 = vrot.slane %v1799, 4
        %v1802 = vrot.slane %v1255, 5
        %v1803 = vsel %vm1096, %v1801, %v1802
        %v1804 = vrot.slane %v1656, 5
        %v1805 = vrot.slane %v1804, 4
        %v1806 = vrot.slane %v1239, 5
        %v1807 = vsel %vm1096, %v1805, %v1806
        %v1808 = vrot.slane %v1806, 4
        %v1809 = vrot.slane %v1256, 5
        %v1810 = vsel %vm1096, %v1808, %v1809
        %v1811 = vrot.slane %v1657, 5
        %v1812 = vrot.slane %v1811, 4
        %v1813 = vrot.slane %v1241, 5
        %v1814 = vsel %vm1096, %v1812, %v1813
        %v1815 = vrot.slane %v1813, 4
        %v1816 = vrot.slane %v1257, 5
        %v1817 = vsel %vm1096, %v1815, %v1816
        %s1818 = scalar_lea.vmem %s356, 24
        %v1819 = vld [vmem:[%s1818] sm:$0xf]
        %v1820 = vld [vmem:[%s1818 + $0x4] sm:$0xf]
        %v1821 = vld [vmem:[%s1818 + $0xc] sm:$0xf]
        %v1822 = vld [vmem:[%s1818 + $0x10] sm:$0xf]
        %v1823 = vld [vmem:[%s1818 + $0x18] sm:$0xf]
        %v1824 = vld [vmem:[%s1818 + $0x1c] sm:$0xf]
        %v1825 = vld [vmem:[%s1818 + $0x24] sm:$0xf]
        %v1826 = vld [vmem:[%s1818 + $0x28] sm:$0xf]
        %v1827 = vld [vmem:[%s1818 + $0x30] sm:$0xf]
        %v1828 = vld [vmem:[%s1818 + $0x34] sm:$0xf]
        %v1829 = vld [vmem:[%s1818 + $0x3c] sm:$0xf]
        %v1830 = vld [vmem:[%s1818 + $0x40] sm:$0xf]
        %v1831 = vld [vmem:[%s1818 + $0x48] sm:$0xf]
        %v1832 = vld [vmem:[%s1818 + $0x4c] sm:$0xf]
        %v1833 = vld [vmem:[%s1818 + $0x54] sm:$0xf]
        %v1834 = vld [vmem:[%s1818 + $0x58] sm:$0xf]
        %v1835 = vld [vmem:[%s1818 + $0x60] sm:$0xf]
        %v1836 = vld [vmem:[%s1818 + $0x64] sm:$0xf]
        %v1837 = vld [vmem:[%s1818 + $0x6c] sm:$0xf]
        %v1838 = vld [vmem:[%s1818 + $0x70] sm:$0xf]
        %v1839 = vld [vmem:[%s1818 + $0x78] sm:$0xf]
        %v1840 = vld [vmem:[%s1818 + $0x7c] sm:$0xf]
        %v1841 = vld [vmem:[%s1818 + $0x84] sm:$0xf]
        %v1842 = vld [vmem:[%s1818 + $0x88] sm:$0xf]
        %v1843 = vld [vmem:[%s1818 + $0x90] sm:$0xf]
        %v1844 = vld [vmem:[%s1818 + $0x94] sm:$0xf]
        %v1845 = vld [vmem:[%s1818 + $0x9c] sm:$0xf]
        %v1846 = vld [vmem:[%s1818 + $0xa0] sm:$0xf]
        %v1847 = vld [vmem:[%s1818 + $0xa8] sm:$0xf]
        %v1848 = vld [vmem:[%s1818 + $0xac] sm:$0xf]
        %v1849 = vld [vmem:[%s1818 + $0xb4] sm:$0xf]
        %v1850 = vld [vmem:[%s1818 + $0xb8] sm:$0xf]
        %v1851 = vld [vmem:[%s1818 + $0x8] sm:$0x1]
        %v1852 = vld [vmem:[%s1818 + $0x14] sm:$0x1]
        %v1853 = vld [vmem:[%s1818 + $0x20] sm:$0x1]
        %v1854 = vld [vmem:[%s1818 + $0x2c] sm:$0x1]
        %v1855 = vld [vmem:[%s1818 + $0x38] sm:$0x1]
        %v1856 = vld [vmem:[%s1818 + $0x44] sm:$0x1]
        %v1857 = vld [vmem:[%s1818 + $0x50] sm:$0x1]
        %v1858 = vld [vmem:[%s1818 + $0x5c] sm:$0x1]
        %v1859 = vld [vmem:[%s1818 + $0x68] sm:$0x1]
        %v1860 = vld [vmem:[%s1818 + $0x74] sm:$0x1]
        %v1861 = vld [vmem:[%s1818 + $0x80] sm:$0x1]
        %v1862 = vld [vmem:[%s1818 + $0x8c] sm:$0x1]
        %v1863 = vld [vmem:[%s1818 + $0x98] sm:$0x1]
        %v1864 = vld [vmem:[%s1818 + $0xa4] sm:$0x1]
        %v1865 = vld [vmem:[%s1818 + $0xb0] sm:$0x1]
        %v1866 = vld [vmem:[%s1818 + $0xbc] sm:$0x1]
        %v1868 = vshrl.u32 %v1819, 16
        %v1870 = vrot.slane %v1868, 4
        %v1871 = vshll.u32 %v1819, 16
        %v1873 = vrot.slane %v1871, 5
        %v1874 = vor.u32 %v1870, %v1873
        %v1875 = vrot.slane %v1874, 4
        %v1877 = vshll.u32 %v1820, 16
        %v1879 = vrot.slane %v1877, 5
        %v1880 = vsel %vm645, %v1875, %v1879
        %v1881 = vshrl.u32 %v1820, 16
        %v1883 = vrot.slane %v1881, 4
        %v1884 = vor.u32 %v1883, %v1879
        %v1885 = vrot.slane %v1884, 4
        %v1887 = vshll.u32 %v1851, 16
        %v1889 = vrot.slane %v1887, 5
        %v1890 = vsel %vm645, %v1885, %v1889
        %v1892 = vshrl.u32 %v1821, 16
        %v1894 = vrot.slane %v1892, 4
        %v1895 = vshll.u32 %v1821, 16
        %v1897 = vrot.slane %v1895, 5
        %v1898 = vor.u32 %v1894, %v1897
        %v1899 = vrot.slane %v1898, 4
        %v1901 = vshll.u32 %v1822, 16
        %v1903 = vrot.slane %v1901, 5
        %v1904 = vsel %vm645, %v1899, %v1903
        %v1905 = vshrl.u32 %v1822, 16
        %v1907 = vrot.slane %v1905, 4
        %v1908 = vor.u32 %v1907, %v1903
        %v1909 = vrot.slane %v1908, 4
        %v1911 = vshll.u32 %v1852, 16
        %v1913 = vrot.slane %v1911, 5
        %v1914 = vsel %vm645, %v1909, %v1913
        %v1916 = vshrl.u32 %v1823, 16
        %v1918 = vrot.slane %v1916, 4
        %v1919 = vshll.u32 %v1823, 16
        %v1921 = vrot.slane %v1919, 5
        %v1922 = vor.u32 %v1918, %v1921
        %v1923 = vrot.slane %v1922, 4
        %v1925 = vshll.u32 %v1824, 16
        %v1927 = vrot.slane %v1925, 5
        %v1928 = vsel %vm645, %v1923, %v1927
        %v1929 = vshrl.u32 %v1824, 16
        %v1931 = vrot.slane %v1929, 4
        %v1932 = vor.u32 %v1931, %v1927
        %v1933 = vrot.slane %v1932, 4
        %v1935 = vshll.u32 %v1853, 16
        %v1937 = vrot.slane %v1935, 5
        %v1938 = vsel %vm645, %v1933, %v1937
        %v1940 = vshrl.u32 %v1825, 16
        %v1942 = vrot.slane %v1940, 4
        %v1943 = vshll.u32 %v1825, 16
        %v1945 = vrot.slane %v1943, 5
        %v1946 = vor.u32 %v1942, %v1945
        %v1947 = vrot.slane %v1946, 4
        %v1949 = vshll.u32 %v1826, 16
        %v1951 = vrot.slane %v1949, 5
        %v1952 = vsel %vm645, %v1947, %v1951
        %v1953 = vshrl.u32 %v1826, 16
        %v1955 = vrot.slane %v1953, 4
        %v1956 = vor.u32 %v1955, %v1951
        %v1957 = vrot.slane %v1956, 4
        %v1959 = vshll.u32 %v1854, 16
        %v1961 = vrot.slane %v1959, 5
        %v1962 = vsel %vm645, %v1957, %v1961
        %v1964 = vshrl.u32 %v1827, 16
        %v1966 = vrot.slane %v1964, 4
        %v1967 = vshll.u32 %v1827, 16
        %v1969 = vrot.slane %v1967, 5
        %v1970 = vor.u32 %v1966, %v1969
        %v1971 = vrot.slane %v1970, 4
        %v1973 = vshll.u32 %v1828, 16
        %v1975 = vrot.slane %v1973, 5
        %v1976 = vsel %vm645, %v1971, %v1975
        %v1977 = vshrl.u32 %v1828, 16
        %v1979 = vrot.slane %v1977, 4
        %v1980 = vor.u32 %v1979, %v1975
        %v1981 = vrot.slane %v1980, 4
        %v1983 = vshll.u32 %v1855, 16
        %v1985 = vrot.slane %v1983, 5
        %v1986 = vsel %vm645, %v1981, %v1985
        %v1988 = vshrl.u32 %v1829, 16
        %v1990 = vrot.slane %v1988, 4
        %v1991 = vshll.u32 %v1829, 16
        %v1993 = vrot.slane %v1991, 5
        %v1994 = vor.u32 %v1990, %v1993
        %v1995 = vrot.slane %v1994, 4
        %v1997 = vshll.u32 %v1830, 16
        %v1999 = vrot.slane %v1997, 5
        %v2000 = vsel %vm645, %v1995, %v1999
        %v2001 = vshrl.u32 %v1830, 16
        %v2003 = vrot.slane %v2001, 4
        %v2004 = vor.u32 %v2003, %v1999
        %v2005 = vrot.slane %v2004, 4
        %v2007 = vshll.u32 %v1856, 16
        %v2009 = vrot.slane %v2007, 5
        %v2010 = vsel %vm645, %v2005, %v2009
        %v2012 = vshrl.u32 %v1831, 16
        %v2014 = vrot.slane %v2012, 4
        %v2015 = vshll.u32 %v1831, 16
        %v2017 = vrot.slane %v2015, 5
        %v2018 = vor.u32 %v2014, %v2017
        %v2019 = vrot.slane %v2018, 4
        %v2021 = vshll.u32 %v1832, 16
        %v2023 = vrot.slane %v2021, 5
        %v2024 = vsel %vm645, %v2019, %v2023
        %v2025 = vshrl.u32 %v1832, 16
        %v2027 = vrot.slane %v2025, 4
        %v2028 = vor.u32 %v2027, %v2023
        %v2029 = vrot.slane %v2028, 4
        %v2031 = vshll.u32 %v1857, 16
        %v2033 = vrot.slane %v2031, 5
        %v2034 = vsel %vm645, %v2029, %v2033
        %v2036 = vshrl.u32 %v1833, 16
        %v2038 = vrot.slane %v2036, 4
        %v2039 = vshll.u32 %v1833, 16
        %v2041 = vrot.slane %v2039, 5
        %v2042 = vor.u32 %v2038, %v2041
        %v2043 = vrot.slane %v2042, 4
        %v2045 = vshll.u32 %v1834, 16
        %v2047 = vrot.slane %v2045, 5
        %v2048 = vsel %vm645, %v2043, %v2047
        %v2049 = vshrl.u32 %v1834, 16
        %v2051 = vrot.slane %v2049, 4
        %v2052 = vor.u32 %v2051, %v2047
        %v2053 = vrot.slane %v2052, 4
        %v2055 = vshll.u32 %v1858, 16
        %v2057 = vrot.slane %v2055, 5
        %v2058 = vsel %vm645, %v2053, %v2057
        %v2060 = vshrl.u32 %v1835, 16
        %v2062 = vrot.slane %v2060, 4
        %v2063 = vshll.u32 %v1835, 16
        %v2065 = vrot.slane %v2063, 5
        %v2066 = vor.u32 %v2062, %v2065
        %v2067 = vrot.slane %v2066, 4
        %v2069 = vshll.u32 %v1836, 16
        %v2071 = vrot.slane %v2069, 5
        %v2072 = vsel %vm645, %v2067, %v2071
        %v2073 = vshrl.u32 %v1836, 16
        %v2075 = vrot.slane %v2073, 4
        %v2076 = vor.u32 %v2075, %v2071
        %v2077 = vrot.slane %v2076, 4
        %v2079 = vshll.u32 %v1859, 16
        %v2081 = vrot.slane %v2079, 5
        %v2082 = vsel %vm645, %v2077, %v2081
        %v2084 = vshrl.u32 %v1837, 16
        %v2086 = vrot.slane %v2084, 4
        %v2087 = vshll.u32 %v1837, 16
        %v2089 = vrot.slane %v2087, 5
        %v2090 = vor.u32 %v2086, %v2089
        %v2091 = vrot.slane %v2090, 4
        %v2093 = vshll.u32 %v1838, 16
        %v2095 = vrot.slane %v2093, 5
        %v2096 = vsel %vm645, %v2091, %v2095
        %v2097 = vshrl.u32 %v1838, 16
        %v2099 = vrot.slane %v2097, 4
        %v2100 = vor.u32 %v2099, %v2095
        %v2101 = vrot.slane %v2100, 4
        %v2103 = vshll.u32 %v1860, 16
        %v2105 = vrot.slane %v2103, 5
        %v2106 = vsel %vm645, %v2101, %v2105
        %v2108 = vshrl.u32 %v1839, 16
        %v2110 = vrot.slane %v2108, 4
        %v2111 = vshll.u32 %v1839, 16
        %v2113 = vrot.slane %v2111, 5
        %v2114 = vor.u32 %v2110, %v2113
        %v2115 = vrot.slane %v2114, 4
        %v2117 = vshll.u32 %v1840, 16
        %v2119 = vrot.slane %v2117, 5
        %v2120 = vsel %vm645, %v2115, %v2119
        %v2121 = vshrl.u32 %v1840, 16
        %v2123 = vrot.slane %v2121, 4
        %v2124 = vor.u32 %v2123, %v2119
        %v2125 = vrot.slane %v2124, 4
        %v2127 = vshll.u32 %v1861, 16
        %v2129 = vrot.slane %v2127, 5
        %v2130 = vsel %vm645, %v2125, %v2129
        %v2132 = vshrl.u32 %v1841, 16
        %v2134 = vrot.slane %v2132, 4
        %v2135 = vshll.u32 %v1841, 16
        %v2137 = vrot.slane %v2135, 5
        %v2138 = vor.u32 %v2134, %v2137
        %v2139 = vrot.slane %v2138, 4
        %v2141 = vshll.u32 %v1842, 16
        %v2143 = vrot.slane %v2141, 5
        %v2144 = vsel %vm645, %v2139, %v2143
        %v2145 = vshrl.u32 %v1842, 16
        %v2147 = vrot.slane %v2145, 4
        %v2148 = vor.u32 %v2147, %v2143
        %v2149 = vrot.slane %v2148, 4
        %v2151 = vshll.u32 %v1862, 16
        %v2153 = vrot.slane %v2151, 5
        %v2154 = vsel %vm645, %v2149, %v2153
        %v2156 = vshrl.u32 %v1843, 16
        %v2158 = vrot.slane %v2156, 4
        %v2159 = vshll.u32 %v1843, 16
        %v2161 = vrot.slane %v2159, 5
        %v2162 = vor.u32 %v2158, %v2161
        %v2163 = vrot.slane %v2162, 4
        %v2165 = vshll.u32 %v1844, 16
        %v2167 = vrot.slane %v2165, 5
        %v2168 = vsel %vm645, %v2163, %v2167
        %v2169 = vshrl.u32 %v1844, 16
        %v2171 = vrot.slane %v2169, 4
        %v2172 = vor.u32 %v2171, %v2167
        %v2173 = vrot.slane %v2172, 4
        %v2175 = vshll.u32 %v1863, 16
        %v2177 = vrot.slane %v2175, 5
        %v2178 = vsel %vm645, %v2173, %v2177
        %v2180 = vshrl.u32 %v1845, 16
        %v2182 = vrot.slane %v2180, 4
        %v2183 = vshll.u32 %v1845, 16
        %v2185 = vrot.slane %v2183, 5
        %v2186 = vor.u32 %v2182, %v2185
        %v2187 = vrot.slane %v2186, 4
        %v2189 = vshll.u32 %v1846, 16
        %v2191 = vrot.slane %v2189, 5
        %v2192 = vsel %vm645, %v2187, %v2191
        %v2193 = vshrl.u32 %v1846, 16
        %v2195 = vrot.slane %v2193, 4
        %v2196 = vor.u32 %v2195, %v2191
        %v2197 = vrot.slane %v2196, 4
        %v2199 = vshll.u32 %v1864, 16
        %v2201 = vrot.slane %v2199, 5
        %v2202 = vsel %vm645, %v2197, %v2201
        %v2204 = vshrl.u32 %v1847, 16
        %v2206 = vrot.slane %v2204, 4
        %v2207 = vshll.u32 %v1847, 16
        %v2209 = vrot.slane %v2207, 5
        %v2210 = vor.u32 %v2206, %v2209
        %v2211 = vrot.slane %v2210, 4
        %v2213 = vshll.u32 %v1848, 16
        %v2215 = vrot.slane %v2213, 5
        %v2216 = vsel %vm645, %v2211, %v2215
        %v2217 = vshrl.u32 %v1848, 16
        %v2219 = vrot.slane %v2217, 4
        %v2220 = vor.u32 %v2219, %v2215
        %v2221 = vrot.slane %v2220, 4
        %v2223 = vshll.u32 %v1865, 16
        %v2225 = vrot.slane %v2223, 5
        %v2226 = vsel %vm645, %v2221, %v2225
        %v2228 = vshrl.u32 %v1849, 16
        %v2230 = vrot.slane %v2228, 4
        %v2231 = vshll.u32 %v1849, 16
        %v2233 = vrot.slane %v2231, 5
        %v2234 = vor.u32 %v2230, %v2233
        %v2235 = vrot.slane %v2234, 4
        %v2237 = vshll.u32 %v1850, 16
        %v2239 = vrot.slane %v2237, 5
        %v2240 = vsel %vm645, %v2235, %v2239
        %v2241 = vshrl.u32 %v1850, 16
        %v2243 = vrot.slane %v2241, 4
        %v2244 = vor.u32 %v2243, %v2239
        %v2245 = vrot.slane %v2244, 4
        %v2247 = vshll.u32 %v1866, 16
        %v2249 = vrot.slane %v2247, 5
        %v2250 = vsel %vm645, %v2245, %v2249
        %v2251 = vld [vmem:[%s1818] sm:$0xe]
        %v2252 = vld [vmem:[%s1818 + $0xc] sm:$0xe]
        %v2253 = vld [vmem:[%s1818 + $0x18] sm:$0xe]
        %v2254 = vld [vmem:[%s1818 + $0x24] sm:$0xe]
        %v2255 = vld [vmem:[%s1818 + $0x30] sm:$0xe]
        %v2256 = vld [vmem:[%s1818 + $0x3c] sm:$0xe]
        %v2257 = vld [vmem:[%s1818 + $0x48] sm:$0xe]
        %v2258 = vld [vmem:[%s1818 + $0x54] sm:$0xe]
        %v2259 = vld [vmem:[%s1818 + $0x60] sm:$0xe]
        %v2260 = vld [vmem:[%s1818 + $0x6c] sm:$0xe]
        %v2261 = vld [vmem:[%s1818 + $0x78] sm:$0xe]
        %v2262 = vld [vmem:[%s1818 + $0x84] sm:$0xe]
        %v2263 = vld [vmem:[%s1818 + $0x90] sm:$0xe]
        %v2264 = vld [vmem:[%s1818 + $0x9c] sm:$0xe]
        %v2265 = vld [vmem:[%s1818 + $0xa8] sm:$0xe]
        %v2266 = vld [vmem:[%s1818 + $0xb4] sm:$0xe]
        %v2315 = vrot.slane %v2251, 5
        %v2316 = vrot.slane %v2315, 4
        %v2317 = vrot.slane %v1820, 5
        %v2318 = vsel %vm1096, %v2316, %v2317
        %v2319 = vrot.slane %v2317, 4
        %v2320 = vrot.slane %v1851, 5
        %v2321 = vsel %vm1096, %v2319, %v2320
        %v2322 = vrot.slane %v2252, 5
        %v2323 = vrot.slane %v2322, 4
        %v2324 = vrot.slane %v1822, 5
        %v2325 = vsel %vm1096, %v2323, %v2324
        %v2326 = vrot.slane %v2324, 4
        %v2327 = vrot.slane %v1852, 5
        %v2328 = vsel %vm1096, %v2326, %v2327
        %v2329 = vrot.slane %v2253, 5
        %v2330 = vrot.slane %v2329, 4
        %v2331 = vrot.slane %v1824, 5
        %v2332 = vsel %vm1096, %v2330, %v2331
        %v2333 = vrot.slane %v2331, 4
        %v2334 = vrot.slane %v1853, 5
        %v2335 = vsel %vm1096, %v2333, %v2334
        %v2336 = vrot.slane %v2254, 5
        %v2337 = vrot.slane %v2336, 4
        %v2338 = vrot.slane %v1826, 5
        %v2339 = vsel %vm1096, %v2337, %v2338
        %v2340 = vrot.slane %v2338, 4
        %v2341 = vrot.slane %v1854, 5
        %v2342 = vsel %vm1096, %v2340, %v2341
        %v2343 = vrot.slane %v2255, 5
        %v2344 = vrot.slane %v2343, 4
        %v2345 = vrot.slane %v1828, 5
        %v2346 = vsel %vm1096, %v2344, %v2345
        %v2347 = vrot.slane %v2345, 4
        %v2348 = vrot.slane %v1855, 5
        %v2349 = vsel %vm1096, %v2347, %v2348
        %v2350 = vrot.slane %v2256, 5
        %v2351 = vrot.slane %v2350, 4
        %v2352 = vrot.slane %v1830, 5
        %v2353 = vsel %vm1096, %v2351, %v2352
        %v2354 = vrot.slane %v2352, 4
        %v2355 = vrot.slane %v1856, 5
        %v2356 = vsel %vm1096, %v2354, %v2355
        %v2357 = vrot.slane %v2257, 5
        %v2358 = vrot.slane %v2357, 4
        %v2359 = vrot.slane %v1832, 5
        %v2360 = vsel %vm1096, %v2358, %v2359
        %v2361 = vrot.slane %v2359, 4
        %v2362 = vrot.slane %v1857, 5
        %v2363 = vsel %vm1096, %v2361, %v2362
        %v2364 = vrot.slane %v2258, 5
        %v2365 = vrot.slane %v2364, 4
        %v2366 = vrot.slane %v1834, 5
        %v2367 = vsel %vm1096, %v2365, %v2366
        %v2368 = vrot.slane %v2366, 4
        %v2369 = vrot.slane %v1858, 5
        %v2370 = vsel %vm1096, %v2368, %v2369
        %v2371 = vrot.slane %v2259, 5
        %v2372 = vrot.slane %v2371, 4
        %v2373 = vrot.slane %v1836, 5
        %v2374 = vsel %vm1096, %v2372, %v2373
        %v2375 = vrot.slane %v2373, 4
        %v2376 = vrot.slane %v1859, 5
        %v2377 = vsel %vm1096, %v2375, %v2376
        %v2378 = vrot.slane %v2260, 5
        %v2379 = vrot.slane %v2378, 4
        %v2380 = vrot.slane %v1838, 5
        %v2381 = vsel %vm1096, %v2379, %v2380
        %v2382 = vrot.slane %v2380, 4
        %v2383 = vrot.slane %v1860, 5
        %v2384 = vsel %vm1096, %v2382, %v2383
        %v2385 = vrot.slane %v2261, 5
        %v2386 = vrot.slane %v2385, 4
        %v2387 = vrot.slane %v1840, 5
        %v2388 = vsel %vm1096, %v2386, %v2387
        %v2389 = vrot.slane %v2387, 4
        %v2390 = vrot.slane %v1861, 5
        %v2391 = vsel %vm1096, %v2389, %v2390
        %v2392 = vrot.slane %v2262, 5
        %v2393 = vrot.slane %v2392, 4
        %v2394 = vrot.slane %v1842, 5
        %v2395 = vsel %vm1096, %v2393, %v2394
        %v2396 = vrot.slane %v2394, 4
        %v2397 = vrot.slane %v1862, 5
        %v2398 = vsel %vm1096, %v2396, %v2397
        %v2399 = vrot.slane %v2263, 5
        %v2400 = vrot.slane %v2399, 4
        %v2401 = vrot.slane %v1844, 5
        %v2402 = vsel %vm1096, %v2400, %v2401
        %v2403 = vrot.slane %v2401, 4
        %v2404 = vrot.slane %v1863, 5
        %v2405 = vsel %vm1096, %v2403, %v2404
        %v2406 = vrot.slane %v2264, 5
        %v2407 = vrot.slane %v2406, 4
        %v2408 = vrot.slane %v1846, 5
        %v2409 = vsel %vm1096, %v2407, %v2408
        %v2410 = vrot.slane %v2408, 4
        %v2411 = vrot.slane %v1864, 5
        %v2412 = vsel %vm1096, %v2410, %v2411
        %v2413 = vrot.slane %v2265, 5
        %v2414 = vrot.slane %v2413, 4
        %v2415 = vrot.slane %v1848, 5
        %v2416 = vsel %vm1096, %v2414, %v2415
        %v2417 = vrot.slane %v2415, 4
        %v2418 = vrot.slane %v1865, 5
        %v2419 = vsel %vm1096, %v2417, %v2418
        %v2420 = vrot.slane %v2266, 5
        %v2421 = vrot.slane %v2420, 4
        %v2422 = vrot.slane %v1850, 5
        %v2423 = vsel %vm1096, %v2421, %v2422
        %v2424 = vrot.slane %v2422, 4
        %v2425 = vrot.slane %v1866, 5
        %v2426 = vsel %vm1096, %v2424, %v2425
        %v2443 = vunpack.c.l.b16 %v595
        %v2444 = vunpack.c.l.b16 %v596
        %v2445 = vunpack.c.l.b16 %v597
        %v2446 = vunpack.c.l.b16 %v598
        %v2447 = vunpack.c.l.b16 %v599
        %v2448 = vunpack.c.l.b16 %v600
        %v2449 = vunpack.c.l.b16 %v601
        %v2450 = vunpack.c.l.b16 %v602
        %v2451 = vunpack.c.l.b16 %v603
        %v2452 = vunpack.c.l.b16 %v604
        %v2453 = vunpack.c.l.b16 %v605
        %v2454 = vunpack.c.l.b16 %v606
        %v2455 = vunpack.c.l.b16 %v607
        %v2456 = vunpack.c.l.b16 %v608
        %v2457 = vunpack.c.l.b16 %v609
        %v2458 = vunpack.c.l.b16 %v610
        %v2459 = vunpack.c.l.b16 %v611
        %v2460 = vunpack.c.l.b16 %v612
        %v2461 = vunpack.c.l.b16 %v613
        %v2462 = vunpack.c.l.b16 %v614
        %v2463 = vunpack.c.l.b16 %v615
        %v2464 = vunpack.c.l.b16 %v616
        %v2465 = vunpack.c.l.b16 %v617
        %v2466 = vunpack.c.l.b16 %v618
        %v2467 = vunpack.c.l.b16 %v619
        %v2468 = vunpack.c.l.b16 %v620
        %v2469 = vunpack.c.l.b16 %v621
        %v2470 = vunpack.c.l.b16 %v622
        %v2471 = vunpack.c.l.b16 %v623
        %v2472 = vunpack.c.l.b16 %v624
        %v2473 = vunpack.c.l.b16 %v625
        %v2474 = vunpack.c.l.b16 %v626
        %v2475 = vpack.c.b16 %v2444, %v2443
        %v2476 = vpack.c.b16 %v2446, %v2445
        %v2477 = vpack.c.b16 %v2448, %v2447
        %v2478 = vpack.c.b16 %v2450, %v2449
        %v2479 = vpack.c.b16 %v2452, %v2451
        %v2480 = vpack.c.b16 %v2454, %v2453
        %v2481 = vpack.c.b16 %v2456, %v2455
        %v2482 = vpack.c.b16 %v2458, %v2457
        %v2483 = vpack.c.b16 %v2460, %v2459
        %v2484 = vpack.c.b16 %v2462, %v2461
        %v2485 = vpack.c.b16 %v2464, %v2463
        %v2486 = vpack.c.b16 %v2466, %v2465
        %v2487 = vpack.c.b16 %v2468, %v2467
        %v2488 = vpack.c.b16 %v2470, %v2469
        %v2489 = vpack.c.b16 %v2472, %v2471
        %v2490 = vpack.c.b16 %v2474, %v2473
        %v2491 = vunpack.c.l.b16 %v659
        %v2492 = vunpack.c.l.b16 %v669
        %v2493 = vunpack.c.l.b16 %v683
        %v2494 = vunpack.c.l.b16 %v693
        %v2495 = vunpack.c.l.b16 %v707
        %v2496 = vunpack.c.l.b16 %v717
        %v2497 = vunpack.c.l.b16 %v731
        %v2498 = vunpack.c.l.b16 %v741
        %v2499 = vunpack.c.l.b16 %v755
        %v2500 = vunpack.c.l.b16 %v765
        %v2501 = vunpack.c.l.b16 %v779
        %v2502 = vunpack.c.l.b16 %v789
        %v2503 = vunpack.c.l.b16 %v803
        %v2504 = vunpack.c.l.b16 %v813
        %v2505 = vunpack.c.l.b16 %v827
        %v2506 = vunpack.c.l.b16 %v837
        %v2507 = vunpack.c.l.b16 %v851
        %v2508 = vunpack.c.l.b16 %v861
        %v2509 = vunpack.c.l.b16 %v875
        %v2510 = vunpack.c.l.b16 %v885
        %v2511 = vunpack.c.l.b16 %v899
        %v2512 = vunpack.c.l.b16 %v909
        %v2513 = vunpack.c.l.b16 %v923
        %v2514 = vunpack.c.l.b16 %v933
        %v2515 = vunpack.c.l.b16 %v947
        %v2516 = vunpack.c.l.b16 %v957
        %v2517 = vunpack.c.l.b16 %v971
        %v2518 = vunpack.c.l.b16 %v981
        %v2519 = vunpack.c.l.b16 %v995
        %v2520 = vunpack.c.l.b16 %v1005
        %v2521 = vunpack.c.l.b16 %v1019
        %v2522 = vunpack.c.l.b16 %v1029
        %v2523 = vpack.c.b16 %v2492, %v2491
        %v2524 = vpack.c.b16 %v2494, %v2493
        %v2525 = vpack.c.b16 %v2496, %v2495
        %v2526 = vpack.c.b16 %v2498, %v2497
        %v2527 = vpack.c.b16 %v2500, %v2499
        %v2528 = vpack.c.b16 %v2502, %v2501
        %v2529 = vpack.c.b16 %v2504, %v2503
        %v2530 = vpack.c.b16 %v2506, %v2505
        %v2531 = vpack.c.b16 %v2508, %v2507
        %v2532 = vpack.c.b16 %v2510, %v2509
        %v2533 = vpack.c.b16 %v2512, %v2511
        %v2534 = vpack.c.b16 %v2514, %v2513
        %v2535 = vpack.c.b16 %v2516, %v2515
        %v2536 = vpack.c.b16 %v2518, %v2517
        %v2537 = vpack.c.b16 %v2520, %v2519
        %v2538 = vpack.c.b16 %v2522, %v2521
        %2539 = vrot.lane.b32.xlu0 %v2523, 4
        %v2540 = vpop.permute.xlu0 %2539
        %2541 = vrot.lane.b32.xlu0 %v2524, 4
        %v2542 = vpop.permute.xlu0 %2541
        %2543 = vrot.lane.b32.xlu0 %v2525, 4
        %v2544 = vpop.permute.xlu0 %2543
        %2545 = vrot.lane.b32.xlu0 %v2526, 4
        %v2546 = vpop.permute.xlu0 %2545
        %2547 = vrot.lane.b32.xlu0 %v2527, 4
        %v2548 = vpop.permute.xlu0 %2547
        %2549 = vrot.lane.b32.xlu0 %v2528, 4
        %v2550 = vpop.permute.xlu0 %2549
        %2551 = vrot.lane.b32.xlu0 %v2529, 4
        %v2552 = vpop.permute.xlu0 %2551
        %2553 = vrot.lane.b32.xlu0 %v2530, 4
        %v2554 = vpop.permute.xlu0 %2553
        %2555 = vrot.lane.b32.xlu0 %v2531, 4
        %v2556 = vpop.permute.xlu0 %2555
        %2557 = vrot.lane.b32.xlu0 %v2532, 4
        %v2558 = vpop.permute.xlu0 %2557
        %2559 = vrot.lane.b32.xlu0 %v2533, 4
        %v2560 = vpop.permute.xlu0 %2559
        %2561 = vrot.lane.b32.xlu0 %v2534, 4
        %v2562 = vpop.permute.xlu0 %2561
        %2563 = vrot.lane.b32.xlu0 %v2535, 4
        %v2564 = vpop.permute.xlu0 %2563
        %2565 = vrot.lane.b32.xlu0 %v2536, 4
        %v2566 = vpop.permute.xlu0 %2565
        %2567 = vrot.lane.b32.xlu0 %v2537, 4
        %v2568 = vpop.permute.xlu0 %2567
        %2569 = vrot.lane.b32.xlu0 %v2538, 4
        %v2570 = vpop.permute.xlu0 %2569
        %v2571 = vunpack.c.l.b16 %v1100
        %v2572 = vunpack.c.l.b16 %v1103
        %v2573 = vunpack.c.l.b16 %v1107
        %v2574 = vunpack.c.l.b16 %v1110
        %v2575 = vunpack.c.l.b16 %v1114
        %v2576 = vunpack.c.l.b16 %v1117
        %v2577 = vunpack.c.l.b16 %v1121
        %v2578 = vunpack.c.l.b16 %v1124
        %v2579 = vunpack.c.l.b16 %v1128
        %v2580 = vunpack.c.l.b16 %v1131
        %v2581 = vunpack.c.l.b16 %v1135
        %v2582 = vunpack.c.l.b16 %v1138
        %v2583 = vunpack.c.l.b16 %v1142
        %v2584 = vunpack.c.l.b16 %v1145
        %v2585 = vunpack.c.l.b16 %v1149
        %v2586 = vunpack.c.l.b16 %v1152
        %v2587 = vunpack.c.l.b16 %v1156
        %v2588 = vunpack.c.l.b16 %v1159
        %v2589 = vunpack.c.l.b16 %v1163
        %v2590 = vunpack.c.l.b16 %v1166
        %v2591 = vunpack.c.l.b16 %v1170
        %v2592 = vunpack.c.l.b16 %v1173
        %v2593 = vunpack.c.l.b16 %v1177
        %v2594 = vunpack.c.l.b16 %v1180
        %v2595 = vunpack.c.l.b16 %v1184
        %v2596 = vunpack.c.l.b16 %v1187
        %v2597 = vunpack.c.l.b16 %v1191
        %v2598 = vunpack.c.l.b16 %v1194
        %v2599 = vunpack.c.l.b16 %v1198
        %v2600 = vunpack.c.l.b16 %v1201
        %v2601 = vunpack.c.l.b16 %v1205
        %v2602 = vunpack.c.l.b16 %v1208
        %v2603 = vpack.c.b16 %v2572, %v2571
        %v2604 = vpack.c.b16 %v2574, %v2573
        %v2605 = vpack.c.b16 %v2576, %v2575
        %v2606 = vpack.c.b16 %v2578, %v2577
        %v2607 = vpack.c.b16 %v2580, %v2579
        %v2608 = vpack.c.b16 %v2582, %v2581
        %v2609 = vpack.c.b16 %v2584, %v2583
        %v2610 = vpack.c.b16 %v2586, %v2585
        %v2611 = vpack.c.b16 %v2588, %v2587
        %v2612 = vpack.c.b16 %v2590, %v2589
        %v2613 = vpack.c.b16 %v2592, %v2591
        %v2614 = vpack.c.b16 %v2594, %v2593
        %v2615 = vpack.c.b16 %v2596, %v2595
        %v2616 = vpack.c.b16 %v2598, %v2597
        %v2617 = vpack.c.b16 %v2600, %v2599
        %v2618 = vpack.c.b16 %v2602, %v2601
        %2619 = vrot.lane.b32.xlu0 %v2603, 8
        %v2620 = vpop.permute.xlu0 %2619
        %2621 = vrot.lane.b32.xlu0 %v2604, 8
        %v2622 = vpop.permute.xlu0 %2621
        %2623 = vrot.lane.b32.xlu0 %v2605, 8
        %v2624 = vpop.permute.xlu0 %2623
        %2625 = vrot.lane.b32.xlu0 %v2606, 8
        %v2626 = vpop.permute.xlu0 %2625
        %2627 = vrot.lane.b32.xlu0 %v2607, 8
        %v2628 = vpop.permute.xlu0 %2627
        %2629 = vrot.lane.b32.xlu0 %v2608, 8
        %v2630 = vpop.permute.xlu0 %2629
        %2631 = vrot.lane.b32.xlu0 %v2609, 8
        %v2632 = vpop.permute.xlu0 %2631
        %2633 = vrot.lane.b32.xlu0 %v2610, 8
        %v2634 = vpop.permute.xlu0 %2633
        %2635 = vrot.lane.b32.xlu0 %v2611, 8
        %v2636 = vpop.permute.xlu0 %2635
        %2637 = vrot.lane.b32.xlu0 %v2612, 8
        %v2638 = vpop.permute.xlu0 %2637
        %2639 = vrot.lane.b32.xlu0 %v2613, 8
        %v2640 = vpop.permute.xlu0 %2639
        %2641 = vrot.lane.b32.xlu0 %v2614, 8
        %v2642 = vpop.permute.xlu0 %2641
        %2643 = vrot.lane.b32.xlu0 %v2615, 8
        %v2644 = vpop.permute.xlu0 %2643
        %2645 = vrot.lane.b32.xlu0 %v2616, 8
        %v2646 = vpop.permute.xlu0 %2645
        %2647 = vrot.lane.b32.xlu0 %v2617, 8
        %v2648 = vpop.permute.xlu0 %2647
        %2649 = vrot.lane.b32.xlu0 %v2618, 8
        %v2650 = vpop.permute.xlu0 %2649
        %v2667 = vunpack.c.l.b16 %v1210
        %v2668 = vunpack.c.l.b16 %v1211
        %v2669 = vunpack.c.l.b16 %v1212
        %v2670 = vunpack.c.l.b16 %v1213
        %v2671 = vunpack.c.l.b16 %v1214
        %v2672 = vunpack.c.l.b16 %v1215
        %v2673 = vunpack.c.l.b16 %v1216
        %v2674 = vunpack.c.l.b16 %v1217
        %v2675 = vunpack.c.l.b16 %v1218
        %v2676 = vunpack.c.l.b16 %v1219
        %v2677 = vunpack.c.l.b16 %v1220
        %v2678 = vunpack.c.l.b16 %v1221
        %v2679 = vunpack.c.l.b16 %v1222
        %v2680 = vunpack.c.l.b16 %v1223
        %v2681 = vunpack.c.l.b16 %v1224
        %v2682 = vunpack.c.l.b16 %v1225
        %v2683 = vunpack.c.l.b16 %v1226
        %v2684 = vunpack.c.l.b16 %v1227
        %v2685 = vunpack.c.l.b16 %v1228
        %v2686 = vunpack.c.l.b16 %v1229
        %v2687 = vunpack.c.l.b16 %v1230
        %v2688 = vunpack.c.l.b16 %v1231
        %v2689 = vunpack.c.l.b16 %v1232
        %v2690 = vunpack.c.l.b16 %v1233
        %v2691 = vunpack.c.l.b16 %v1234
        %v2692 = vunpack.c.l.b16 %v1235
        %v2693 = vunpack.c.l.b16 %v1236
        %v2694 = vunpack.c.l.b16 %v1237
        %v2695 = vunpack.c.l.b16 %v1238
        %v2696 = vunpack.c.l.b16 %v1239
        %v2697 = vunpack.c.l.b16 %v1240
        %v2698 = vunpack.c.l.b16 %v1241
        %v2699 = vpack.c.b16 %v2668, %v2667
        %v2700 = vpack.c.b16 %v2670, %v2669
        %v2701 = vpack.c.b16 %v2672, %v2671
        %v2702 = vpack.c.b16 %v2674, %v2673
        %v2703 = vpack.c.b16 %v2676, %v2675
        %v2704 = vpack.c.b16 %v2678, %v2677
        %v2705 = vpack.c.b16 %v2680, %v2679
        %v2706 = vpack.c.b16 %v2682, %v2681
        %v2707 = vpack.c.b16 %v2684, %v2683
        %v2708 = vpack.c.b16 %v2686, %v2685
        %v2709 = vpack.c.b16 %v2688, %v2687
        %v2710 = vpack.c.b16 %v2690, %v2689
        %v2711 = vpack.c.b16 %v2692, %v2691
        %v2712 = vpack.c.b16 %v2694, %v2693
        %v2713 = vpack.c.b16 %v2696, %v2695
        %v2714 = vpack.c.b16 %v2698, %v2697
        %2715 = vrot.lane.b32.xlu0 %v2699, 12
        %v2716 = vpop.permute.xlu0 %2715
        %2717 = vrot.lane.b32.xlu0 %v2700, 12
        %v2718 = vpop.permute.xlu0 %2717
        %2719 = vrot.lane.b32.xlu0 %v2701, 12
        %v2720 = vpop.permute.xlu0 %2719
        %2721 = vrot.lane.b32.xlu0 %v2702, 12
        %v2722 = vpop.permute.xlu0 %2721
        %2723 = vrot.lane.b32.xlu0 %v2703, 12
        %v2724 = vpop.permute.xlu0 %2723
        %2725 = vrot.lane.b32.xlu0 %v2704, 12
        %v2726 = vpop.permute.xlu0 %2725
        %2727 = vrot.lane.b32.xlu0 %v2705, 12
        %v2728 = vpop.permute.xlu0 %2727
        %2729 = vrot.lane.b32.xlu0 %v2706, 12
        %v2730 = vpop.permute.xlu0 %2729
        %2731 = vrot.lane.b32.xlu0 %v2707, 12
        %v2732 = vpop.permute.xlu0 %2731
        %2733 = vrot.lane.b32.xlu0 %v2708, 12
        %v2734 = vpop.permute.xlu0 %2733
        %2735 = vrot.lane.b32.xlu0 %v2709, 12
        %v2736 = vpop.permute.xlu0 %2735
        %2737 = vrot.lane.b32.xlu0 %v2710, 12
        %v2738 = vpop.permute.xlu0 %2737
        %2739 = vrot.lane.b32.xlu0 %v2711, 12
        %v2740 = vpop.permute.xlu0 %2739
        %2741 = vrot.lane.b32.xlu0 %v2712, 12
        %v2742 = vpop.permute.xlu0 %2741
        %2743 = vrot.lane.b32.xlu0 %v2713, 12
        %v2744 = vpop.permute.xlu0 %2743
        %2745 = vrot.lane.b32.xlu0 %v2714, 12
        %v2746 = vpop.permute.xlu0 %2745
        %v2747 = vunpack.c.l.b16 %v1271
        %v2748 = vunpack.c.l.b16 %v1281
        %v2749 = vunpack.c.l.b16 %v1295
        %v2750 = vunpack.c.l.b16 %v1305
        %v2751 = vunpack.c.l.b16 %v1319
        %v2752 = vunpack.c.l.b16 %v1329
        %v2753 = vunpack.c.l.b16 %v1343
        %v2754 = vunpack.c.l.b16 %v1353
        %v2755 = vunpack.c.l.b16 %v1367
        %v2756 = vunpack.c.l.b16 %v1377
        %v2757 = vunpack.c.l.b16 %v1391
        %v2758 = vunpack.c.l.b16 %v1401
        %v2759 = vunpack.c.l.b16 %v1415
        %v2760 = vunpack.c.l.b16 %v1425
        %v2761 = vunpack.c.l.b16 %v1439
        %v2762 = vunpack.c.l.b16 %v1449
        %v2763 = vunpack.c.l.b16 %v1463
        %v2764 = vunpack.c.l.b16 %v1473
        %v2765 = vunpack.c.l.b16 %v1487
        %v2766 = vunpack.c.l.b16 %v1497
        %v2767 = vunpack.c.l.b16 %v1511
        %v2768 = vunpack.c.l.b16 %v1521
        %v2769 = vunpack.c.l.b16 %v1535
        %v2770 = vunpack.c.l.b16 %v1545
        %v2771 = vunpack.c.l.b16 %v1559
        %v2772 = vunpack.c.l.b16 %v1569
        %v2773 = vunpack.c.l.b16 %v1583
        %v2774 = vunpack.c.l.b16 %v1593
        %v2775 = vunpack.c.l.b16 %v1607
        %v2776 = vunpack.c.l.b16 %v1617
        %v2777 = vunpack.c.l.b16 %v1631
        %v2778 = vunpack.c.l.b16 %v1641
        %v2779 = vpack.c.b16 %v2748, %v2747
        %v2780 = vpack.c.b16 %v2750, %v2749
        %v2781 = vpack.c.b16 %v2752, %v2751
        %v2782 = vpack.c.b16 %v2754, %v2753
        %v2783 = vpack.c.b16 %v2756, %v2755
        %v2784 = vpack.c.b16 %v2758, %v2757
        %v2785 = vpack.c.b16 %v2760, %v2759
        %v2786 = vpack.c.b16 %v2762, %v2761
        %v2787 = vpack.c.b16 %v2764, %v2763
        %v2788 = vpack.c.b16 %v2766, %v2765
        %v2789 = vpack.c.b16 %v2768, %v2767
        %v2790 = vpack.c.b16 %v2770, %v2769
        %v2791 = vpack.c.b16 %v2772, %v2771
        %v2792 = vpack.c.b16 %v2774, %v2773
        %v2793 = vpack.c.b16 %v2776, %v2775
        %v2794 = vpack.c.b16 %v2778, %v2777
        %2795 = vrot.lane.b32.xlu0 %v2779, 16
        %v2796 = vpop.permute.xlu0 %2795
        %2797 = vrot.lane.b32.xlu0 %v2780, 16
        %v2798 = vpop.permute.xlu0 %2797
        %2799 = vrot.lane.b32.xlu0 %v2781, 16
        %v2800 = vpop.permute.xlu0 %2799
        %2801 = vrot.lane.b32.xlu0 %v2782, 16
        %v2802 = vpop.permute.xlu0 %2801
        %2803 = vrot.lane.b32.xlu0 %v2783, 16
        %v2804 = vpop.permute.xlu0 %2803
        %2805 = vrot.lane.b32.xlu0 %v2784, 16
        %v2806 = vpop.permute.xlu0 %2805
        %2807 = vrot.lane.b32.xlu0 %v2785, 16
        %v2808 = vpop.permute.xlu0 %2807
        %2809 = vrot.lane.b32.xlu0 %v2786, 16
        %v2810 = vpop.permute.xlu0 %2809
        %2811 = vrot.lane.b32.xlu0 %v2787, 16
        %v2812 = vpop.permute.xlu0 %2811
        %2813 = vrot.lane.b32.xlu0 %v2788, 16
        %v2814 = vpop.permute.xlu0 %2813
        %2815 = vrot.lane.b32.xlu0 %v2789, 16
        %v2816 = vpop.permute.xlu0 %2815
        %2817 = vrot.lane.b32.xlu0 %v2790, 16
        %v2818 = vpop.permute.xlu0 %2817
        %2819 = vrot.lane.b32.xlu0 %v2791, 16
        %v2820 = vpop.permute.xlu0 %2819
        %2821 = vrot.lane.b32.xlu0 %v2792, 16
        %v2822 = vpop.permute.xlu0 %2821
        %2823 = vrot.lane.b32.xlu0 %v2793, 16
        %v2824 = vpop.permute.xlu0 %2823
        %2825 = vrot.lane.b32.xlu0 %v2794, 16
        %v2826 = vpop.permute.xlu0 %2825
        %v2827 = vunpack.c.l.b16 %v1709
        %v2828 = vunpack.c.l.b16 %v1712
        %v2829 = vunpack.c.l.b16 %v1716
        %v2830 = vunpack.c.l.b16 %v1719
        %v2831 = vunpack.c.l.b16 %v1723
        %v2832 = vunpack.c.l.b16 %v1726
        %v2833 = vunpack.c.l.b16 %v1730
        %v2834 = vunpack.c.l.b16 %v1733
        %v2835 = vunpack.c.l.b16 %v1737
        %v2836 = vunpack.c.l.b16 %v1740
        %v2837 = vunpack.c.l.b16 %v1744
        %v2838 = vunpack.c.l.b16 %v1747
        %v2839 = vunpack.c.l.b16 %v1751
        %v2840 = vunpack.c.l.b16 %v1754
        %v2841 = vunpack.c.l.b16 %v1758
        %v2842 = vunpack.c.l.b16 %v1761
        %v2843 = vunpack.c.l.b16 %v1765
        %v2844 = vunpack.c.l.b16 %v1768
        %v2845 = vunpack.c.l.b16 %v1772
        %v2846 = vunpack.c.l.b16 %v1775
        %v2847 = vunpack.c.l.b16 %v1779
        %v2848 = vunpack.c.l.b16 %v1782
        %v2849 = vunpack.c.l.b16 %v1786
        %v2850 = vunpack.c.l.b16 %v1789
        %v2851 = vunpack.c.l.b16 %v1793
        %v2852 = vunpack.c.l.b16 %v1796
        %v2853 = vunpack.c.l.b16 %v1800
        %v2854 = vunpack.c.l.b16 %v1803
        %v2855 = vunpack.c.l.b16 %v1807
        %v2856 = vunpack.c.l.b16 %v1810
        %v2857 = vunpack.c.l.b16 %v1814
        %v2858 = vunpack.c.l.b16 %v1817
        %v2859 = vpack.c.b16 %v2828, %v2827
        %v2860 = vpack.c.b16 %v2830, %v2829
        %v2861 = vpack.c.b16 %v2832, %v2831
        %v2862 = vpack.c.b16 %v2834, %v2833
        %v2863 = vpack.c.b16 %v2836, %v2835
        %v2864 = vpack.c.b16 %v2838, %v2837
        %v2865 = vpack.c.b16 %v2840, %v2839
        %v2866 = vpack.c.b16 %v2842, %v2841
        %v2867 = vpack.c.b16 %v2844, %v2843
        %v2868 = vpack.c.b16 %v2846, %v2845
        %v2869 = vpack.c.b16 %v2848, %v2847
        %v2870 = vpack.c.b16 %v2850, %v2849
        %v2871 = vpack.c.b16 %v2852, %v2851
        %v2872 = vpack.c.b16 %v2854, %v2853
        %v2873 = vpack.c.b16 %v2856, %v2855
        %v2874 = vpack.c.b16 %v2858, %v2857
        %2875 = vrot.lane.b32.xlu0 %v2859, 20
        %v2876 = vpop.permute.xlu0 %2875
        %2877 = vrot.lane.b32.xlu0 %v2860, 20
        %v2878 = vpop.permute.xlu0 %2877
        %2879 = vrot.lane.b32.xlu0 %v2861, 20
        %v2880 = vpop.permute.xlu0 %2879
        %2881 = vrot.lane.b32.xlu0 %v2862, 20
        %v2882 = vpop.permute.xlu0 %2881
        %2883 = vrot.lane.b32.xlu0 %v2863, 20
        %v2884 = vpop.permute.xlu0 %2883
        %2885 = vrot.lane.b32.xlu0 %v2864, 20
        %v2886 = vpop.permute.xlu0 %2885
        %2887 = vrot.lane.b32.xlu0 %v2865, 20
        %v2888 = vpop.permute.xlu0 %2887
        %2889 = vrot.lane.b32.xlu0 %v2866, 20
        %v2890 = vpop.permute.xlu0 %2889
        %2891 = vrot.lane.b32.xlu0 %v2867, 20
        %v2892 = vpop.permute.xlu0 %2891
        %2893 = vrot.lane.b32.xlu0 %v2868, 20
        %v2894 = vpop.permute.xlu0 %2893
        %2895 = vrot.lane.b32.xlu0 %v2869, 20
        %v2896 = vpop.permute.xlu0 %2895
        %2897 = vrot.lane.b32.xlu0 %v2870, 20
        %v2898 = vpop.permute.xlu0 %2897
        %2899 = vrot.lane.b32.xlu0 %v2871, 20
        %v2900 = vpop.permute.xlu0 %2899
        %2901 = vrot.lane.b32.xlu0 %v2872, 20
        %v2902 = vpop.permute.xlu0 %2901
        %2903 = vrot.lane.b32.xlu0 %v2873, 20
        %v2904 = vpop.permute.xlu0 %2903
        %2905 = vrot.lane.b32.xlu0 %v2874, 20
        %v2906 = vpop.permute.xlu0 %2905
        %v2923 = vunpack.c.l.b16 %v1819
        %v2924 = vunpack.c.l.b16 %v1820
        %v2925 = vunpack.c.l.b16 %v1821
        %v2926 = vunpack.c.l.b16 %v1822
        %v2927 = vunpack.c.l.b16 %v1823
        %v2928 = vunpack.c.l.b16 %v1824
        %v2929 = vunpack.c.l.b16 %v1825
        %v2930 = vunpack.c.l.b16 %v1826
        %v2931 = vunpack.c.l.b16 %v1827
        %v2932 = vunpack.c.l.b16 %v1828
        %v2933 = vunpack.c.l.b16 %v1829
        %v2934 = vunpack.c.l.b16 %v1830
        %v2935 = vunpack.c.l.b16 %v1831
        %v2936 = vunpack.c.l.b16 %v1832
        %v2937 = vunpack.c.l.b16 %v1833
        %v2938 = vunpack.c.l.b16 %v1834
        %v2939 = vunpack.c.l.b16 %v1835
        %v2940 = vunpack.c.l.b16 %v1836
        %v2941 = vunpack.c.l.b16 %v1837
        %v2942 = vunpack.c.l.b16 %v1838
        %v2943 = vunpack.c.l.b16 %v1839
        %v2944 = vunpack.c.l.b16 %v1840
        %v2945 = vunpack.c.l.b16 %v1841
        %v2946 = vunpack.c.l.b16 %v1842
        %v2947 = vunpack.c.l.b16 %v1843
        %v2948 = vunpack.c.l.b16 %v1844
        %v2949 = vunpack.c.l.b16 %v1845
        %v2950 = vunpack.c.l.b16 %v1846
        %v2951 = vunpack.c.l.b16 %v1847
        %v2952 = vunpack.c.l.b16 %v1848
        %v2953 = vunpack.c.l.b16 %v1849
        %v2954 = vunpack.c.l.b16 %v1850
        %v2955 = vpack.c.b16 %v2924, %v2923
        %v2956 = vpack.c.b16 %v2926, %v2925
        %v2957 = vpack.c.b16 %v2928, %v2927
        %v2958 = vpack.c.b16 %v2930, %v2929
        %v2959 = vpack.c.b16 %v2932, %v2931
        %v2960 = vpack.c.b16 %v2934, %v2933
        %v2961 = vpack.c.b16 %v2936, %v2935
        %v2962 = vpack.c.b16 %v2938, %v2937
        %v2963 = vpack.c.b16 %v2940, %v2939
        %v2964 = vpack.c.b16 %v2942, %v2941
        %v2965 = vpack.c.b16 %v2944, %v2943
        %v2966 = vpack.c.b16 %v2946, %v2945
        %v2967 = vpack.c.b16 %v2948, %v2947
        %v2968 = vpack.c.b16 %v2950, %v2949
        %v2969 = vpack.c.b16 %v2952, %v2951
        %v2970 = vpack.c.b16 %v2954, %v2953
        %2971 = vrot.lane.b32.xlu0 %v2955, 24
        %v2972 = vpop.permute.xlu0 %2971
        %2973 = vrot.lane.b32.xlu0 %v2956, 24
        %v2974 = vpop.permute.xlu0 %2973
        %2975 = vrot.lane.b32.xlu0 %v2957, 24
        %v2976 = vpop.permute.xlu0 %2975
        %2977 = vrot.lane.b32.xlu0 %v2958, 24
        %v2978 = vpop.permute.xlu0 %2977
        %2979 = vrot.lane.b32.xlu0 %v2959, 24
        %v2980 = vpop.permute.xlu0 %2979
        %2981 = vrot.lane.b32.xlu0 %v2960, 24
        %v2982 = vpop.permute.xlu0 %2981
        %2983 = vrot.lane.b32.xlu0 %v2961, 24
        %v2984 = vpop.permute.xlu0 %2983
        %2985 = vrot.lane.b32.xlu0 %v2962, 24
        %v2986 = vpop.permute.xlu0 %2985
        %2987 = vrot.lane.b32.xlu0 %v2963, 24
        %v2988 = vpop.permute.xlu0 %2987
        %2989 = vrot.lane.b32.xlu0 %v2964, 24
        %v2990 = vpop.permute.xlu0 %2989
        %2991 = vrot.lane.b32.xlu0 %v2965, 24
        %v2992 = vpop.permute.xlu0 %2991
        %2993 = vrot.lane.b32.xlu0 %v2966, 24
        %v2994 = vpop.permute.xlu0 %2993
        %2995 = vrot.lane.b32.xlu0 %v2967, 24
        %v2996 = vpop.permute.xlu0 %2995
        %2997 = vrot.lane.b32.xlu0 %v2968, 24
        %v2998 = vpop.permute.xlu0 %2997
        %2999 = vrot.lane.b32.xlu0 %v2969, 24
        %v3000 = vpop.permute.xlu0 %2999
        %3001 = vrot.lane.b32.xlu0 %v2970, 24
        %v3002 = vpop.permute.xlu0 %3001
        %v3003 = vunpack.c.l.b16 %v1880
        %v3004 = vunpack.c.l.b16 %v1890
        %v3005 = vunpack.c.l.b16 %v1904
        %v3006 = vunpack.c.l.b16 %v1914
        %v3007 = vunpack.c.l.b16 %v1928
        %v3008 = vunpack.c.l.b16 %v1938
        %v3009 = vunpack.c.l.b16 %v1952
        %v3010 = vunpack.c.l.b16 %v1962
        %v3011 = vunpack.c.l.b16 %v1976
        %v3012 = vunpack.c.l.b16 %v1986
        %v3013 = vunpack.c.l.b16 %v2000
        %v3014 = vunpack.c.l.b16 %v2010
        %v3015 = vunpack.c.l.b16 %v2024
        %v3016 = vunpack.c.l.b16 %v2034
        %v3017 = vunpack.c.l.b16 %v2048
        %v3018 = vunpack.c.l.b16 %v2058
        %v3019 = vunpack.c.l.b16 %v2072
        %v3020 = vunpack.c.l.b16 %v2082
        %v3021 = vunpack.c.l.b16 %v2096
        %v3022 = vunpack.c.l.b16 %v2106
        %v3023 = vunpack.c.l.b16 %v2120
        %v3024 = vunpack.c.l.b16 %v2130
        %v3025 = vunpack.c.l.b16 %v2144
        %v3026 = vunpack.c.l.b16 %v2154
        %v3027 = vunpack.c.l.b16 %v2168
        %v3028 = vunpack.c.l.b16 %v2178
        %v3029 = vunpack.c.l.b16 %v2192
        %v3030 = vunpack.c.l.b16 %v2202
        %v3031 = vunpack.c.l.b16 %v2216
        %v3032 = vunpack.c.l.b16 %v2226
        %v3033 = vunpack.c.l.b16 %v2240
        %v3034 = vunpack.c.l.b16 %v2250
        %v3035 = vpack.c.b16 %v3004, %v3003
        %v3036 = vpack.c.b16 %v3006, %v3005
        %v3037 = vpack.c.b16 %v3008, %v3007
        %v3038 = vpack.c.b16 %v3010, %v3009
        %v3039 = vpack.c.b16 %v3012, %v3011
        %v3040 = vpack.c.b16 %v3014, %v3013
        %v3041 = vpack.c.b16 %v3016, %v3015
        %v3042 = vpack.c.b16 %v3018, %v3017
        %v3043 = vpack.c.b16 %v3020, %v3019
        %v3044 = vpack.c.b16 %v3022, %v3021
        %v3045 = vpack.c.b16 %v3024, %v3023
        %v3046 = vpack.c.b16 %v3026, %v3025
        %v3047 = vpack.c.b16 %v3028, %v3027
        %v3048 = vpack.c.b16 %v3030, %v3029
        %v3049 = vpack.c.b16 %v3032, %v3031
        %v3050 = vpack.c.b16 %v3034, %v3033
        %3051 = vrot.lane.b32.xlu0 %v3035, 28
        %v3052 = vpop.permute.xlu0 %3051
        %3053 = vrot.lane.b32.xlu0 %v3036, 28
        %v3054 = vpop.permute.xlu0 %3053
        %3055 = vrot.lane.b32.xlu0 %v3037, 28
        %v3056 = vpop.permute.xlu0 %3055
        %3057 = vrot.lane.b32.xlu0 %v3038, 28
        %v3058 = vpop.permute.xlu0 %3057
        %3059 = vrot.lane.b32.xlu0 %v3039, 28
        %v3060 = vpop.permute.xlu0 %3059
        %3061 = vrot.lane.b32.xlu0 %v3040, 28
        %v3062 = vpop.permute.xlu0 %3061
        %3063 = vrot.lane.b32.xlu0 %v3041, 28
        %v3064 = vpop.permute.xlu0 %3063
        %3065 = vrot.lane.b32.xlu0 %v3042, 28
        %v3066 = vpop.permute.xlu0 %3065
        %3067 = vrot.lane.b32.xlu0 %v3043, 28
        %v3068 = vpop.permute.xlu0 %3067
        %3069 = vrot.lane.b32.xlu0 %v3044, 28
        %v3070 = vpop.permute.xlu0 %3069
        %3071 = vrot.lane.b32.xlu0 %v3045, 28
        %v3072 = vpop.permute.xlu0 %3071
        %3073 = vrot.lane.b32.xlu0 %v3046, 28
        %v3074 = vpop.permute.xlu0 %3073
        %3075 = vrot.lane.b32.xlu0 %v3047, 28
        %v3076 = vpop.permute.xlu0 %3075
        %3077 = vrot.lane.b32.xlu0 %v3048, 28
        %v3078 = vpop.permute.xlu0 %3077
        %3079 = vrot.lane.b32.xlu0 %v3049, 28
        %v3080 = vpop.permute.xlu0 %3079
        %3081 = vrot.lane.b32.xlu0 %v3050, 28
        %v3082 = vpop.permute.xlu0 %3081
        %v3083 = vunpack.c.l.b16 %v2318
        %v3084 = vunpack.c.l.b16 %v2321
        %v3085 = vunpack.c.l.b16 %v2325
        %v3086 = vunpack.c.l.b16 %v2328
        %v3087 = vunpack.c.l.b16 %v2332
        %v3088 = vunpack.c.l.b16 %v2335
        %v3089 = vunpack.c.l.b16 %v2339
        %v3090 = vunpack.c.l.b16 %v2342
        %v3091 = vunpack.c.l.b16 %v2346
        %v3092 = vunpack.c.l.b16 %v2349
        %v3093 = vunpack.c.l.b16 %v2353
        %v3094 = vunpack.c.l.b16 %v2356
        %v3095 = vunpack.c.l.b16 %v2360
        %v3096 = vunpack.c.l.b16 %v2363
        %v3097 = vunpack.c.l.b16 %v2367
        %v3098 = vunpack.c.l.b16 %v2370
        %v3099 = vunpack.c.l.b16 %v2374
        %v3100 = vunpack.c.l.b16 %v2377
        %v3101 = vunpack.c.l.b16 %v2381
        %v3102 = vunpack.c.l.b16 %v2384
        %v3103 = vunpack.c.l.b16 %v2388
        %v3104 = vunpack.c.l.b16 %v2391
        %v3105 = vunpack.c.l.b16 %v2395
        %v3106 = vunpack.c.l.b16 %v2398
        %v3107 = vunpack.c.l.b16 %v2402
        %v3108 = vunpack.c.l.b16 %v2405
        %v3109 = vunpack.c.l.b16 %v2409
        %v3110 = vunpack.c.l.b16 %v2412
        %v3111 = vunpack.c.l.b16 %v2416
        %v3112 = vunpack.c.l.b16 %v2419
        %v3113 = vunpack.c.l.b16 %v2423
        %v3114 = vunpack.c.l.b16 %v2426
        %v3115 = vpack.c.b16 %v3084, %v3083
        %v3116 = vpack.c.b16 %v3086, %v3085
        %v3117 = vpack.c.b16 %v3088, %v3087
        %v3118 = vpack.c.b16 %v3090, %v3089
        %v3119 = vpack.c.b16 %v3092, %v3091
        %v3120 = vpack.c.b16 %v3094, %v3093
        %v3121 = vpack.c.b16 %v3096, %v3095
        %v3122 = vpack.c.b16 %v3098, %v3097
        %v3123 = vpack.c.b16 %v3100, %v3099
        %v3124 = vpack.c.b16 %v3102, %v3101
        %v3125 = vpack.c.b16 %v3104, %v3103
        %v3126 = vpack.c.b16 %v3106, %v3105
        %v3127 = vpack.c.b16 %v3108, %v3107
        %v3128 = vpack.c.b16 %v3110, %v3109
        %v3129 = vpack.c.b16 %v3112, %v3111
        %v3130 = vpack.c.b16 %v3114, %v3113
        %3131 = vrot.lane.b32.xlu0 %v3115, 32
        %v3132 = vpop.permute.xlu0 %3131
        %3133 = vrot.lane.b32.xlu0 %v3116, 32
        %v3134 = vpop.permute.xlu0 %3133
        %3135 = vrot.lane.b32.xlu0 %v3117, 32
        %v3136 = vpop.permute.xlu0 %3135
        %3137 = vrot.lane.b32.xlu0 %v3118, 32
        %v3138 = vpop.permute.xlu0 %3137
        %3139 = vrot.lane.b32.xlu0 %v3119, 32
        %v3140 = vpop.permute.xlu0 %3139
        %3141 = vrot.lane.b32.xlu0 %v3120, 32
        %v3142 = vpop.permute.xlu0 %3141
        %3143 = vrot.lane.b32.xlu0 %v3121, 32
        %v3144 = vpop.permute.xlu0 %3143
        %3145 = vrot.lane.b32.xlu0 %v3122, 32
        %v3146 = vpop.permute.xlu0 %3145
        %3147 = vrot.lane.b32.xlu0 %v3123, 32
        %v3148 = vpop.permute.xlu0 %3147
        %3149 = vrot.lane.b32.xlu0 %v3124, 32
        %v3150 = vpop.permute.xlu0 %3149
        %3151 = vrot.lane.b32.xlu0 %v3125, 32
        %v3152 = vpop.permute.xlu0 %3151
        %3153 = vrot.lane.b32.xlu0 %v3126, 32
        %v3154 = vpop.permute.xlu0 %3153
        %3155 = vrot.lane.b32.xlu0 %v3127, 32
        %v3156 = vpop.permute.xlu0 %3155
        %3157 = vrot.lane.b32.xlu0 %v3128, 32
        %v3158 = vpop.permute.xlu0 %3157
        %3159 = vrot.lane.b32.xlu0 %v3129, 32
        %v3160 = vpop.permute.xlu0 %3159
        %3161 = vrot.lane.b32.xlu0 %v3130, 32
        %v3162 = vpop.permute.xlu0 %3161
        %vm3163 = vcmask 31744
        %v3166 = vsel %vm3163, %v2475, %v2540
        %v3169 = vsel %vm3163, %v2476, %v2542
        %v3172 = vsel %vm3163, %v2477, %v2544
        %v3175 = vsel %vm3163, %v2478, %v2546
        %v3178 = vsel %vm3163, %v2479, %v2548
        %v3181 = vsel %vm3163, %v2480, %v2550
        %v3184 = vsel %vm3163, %v2481, %v2552
        %v3187 = vsel %vm3163, %v2482, %v2554
        %v3190 = vsel %vm3163, %v2483, %v2556
        %v3193 = vsel %vm3163, %v2484, %v2558
        %v3196 = vsel %vm3163, %v2485, %v2560
        %v3199 = vsel %vm3163, %v2486, %v2562
        %v3202 = vsel %vm3163, %v2487, %v2564
        %v3205 = vsel %vm3163, %v2488, %v2566
        %v3208 = vsel %vm3163, %v2489, %v2568
        %v3211 = vsel %vm3163, %v2490, %v2570
        %vm3212 = vcmask 64512
        %v3214 = vsel %vm3212, %v3166, %v2620
        %v3216 = vsel %vm3212, %v3169, %v2622
        %v3218 = vsel %vm3212, %v3172, %v2624
        %v3220 = vsel %vm3212, %v3175, %v2626
        %v3222 = vsel %vm3212, %v3178, %v2628
        %v3224 = vsel %vm3212, %v3181, %v2630
        %v3226 = vsel %vm3212, %v3184, %v2632
        %v3228 = vsel %vm3212, %v3187, %v2634
        %v3230 = vsel %vm3212, %v3190, %v2636
        %v3232 = vsel %vm3212, %v3193, %v2638
        %v3234 = vsel %vm3212, %v3196, %v2640
        %v3236 = vsel %vm3212, %v3199, %v2642
        %v3238 = vsel %vm3212, %v3202, %v2644
        %v3240 = vsel %vm3212, %v3205, %v2646
        %v3242 = vsel %vm3212, %v3208, %v2648
        %v3244 = vsel %vm3212, %v3211, %v2650
        %vm3245 = vcmask 97280
        %v3247 = vsel %vm3245, %v3214, %v2716
        %v3249 = vsel %vm3245, %v3216, %v2718
        %v3251 = vsel %vm3245, %v3218, %v2720
        %v3253 = vsel %vm3245, %v3220, %v2722
        %v3255 = vsel %vm3245, %v3222, %v2724
        %v3257 = vsel %vm3245, %v3224, %v2726
        %v3259 = vsel %vm3245, %v3226, %v2728
        %v3261 = vsel %vm3245, %v3228, %v2730
        %v3263 = vsel %vm3245, %v3230, %v2732
        %v3265 = vsel %vm3245, %v3232, %v2734
        %v3267 = vsel %vm3245, %v3234, %v2736
        %v3269 = vsel %vm3245, %v3236, %v2738
        %v3271 = vsel %vm3245, %v3238, %v2740
        %v3273 = vsel %vm3245, %v3240, %v2742
        %v3275 = vsel %vm3245, %v3242, %v2744
        %v3277 = vsel %vm3245, %v3244, %v2746
        %vm3278 = vcmask 130048
        %v3280 = vsel %vm3278, %v3247, %v2796
        %v3282 = vsel %vm3278, %v3249, %v2798
        %v3284 = vsel %vm3278, %v3251, %v2800
        %v3286 = vsel %vm3278, %v3253, %v2802
        %v3288 = vsel %vm3278, %v3255, %v2804
        %v3290 = vsel %vm3278, %v3257, %v2806
        %v3292 = vsel %vm3278, %v3259, %v2808
        %v3294 = vsel %vm3278, %v3261, %v2810
        %v3296 = vsel %vm3278, %v3263, %v2812
        %v3298 = vsel %vm3278, %v3265, %v2814
        %v3300 = vsel %vm3278, %v3267, %v2816
        %v3302 = vsel %vm3278, %v3269, %v2818
        %v3304 = vsel %vm3278, %v3271, %v2820
        %v3306 = vsel %vm3278, %v3273, %v2822
        %v3308 = vsel %vm3278, %v3275, %v2824
        %v3310 = vsel %vm3278, %v3277, %v2826
        %vm3311 = vcmask 162816
        %v3313 = vsel %vm3311, %v3280, %v2876
        %v3315 = vsel %vm3311, %v3282, %v2878
        %v3317 = vsel %vm3311, %v3284, %v2880
        %v3319 = vsel %vm3311, %v3286, %v2882
        %v3321 = vsel %vm3311, %v3288, %v2884
        %v3323 = vsel %vm3311, %v3290, %v2886
        %v3325 = vsel %vm3311, %v3292, %v2888
        %v3327 = vsel %vm3311, %v3294, %v2890
        %v3329 = vsel %vm3311, %v3296, %v2892
        %v3331 = vsel %vm3311, %v3298, %v2894
        %v3333 = vsel %vm3311, %v3300, %v2896
        %v3335 = vsel %vm3311, %v3302, %v2898
        %v3337 = vsel %vm3311, %v3304, %v2900
        %v3339 = vsel %vm3311, %v3306, %v2902
        %v3341 = vsel %vm3311, %v3308, %v2904
        %v3343 = vsel %vm3311, %v3310, %v2906
        %vm3344 = vcmask 195584
        %v3346 = vsel %vm3344, %v3313, %v2972
        %v3348 = vsel %vm3344, %v3315, %v2974
        %v3350 = vsel %vm3344, %v3317, %v2976
        %v3352 = vsel %vm3344, %v3319, %v2978
        %v3354 = vsel %vm3344, %v3321, %v2980
        %v3356 = vsel %vm3344, %v3323, %v2982
        %v3358 = vsel %vm3344, %v3325, %v2984
        %v3360 = vsel %vm3344, %v3327, %v2986
        %v3362 = vsel %vm3344, %v3329, %v2988
        %v3364 = vsel %vm3344, %v3331, %v2990
        %v3366 = vsel %vm3344, %v3333, %v2992
        %v3368 = vsel %vm3344, %v3335, %v2994
        %v3370 = vsel %vm3344, %v3337, %v2996
        %v3372 = vsel %vm3344, %v3339, %v2998
        %v3374 = vsel %vm3344, %v3341, %v3000
        %v3376 = vsel %vm3344, %v3343, %v3002
        %vm3377 = vcmask 228352
        %v3379 = vsel %vm3377, %v3346, %v3052
        %v3381 = vsel %vm3377, %v3348, %v3054
        %v3383 = vsel %vm3377, %v3350, %v3056
        %v3385 = vsel %vm3377, %v3352, %v3058
        %v3387 = vsel %vm3377, %v3354, %v3060
        %v3389 = vsel %vm3377, %v3356, %v3062
        %v3391 = vsel %vm3377, %v3358, %v3064
        %v3393 = vsel %vm3377, %v3360, %v3066
        %v3395 = vsel %vm3377, %v3362, %v3068
        %v3397 = vsel %vm3377, %v3364, %v3070
        %v3399 = vsel %vm3377, %v3366, %v3072
        %v3401 = vsel %vm3377, %v3368, %v3074
        %v3403 = vsel %vm3377, %v3370, %v3076
        %v3405 = vsel %vm3377, %v3372, %v3078
        %v3407 = vsel %vm3377, %v3374, %v3080
        %v3409 = vsel %vm3377, %v3376, %v3082
        %vm3410 = vcmask 261120
        %v3412 = vsel %vm3410, %v3379, %v3132
        %v3414 = vsel %vm3410, %v3381, %v3134
        %v3416 = vsel %vm3410, %v3383, %v3136
        %v3418 = vsel %vm3410, %v3385, %v3138
        %v3420 = vsel %vm3410, %v3387, %v3140
        %v3422 = vsel %vm3410, %v3389, %v3142
        %v3424 = vsel %vm3410, %v3391, %v3144
        %v3426 = vsel %vm3410, %v3393, %v3146
        %v3428 = vsel %vm3410, %v3395, %v3148
        %v3430 = vsel %vm3410, %v3397, %v3150
        %v3432 = vsel %vm3410, %v3399, %v3152
        %v3434 = vsel %vm3410, %v3401, %v3154
        %v3436 = vsel %vm3410, %v3403, %v3156
        %v3438 = vsel %vm3410, %v3405, %v3158
        %v3440 = vsel %vm3410, %v3407, %v3160
        %v3442 = vsel %vm3410, %v3409, %v3162
        %v3443 = vld [vmem:[%s1] sm:$0xf]
        %v3444 = vld [vmem:[%s1 + $0x4] sm:$0xf]
        %v3445 = vld [vmem:[%s1 + $0x8] sm:$0xf]
        %v3446 = vld [vmem:[%s1 + $0xc] sm:$0xf]
        %v3447 = vld [vmem:[%s1 + $0x10] sm:$0x3]
        %v3453 = vunpack.c.l.b16 %v3443
        %v3454 = vunpack.c.l.b16 %v3444
        %v3455 = vunpack.c.l.b16 %v3445
        %v3456 = vunpack.c.l.b16 %v3446
        %v3457 = vunpack.c.l.b16 %v3447
        %v3458 = vpack.c.b16 %v3454, %v3453
        %v3459 = vpack.c.b16 %v3456, %v3455
        %v3460 = vpack.c.b16 %v3457, %v3457
        %vm3463 = vcmask 293888
        %v3464 = vsel %vm3463, %v3412, 0
        %v3466 = vsel %vm3463, %v3414, 0
        %v3468 = vsel %vm3463, %v3416, 0
        %v3470 = vsel %vm3463, %v3418, 0
        %v3472 = vsel %vm3463, %v3420, 0
        %v3474 = vsel %vm3463, %v3422, 0
        %v3476 = vsel %vm3463, %v3424, 0
        %v3478 = vsel %vm3463, %v3426, 0
        %v3480 = vsel %vm3463, %v3428, 0
        %v3482 = vsel %vm3463, %v3430, 0
        %v3484 = vsel %vm3463, %v3432, 0
        %v3486 = vsel %vm3463, %v3434, 0
        %v3488 = vsel %vm3463, %v3436, 0
        %v3490 = vsel %vm3463, %v3438, 0
        %v3492 = vsel %vm3463, %v3440, 0
        %v3494 = vsel %vm3463, %v3442, 0
        %vm3496 = vcmask 1041408
        %v3498 = vsel %vm3496, %v3460, 0
        %3500 = vmatprep.subr.bf16.mxu0 0
        %3501 = vmatpush1.bf16.msra.mxu0 %v3458
        %3502 = vmatprep.subr.bf16.mxu0 0
        %3503 = vmatpush1.bf16.msra.mxu0 %v3459
        %3504 = vmatprep.subr.bf16.mxu0 0
        %3505 = vmatpush1.bf16.msra.mxu0 %v3498
        %3506 = vmatprep.subr.bf16.mxu0 0
        %3507 = vmatpush1.bf16.msra.mxu0 0
        %3508 = vmatprep.subr.bf16.mxu0 0
        %3509 = vmatpush1.bf16.msra.mxu0 0
        %3510 = vmatprep.subr.bf16.mxu0 0
        %3511 = vmatpush1.bf16.msra.mxu0 0
        %3512 = vmatprep.subr.bf16.mxu0 0
        %3513 = vmatpush1.bf16.msra.mxu0 0
        %3514 = vmatprep.subr.bf16.mxu0 0
        %3515 = vmatpush1.bf16.msra.mxu0 0
        %3516 = vmatprep.subr.bf16.mxu0 0
        %3517 = vmatpush1.bf16.msra.mxu0 0
        %3518 = vmatprep.subr.bf16.mxu0 0
        %3519 = vmatpush1.bf16.msra.mxu0 0
        %3520 = vmatprep.subr.bf16.mxu0 0
        %3521 = vmatpush1.bf16.msra.mxu0 0
        %3522 = vmatprep.subr.bf16.mxu0 0
        %3523 = vmatpush1.bf16.msra.mxu0 0
        %3524 = vmatprep.subr.bf16.mxu0 0
        %3525 = vmatpush1.bf16.msra.mxu0 0
        %3526 = vmatprep.subr.bf16.mxu0 0
        %3527 = vmatpush1.bf16.msra.mxu0 0
        %3528 = vmatprep.subr.bf16.mxu0 0
        %3529 = vmatpush1.bf16.msra.mxu0 0
        %3530 = vmatprep.subr.bf16.mxu0 0
        %3531 = vmatpush1.bf16.msra.mxu0 0
        %3532 = vmatprep.mubr.bf16.mxu0 0
        %3533 = vmatmul.mubr.bf16.gmra.mrb[0].mxu0 %v3464
        %v3534 = vpop.f32.mrb[0].mxu0
        %v3535 = vadd.f32 0.0, %v3534
        %v3536 = vpop.f32.mrb[0].mxu0
        %v3537 = vpop.f32.mrb[0].mxu0
        %v3538 = vadd.f32 0.0, %v3537
        %v3539 = vpop.f32.mrb[0].mxu0
        %3540 = vmatprep.mubr.bf16.mxu0 0
        %3541 = vmatmul.mubr.bf16.gmra.mrb[0].mxu0 %v3466
        %v3542 = vpop.f32.mrb[0].mxu0
        %v3543 = vadd.f32 0.0, %v3542
        %v3544 = vpop.f32.mrb[0].mxu0
        %v3545 = vpop.f32.mrb[0].mxu0
        %v3546 = vadd.f32 0.0, %v3545
        %v3547 = vpop.f32.mrb[0].mxu0
        %3548 = vmatprep.mubr.bf16.mxu0 0
        %3549 = vmatmul.mubr.bf16.gmra.mrb[0].mxu0 %v3468
        %v3550 = vpop.f32.mrb[0].mxu0
        %v3551 = vadd.f32 0.0, %v3550
        %v3552 = vpop.f32.mrb[0].mxu0
        %v3553 = vpop.f32.mrb[0].mxu0
        %v3554 = vadd.f32 0.0, %v3553
        %v3555 = vpop.f32.mrb[0].mxu0
        %3556 = vmatprep.mubr.bf16.mxu0 0
        %3557 = vmatmul.mubr.bf16.gmra.mrb[0].mxu0 %v3470
        %v3558 = vpop.f32.mrb[0].mxu0
        %v3559 = vadd.f32 0.0, %v3558
        %v3560 = vpop.f32.mrb[0].mxu0
        %v3561 = vpop.f32.mrb[0].mxu0
        %v3562 = vadd.f32 0.0, %v3561
        %v3563 = vpop.f32.mrb[0].mxu0
        %3564 = vmatprep.mubr.bf16.mxu0 0
        %3565 = vmatmul.mubr.bf16.gmra.mrb[0].mxu0 %v3472
        %v3566 = vpop.f32.mrb[0].mxu0
        %v3567 = vadd.f32 0.0, %v3566
        %v3568 = vpop.f32.mrb[0].mxu0
        %v3569 = vpop.f32.mrb[0].mxu0
        %v3570 = vadd.f32 0.0, %v3569
        %v3571 = vpop.f32.mrb[0].mxu0
        %3572 = vmatprep.mubr.bf16.mxu0 0
        %3573 = vmatmul.mubr.bf16.gmra.mrb[0].mxu0 %v3474
        %v3574 = vpop.f32.mrb[0].mxu0
        %v3575 = vadd.f32 0.0, %v3574
        %v3576 = vpop.f32.mrb[0].mxu0
        %v3577 = vpop.f32.mrb[0].mxu0
        %v3578 = vadd.f32 0.0, %v3577
        %v3579 = vpop.f32.mrb[0].mxu0
        %3580 = vmatprep.mubr.bf16.mxu0 0
        %3581 = vmatmul.mubr.bf16.gmra.mrb[0].mxu0 %v3476
        %v3582 = vpop.f32.mrb[0].mxu0
        %v3583 = vadd.f32 0.0, %v3582
        %v3584 = vpop.f32.mrb[0].mxu0
        %v3585 = vpop.f32.mrb[0].mxu0
        %v3586 = vadd.f32 0.0, %v3585
        %v3587 = vpop.f32.mrb[0].mxu0
        %3588 = vmatprep.mubr.bf16.mxu0 0
        %3589 = vmatmul.mubr.bf16.gmra.mrb[0].mxu0 %v3478
        %v3590 = vpop.f32.mrb[0].mxu0
        %v3591 = vadd.f32 0.0, %v3590
        %v3592 = vpop.f32.mrb[0].mxu0
        %v3593 = vpop.f32.mrb[0].mxu0
        %v3594 = vadd.f32 0.0, %v3593
        %v3595 = vpop.f32.mrb[0].mxu0
        %3596 = vmatprep.mubr.bf16.mxu0 0
        %3597 = vmatmul.mubr.bf16.gmra.mrb[0].mxu0 %v3480
        %v3598 = vpop.f32.mrb[0].mxu0
        %v3599 = vadd.f32 0.0, %v3598
        %v3600 = vpop.f32.mrb[0].mxu0
        %v3601 = vpop.f32.mrb[0].mxu0
        %v3602 = vadd.f32 0.0, %v3601
        %v3603 = vpop.f32.mrb[0].mxu0
        %3604 = vmatprep.mubr.bf16.mxu0 0
        %3605 = vmatmul.mubr.bf16.gmra.mrb[0].mxu0 %v3482
        %v3606 = vpop.f32.mrb[0].mxu0
        %v3607 = vadd.f32 0.0, %v3606
        %v3608 = vpop.f32.mrb[0].mxu0
        %v3609 = vpop.f32.mrb[0].mxu0
        %v3610 = vadd.f32 0.0, %v3609
        %v3611 = vpop.f32.mrb[0].mxu0
        %3612 = vmatprep.mubr.bf16.mxu0 0
        %3613 = vmatmul.mubr.bf16.gmra.mrb[0].mxu0 %v3484
        %v3614 = vpop.f32.mrb[0].mxu0
        %v3615 = vadd.f32 0.0, %v3614
        %v3616 = vpop.f32.mrb[0].mxu0
        %v3617 = vpop.f32.mrb[0].mxu0
        %v3618 = vadd.f32 0.0, %v3617
        %v3619 = vpop.f32.mrb[0].mxu0
        %3620 = vmatprep.mubr.bf16.mxu0 0
        %3621 = vmatmul.mubr.bf16.gmra.mrb[0].mxu0 %v3486
        %v3622 = vpop.f32.mrb[0].mxu0
        %v3623 = vadd.f32 0.0, %v3622
        %v3624 = vpop.f32.mrb[0].mxu0
        %v3625 = vpop.f32.mrb[0].mxu0
        %v3626 = vadd.f32 0.0, %v3625
        %v3627 = vpop.f32.mrb[0].mxu0
        %3628 = vmatprep.mubr.bf16.mxu0 0
        %3629 = vmatmul.mubr.bf16.gmra.mrb[0].mxu0 %v3488
        %v3630 = vpop.f32.mrb[0].mxu0
        %v3631 = vadd.f32 0.0, %v3630
        %v3632 = vpop.f32.mrb[0].mxu0
        %v3633 = vpop.f32.mrb[0].mxu0
        %v3634 = vadd.f32 0.0, %v3633
        %v3635 = vpop.f32.mrb[0].mxu0
        %3636 = vmatprep.mubr.bf16.mxu0 0
        %3637 = vmatmul.mubr.bf16.gmra.mrb[0].mxu0 %v3490
        %v3638 = vpop.f32.mrb[0].mxu0
        %v3639 = vadd.f32 0.0, %v3638
        %v3640 = vpop.f32.mrb[0].mxu0
        %v3641 = vpop.f32.mrb[0].mxu0
        %v3642 = vadd.f32 0.0, %v3641
        %v3643 = vpop.f32.mrb[0].mxu0
        %3644 = vmatprep.mubr.bf16.mxu0 0
        %3645 = vmatmul.mubr.bf16.gmra.mrb[0].mxu0 %v3492
        %v3646 = vpop.f32.mrb[0].mxu0
        %v3647 = vadd.f32 0.0, %v3646
        %v3648 = vpop.f32.mrb[0].mxu0
        %v3649 = vpop.f32.mrb[0].mxu0
        %v3650 = vadd.f32 0.0, %v3649
        %v3651 = vpop.f32.mrb[0].mxu0
        %3652 = vmatprep.mubr.bf16.mxu0 0
        %3653 = vmatmul.mubr.bf16.gmra.mrb[0].mxu0 %v3494
        %v3654 = vpop.f32.mrb[0].mxu0
        %v3655 = vadd.f32 0.0, %v3654
        %v3656 = vpop.f32.mrb[0].mxu0
        %v3657 = vpop.f32.mrb[0].mxu0
        %v3658 = vadd.f32 0.0, %v3657
        %v3659 = vpop.f32.mrb[0].mxu0
        %3660 = vdwg.mxu0
        %v3661 = vsel %vm3410, %v3535, 0.0
        %v3662 = vsel %vm3410, %v3538, 0.0
        %v3663 = vadd.f32 %v3661, %v3662
        %v3664 = vsel %vm3410, %v3543, 0.0
        %v3665 = vadd.f32 %v3663, %v3664
        %v3666 = vsel %vm3410, %v3546, 0.0
        %v3667 = vadd.f32 %v3665, %v3666
        %v3668 = vsel %vm3410, %v3551, 0.0
        %v3669 = vadd.f32 %v3667, %v3668
        %v3670 = vsel %vm3410, %v3554, 0.0
        %v3671 = vadd.f32 %v3669, %v3670
        %v3672 = vsel %vm3410, %v3559, 0.0
        %v3673 = vadd.f32 %v3671, %v3672
        %v3674 = vsel %vm3410, %v3562, 0.0
        %v3675 = vadd.f32 %v3673, %v3674
        %v3676 = vsel %vm3410, %v3567, 0.0
        %v3677 = vadd.f32 %v3675, %v3676
        %v3678 = vsel %vm3410, %v3570, 0.0
        %v3679 = vadd.f32 %v3677, %v3678
        %v3680 = vsel %vm3410, %v3575, 0.0
        %v3681 = vadd.f32 %v3679, %v3680
        %v3682 = vsel %vm3410, %v3578, 0.0
        %v3683 = vadd.f32 %v3681, %v3682
        %v3684 = vsel %vm3410, %v3583, 0.0
        %v3685 = vadd.f32 %v3683, %v3684
        %v3686 = vsel %vm3410, %v3586, 0.0
        %v3687 = vadd.f32 %v3685, %v3686
        %v3688 = vsel %vm3410, %v3591, 0.0
        %v3689 = vadd.f32 %v3687, %v3688
        %v3690 = vsel %vm3410, %v3594, 0.0
        %v3691 = vadd.f32 %v3689, %v3690
        %v3692 = vsel %vm3410, %v3599, 0.0
        %v3693 = vadd.f32 %v3691, %v3692
        %v3694 = vsel %vm3410, %v3602, 0.0
        %v3695 = vadd.f32 %v3693, %v3694
        %v3696 = vsel %vm3410, %v3607, 0.0
        %v3697 = vadd.f32 %v3695, %v3696
        %v3698 = vsel %vm3410, %v3610, 0.0
        %v3699 = vadd.f32 %v3697, %v3698
        %v3700 = vsel %vm3410, %v3615, 0.0
        %v3701 = vadd.f32 %v3699, %v3700
        %v3702 = vsel %vm3410, %v3618, 0.0
        %v3703 = vadd.f32 %v3701, %v3702
        %v3704 = vsel %vm3410, %v3623, 0.0
        %v3705 = vadd.f32 %v3703, %v3704
        %v3706 = vsel %vm3410, %v3626, 0.0
        %v3707 = vadd.f32 %v3705, %v3706
        %v3708 = vsel %vm3410, %v3631, 0.0
        %v3709 = vadd.f32 %v3707, %v3708
        %v3710 = vsel %vm3410, %v3634, 0.0
        %v3711 = vadd.f32 %v3709, %v3710
        %v3712 = vsel %vm3410, %v3639, 0.0
        %v3713 = vadd.f32 %v3711, %v3712
        %v3714 = vsel %vm3410, %v3642, 0.0
        %v3715 = vadd.f32 %v3713, %v3714
        %v3716 = vsel %vm3410, %v3647, 0.0
        %v3717 = vadd.f32 %v3715, %v3716
        %v3718 = vsel %vm3410, %v3650, 0.0
        %v3719 = vadd.f32 %v3717, %v3718
        %v3720 = vsel %vm3410, %v3655, 0.0
        %v3721 = vadd.f32 %v3719, %v3720
        %v3722 = vsel %vm3410, %v3658, 0.0
        %v3723 = vadd.f32 %v3721, %v3722
        %v3724 = vrot.slane %v3723, 4
        %v3725 = vadd.f32 %v3723, %v3724
        %v3726 = vrot.slane %v3725, 2
        %v3727 = vadd.f32 %v3725, %v3726
        %v3728 = vrot.slane %v3727, 1
        %v3729 = vadd.f32 %v3727, %v3728
        %v3730 = vrcp.pop 256.0
        %v3731 = vmul.f32 %v3729, %v3730
        %v3732 = vsub.f32 %v3535, %v3731
        %v3733 = vsub.f32 %v3538, %v3731
        %v3734 = vsub.f32 %v3543, %v3731
        %v3735 = vsub.f32 %v3546, %v3731
        %v3736 = vsub.f32 %v3551, %v3731
        %v3737 = vsub.f32 %v3554, %v3731
        %v3738 = vsub.f32 %v3559, %v3731
        %v3739 = vsub.f32 %v3562, %v3731
        %v3740 = vsub.f32 %v3567, %v3731
        %v3741 = vsub.f32 %v3570, %v3731
        %v3742 = vsub.f32 %v3575, %v3731
        %v3743 = vsub.f32 %v3578, %v3731
        %v3744 = vsub.f32 %v3583, %v3731
        %v3745 = vsub.f32 %v3586, %v3731
        %v3746 = vsub.f32 %v3591, %v3731
        %v3747 = vsub.f32 %v3594, %v3731
        %v3748 = vsub.f32 %v3599, %v3731
        %v3749 = vsub.f32 %v3602, %v3731
        %v3750 = vsub.f32 %v3607, %v3731
        %v3751 = vsub.f32 %v3610, %v3731
        %v3752 = vsub.f32 %v3615, %v3731
        %v3753 = vsub.f32 %v3618, %v3731
        %v3754 = vsub.f32 %v3623, %v3731
        %v3755 = vsub.f32 %v3626, %v3731
        %v3756 = vsub.f32 %v3631, %v3731
        %v3757 = vsub.f32 %v3634, %v3731
        %v3758 = vsub.f32 %v3639, %v3731
        %v3759 = vsub.f32 %v3642, %v3731
        %v3760 = vsub.f32 %v3647, %v3731
        %v3761 = vsub.f32 %v3650, %v3731
        %v3762 = vsub.f32 %v3655, %v3731
        %v3763 = vsub.f32 %v3658, %v3731
        %v3764 = vmul.f32 %v3732, %v3732
        %v3765 = vmul.f32 %v3733, %v3733
        %v3766 = vmul.f32 %v3734, %v3734
        %v3767 = vmul.f32 %v3735, %v3735
        %v3768 = vmul.f32 %v3736, %v3736
        %v3769 = vmul.f32 %v3737, %v3737
        %v3770 = vmul.f32 %v3738, %v3738
        %v3771 = vmul.f32 %v3739, %v3739
        %v3772 = vmul.f32 %v3740, %v3740
        %v3773 = vmul.f32 %v3741, %v3741
        %v3774 = vmul.f32 %v3742, %v3742
        %v3775 = vmul.f32 %v3743, %v3743
        %v3776 = vmul.f32 %v3744, %v3744
        %v3777 = vmul.f32 %v3745, %v3745
        %v3778 = vmul.f32 %v3746, %v3746
        %v3779 = vmul.f32 %v3747, %v3747
        %v3780 = vmul.f32 %v3748, %v3748
        %v3781 = vmul.f32 %v3749, %v3749
        %v3782 = vmul.f32 %v3750, %v3750
        %v3783 = vmul.f32 %v3751, %v3751
        %v3784 = vmul.f32 %v3752, %v3752
        %v3785 = vmul.f32 %v3753, %v3753
        %v3786 = vmul.f32 %v3754, %v3754
        %v3787 = vmul.f32 %v3755, %v3755
        %v3788 = vmul.f32 %v3756, %v3756
        %v3789 = vmul.f32 %v3757, %v3757
        %v3790 = vmul.f32 %v3758, %v3758
        %v3791 = vmul.f32 %v3759, %v3759
        %v3792 = vmul.f32 %v3760, %v3760
        %v3793 = vmul.f32 %v3761, %v3761
        %v3794 = vmul.f32 %v3762, %v3762
        %v3795 = vmul.f32 %v3763, %v3763
        %v3796 = vsel %vm3410, %v3764, 0.0
        %v3797 = vsel %vm3410, %v3765, 0.0
        %v3798 = vadd.f32 %v3796, %v3797
        %v3799 = vsel %vm3410, %v3766, 0.0
        %v3800 = vadd.f32 %v3798, %v3799
        %v3801 = vsel %vm3410, %v3767, 0.0
        %v3802 = vadd.f32 %v3800, %v3801
        %v3803 = vsel %vm3410, %v3768, 0.0
        %v3804 = vadd.f32 %v3802, %v3803
        %v3805 = vsel %vm3410, %v3769, 0.0
        %v3806 = vadd.f32 %v3804, %v3805
        %v3807 = vsel %vm3410, %v3770, 0.0
        %v3808 = vadd.f32 %v3806, %v3807
        %v3809 = vsel %vm3410, %v3771, 0.0
        %v3810 = vadd.f32 %v3808, %v3809
        %v3811 = vsel %vm3410, %v3772, 0.0
        %v3812 = vadd.f32 %v3810, %v3811
        %v3813 = vsel %vm3410, %v3773, 0.0
        %v3814 = vadd.f32 %v3812, %v3813
        %v3815 = vsel %vm3410, %v3774, 0.0
        %v3816 = vadd.f32 %v3814, %v3815
        %v3817 = vsel %vm3410, %v3775, 0.0
        %v3818 = vadd.f32 %v3816, %v3817
        %v3819 = vsel %vm3410, %v3776, 0.0
        %v3820 = vadd.f32 %v3818, %v3819
        %v3821 = vsel %vm3410, %v3777, 0.0
        %v3822 = vadd.f32 %v3820, %v3821
        %v3823 = vsel %vm3410, %v3778, 0.0
        %v3824 = vadd.f32 %v3822, %v3823
        %v3825 = vsel %vm3410, %v3779, 0.0
        %v3826 = vadd.f32 %v3824, %v3825
        %v3827 = vsel %vm3410, %v3780, 0.0
        %v3828 = vadd.f32 %v3826, %v3827
        %v3829 = vsel %vm3410, %v3781, 0.0
        %v3830 = vadd.f32 %v3828, %v3829
        %v3831 = vsel %vm3410, %v3782, 0.0
        %v3832 = vadd.f32 %v3830, %v3831
        %v3833 = vsel %vm3410, %v3783, 0.0
        %v3834 = vadd.f32 %v3832, %v3833
        %v3835 = vsel %vm3410, %v3784, 0.0
        %v3836 = vadd.f32 %v3834, %v3835
        %v3837 = vsel %vm3410, %v3785, 0.0
        %v3838 = vadd.f32 %v3836, %v3837
        %v3839 = vsel %vm3410, %v3786, 0.0
        %v3840 = vadd.f32 %v3838, %v3839
        %v3841 = vsel %vm3410, %v3787, 0.0
        %v3842 = vadd.f32 %v3840, %v3841
        %v3843 = vsel %vm3410, %v3788, 0.0
        %v3844 = vadd.f32 %v3842, %v3843
        %v3845 = vsel %vm3410, %v3789, 0.0
        %v3846 = vadd.f32 %v3844, %v3845
        %v3847 = vsel %vm3410, %v3790, 0.0
        %v3848 = vadd.f32 %v3846, %v3847
        %v3849 = vsel %vm3410, %v3791, 0.0
        %v3850 = vadd.f32 %v3848, %v3849
        %v3851 = vsel %vm3410, %v3792, 0.0
        %v3852 = vadd.f32 %v3850, %v3851
        %v3853 = vsel %vm3410, %v3793, 0.0
        %v3854 = vadd.f32 %v3852, %v3853
        %v3855 = vsel %vm3410, %v3794, 0.0
        %v3856 = vadd.f32 %v3854, %v3855
        %v3857 = vsel %vm3410, %v3795, 0.0
        %v3858 = vadd.f32 %v3856, %v3857
        %v3859 = vrot.slane %v3858, 4
        %v3860 = vadd.f32 %v3858, %v3859
        %v3861 = vrot.slane %v3860, 2
        %v3862 = vadd.f32 %v3860, %v3861
        %v3863 = vrot.slane %v3862, 1
        %v3864 = vadd.f32 %v3862, %v3863
        %v3865 = vmul.f32 %v3864, %v3730
        %v3866 = vmax.f32 %v3865, 0.0
        %v3867 = vadd.f32 %v3866, 1e-05
        %v3868 = vrsqrt.pop %v3867
        %v3869 = vmul.f32 %v3732, %v3868
        %v3870 = vmul.f32 %v3733, %v3868
        %v3871 = vmul.f32 %v3734, %v3868
        %v3872 = vmul.f32 %v3735, %v3868
        %v3873 = vmul.f32 %v3736, %v3868
        %v3874 = vmul.f32 %v3737, %v3868
        %v3875 = vmul.f32 %v3738, %v3868
        %v3876 = vmul.f32 %v3739, %v3868
        %v3877 = vmul.f32 %v3740, %v3868
        %v3878 = vmul.f32 %v3741, %v3868
        %v3879 = vmul.f32 %v3742, %v3868
        %v3880 = vmul.f32 %v3743, %v3868
        %v3881 = vmul.f32 %v3744, %v3868
        %v3882 = vmul.f32 %v3745, %v3868
        %v3883 = vmul.f32 %v3746, %v3868
        %v3884 = vmul.f32 %v3747, %v3868
        %v3885 = vmul.f32 %v3748, %v3868
        %v3886 = vmul.f32 %v3749, %v3868
        %v3887 = vmul.f32 %v3750, %v3868
        %v3888 = vmul.f32 %v3751, %v3868
        %v3889 = vmul.f32 %v3752, %v3868
        %v3890 = vmul.f32 %v3753, %v3868
        %v3891 = vmul.f32 %v3754, %v3868
        %v3892 = vmul.f32 %v3755, %v3868
        %v3893 = vmul.f32 %v3756, %v3868
        %v3894 = vmul.f32 %v3757, %v3868
        %v3895 = vmul.f32 %v3758, %v3868
        %v3896 = vmul.f32 %v3759, %v3868
        %v3897 = vmul.f32 %v3760, %v3868
        %v3898 = vmul.f32 %v3761, %v3868
        %v3899 = vmul.f32 %v3762, %v3868
        %v3900 = vmul.f32 %v3763, %v3868
        %v3901 = vld [vmem:[%s2] sm:$0x1]
        %v3903 = vlaneseq
        %v3904 = vshrl.u32 %v3903, 7
        %v3905 = vsub.s32 0, %v3904
        %v3906 = vrot.slane %v3901, %v3905
        %v3908 = vmul.f32 %v3869, %v3906
        %v3909 = vmul.f32 %v3870, %v3906
        %v3910 = vmul.f32 %v3871, %v3906
        %v3911 = vmul.f32 %v3872, %v3906
        %v3912 = vmul.f32 %v3873, %v3906
        %v3913 = vmul.f32 %v3874, %v3906
        %v3914 = vmul.f32 %v3875, %v3906
        %v3915 = vmul.f32 %v3876, %v3906
        %v3916 = vmul.f32 %v3877, %v3906
        %v3917 = vmul.f32 %v3878, %v3906
        %v3918 = vmul.f32 %v3879, %v3906
        %v3919 = vmul.f32 %v3880, %v3906
        %v3920 = vmul.f32 %v3881, %v3906
        %v3921 = vmul.f32 %v3882, %v3906
        %v3922 = vmul.f32 %v3883, %v3906
        %v3923 = vmul.f32 %v3884, %v3906
        %v3924 = vmul.f32 %v3885, %v3906
        %v3925 = vmul.f32 %v3886, %v3906
        %v3926 = vmul.f32 %v3887, %v3906
        %v3927 = vmul.f32 %v3888, %v3906
        %v3928 = vmul.f32 %v3889, %v3906
        %v3929 = vmul.f32 %v3890, %v3906
        %v3930 = vmul.f32 %v3891, %v3906
        %v3931 = vmul.f32 %v3892, %v3906
        %v3932 = vmul.f32 %v3893, %v3906
        %v3933 = vmul.f32 %v3894, %v3906
        %v3934 = vmul.f32 %v3895, %v3906
        %v3935 = vmul.f32 %v3896, %v3906
        %v3936 = vmul.f32 %v3897, %v3906
        %v3937 = vmul.f32 %v3898, %v3906
        %v3938 = vmul.f32 %v3899, %v3906
        %v3939 = vmul.f32 %v3900, %v3906
        %v3940 = vld [vmem:[%s3] sm:$0x1]
        %v3942 = vlaneseq
        %v3943 = vshrl.u32 %v3942, 7
        %v3944 = vsub.s32 0, %v3943
        %v3945 = vrot.slane %v3940, %v3944
        %v3947 = vadd.f32 %v3908, %v3945
        %v3948 = vadd.f32 %v3909, %v3945
        %v3949 = vadd.f32 %v3910, %v3945
        %v3950 = vadd.f32 %v3911, %v3945
        %v3951 = vadd.f32 %v3912, %v3945
        %v3952 = vadd.f32 %v3913, %v3945
        %v3953 = vadd.f32 %v3914, %v3945
        %v3954 = vadd.f32 %v3915, %v3945
        %v3955 = vadd.f32 %v3916, %v3945
        %v3956 = vadd.f32 %v3917, %v3945
        %v3957 = vadd.f32 %v3918, %v3945
        %v3958 = vadd.f32 %v3919, %v3945
        %v3959 = vadd.f32 %v3920, %v3945
        %v3960 = vadd.f32 %v3921, %v3945
        %v3961 = vadd.f32 %v3922, %v3945
        %v3962 = vadd.f32 %v3923, %v3945
        %v3963 = vadd.f32 %v3924, %v3945
        %v3964 = vadd.f32 %v3925, %v3945
        %v3965 = vadd.f32 %v3926, %v3945
        %v3966 = vadd.f32 %v3927, %v3945
        %v3967 = vadd.f32 %v3928, %v3945
        %v3968 = vadd.f32 %v3929, %v3945
        %v3969 = vadd.f32 %v3930, %v3945
        %v3970 = vadd.f32 %v3931, %v3945
        %v3971 = vadd.f32 %v3932, %v3945
        %v3972 = vadd.f32 %v3933, %v3945
        %v3973 = vadd.f32 %v3934, %v3945
        %v3974 = vadd.f32 %v3935, %v3945
        %v3975 = vadd.f32 %v3936, %v3945
        %v3976 = vadd.f32 %v3937, %v3945
        %v3977 = vadd.f32 %v3938, %v3945
        %v3978 = vadd.f32 %v3939, %v3945
        %v3979 = vmax.f32 %v3947, 0.0
        %v3980 = vmax.f32 %v3948, 0.0
        %v3981 = vmax.f32 %v3949, 0.0
        %v3982 = vmax.f32 %v3950, 0.0
        %v3983 = vmax.f32 %v3951, 0.0
        %v3984 = vmax.f32 %v3952, 0.0
        %v3985 = vmax.f32 %v3953, 0.0
        %v3986 = vmax.f32 %v3954, 0.0
        %v3987 = vmax.f32 %v3955, 0.0
        %v3988 = vmax.f32 %v3956, 0.0
        %v3989 = vmax.f32 %v3957, 0.0
        %v3990 = vmax.f32 %v3958, 0.0
        %v3991 = vmax.f32 %v3959, 0.0
        %v3992 = vmax.f32 %v3960, 0.0
        %v3993 = vmax.f32 %v3961, 0.0
        %v3994 = vmax.f32 %v3962, 0.0
        %v3995 = vmax.f32 %v3963, 0.0
        %v3996 = vmax.f32 %v3964, 0.0
        %v3997 = vmax.f32 %v3965, 0.0
        %v3998 = vmax.f32 %v3966, 0.0
        %v3999 = vmax.f32 %v3967, 0.0
        %v4000 = vmax.f32 %v3968, 0.0
        %v4001 = vmax.f32 %v3969, 0.0
        %v4002 = vmax.f32 %v3970, 0.0
        %v4003 = vmax.f32 %v3971, 0.0
        %v4004 = vmax.f32 %v3972, 0.0
        %v4005 = vmax.f32 %v3973, 0.0
        %v4006 = vmax.f32 %v3974, 0.0
        %v4007 = vmax.f32 %v3975, 0.0
        %v4008 = vmax.f32 %v3976, 0.0
        %v4009 = vmax.f32 %v3977, 0.0
        %v4010 = vmax.f32 %v3978, 0.0
        %v4011 = vpack.c.bf16 %v3980, %v3979
        %v4012 = vpack.c.bf16 %v3982, %v3981
        %v4013 = vpack.c.bf16 %v3984, %v3983
        %v4014 = vpack.c.bf16 %v3986, %v3985
        %v4015 = vpack.c.bf16 %v3988, %v3987
        %v4016 = vpack.c.bf16 %v3990, %v3989
        %v4017 = vpack.c.bf16 %v3992, %v3991
        %v4018 = vpack.c.bf16 %v3994, %v3993
        %v4019 = vpack.c.bf16 %v3996, %v3995
        %v4020 = vpack.c.bf16 %v3998, %v3997
        %v4021 = vpack.c.bf16 %v4000, %v3999
        %v4022 = vpack.c.bf16 %v4002, %v4001
        %v4023 = vpack.c.bf16 %v4004, %v4003
        %v4024 = vpack.c.bf16 %v4006, %v4005
        %v4025 = vpack.c.bf16 %v4008, %v4007
        %v4026 = vpack.c.bf16 %v4010, %v4009
        %v4043 = vunpack.c.l.b16 %v4011
        %v4044 = vunpack.c.h.b16 %v4011
        %v4045 = vunpack.c.l.b16 %v4012
        %v4046 = vunpack.c.h.b16 %v4012
        %v4047 = vunpack.c.l.b16 %v4013
        %v4048 = vunpack.c.h.b16 %v4013
        %v4049 = vunpack.c.l.b16 %v4014
        %v4050 = vunpack.c.h.b16 %v4014
        %v4051 = vunpack.c.l.b16 %v4015
        %v4052 = vunpack.c.h.b16 %v4015
        %v4053 = vunpack.c.l.b16 %v4016
        %v4054 = vunpack.c.h.b16 %v4016
        %v4055 = vunpack.c.l.b16 %v4017
        %v4056 = vunpack.c.h.b16 %v4017
        %v4057 = vunpack.c.l.b16 %v4018
        %v4058 = vunpack.c.h.b16 %v4018
        %v4059 = vunpack.c.l.b16 %v4019
        %v4060 = vunpack.c.h.b16 %v4019
        %v4061 = vunpack.c.l.b16 %v4020
        %v4062 = vunpack.c.h.b16 %v4020
        %v4063 = vunpack.c.l.b16 %v4021
        %v4064 = vunpack.c.h.b16 %v4021
        %v4065 = vunpack.c.l.b16 %v4022
        %v4066 = vunpack.c.h.b16 %v4022
        %v4067 = vunpack.c.l.b16 %v4023
        %v4068 = vunpack.c.h.b16 %v4023
        %v4069 = vunpack.c.l.b16 %v4024
        %v4070 = vunpack.c.h.b16 %v4024
        %v4071 = vunpack.c.l.b16 %v4025
        %v4072 = vunpack.c.h.b16 %v4025
        %v4073 = vunpack.c.l.b16 %v4026
        %v4074 = vunpack.c.h.b16 %v4026
        %v4075 = vpack.c.b16 %v4043, %v4043
        %v4076 = vpack.c.b16 %v4044, %v4044
        %v4077 = vpack.c.b16 %v4045, %v4045
        %v4078 = vpack.c.b16 %v4046, %v4046
        %v4079 = vpack.c.b16 %v4047, %v4047
        %v4080 = vpack.c.b16 %v4048, %v4048
        %v4081 = vpack.c.b16 %v4049, %v4049
        %v4082 = vpack.c.b16 %v4050, %v4050
        %v4083 = vpack.c.b16 %v4051, %v4051
        %v4084 = vpack.c.b16 %v4052, %v4052
        %v4085 = vpack.c.b16 %v4053, %v4053
        %v4086 = vpack.c.b16 %v4054, %v4054
        %v4087 = vpack.c.b16 %v4055, %v4055
        %v4088 = vpack.c.b16 %v4056, %v4056
        %v4089 = vpack.c.b16 %v4057, %v4057
        %v4090 = vpack.c.b16 %v4058, %v4058
        %v4091 = vpack.c.b16 %v4059, %v4059
        %v4092 = vpack.c.b16 %v4060, %v4060
        %v4093 = vpack.c.b16 %v4061, %v4061
        %v4094 = vpack.c.b16 %v4062, %v4062
        %v4095 = vpack.c.b16 %v4063, %v4063
        %v4096 = vpack.c.b16 %v4064, %v4064
        %v4097 = vpack.c.b16 %v4065, %v4065
        %v4098 = vpack.c.b16 %v4066, %v4066
        %v4099 = vpack.c.b16 %v4067, %v4067
        %v4100 = vpack.c.b16 %v4068, %v4068
        %v4101 = vpack.c.b16 %v4069, %v4069
        %v4102 = vpack.c.b16 %v4070, %v4070
        %v4103 = vpack.c.b16 %v4071, %v4071
        %v4104 = vpack.c.b16 %v4072, %v4072
        %v4105 = vpack.c.b16 %v4073, %v4073
        %v4106 = vpack.c.b16 %v4074, %v4074
        %vm4107 = vsmask.f32 4368
        %vm4108 = vmor %vm368, %vm4107
        %v4110 = vshrl.u32 %v4075, 16
        %v4112 = vrot.slane %v4110, 7
        %v4113 = vshll.u32 %v4075, 16
        %v4115 = vor.u32 %v4112, %v4113
        %v4116 = vrot.slane %v4112, 4
        %v4118 = vshrl.u32 %v4076, 16
        %v4120 = vrot.slane %v4118, 7
        %v4121 = vshll.u32 %v4076, 16
        %v4123 = vor.u32 %v4120, %v4121
        %v4124 = vsel %vm4108, %v4116, %v4123
        %v4125 = vrot.slane %v4120, 4
        %v4127 = vshrl.u32 %v4077, 16
        %v4129 = vrot.slane %v4127, 7
        %v4130 = vshll.u32 %v4077, 16
        %v4132 = vor.u32 %v4129, %v4130
        %v4133 = vrot.slane %v4129, 4
        %v4135 = vshrl.u32 %v4078, 16
        %v4137 = vrot.slane %v4135, 7
        %v4138 = vshll.u32 %v4078, 16
        %v4140 = vor.u32 %v4137, %v4138
        %v4141 = vsel %vm4108, %v4133, %v4140
        %v4142 = vrot.slane %v4137, 4
        %v4144 = vshrl.u32 %v4079, 16
        %v4146 = vrot.slane %v4144, 7
        %v4147 = vshll.u32 %v4079, 16
        %v4149 = vor.u32 %v4146, %v4147
        %v4150 = vrot.slane %v4146, 4
        %v4152 = vshrl.u32 %v4080, 16
        %v4154 = vrot.slane %v4152, 7
        %v4155 = vshll.u32 %v4080, 16
        %v4157 = vor.u32 %v4154, %v4155
        %v4158 = vsel %vm4108, %v4150, %v4157
        %v4159 = vrot.slane %v4154, 4
        %v4161 = vshrl.u32 %v4081, 16
        %v4163 = vrot.slane %v4161, 7
        %v4164 = vshll.u32 %v4081, 16
        %v4166 = vor.u32 %v4163, %v4164
        %v4167 = vrot.slane %v4163, 4
        %v4169 = vshrl.u32 %v4082, 16
        %v4171 = vrot.slane %v4169, 7
        %v4172 = vshll.u32 %v4082, 16
        %v4174 = vor.u32 %v4171, %v4172
        %v4175 = vsel %vm4108, %v4167, %v4174
        %v4176 = vrot.slane %v4171, 4
        %v4178 = vshrl.u32 %v4083, 16
        %v4180 = vrot.slane %v4178, 7
        %v4181 = vshll.u32 %v4083, 16
        %v4183 = vor.u32 %v4180, %v4181
        %v4184 = vrot.slane %v4180, 4
        %v4186 = vshrl.u32 %v4084, 16
        %v4188 = vrot.slane %v4186, 7
        %v4189 = vshll.u32 %v4084, 16
        %v4191 = vor.u32 %v4188, %v4189
        %v4192 = vsel %vm4108, %v4184, %v4191
        %v4193 = vrot.slane %v4188, 4
        %v4195 = vshrl.u32 %v4085, 16
        %v4197 = vrot.slane %v4195, 7
        %v4198 = vshll.u32 %v4085, 16
        %v4200 = vor.u32 %v4197, %v4198
        %v4201 = vrot.slane %v4197, 4
        %v4203 = vshrl.u32 %v4086, 16
        %v4205 = vrot.slane %v4203, 7
        %v4206 = vshll.u32 %v4086, 16
        %v4208 = vor.u32 %v4205, %v4206
        %v4209 = vsel %vm4108, %v4201, %v4208
        %v4210 = vrot.slane %v4205, 4
        %v4212 = vshrl.u32 %v4087, 16
        %v4214 = vrot.slane %v4212, 7
        %v4215 = vshll.u32 %v4087, 16
        %v4217 = vor.u32 %v4214, %v4215
        %v4218 = vrot.slane %v4214, 4
        %v4220 = vshrl.u32 %v4088, 16
        %v4222 = vrot.slane %v4220, 7
        %v4223 = vshll.u32 %v4088, 16
        %v4225 = vor.u32 %v4222, %v4223
        %v4226 = vsel %vm4108, %v4218, %v4225
        %v4227 = vrot.slane %v4222, 4
        %v4229 = vshrl.u32 %v4089, 16
        %v4231 = vrot.slane %v4229, 7
        %v4232 = vshll.u32 %v4089, 16
        %v4234 = vor.u32 %v4231, %v4232
        %v4235 = vrot.slane %v4231, 4
        %v4237 = vshrl.u32 %v4090, 16
        %v4239 = vrot.slane %v4237, 7
        %v4240 = vshll.u32 %v4090, 16
        %v4242 = vor.u32 %v4239, %v4240
        %v4243 = vsel %vm4108, %v4235, %v4242
        %v4244 = vrot.slane %v4239, 4
        %v4246 = vshrl.u32 %v4091, 16
        %v4248 = vrot.slane %v4246, 7
        %v4249 = vshll.u32 %v4091, 16
        %v4251 = vor.u32 %v4248, %v4249
        %v4252 = vrot.slane %v4248, 4
        %v4254 = vshrl.u32 %v4092, 16
        %v4256 = vrot.slane %v4254, 7
        %v4257 = vshll.u32 %v4092, 16
        %v4259 = vor.u32 %v4256, %v4257
        %v4260 = vsel %vm4108, %v4252, %v4259
        %v4261 = vrot.slane %v4256, 4
        %v4263 = vshrl.u32 %v4093, 16
        %v4265 = vrot.slane %v4263, 7
        %v4266 = vshll.u32 %v4093, 16
        %v4268 = vor.u32 %v4265, %v4266
        %v4269 = vrot.slane %v4265, 4
        %v4271 = vshrl.u32 %v4094, 16
        %v4273 = vrot.slane %v4271, 7
        %v4274 = vshll.u32 %v4094, 16
        %v4276 = vor.u32 %v4273, %v4274
        %v4277 = vsel %vm4108, %v4269, %v4276
        %v4278 = vrot.slane %v4273, 4
        %v4280 = vshrl.u32 %v4095, 16
        %v4282 = vrot.slane %v4280, 7
        %v4283 = vshll.u32 %v4095, 16
        %v4285 = vor.u32 %v4282, %v4283
        %v4286 = vrot.slane %v4282, 4
        %v4288 = vshrl.u32 %v4096, 16
        %v4290 = vrot.slane %v4288, 7
        %v4291 = vshll.u32 %v4096, 16
        %v4293 = vor.u32 %v4290, %v4291
        %v4294 = vsel %vm4108, %v4286, %v4293
        %v4295 = vrot.slane %v4290, 4
        %v4297 = vshrl.u32 %v4097, 16
        %v4299 = vrot.slane %v4297, 7
        %v4300 = vshll.u32 %v4097, 16
        %v4302 = vor.u32 %v4299, %v4300
        %v4303 = vrot.slane %v4299, 4
        %v4305 = vshrl.u32 %v4098, 16
        %v4307 = vrot.slane %v4305, 7
        %v4308 = vshll.u32 %v4098, 16
        %v4310 = vor.u32 %v4307, %v4308
        %v4311 = vsel %vm4108, %v4303, %v4310
        %v4312 = vrot.slane %v4307, 4
        %v4314 = vshrl.u32 %v4099, 16
        %v4316 = vrot.slane %v4314, 7
        %v4317 = vshll.u32 %v4099, 16
        %v4319 = vor.u32 %v4316, %v4317
        %v4320 = vrot.slane %v4316, 4
        %v4322 = vshrl.u32 %v4100, 16
        %v4324 = vrot.slane %v4322, 7
        %v4325 = vshll.u32 %v4100, 16
        %v4327 = vor.u32 %v4324, %v4325
        %v4328 = vsel %vm4108, %v4320, %v4327
        %v4329 = vrot.slane %v4324, 4
        %v4331 = vshrl.u32 %v4101, 16
        %v4333 = vrot.slane %v4331, 7
        %v4334 = vshll.u32 %v4101, 16
        %v4336 = vor.u32 %v4333, %v4334
        %v4337 = vrot.slane %v4333, 4
        %v4339 = vshrl.u32 %v4102, 16
        %v4341 = vrot.slane %v4339, 7
        %v4342 = vshll.u32 %v4102, 16
        %v4344 = vor.u32 %v4341, %v4342
        %v4345 = vsel %vm4108, %v4337, %v4344
        %v4346 = vrot.slane %v4341, 4
        %v4348 = vshrl.u32 %v4103, 16
        %v4350 = vrot.slane %v4348, 7
        %v4351 = vshll.u32 %v4103, 16
        %v4353 = vor.u32 %v4350, %v4351
        %v4354 = vrot.slane %v4350, 4
        %v4356 = vshrl.u32 %v4104, 16
        %v4358 = vrot.slane %v4356, 7
        %v4359 = vshll.u32 %v4104, 16
        %v4361 = vor.u32 %v4358, %v4359
        %v4362 = vsel %vm4108, %v4354, %v4361
        %v4363 = vrot.slane %v4358, 4
        %v4365 = vshrl.u32 %v4105, 16
        %v4367 = vrot.slane %v4365, 7
        %v4368 = vshll.u32 %v4105, 16
        %v4370 = vor.u32 %v4367, %v4368
        %v4371 = vrot.slane %v4367, 4
        %v4373 = vshrl.u32 %v4106, 16
        %v4375 = vrot.slane %v4373, 7
        %v4376 = vshll.u32 %v4106, 16
        %v4378 = vor.u32 %v4375, %v4376
        %v4379 = vsel %vm4108, %v4371, %v4378
        %v4380 = vrot.slane %v4375, 4
        %s4429 = scalar_lea.vmem [#allocation2], 12
        %vm4430 = vcmask 257024
        %vm4431 = vmand %vm4430, %vm424
        %v4432 = vld [vmem:[%s4429] sm:$0xf]
        %v4433 = vsel %vm4431, %v4115, %v4432
        %4434 = vst [vmem:[%s4429] sm:$0xf] %v4433
        %4435 = vst.msk [vmem:[%s4429 + $0x4] sm:$0xf] %vm358, %v4124
        %v4436 = vld [vmem:[%s4429 + $0x8] sm:$0x1]
        %v4437 = vsel %vm369, %v4125, %v4436
        %4438 = vst [vmem:[%s4429 + $0x8] sm:$0x1] %v4437
        %v4439 = vld [vmem:[%s4429 + $0xc] sm:$0xf]
        %v4440 = vsel %vm4431, %v4132, %v4439
        %4441 = vst [vmem:[%s4429 + $0xc] sm:$0xf] %v4440
        %4442 = vst.msk [vmem:[%s4429 + $0x10] sm:$0xf] %vm358, %v4141
        %v4443 = vld [vmem:[%s4429 + $0x14] sm:$0x1]
        %v4444 = vsel %vm369, %v4142, %v4443
        %4445 = vst [vmem:[%s4429 + $0x14] sm:$0x1] %v4444
        %v4446 = vld [vmem:[%s4429 + $0x18] sm:$0xf]
        %v4447 = vsel %vm4431, %v4149, %v4446
        %4448 = vst [vmem:[%s4429 + $0x18] sm:$0xf] %v4447
        %4449 = vst.msk [vmem:[%s4429 + $0x1c] sm:$0xf] %vm358, %v4158
        %v4450 = vld [vmem:[%s4429 + $0x20] sm:$0x1]
        %v4451 = vsel %vm369, %v4159, %v4450
        %4452 = vst [vmem:[%s4429 + $0x20] sm:$0x1] %v4451
        %v4453 = vld [vmem:[%s4429 + $0x24] sm:$0xf]
        %v4454 = vsel %vm4431, %v4166, %v4453
        %4455 = vst [vmem:[%s4429 + $0x24] sm:$0xf] %v4454
        %4456 = vst.msk [vmem:[%s4429 + $0x28] sm:$0xf] %vm358, %v4175
        %v4457 = vld [vmem:[%s4429 + $0x2c] sm:$0x1]
        %v4458 = vsel %vm369, %v4176, %v4457
        %4459 = vst [vmem:[%s4429 + $0x2c] sm:$0x1] %v4458
        %v4460 = vld [vmem:[%s4429 + $0x30] sm:$0xf]
        %v4461 = vsel %vm4431, %v4183, %v4460
        %4462 = vst [vmem:[%s4429 + $0x30] sm:$0xf] %v4461
        %4463 = vst.msk [vmem:[%s4429 + $0x34] sm:$0xf] %vm358, %v4192
        %v4464 = vld [vmem:[%s4429 + $0x38] sm:$0x1]
        %v4465 = vsel %vm369, %v4193, %v4464
        %4466 = vst [vmem:[%s4429 + $0x38] sm:$0x1] %v4465
        %v4467 = vld [vmem:[%s4429 + $0x3c] sm:$0xf]
        %v4468 = vsel %vm4431, %v4200, %v4467
        %4469 = vst [vmem:[%s4429 + $0x3c] sm:$0xf] %v4468
        %4470 = vst.msk [vmem:[%s4429 + $0x40] sm:$0xf] %vm358, %v4209
        %v4471 = vld [vmem:[%s4429 + $0x44] sm:$0x1]
        %v4472 = vsel %vm369, %v4210, %v4471
        %4473 = vst [vmem:[%s4429 + $0x44] sm:$0x1] %v4472
        %v4474 = vld [vmem:[%s4429 + $0x48] sm:$0xf]
        %v4475 = vsel %vm4431, %v4217, %v4474
        %4476 = vst [vmem:[%s4429 + $0x48] sm:$0xf] %v4475
        %4477 = vst.msk [vmem:[%s4429 + $0x4c] sm:$0xf] %vm358, %v4226
        %v4478 = vld [vmem:[%s4429 + $0x50] sm:$0x1]
        %v4479 = vsel %vm369, %v4227, %v4478
        %4480 = vst [vmem:[%s4429 + $0x50] sm:$0x1] %v4479
        %v4481 = vld [vmem:[%s4429 + $0x54] sm:$0xf]
        %v4482 = vsel %vm4431, %v4234, %v4481
        %4483 = vst [vmem:[%s4429 + $0x54] sm:$0xf] %v4482
        %4484 = vst.msk [vmem:[%s4429 + $0x58] sm:$0xf] %vm358, %v4243
        %v4485 = vld [vmem:[%s4429 + $0x5c] sm:$0x1]
        %v4486 = vsel %vm369, %v4244, %v4485
        %4487 = vst [vmem:[%s4429 + $0x5c] sm:$0x1] %v4486
        %v4488 = vld [vmem:[%s4429 + $0x60] sm:$0xf]
        %v4489 = vsel %vm4431, %v4251, %v4488
        %4490 = vst [vmem:[%s4429 + $0x60] sm:$0xf] %v4489
        %4491 = vst.msk [vmem:[%s4429 + $0x64] sm:$0xf] %vm358, %v4260
        %v4492 = vld [vmem:[%s4429 + $0x68] sm:$0x1]
        %v4493 = vsel %vm369, %v4261, %v4492
        %4494 = vst [vmem:[%s4429 + $0x68] sm:$0x1] %v4493
        %v4495 = vld [vmem:[%s4429 + $0x6c] sm:$0xf]
        %v4496 = vsel %vm4431, %v4268, %v4495
        %4497 = vst [vmem:[%s4429 + $0x6c] sm:$0xf] %v4496
        %4498 = vst.msk [vmem:[%s4429 + $0x70] sm:$0xf] %vm358, %v4277
        %v4499 = vld [vmem:[%s4429 + $0x74] sm:$0x1]
        %v4500 = vsel %vm369, %v4278, %v4499
        %4501 = vst [vmem:[%s4429 + $0x74] sm:$0x1] %v4500
        %v4502 = vld [vmem:[%s4429 + $0x78] sm:$0xf]
        %v4503 = vsel %vm4431, %v4285, %v4502
        %4504 = vst [vmem:[%s4429 + $0x78] sm:$0xf] %v4503
        %4505 = vst.msk [vmem:[%s4429 + $0x7c] sm:$0xf] %vm358, %v4294
        %v4506 = vld [vmem:[%s4429 + $0x80] sm:$0x1]
        %v4507 = vsel %vm369, %v4295, %v4506
        %4508 = vst [vmem:[%s4429 + $0x80] sm:$0x1] %v4507
        %v4509 = vld [vmem:[%s4429 + $0x84] sm:$0xf]
        %v4510 = vsel %vm4431, %v4302, %v4509
        %4511 = vst [vmem:[%s4429 + $0x84] sm:$0xf] %v4510
        %4512 = vst.msk [vmem:[%s4429 + $0x88] sm:$0xf] %vm358, %v4311
        %v4513 = vld [vmem:[%s4429 + $0x8c] sm:$0x1]
        %v4514 = vsel %vm369, %v4312, %v4513
        %4515 = vst [vmem:[%s4429 + $0x8c] sm:$0x1] %v4514
        %v4516 = vld [vmem:[%s4429 + $0x90] sm:$0xf]
        %v4517 = vsel %vm4431, %v4319, %v4516
        %4518 = vst [vmem:[%s4429 + $0x90] sm:$0xf] %v4517
        %4519 = vst.msk [vmem:[%s4429 + $0x94] sm:$0xf] %vm358, %v4328
        %v4520 = vld [vmem:[%s4429 + $0x98] sm:$0x1]
        %v4521 = vsel %vm369, %v4329, %v4520
        %4522 = vst [vmem:[%s4429 + $0x98] sm:$0x1] %v4521
        %v4523 = vld [vmem:[%s4429 + $0x9c] sm:$0xf]
        %v4524 = vsel %vm4431, %v4336, %v4523
        %4525 = vst [vmem:[%s4429 + $0x9c] sm:$0xf] %v4524
        %4526 = vst.msk [vmem:[%s4429 + $0xa0] sm:$0xf] %vm358, %v4345
        %v4527 = vld [vmem:[%s4429 + $0xa4] sm:$0x1]
        %v4528 = vsel %vm369, %v4346, %v4527
        %4529 = vst [vmem:[%s4429 + $0xa4] sm:$0x1] %v4528
        %v4530 = vld [vmem:[%s4429 + $0xa8] sm:$0xf]
        %v4531 = vsel %vm4431, %v4353, %v4530
        %4532 = vst [vmem:[%s4429 + $0xa8] sm:$0xf] %v4531
        %4533 = vst.msk [vmem:[%s4429 + $0xac] sm:$0xf] %vm358, %v4362
        %v4534 = vld [vmem:[%s4429 + $0xb0] sm:$0x1]
        %v4535 = vsel %vm369, %v4363, %v4534
        %4536 = vst [vmem:[%s4429 + $0xb0] sm:$0x1] %v4535
        %v4537 = vld [vmem:[%s4429 + $0xb4] sm:$0xf]
        %v4538 = vsel %vm4431, %v4370, %v4537
        %4539 = vst [vmem:[%s4429 + $0xb4] sm:$0xf] %v4538
        %4540 = vst.msk [vmem:[%s4429 + $0xb8] sm:$0xf] %vm358, %v4379
        %v4541 = vld [vmem:[%s4429 + $0xbc] sm:$0x1]
        %v4542 = vsel %vm369, %v4380, %v4541
        %4543 = vst [vmem:[%s4429 + $0xbc] sm:$0x1] %v4542
        %v4544 = vld [vmem:[#allocation2] sm:$0xf]
        %v4545 = vld [vmem:[#allocation2 + $0x4] sm:$0xf]
        %v4546 = vld [vmem:[#allocation2 + $0xc] sm:$0xf]
        %v4547 = vld [vmem:[#allocation2 + $0x10] sm:$0xf]
        %v4548 = vld [vmem:[#allocation2 + $0x18] sm:$0xf]
        %v4549 = vld [vmem:[#allocation2 + $0x1c] sm:$0xf]
        %v4550 = vld [vmem:[#allocation2 + $0x24] sm:$0xf]
        %v4551 = vld [vmem:[#allocation2 + $0x28] sm:$0xf]
        %v4552 = vld [vmem:[#allocation2 + $0x30] sm:$0xf]
        %v4553 = vld [vmem:[#allocation2 + $0x34] sm:$0xf]
        %v4554 = vld [vmem:[#allocation2 + $0x3c] sm:$0xf]
        %v4555 = vld [vmem:[#allocation2 + $0x40] sm:$0xf]
        %v4556 = vld [vmem:[#allocation2 + $0x48] sm:$0xf]
        %v4557 = vld [vmem:[#allocation2 + $0x4c] sm:$0xf]
        %v4558 = vld [vmem:[#allocation2 + $0x54] sm:$0xf]
        %v4559 = vld [vmem:[#allocation2 + $0x58] sm:$0xf]
        %v4560 = vld [vmem:[#allocation2 + $0x60] sm:$0xf]
        %v4561 = vld [vmem:[#allocation2 + $0x64] sm:$0xf]
        %v4562 = vld [vmem:[#allocation2 + $0x6c] sm:$0xf]
        %v4563 = vld [vmem:[#allocation2 + $0x70] sm:$0xf]
        %v4564 = vld [vmem:[#allocation2 + $0x78] sm:$0xf]
        %v4565 = vld [vmem:[#allocation2 + $0x7c] sm:$0xf]
        %v4566 = vld [vmem:[#allocation2 + $0x84] sm:$0xf]
        %v4567 = vld [vmem:[#allocation2 + $0x88] sm:$0xf]
        %v4568 = vld [vmem:[#allocation2 + $0x90] sm:$0xf]
        %v4569 = vld [vmem:[#allocation2 + $0x94] sm:$0xf]
        %v4570 = vld [vmem:[#allocation2 + $0x9c] sm:$0xf]
        %v4571 = vld [vmem:[#allocation2 + $0xa0] sm:$0xf]
        %v4572 = vld [vmem:[#allocation2 + $0xa8] sm:$0xf]
        %v4573 = vld [vmem:[#allocation2 + $0xac] sm:$0xf]
        %v4574 = vld [vmem:[#allocation2 + $0xb4] sm:$0xf]
        %v4575 = vld [vmem:[#allocation2 + $0xb8] sm:$0xf]
        %v4576 = vld [vmem:[#allocation2 + $0x8] sm:$0x1]
        %v4577 = vld [vmem:[#allocation2 + $0x14] sm:$0x1]
        %v4578 = vld [vmem:[#allocation2 + $0x20] sm:$0x1]
        %v4579 = vld [vmem:[#allocation2 + $0x2c] sm:$0x1]
        %v4580 = vld [vmem:[#allocation2 + $0x38] sm:$0x1]
        %v4581 = vld [vmem:[#allocation2 + $0x44] sm:$0x1]
        %v4582 = vld [vmem:[#allocation2 + $0x50] sm:$0x1]
        %v4583 = vld [vmem:[#allocation2 + $0x5c] sm:$0x1]
        %v4584 = vld [vmem:[#allocation2 + $0x68] sm:$0x1]
        %v4585 = vld [vmem:[#allocation2 + $0x74] sm:$0x1]
        %v4586 = vld [vmem:[#allocation2 + $0x80] sm:$0x1]
        %v4587 = vld [vmem:[#allocation2 + $0x8c] sm:$0x1]
        %v4588 = vld [vmem:[#allocation2 + $0x98] sm:$0x1]
        %v4589 = vld [vmem:[#allocation2 + $0xa4] sm:$0x1]
        %v4590 = vld [vmem:[#allocation2 + $0xb0] sm:$0x1]
        %v4591 = vld [vmem:[#allocation2 + $0xbc] sm:$0x1]
        %v4593 = vshrl.u32 %v4544, 16
        %v4595 = vrot.slane %v4593, 4
        %v4596 = vshll.u32 %v4544, 16
        %v4598 = vrot.slane %v4596, 5
        %v4599 = vor.u32 %v4595, %v4598
        %v4600 = vrot.slane %v4599, 4
        %v4602 = vshll.u32 %v4545, 16
        %v4604 = vrot.slane %v4602, 5
        %v4605 = vsel %vm645, %v4600, %v4604
        %v4606 = vshrl.u32 %v4545, 16
        %v4608 = vrot.slane %v4606, 4
        %v4609 = vor.u32 %v4608, %v4604
        %v4610 = vrot.slane %v4609, 4
        %v4612 = vshll.u32 %v4576, 16
        %v4614 = vrot.slane %v4612, 5
        %v4615 = vsel %vm645, %v4610, %v4614
        %v4617 = vshrl.u32 %v4546, 16
        %v4619 = vrot.slane %v4617, 4
        %v4620 = vshll.u32 %v4546, 16
        %v4622 = vrot.slane %v4620, 5
        %v4623 = vor.u32 %v4619, %v4622
        %v4624 = vrot.slane %v4623, 4
        %v4626 = vshll.u32 %v4547, 16
        %v4628 = vrot.slane %v4626, 5
        %v4629 = vsel %vm645, %v4624, %v4628
        %v4630 = vshrl.u32 %v4547, 16
        %v4632 = vrot.slane %v4630, 4
        %v4633 = vor.u32 %v4632, %v4628
        %v4634 = vrot.slane %v4633, 4
        %v4636 = vshll.u32 %v4577, 16
        %v4638 = vrot.slane %v4636, 5
        %v4639 = vsel %vm645, %v4634, %v4638
        %v4641 = vshrl.u32 %v4548, 16
        %v4643 = vrot.slane %v4641, 4
        %v4644 = vshll.u32 %v4548, 16
        %v4646 = vrot.slane %v4644, 5
        %v4647 = vor.u32 %v4643, %v4646
        %v4648 = vrot.slane %v4647, 4
        %v4650 = vshll.u32 %v4549, 16
        %v4652 = vrot.slane %v4650, 5
        %v4653 = vsel %vm645, %v4648, %v4652
        %v4654 = vshrl.u32 %v4549, 16
        %v4656 = vrot.slane %v4654, 4
        %v4657 = vor.u32 %v4656, %v4652
        %v4658 = vrot.slane %v4657, 4
        %v4660 = vshll.u32 %v4578, 16
        %v4662 = vrot.slane %v4660, 5
        %v4663 = vsel %vm645, %v4658, %v4662
        %v4665 = vshrl.u32 %v4550, 16
        %v4667 = vrot.slane %v4665, 4
        %v4668 = vshll.u32 %v4550, 16
        %v4670 = vrot.slane %v4668, 5
        %v4671 = vor.u32 %v4667, %v4670
        %v4672 = vrot.slane %v4671, 4
        %v4674 = vshll.u32 %v4551, 16
        %v4676 = vrot.slane %v4674, 5
        %v4677 = vsel %vm645, %v4672, %v4676
        %v4678 = vshrl.u32 %v4551, 16
        %v4680 = vrot.slane %v4678, 4
        %v4681 = vor.u32 %v4680, %v4676
        %v4682 = vrot.slane %v4681, 4
        %v4684 = vshll.u32 %v4579, 16
        %v4686 = vrot.slane %v4684, 5
        %v4687 = vsel %vm645, %v4682, %v4686
        %v4689 = vshrl.u32 %v4552, 16
        %v4691 = vrot.slane %v4689, 4
        %v4692 = vshll.u32 %v4552, 16
        %v4694 = vrot.slane %v4692, 5
        %v4695 = vor.u32 %v4691, %v4694
        %v4696 = vrot.slane %v4695, 4
        %v4698 = vshll.u32 %v4553, 16
        %v4700 = vrot.slane %v4698, 5
        %v4701 = vsel %vm645, %v4696, %v4700
        %v4702 = vshrl.u32 %v4553, 16
        %v4704 = vrot.slane %v4702, 4
        %v4705 = vor.u32 %v4704, %v4700
        %v4706 = vrot.slane %v4705, 4
        %v4708 = vshll.u32 %v4580, 16
        %v4710 = vrot.slane %v4708, 5
        %v4711 = vsel %vm645, %v4706, %v4710
        %v4713 = vshrl.u32 %v4554, 16
        %v4715 = vrot.slane %v4713, 4
        %v4716 = vshll.u32 %v4554, 16
        %v4718 = vrot.slane %v4716, 5
        %v4719 = vor.u32 %v4715, %v4718
        %v4720 = vrot.slane %v4719, 4
        %v4722 = vshll.u32 %v4555, 16
        %v4724 = vrot.slane %v4722, 5
        %v4725 = vsel %vm645, %v4720, %v4724
        %v4726 = vshrl.u32 %v4555, 16
        %v4728 = vrot.slane %v4726, 4
        %v4729 = vor.u32 %v4728, %v4724
        %v4730 = vrot.slane %v4729, 4
        %v4732 = vshll.u32 %v4581, 16
        %v4734 = vrot.slane %v4732, 5
        %v4735 = vsel %vm645, %v4730, %v4734
        %v4737 = vshrl.u32 %v4556, 16
        %v4739 = vrot.slane %v4737, 4
        %v4740 = vshll.u32 %v4556, 16
        %v4742 = vrot.slane %v4740, 5
        %v4743 = vor.u32 %v4739, %v4742
        %v4744 = vrot.slane %v4743, 4
        %v4746 = vshll.u32 %v4557, 16
        %v4748 = vrot.slane %v4746, 5
        %v4749 = vsel %vm645, %v4744, %v4748
        %v4750 = vshrl.u32 %v4557, 16
        %v4752 = vrot.slane %v4750, 4
        %v4753 = vor.u32 %v4752, %v4748
        %v4754 = vrot.slane %v4753, 4
        %v4756 = vshll.u32 %v4582, 16
        %v4758 = vrot.slane %v4756, 5
        %v4759 = vsel %vm645, %v4754, %v4758
        %v4761 = vshrl.u32 %v4558, 16
        %v4763 = vrot.slane %v4761, 4
        %v4764 = vshll.u32 %v4558, 16
        %v4766 = vrot.slane %v4764, 5
        %v4767 = vor.u32 %v4763, %v4766
        %v4768 = vrot.slane %v4767, 4
        %v4770 = vshll.u32 %v4559, 16
        %v4772 = vrot.slane %v4770, 5
        %v4773 = vsel %vm645, %v4768, %v4772
        %v4774 = vshrl.u32 %v4559, 16
        %v4776 = vrot.slane %v4774, 4
        %v4777 = vor.u32 %v4776, %v4772
        %v4778 = vrot.slane %v4777, 4
        %v4780 = vshll.u32 %v4583, 16
        %v4782 = vrot.slane %v4780, 5
        %v4783 = vsel %vm645, %v4778, %v4782
        %v4785 = vshrl.u32 %v4560, 16
        %v4787 = vrot.slane %v4785, 4
        %v4788 = vshll.u32 %v4560, 16
        %v4790 = vrot.slane %v4788, 5
        %v4791 = vor.u32 %v4787, %v4790
        %v4792 = vrot.slane %v4791, 4
        %v4794 = vshll.u32 %v4561, 16
        %v4796 = vrot.slane %v4794, 5
        %v4797 = vsel %vm645, %v4792, %v4796
        %v4798 = vshrl.u32 %v4561, 16
        %v4800 = vrot.slane %v4798, 4
        %v4801 = vor.u32 %v4800, %v4796
        %v4802 = vrot.slane %v4801, 4
        %v4804 = vshll.u32 %v4584, 16
        %v4806 = vrot.slane %v4804, 5
        %v4807 = vsel %vm645, %v4802, %v4806
        %v4809 = vshrl.u32 %v4562, 16
        %v4811 = vrot.slane %v4809, 4
        %v4812 = vshll.u32 %v4562, 16
        %v4814 = vrot.slane %v4812, 5
        %v4815 = vor.u32 %v4811, %v4814
        %v4816 = vrot.slane %v4815, 4
        %v4818 = vshll.u32 %v4563, 16
        %v4820 = vrot.slane %v4818, 5
        %v4821 = vsel %vm645, %v4816, %v4820
        %v4822 = vshrl.u32 %v4563, 16
        %v4824 = vrot.slane %v4822, 4
        %v4825 = vor.u32 %v4824, %v4820
        %v4826 = vrot.slane %v4825, 4
        %v4828 = vshll.u32 %v4585, 16
        %v4830 = vrot.slane %v4828, 5
        %v4831 = vsel %vm645, %v4826, %v4830
        %v4833 = vshrl.u32 %v4564, 16
        %v4835 = vrot.slane %v4833, 4
        %v4836 = vshll.u32 %v4564, 16
        %v4838 = vrot.slane %v4836, 5
        %v4839 = vor.u32 %v4835, %v4838
        %v4840 = vrot.slane %v4839, 4
        %v4842 = vshll.u32 %v4565, 16
        %v4844 = vrot.slane %v4842, 5
        %v4845 = vsel %vm645, %v4840, %v4844
        %v4846 = vshrl.u32 %v4565, 16
        %v4848 = vrot.slane %v4846, 4
        %v4849 = vor.u32 %v4848, %v4844
        %v4850 = vrot.slane %v4849, 4
        %v4852 = vshll.u32 %v4586, 16
        %v4854 = vrot.slane %v4852, 5
        %v4855 = vsel %vm645, %v4850, %v4854
        %v4857 = vshrl.u32 %v4566, 16
        %v4859 = vrot.slane %v4857, 4
        %v4860 = vshll.u32 %v4566, 16
        %v4862 = vrot.slane %v4860, 5
        %v4863 = vor.u32 %v4859, %v4862
        %v4864 = vrot.slane %v4863, 4
        %v4866 = vshll.u32 %v4567, 16
        %v4868 = vrot.slane %v4866, 5
        %v4869 = vsel %vm645, %v4864, %v4868
        %v4870 = vshrl.u32 %v4567, 16
        %v4872 = vrot.slane %v4870, 4
        %v4873 = vor.u32 %v4872, %v4868
        %v4874 = vrot.slane %v4873, 4
        %v4876 = vshll.u32 %v4587, 16
        %v4878 = vrot.slane %v4876, 5
        %v4879 = vsel %vm645, %v4874, %v4878
        %v4881 = vshrl.u32 %v4568, 16
        %v4883 = vrot.slane %v4881, 4
        %v4884 = vshll.u32 %v4568, 16
        %v4886 = vrot.slane %v4884, 5
        %v4887 = vor.u32 %v4883, %v4886
        %v4888 = vrot.slane %v4887, 4
        %v4890 = vshll.u32 %v4569, 16
        %v4892 = vrot.slane %v4890, 5
        %v4893 = vsel %vm645, %v4888, %v4892
        %v4894 = vshrl.u32 %v4569, 16
        %v4896 = vrot.slane %v4894, 4
        %v4897 = vor.u32 %v4896, %v4892
        %v4898 = vrot.slane %v4897, 4
        %v4900 = vshll.u32 %v4588, 16
        %v4902 = vrot.slane %v4900, 5
        %v4903 = vsel %vm645, %v4898, %v4902
        %v4905 = vshrl.u32 %v4570, 16
        %v4907 = vrot.slane %v4905, 4
        %v4908 = vshll.u32 %v4570, 16
        %v4910 = vrot.slane %v4908, 5
        %v4911 = vor.u32 %v4907, %v4910
        %v4912 = vrot.slane %v4911, 4
        %v4914 = vshll.u32 %v4571, 16
        %v4916 = vrot.slane %v4914, 5
        %v4917 = vsel %vm645, %v4912, %v4916
        %v4918 = vshrl.u32 %v4571, 16
        %v4920 = vrot.slane %v4918, 4
        %v4921 = vor.u32 %v4920, %v4916
        %v4922 = vrot.slane %v4921, 4
        %v4924 = vshll.u32 %v4589, 16
        %v4926 = vrot.slane %v4924, 5
        %v4927 = vsel %vm645, %v4922, %v4926
        %v4929 = vshrl.u32 %v4572, 16
        %v4931 = vrot.slane %v4929, 4
        %v4932 = vshll.u32 %v4572, 16
        %v4934 = vrot.slane %v4932, 5
        %v4935 = vor.u32 %v4931, %v4934
        %v4936 = vrot.slane %v4935, 4
        %v4938 = vshll.u32 %v4573, 16
        %v4940 = vrot.slane %v4938, 5
        %v4941 = vsel %vm645, %v4936, %v4940
        %v4942 = vshrl.u32 %v4573, 16
        %v4944 = vrot.slane %v4942, 4
        %v4945 = vor.u32 %v4944, %v4940
        %v4946 = vrot.slane %v4945, 4
        %v4948 = vshll.u32 %v4590, 16
        %v4950 = vrot.slane %v4948, 5
        %v4951 = vsel %vm645, %v4946, %v4950
        %v4953 = vshrl.u32 %v4574, 16
        %v4955 = vrot.slane %v4953, 4
        %v4956 = vshll.u32 %v4574, 16
        %v4958 = vrot.slane %v4956, 5
        %v4959 = vor.u32 %v4955, %v4958
        %v4960 = vrot.slane %v4959, 4
        %v4962 = vshll.u32 %v4575, 16
        %v4964 = vrot.slane %v4962, 5
        %v4965 = vsel %vm645, %v4960, %v4964
        %v4966 = vshrl.u32 %v4575, 16
        %v4968 = vrot.slane %v4966, 4
        %v4969 = vor.u32 %v4968, %v4964
        %v4970 = vrot.slane %v4969, 4
        %v4972 = vshll.u32 %v4591, 16
        %v4974 = vrot.slane %v4972, 5
        %v4975 = vsel %vm645, %v4970, %v4974
        %v4976 = vld [vmem:[#allocation2] sm:$0xe]
        %v4977 = vld [vmem:[#allocation2 + $0xc] sm:$0xe]
        %v4978 = vld [vmem:[#allocation2 + $0x18] sm:$0xe]
        %v4979 = vld [vmem:[#allocation2 + $0x24] sm:$0xe]
        %v4980 = vld [vmem:[#allocation2 + $0x30] sm:$0xe]
        %v4981 = vld [vmem:[#allocation2 + $0x3c] sm:$0xe]
        %v4982 = vld [vmem:[#allocation2 + $0x48] sm:$0xe]
        %v4983 = vld [vmem:[#allocation2 + $0x54] sm:$0xe]
        %v4984 = vld [vmem:[#allocation2 + $0x60] sm:$0xe]
        %v4985 = vld [vmem:[#allocation2 + $0x6c] sm:$0xe]
        %v4986 = vld [vmem:[#allocation2 + $0x78] sm:$0xe]
        %v4987 = vld [vmem:[#allocation2 + $0x84] sm:$0xe]
        %v4988 = vld [vmem:[#allocation2 + $0x90] sm:$0xe]
        %v4989 = vld [vmem:[#allocation2 + $0x9c] sm:$0xe]
        %v4990 = vld [vmem:[#allocation2 + $0xa8] sm:$0xe]
        %v4991 = vld [vmem:[#allocation2 + $0xb4] sm:$0xe]
        %v5040 = vrot.slane %v4976, 5
        %v5041 = vrot.slane %v5040, 4
        %v5042 = vrot.slane %v4545, 5
        %v5043 = vsel %vm1096, %v5041, %v5042
        %v5044 = vrot.slane %v5042, 4
        %v5045 = vrot.slane %v4576, 5
        %v5046 = vsel %vm1096, %v5044, %v5045
        %v5047 = vrot.slane %v4977, 5
        %v5048 = vrot.slane %v5047, 4
        %v5049 = vrot.slane %v4547, 5
        %v5050 = vsel %vm1096, %v5048, %v5049
        %v5051 = vrot.slane %v5049, 4
        %v5052 = vrot.slane %v4577, 5
        %v5053 = vsel %vm1096, %v5051, %v5052
        %v5054 = vrot.slane %v4978, 5
        %v5055 = vrot.slane %v5054, 4
        %v5056 = vrot.slane %v4549, 5
        %v5057 = vsel %vm1096, %v5055, %v5056
        %v5058 = vrot.slane %v5056, 4
        %v5059 = vrot.slane %v4578, 5
        %v5060 = vsel %vm1096, %v5058, %v5059
        %v5061 = vrot.slane %v4979, 5
        %v5062 = vrot.slane %v5061, 4
        %v5063 = vrot.slane %v4551, 5
        %v5064 = vsel %vm1096, %v5062, %v5063
        %v5065 = vrot.slane %v5063, 4
        %v5066 = vrot.slane %v4579, 5
        %v5067 = vsel %vm1096, %v5065, %v5066
        %v5068 = vrot.slane %v4980, 5
        %v5069 = vrot.slane %v5068, 4
        %v5070 = vrot.slane %v4553, 5
        %v5071 = vsel %vm1096, %v5069, %v5070
        %v5072 = vrot.slane %v5070, 4
        %v5073 = vrot.slane %v4580, 5
        %v5074 = vsel %vm1096, %v5072, %v5073
        %v5075 = vrot.slane %v4981, 5
        %v5076 = vrot.slane %v5075, 4
        %v5077 = vrot.slane %v4555, 5
        %v5078 = vsel %vm1096, %v5076, %v5077
        %v5079 = vrot.slane %v5077, 4
        %v5080 = vrot.slane %v4581, 5
        %v5081 = vsel %vm1096, %v5079, %v5080
        %v5082 = vrot.slane %v4982, 5
        %v5083 = vrot.slane %v5082, 4
        %v5084 = vrot.slane %v4557, 5
        %v5085 = vsel %vm1096, %v5083, %v5084
        %v5086 = vrot.slane %v5084, 4
        %v5087 = vrot.slane %v4582, 5
        %v5088 = vsel %vm1096, %v5086, %v5087
        %v5089 = vrot.slane %v4983, 5
        %v5090 = vrot.slane %v5089, 4
        %v5091 = vrot.slane %v4559, 5
        %v5092 = vsel %vm1096, %v5090, %v5091
        %v5093 = vrot.slane %v5091, 4
        %v5094 = vrot.slane %v4583, 5
        %v5095 = vsel %vm1096, %v5093, %v5094
        %v5096 = vrot.slane %v4984, 5
        %v5097 = vrot.slane %v5096, 4
        %v5098 = vrot.slane %v4561, 5
        %v5099 = vsel %vm1096, %v5097, %v5098
        %v5100 = vrot.slane %v5098, 4
        %v5101 = vrot.slane %v4584, 5
        %v5102 = vsel %vm1096, %v5100, %v5101
        %v5103 = vrot.slane %v4985, 5
        %v5104 = vrot.slane %v5103, 4
        %v5105 = vrot.slane %v4563, 5
        %v5106 = vsel %vm1096, %v5104, %v5105
        %v5107 = vrot.slane %v5105, 4
        %v5108 = vrot.slane %v4585, 5
        %v5109 = vsel %vm1096, %v5107, %v5108
        %v5110 = vrot.slane %v4986, 5
        %v5111 = vrot.slane %v5110, 4
        %v5112 = vrot.slane %v4565, 5
        %v5113 = vsel %vm1096, %v5111, %v5112
        %v5114 = vrot.slane %v5112, 4
        %v5115 = vrot.slane %v4586, 5
        %v5116 = vsel %vm1096, %v5114, %v5115
        %v5117 = vrot.slane %v4987, 5
        %v5118 = vrot.slane %v5117, 4
        %v5119 = vrot.slane %v4567, 5
        %v5120 = vsel %vm1096, %v5118, %v5119
        %v5121 = vrot.slane %v5119, 4
        %v5122 = vrot.slane %v4587, 5
        %v5123 = vsel %vm1096, %v5121, %v5122
        %v5124 = vrot.slane %v4988, 5
        %v5125 = vrot.slane %v5124, 4
        %v5126 = vrot.slane %v4569, 5
        %v5127 = vsel %vm1096, %v5125, %v5126
        %v5128 = vrot.slane %v5126, 4
        %v5129 = vrot.slane %v4588, 5
        %v5130 = vsel %vm1096, %v5128, %v5129
        %v5131 = vrot.slane %v4989, 5
        %v5132 = vrot.slane %v5131, 4
        %v5133 = vrot.slane %v4571, 5
        %v5134 = vsel %vm1096, %v5132, %v5133
        %v5135 = vrot.slane %v5133, 4
        %v5136 = vrot.slane %v4589, 5
        %v5137 = vsel %vm1096, %v5135, %v5136
        %v5138 = vrot.slane %v4990, 5
        %v5139 = vrot.slane %v5138, 4
        %v5140 = vrot.slane %v4573, 5
        %v5141 = vsel %vm1096, %v5139, %v5140
        %v5142 = vrot.slane %v5140, 4
        %v5143 = vrot.slane %v4590, 5
        %v5144 = vsel %vm1096, %v5142, %v5143
        %v5145 = vrot.slane %v4991, 5
        %v5146 = vrot.slane %v5145, 4
        %v5147 = vrot.slane %v4575, 5
        %v5148 = vsel %vm1096, %v5146, %v5147
        %v5149 = vrot.slane %v5147, 4
        %v5150 = vrot.slane %v4591, 5
        %v5151 = vsel %vm1096, %v5149, %v5150
        %v5152 = vld [vmem:[%s4429] sm:$0xf]
        %v5153 = vld [vmem:[%s4429 + $0x4] sm:$0xf]
        %v5154 = vld [vmem:[%s4429 + $0xc] sm:$0xf]
        %v5155 = vld [vmem:[%s4429 + $0x10] sm:$0xf]
        %v5156 = vld [vmem:[%s4429 + $0x18] sm:$0xf]
        %v5157 = vld [vmem:[%s4429 + $0x1c] sm:$0xf]
        %v5158 = vld [vmem:[%s4429 + $0x24] sm:$0xf]
        %v5159 = vld [vmem:[%s4429 + $0x28] sm:$0xf]
        %v5160 = vld [vmem:[%s4429 + $0x30] sm:$0xf]
        %v5161 = vld [vmem:[%s4429 + $0x34] sm:$0xf]
        %v5162 = vld [vmem:[%s4429 + $0x3c] sm:$0xf]
        %v5163 = vld [vmem:[%s4429 + $0x40] sm:$0xf]
        %v5164 = vld [vmem:[%s4429 + $0x48] sm:$0xf]
        %v5165 = vld [vmem:[%s4429 + $0x4c] sm:$0xf]
        %v5166 = vld [vmem:[%s4429 + $0x54] sm:$0xf]
        %v5167 = vld [vmem:[%s4429 + $0x58] sm:$0xf]
        %v5168 = vld [vmem:[%s4429 + $0x60] sm:$0xf]
        %v5169 = vld [vmem:[%s4429 + $0x64] sm:$0xf]
        %v5170 = vld [vmem:[%s4429 + $0x6c] sm:$0xf]
        %v5171 = vld [vmem:[%s4429 + $0x70] sm:$0xf]
        %v5172 = vld [vmem:[%s4429 + $0x78] sm:$0xf]
        %v5173 = vld [vmem:[%s4429 + $0x7c] sm:$0xf]
        %v5174 = vld [vmem:[%s4429 + $0x84] sm:$0xf]
        %v5175 = vld [vmem:[%s4429 + $0x88] sm:$0xf]
        %v5176 = vld [vmem:[%s4429 + $0x90] sm:$0xf]
        %v5177 = vld [vmem:[%s4429 + $0x94] sm:$0xf]
        %v5178 = vld [vmem:[%s4429 + $0x9c] sm:$0xf]
        %v5179 = vld [vmem:[%s4429 + $0xa0] sm:$0xf]
        %v5180 = vld [vmem:[%s4429 + $0xa8] sm:$0xf]
        %v5181 = vld [vmem:[%s4429 + $0xac] sm:$0xf]
        %v5182 = vld [vmem:[%s4429 + $0xb4] sm:$0xf]
        %v5183 = vld [vmem:[%s4429 + $0xb8] sm:$0xf]
        %v5184 = vld [vmem:[%s4429 + $0x8] sm:$0x1]
        %v5185 = vld [vmem:[%s4429 + $0x14] sm:$0x1]
        %v5186 = vld [vmem:[%s4429 + $0x20] sm:$0x1]
        %v5187 = vld [vmem:[%s4429 + $0x2c] sm:$0x1]
        %v5188 = vld [vmem:[%s4429 + $0x38] sm:$0x1]
        %v5189 = vld [vmem:[%s4429 + $0x44] sm:$0x1]
        %v5190 = vld [vmem:[%s4429 + $0x50] sm:$0x1]
        %v5191 = vld [vmem:[%s4429 + $0x5c] sm:$0x1]
        %v5192 = vld [vmem:[%s4429 + $0x68] sm:$0x1]
        %v5193 = vld [vmem:[%s4429 + $0x74] sm:$0x1]
        %v5194 = vld [vmem:[%s4429 + $0x80] sm:$0x1]
        %v5195 = vld [vmem:[%s4429 + $0x8c] sm:$0x1]
        %v5196 = vld [vmem:[%s4429 + $0x98] sm:$0x1]
        %v5197 = vld [vmem:[%s4429 + $0xa4] sm:$0x1]
        %v5198 = vld [vmem:[%s4429 + $0xb0] sm:$0x1]
        %v5199 = vld [vmem:[%s4429 + $0xbc] sm:$0x1]
        %v5201 = vshrl.u32 %v5152, 16
        %v5203 = vrot.slane %v5201, 4
        %v5204 = vshll.u32 %v5152, 16
        %v5206 = vrot.slane %v5204, 5
        %v5207 = vor.u32 %v5203, %v5206
        %v5208 = vrot.slane %v5207, 4
        %v5210 = vshll.u32 %v5153, 16
        %v5212 = vrot.slane %v5210, 5
        %v5213 = vsel %vm645, %v5208, %v5212
        %v5214 = vshrl.u32 %v5153, 16
        %v5216 = vrot.slane %v5214, 4
        %v5217 = vor.u32 %v5216, %v5212
        %v5218 = vrot.slane %v5217, 4
        %v5220 = vshll.u32 %v5184, 16
        %v5222 = vrot.slane %v5220, 5
        %v5223 = vsel %vm645, %v5218, %v5222
        %v5225 = vshrl.u32 %v5154, 16
        %v5227 = vrot.slane %v5225, 4
        %v5228 = vshll.u32 %v5154, 16
        %v5230 = vrot.slane %v5228, 5
        %v5231 = vor.u32 %v5227, %v5230
        %v5232 = vrot.slane %v5231, 4
        %v5234 = vshll.u32 %v5155, 16
        %v5236 = vrot.slane %v5234, 5
        %v5237 = vsel %vm645, %v5232, %v5236
        %v5238 = vshrl.u32 %v5155, 16
        %v5240 = vrot.slane %v5238, 4
        %v5241 = vor.u32 %v5240, %v5236
        %v5242 = vrot.slane %v5241, 4
        %v5244 = vshll.u32 %v5185, 16
        %v5246 = vrot.slane %v5244, 5
        %v5247 = vsel %vm645, %v5242, %v5246
        %v5249 = vshrl.u32 %v5156, 16
        %v5251 = vrot.slane %v5249, 4
        %v5252 = vshll.u32 %v5156, 16
        %v5254 = vrot.slane %v5252, 5
        %v5255 = vor.u32 %v5251, %v5254
        %v5256 = vrot.slane %v5255, 4
        %v5258 = vshll.u32 %v5157, 16
        %v5260 = vrot.slane %v5258, 5
        %v5261 = vsel %vm645, %v5256, %v5260
        %v5262 = vshrl.u32 %v5157, 16
        %v5264 = vrot.slane %v5262, 4
        %v5265 = vor.u32 %v5264, %v5260
        %v5266 = vrot.slane %v5265, 4
        %v5268 = vshll.u32 %v5186, 16
        %v5270 = vrot.slane %v5268, 5
        %v5271 = vsel %vm645, %v5266, %v5270
        %v5273 = vshrl.u32 %v5158, 16
        %v5275 = vrot.slane %v5273, 4
        %v5276 = vshll.u32 %v5158, 16
        %v5278 = vrot.slane %v5276, 5
        %v5279 = vor.u32 %v5275, %v5278
        %v5280 = vrot.slane %v5279, 4
        %v5282 = vshll.u32 %v5159, 16
        %v5284 = vrot.slane %v5282, 5
        %v5285 = vsel %vm645, %v5280, %v5284
        %v5286 = vshrl.u32 %v5159, 16
        %v5288 = vrot.slane %v5286, 4
        %v5289 = vor.u32 %v5288, %v5284
        %v5290 = vrot.slane %v5289, 4
        %v5292 = vshll.u32 %v5187, 16
        %v5294 = vrot.slane %v5292, 5
        %v5295 = vsel %vm645, %v5290, %v5294
        %v5297 = vshrl.u32 %v5160, 16
        %v5299 = vrot.slane %v5297, 4
        %v5300 = vshll.u32 %v5160, 16
        %v5302 = vrot.slane %v5300, 5
        %v5303 = vor.u32 %v5299, %v5302
        %v5304 = vrot.slane %v5303, 4
        %v5306 = vshll.u32 %v5161, 16
        %v5308 = vrot.slane %v5306, 5
        %v5309 = vsel %vm645, %v5304, %v5308
        %v5310 = vshrl.u32 %v5161, 16
        %v5312 = vrot.slane %v5310, 4
        %v5313 = vor.u32 %v5312, %v5308
        %v5314 = vrot.slane %v5313, 4
        %v5316 = vshll.u32 %v5188, 16
        %v5318 = vrot.slane %v5316, 5
        %v5319 = vsel %vm645, %v5314, %v5318
        %v5321 = vshrl.u32 %v5162, 16
        %v5323 = vrot.slane %v5321, 4
        %v5324 = vshll.u32 %v5162, 16
        %v5326 = vrot.slane %v5324, 5
        %v5327 = vor.u32 %v5323, %v5326
        %v5328 = vrot.slane %v5327, 4
        %v5330 = vshll.u32 %v5163, 16
        %v5332 = vrot.slane %v5330, 5
        %v5333 = vsel %vm645, %v5328, %v5332
        %v5334 = vshrl.u32 %v5163, 16
        %v5336 = vrot.slane %v5334, 4
        %v5337 = vor.u32 %v5336, %v5332
        %v5338 = vrot.slane %v5337, 4
        %v5340 = vshll.u32 %v5189, 16
        %v5342 = vrot.slane %v5340, 5
        %v5343 = vsel %vm645, %v5338, %v5342
        %v5345 = vshrl.u32 %v5164, 16
        %v5347 = vrot.slane %v5345, 4
        %v5348 = vshll.u32 %v5164, 16
        %v5350 = vrot.slane %v5348, 5
        %v5351 = vor.u32 %v5347, %v5350
        %v5352 = vrot.slane %v5351, 4
        %v5354 = vshll.u32 %v5165, 16
        %v5356 = vrot.slane %v5354, 5
        %v5357 = vsel %vm645, %v5352, %v5356
        %v5358 = vshrl.u32 %v5165, 16
        %v5360 = vrot.slane %v5358, 4
        %v5361 = vor.u32 %v5360, %v5356
        %v5362 = vrot.slane %v5361, 4
        %v5364 = vshll.u32 %v5190, 16
        %v5366 = vrot.slane %v5364, 5
        %v5367 = vsel %vm645, %v5362, %v5366
        %v5369 = vshrl.u32 %v5166, 16
        %v5371 = vrot.slane %v5369, 4
        %v5372 = vshll.u32 %v5166, 16
        %v5374 = vrot.slane %v5372, 5
        %v5375 = vor.u32 %v5371, %v5374
        %v5376 = vrot.slane %v5375, 4
        %v5378 = vshll.u32 %v5167, 16
        %v5380 = vrot.slane %v5378, 5
        %v5381 = vsel %vm645, %v5376, %v5380
        %v5382 = vshrl.u32 %v5167, 16
        %v5384 = vrot.slane %v5382, 4
        %v5385 = vor.u32 %v5384, %v5380
        %v5386 = vrot.slane %v5385, 4
        %v5388 = vshll.u32 %v5191, 16
        %v5390 = vrot.slane %v5388, 5
        %v5391 = vsel %vm645, %v5386, %v5390
        %v5393 = vshrl.u32 %v5168, 16
        %v5395 = vrot.slane %v5393, 4
        %v5396 = vshll.u32 %v5168, 16
        %v5398 = vrot.slane %v5396, 5
        %v5399 = vor.u32 %v5395, %v5398
        %v5400 = vrot.slane %v5399, 4
        %v5402 = vshll.u32 %v5169, 16
        %v5404 = vrot.slane %v5402, 5
        %v5405 = vsel %vm645, %v5400, %v5404
        %v5406 = vshrl.u32 %v5169, 16
        %v5408 = vrot.slane %v5406, 4
        %v5409 = vor.u32 %v5408, %v5404
        %v5410 = vrot.slane %v5409, 4
        %v5412 = vshll.u32 %v5192, 16
        %v5414 = vrot.slane %v5412, 5
        %v5415 = vsel %vm645, %v5410, %v5414
        %v5417 = vshrl.u32 %v5170, 16
        %v5419 = vrot.slane %v5417, 4
        %v5420 = vshll.u32 %v5170, 16
        %v5422 = vrot.slane %v5420, 5
        %v5423 = vor.u32 %v5419, %v5422
        %v5424 = vrot.slane %v5423, 4
        %v5426 = vshll.u32 %v5171, 16
        %v5428 = vrot.slane %v5426, 5
        %v5429 = vsel %vm645, %v5424, %v5428
        %v5430 = vshrl.u32 %v5171, 16
        %v5432 = vrot.slane %v5430, 4
        %v5433 = vor.u32 %v5432, %v5428
        %v5434 = vrot.slane %v5433, 4
        %v5436 = vshll.u32 %v5193, 16
        %v5438 = vrot.slane %v5436, 5
        %v5439 = vsel %vm645, %v5434, %v5438
        %v5441 = vshrl.u32 %v5172, 16
        %v5443 = vrot.slane %v5441, 4
        %v5444 = vshll.u32 %v5172, 16
        %v5446 = vrot.slane %v5444, 5
        %v5447 = vor.u32 %v5443, %v5446
        %v5448 = vrot.slane %v5447, 4
        %v5450 = vshll.u32 %v5173, 16
        %v5452 = vrot.slane %v5450, 5
        %v5453 = vsel %vm645, %v5448, %v5452
        %v5454 = vshrl.u32 %v5173, 16
        %v5456 = vrot.slane %v5454, 4
        %v5457 = vor.u32 %v5456, %v5452
        %v5458 = vrot.slane %v5457, 4
        %v5460 = vshll.u32 %v5194, 16
        %v5462 = vrot.slane %v5460, 5
        %v5463 = vsel %vm645, %v5458, %v5462
        %v5465 = vshrl.u32 %v5174, 16
        %v5467 = vrot.slane %v5465, 4
        %v5468 = vshll.u32 %v5174, 16
        %v5470 = vrot.slane %v5468, 5
        %v5471 = vor.u32 %v5467, %v5470
        %v5472 = vrot.slane %v5471, 4
        %v5474 = vshll.u32 %v5175, 16
        %v5476 = vrot.slane %v5474, 5
        %v5477 = vsel %vm645, %v5472, %v5476
        %v5478 = vshrl.u32 %v5175, 16
        %v5480 = vrot.slane %v5478, 4
        %v5481 = vor.u32 %v5480, %v5476
        %v5482 = vrot.slane %v5481, 4
        %v5484 = vshll.u32 %v5195, 16
        %v5486 = vrot.slane %v5484, 5
        %v5487 = vsel %vm645, %v5482, %v5486
        %v5489 = vshrl.u32 %v5176, 16
        %v5491 = vrot.slane %v5489, 4
        %v5492 = vshll.u32 %v5176, 16
        %v5494 = vrot.slane %v5492, 5
        %v5495 = vor.u32 %v5491, %v5494
        %v5496 = vrot.slane %v5495, 4
        %v5498 = vshll.u32 %v5177, 16
        %v5500 = vrot.slane %v5498, 5
        %v5501 = vsel %vm645, %v5496, %v5500
        %v5502 = vshrl.u32 %v5177, 16
        %v5504 = vrot.slane %v5502, 4
        %v5505 = vor.u32 %v5504, %v5500
        %v5506 = vrot.slane %v5505, 4
        %v5508 = vshll.u32 %v5196, 16
        %v5510 = vrot.slane %v5508, 5
        %v5511 = vsel %vm645, %v5506, %v5510
        %v5513 = vshrl.u32 %v5178, 16
        %v5515 = vrot.slane %v5513, 4
        %v5516 = vshll.u32 %v5178, 16
        %v5518 = vrot.slane %v5516, 5
        %v5519 = vor.u32 %v5515, %v5518
        %v5520 = vrot.slane %v5519, 4
        %v5522 = vshll.u32 %v5179, 16
        %v5524 = vrot.slane %v5522, 5
        %v5525 = vsel %vm645, %v5520, %v5524
        %v5526 = vshrl.u32 %v5179, 16
        %v5528 = vrot.slane %v5526, 4
        %v5529 = vor.u32 %v5528, %v5524
        %v5530 = vrot.slane %v5529, 4
        %v5532 = vshll.u32 %v5197, 16
        %v5534 = vrot.slane %v5532, 5
        %v5535 = vsel %vm645, %v5530, %v5534
        %v5537 = vshrl.u32 %v5180, 16
        %v5539 = vrot.slane %v5537, 4
        %v5540 = vshll.u32 %v5180, 16
        %v5542 = vrot.slane %v5540, 5
        %v5543 = vor.u32 %v5539, %v5542
        %v5544 = vrot.slane %v5543, 4
        %v5546 = vshll.u32 %v5181, 16
        %v5548 = vrot.slane %v5546, 5
        %v5549 = vsel %vm645, %v5544, %v5548
        %v5550 = vshrl.u32 %v5181, 16
        %v5552 = vrot.slane %v5550, 4
        %v5553 = vor.u32 %v5552, %v5548
        %v5554 = vrot.slane %v5553, 4
        %v5556 = vshll.u32 %v5198, 16
        %v5558 = vrot.slane %v5556, 5
        %v5559 = vsel %vm645, %v5554, %v5558
        %v5561 = vshrl.u32 %v5182, 16
        %v5563 = vrot.slane %v5561, 4
        %v5564 = vshll.u32 %v5182, 16
        %v5566 = vrot.slane %v5564, 5
        %v5567 = vor.u32 %v5563, %v5566
        %v5568 = vrot.slane %v5567, 4
        %v5570 = vshll.u32 %v5183, 16
        %v5572 = vrot.slane %v5570, 5
        %v5573 = vsel %vm645, %v5568, %v5572
        %v5574 = vshrl.u32 %v5183, 16
        %v5576 = vrot.slane %v5574, 4
        %v5577 = vor.u32 %v5576, %v5572
        %v5578 = vrot.slane %v5577, 4
        %v5580 = vshll.u32 %v5199, 16
        %v5582 = vrot.slane %v5580, 5
        %v5583 = vsel %vm645, %v5578, %v5582
        %v5584 = vld [vmem:[%s4429] sm:$0xe]
        %v5585 = vld [vmem:[%s4429 + $0xc] sm:$0xe]
        %v5586 = vld [vmem:[%s4429 + $0x18] sm:$0xe]
        %v5587 = vld [vmem:[%s4429 + $0x24] sm:$0xe]
        %v5588 = vld [vmem:[%s4429 + $0x30] sm:$0xe]
        %v5589 = vld [vmem:[%s4429 + $0x3c] sm:$0xe]
        %v5590 = vld [vmem:[%s4429 + $0x48] sm:$0xe]
        %v5591 = vld [vmem:[%s4429 + $0x54] sm:$0xe]
        %v5592 = vld [vmem:[%s4429 + $0x60] sm:$0xe]
        %v5593 = vld [vmem:[%s4429 + $0x6c] sm:$0xe]
        %v5594 = vld [vmem:[%s4429 + $0x78] sm:$0xe]
        %v5595 = vld [vmem:[%s4429 + $0x84] sm:$0xe]
        %v5596 = vld [vmem:[%s4429 + $0x90] sm:$0xe]
        %v5597 = vld [vmem:[%s4429 + $0x9c] sm:$0xe]
        %v5598 = vld [vmem:[%s4429 + $0xa8] sm:$0xe]
        %v5599 = vld [vmem:[%s4429 + $0xb4] sm:$0xe]
        %v5648 = vrot.slane %v5584, 5
        %v5649 = vrot.slane %v5648, 4
        %v5650 = vrot.slane %v5153, 5
        %v5651 = vsel %vm1096, %v5649, %v5650
        %v5652 = vrot.slane %v5650, 4
        %v5653 = vrot.slane %v5184, 5
        %v5654 = vsel %vm1096, %v5652, %v5653
        %v5655 = vrot.slane %v5585, 5
        %v5656 = vrot.slane %v5655, 4
        %v5657 = vrot.slane %v5155, 5
        %v5658 = vsel %vm1096, %v5656, %v5657
        %v5659 = vrot.slane %v5657, 4
        %v5660 = vrot.slane %v5185, 5
        %v5661 = vsel %vm1096, %v5659, %v5660
        %v5662 = vrot.slane %v5586, 5
        %v5663 = vrot.slane %v5662, 4
        %v5664 = vrot.slane %v5157, 5
        %v5665 = vsel %vm1096, %v5663, %v5664
        %v5666 = vrot.slane %v5664, 4
        %v5667 = vrot.slane %v5186, 5
        %v5668 = vsel %vm1096, %v5666, %v5667
        %v5669 = vrot.slane %v5587, 5
        %v5670 = vrot.slane %v5669, 4
        %v5671 = vrot.slane %v5159, 5
        %v5672 = vsel %vm1096, %v5670, %v5671
        %v5673 = vrot.slane %v5671, 4
        %v5674 = vrot.slane %v5187, 5
        %v5675 = vsel %vm1096, %v5673, %v5674
        %v5676 = vrot.slane %v5588, 5
        %v5677 = vrot.slane %v5676, 4
        %v5678 = vrot.slane %v5161, 5
        %v5679 = vsel %vm1096, %v5677, %v5678
        %v5680 = vrot.slane %v5678, 4
        %v5681 = vrot.slane %v5188, 5
        %v5682 = vsel %vm1096, %v5680, %v5681
        %v5683 = vrot.slane %v5589, 5
        %v5684 = vrot.slane %v5683, 4
        %v5685 = vrot.slane %v5163, 5
        %v5686 = vsel %vm1096, %v5684, %v5685
        %v5687 = vrot.slane %v5685, 4
        %v5688 = vrot.slane %v5189, 5
        %v5689 = vsel %vm1096, %v5687, %v5688
        %v5690 = vrot.slane %v5590, 5
        %v5691 = vrot.slane %v5690, 4
        %v5692 = vrot.slane %v5165, 5
        %v5693 = vsel %vm1096, %v5691, %v5692
        %v5694 = vrot.slane %v5692, 4
        %v5695 = vrot.slane %v5190, 5
        %v5696 = vsel %vm1096, %v5694, %v5695
        %v5697 = vrot.slane %v5591, 5
        %v5698 = vrot.slane %v5697, 4
        %v5699 = vrot.slane %v5167, 5
        %v5700 = vsel %vm1096, %v5698, %v5699
        %v5701 = vrot.slane %v5699, 4
        %v5702 = vrot.slane %v5191, 5
        %v5703 = vsel %vm1096, %v5701, %v5702
        %v5704 = vrot.slane %v5592, 5
        %v5705 = vrot.slane %v5704, 4
        %v5706 = vrot.slane %v5169, 5
        %v5707 = vsel %vm1096, %v5705, %v5706
        %v5708 = vrot.slane %v5706, 4
        %v5709 = vrot.slane %v5192, 5
        %v5710 = vsel %vm1096, %v5708, %v5709
        %v5711 = vrot.slane %v5593, 5
        %v5712 = vrot.slane %v5711, 4
        %v5713 = vrot.slane %v5171, 5
        %v5714 = vsel %vm1096, %v5712, %v5713
        %v5715 = vrot.slane %v5713, 4
        %v5716 = vrot.slane %v5193, 5
        %v5717 = vsel %vm1096, %v5715, %v5716
        %v5718 = vrot.slane %v5594, 5
        %v5719 = vrot.slane %v5718, 4
        %v5720 = vrot.slane %v5173, 5
        %v5721 = vsel %vm1096, %v5719, %v5720
        %v5722 = vrot.slane %v5720, 4
        %v5723 = vrot.slane %v5194, 5
        %v5724 = vsel %vm1096, %v5722, %v5723
        %v5725 = vrot.slane %v5595, 5
        %v5726 = vrot.slane %v5725, 4
        %v5727 = vrot.slane %v5175, 5
        %v5728 = vsel %vm1096, %v5726, %v5727
        %v5729 = vrot.slane %v5727, 4
        %v5730 = vrot.slane %v5195, 5
        %v5731 = vsel %vm1096, %v5729, %v5730
        %v5732 = vrot.slane %v5596, 5
        %v5733 = vrot.slane %v5732, 4
        %v5734 = vrot.slane %v5177, 5
        %v5735 = vsel %vm1096, %v5733, %v5734
        %v5736 = vrot.slane %v5734, 4
        %v5737 = vrot.slane %v5196, 5
        %v5738 = vsel %vm1096, %v5736, %v5737
        %v5739 = vrot.slane %v5597, 5
        %v5740 = vrot.slane %v5739, 4
        %v5741 = vrot.slane %v5179, 5
        %v5742 = vsel %vm1096, %v5740, %v5741
        %v5743 = vrot.slane %v5741, 4
        %v5744 = vrot.slane %v5197, 5
        %v5745 = vsel %vm1096, %v5743, %v5744
        %v5746 = vrot.slane %v5598, 5
        %v5747 = vrot.slane %v5746, 4
        %v5748 = vrot.slane %v5181, 5
        %v5749 = vsel %vm1096, %v5747, %v5748
        %v5750 = vrot.slane %v5748, 4
        %v5751 = vrot.slane %v5198, 5
        %v5752 = vsel %vm1096, %v5750, %v5751
        %v5753 = vrot.slane %v5599, 5
        %v5754 = vrot.slane %v5753, 4
        %v5755 = vrot.slane %v5183, 5
        %v5756 = vsel %vm1096, %v5754, %v5755
        %v5757 = vrot.slane %v5755, 4
        %v5758 = vrot.slane %v5199, 5
        %v5759 = vsel %vm1096, %v5757, %v5758
        %s5760 = scalar_lea.vmem [#allocation2], 24
        %v5761 = vld [vmem:[%s5760] sm:$0xf]
        %v5762 = vld [vmem:[%s5760 + $0x4] sm:$0xf]
        %v5763 = vld [vmem:[%s5760 + $0xc] sm:$0xf]
        %v5764 = vld [vmem:[%s5760 + $0x10] sm:$0xf]
        %v5765 = vld [vmem:[%s5760 + $0x18] sm:$0xf]
        %v5766 = vld [vmem:[%s5760 + $0x1c] sm:$0xf]
        %v5767 = vld [vmem:[%s5760 + $0x24] sm:$0xf]
        %v5768 = vld [vmem:[%s5760 + $0x28] sm:$0xf]
        %v5769 = vld [vmem:[%s5760 + $0x30] sm:$0xf]
        %v5770 = vld [vmem:[%s5760 + $0x34] sm:$0xf]
        %v5771 = vld [vmem:[%s5760 + $0x3c] sm:$0xf]
        %v5772 = vld [vmem:[%s5760 + $0x40] sm:$0xf]
        %v5773 = vld [vmem:[%s5760 + $0x48] sm:$0xf]
        %v5774 = vld [vmem:[%s5760 + $0x4c] sm:$0xf]
        %v5775 = vld [vmem:[%s5760 + $0x54] sm:$0xf]
        %v5776 = vld [vmem:[%s5760 + $0x58] sm:$0xf]
        %v5777 = vld [vmem:[%s5760 + $0x60] sm:$0xf]
        %v5778 = vld [vmem:[%s5760 + $0x64] sm:$0xf]
        %v5779 = vld [vmem:[%s5760 + $0x6c] sm:$0xf]
        %v5780 = vld [vmem:[%s5760 + $0x70] sm:$0xf]
        %v5781 = vld [vmem:[%s5760 + $0x78] sm:$0xf]
        %v5782 = vld [vmem:[%s5760 + $0x7c] sm:$0xf]
        %v5783 = vld [vmem:[%s5760 + $0x84] sm:$0xf]
        %v5784 = vld [vmem:[%s5760 + $0x88] sm:$0xf]
        %v5785 = vld [vmem:[%s5760 + $0x90] sm:$0xf]
        %v5786 = vld [vmem:[%s5760 + $0x94] sm:$0xf]
        %v5787 = vld [vmem:[%s5760 + $0x9c] sm:$0xf]
        %v5788 = vld [vmem:[%s5760 + $0xa0] sm:$0xf]
        %v5789 = vld [vmem:[%s5760 + $0xa8] sm:$0xf]
        %v5790 = vld [vmem:[%s5760 + $0xac] sm:$0xf]
        %v5791 = vld [vmem:[%s5760 + $0xb4] sm:$0xf]
        %v5792 = vld [vmem:[%s5760 + $0xb8] sm:$0xf]
        %v5793 = vld [vmem:[%s5760 + $0x8] sm:$0x1]
        %v5794 = vld [vmem:[%s5760 + $0x14] sm:$0x1]
        %v5795 = vld [vmem:[%s5760 + $0x20] sm:$0x1]
        %v5796 = vld [vmem:[%s5760 + $0x2c] sm:$0x1]
        %v5797 = vld [vmem:[%s5760 + $0x38] sm:$0x1]
        %v5798 = vld [vmem:[%s5760 + $0x44] sm:$0x1]
        %v5799 = vld [vmem:[%s5760 + $0x50] sm:$0x1]
        %v5800 = vld [vmem:[%s5760 + $0x5c] sm:$0x1]
        %v5801 = vld [vmem:[%s5760 + $0x68] sm:$0x1]
        %v5802 = vld [vmem:[%s5760 + $0x74] sm:$0x1]
        %v5803 = vld [vmem:[%s5760 + $0x80] sm:$0x1]
        %v5804 = vld [vmem:[%s5760 + $0x8c] sm:$0x1]
        %v5805 = vld [vmem:[%s5760 + $0x98] sm:$0x1]
        %v5806 = vld [vmem:[%s5760 + $0xa4] sm:$0x1]
        %v5807 = vld [vmem:[%s5760 + $0xb0] sm:$0x1]
        %v5808 = vld [vmem:[%s5760 + $0xbc] sm:$0x1]
        %v5810 = vshrl.u32 %v5761, 16
        %v5812 = vrot.slane %v5810, 4
        %v5813 = vshll.u32 %v5761, 16
        %v5815 = vrot.slane %v5813, 5
        %v5816 = vor.u32 %v5812, %v5815
        %v5817 = vrot.slane %v5816, 4
        %v5819 = vshll.u32 %v5762, 16
        %v5821 = vrot.slane %v5819, 5
        %v5822 = vsel %vm645, %v5817, %v5821
        %v5823 = vshrl.u32 %v5762, 16
        %v5825 = vrot.slane %v5823, 4
        %v5826 = vor.u32 %v5825, %v5821
        %v5827 = vrot.slane %v5826, 4
        %v5829 = vshll.u32 %v5793, 16
        %v5831 = vrot.slane %v5829, 5
        %v5832 = vsel %vm645, %v5827, %v5831
        %v5834 = vshrl.u32 %v5763, 16
        %v5836 = vrot.slane %v5834, 4
        %v5837 = vshll.u32 %v5763, 16
        %v5839 = vrot.slane %v5837, 5
        %v5840 = vor.u32 %v5836, %v5839
        %v5841 = vrot.slane %v5840, 4
        %v5843 = vshll.u32 %v5764, 16
        %v5845 = vrot.slane %v5843, 5
        %v5846 = vsel %vm645, %v5841, %v5845
        %v5847 = vshrl.u32 %v5764, 16
        %v5849 = vrot.slane %v5847, 4
        %v5850 = vor.u32 %v5849, %v5845
        %v5851 = vrot.slane %v5850, 4
        %v5853 = vshll.u32 %v5794, 16
        %v5855 = vrot.slane %v5853, 5
        %v5856 = vsel %vm645, %v5851, %v5855
        %v5858 = vshrl.u32 %v5765, 16
        %v5860 = vrot.slane %v5858, 4
        %v5861 = vshll.u32 %v5765, 16
        %v5863 = vrot.slane %v5861, 5
        %v5864 = vor.u32 %v5860, %v5863
        %v5865 = vrot.slane %v5864, 4
        %v5867 = vshll.u32 %v5766, 16
        %v5869 = vrot.slane %v5867, 5
        %v5870 = vsel %vm645, %v5865, %v5869
        %v5871 = vshrl.u32 %v5766, 16
        %v5873 = vrot.slane %v5871, 4
        %v5874 = vor.u32 %v5873, %v5869
        %v5875 = vrot.slane %v5874, 4
        %v5877 = vshll.u32 %v5795, 16
        %v5879 = vrot.slane %v5877, 5
        %v5880 = vsel %vm645, %v5875, %v5879
        %v5882 = vshrl.u32 %v5767, 16
        %v5884 = vrot.slane %v5882, 4
        %v5885 = vshll.u32 %v5767, 16
        %v5887 = vrot.slane %v5885, 5
        %v5888 = vor.u32 %v5884, %v5887
        %v5889 = vrot.slane %v5888, 4
        %v5891 = vshll.u32 %v5768, 16
        %v5893 = vrot.slane %v5891, 5
        %v5894 = vsel %vm645, %v5889, %v5893
        %v5895 = vshrl.u32 %v5768, 16
        %v5897 = vrot.slane %v5895, 4
        %v5898 = vor.u32 %v5897, %v5893
        %v5899 = vrot.slane %v5898, 4
        %v5901 = vshll.u32 %v5796, 16
        %v5903 = vrot.slane %v5901, 5
        %v5904 = vsel %vm645, %v5899, %v5903
        %v5906 = vshrl.u32 %v5769, 16
        %v5908 = vrot.slane %v5906, 4
        %v5909 = vshll.u32 %v5769, 16
        %v5911 = vrot.slane %v5909, 5
        %v5912 = vor.u32 %v5908, %v5911
        %v5913 = vrot.slane %v5912, 4
        %v5915 = vshll.u32 %v5770, 16
        %v5917 = vrot.slane %v5915, 5
        %v5918 = vsel %vm645, %v5913, %v5917
        %v5919 = vshrl.u32 %v5770, 16
        %v5921 = vrot.slane %v5919, 4
        %v5922 = vor.u32 %v5921, %v5917
        %v5923 = vrot.slane %v5922, 4
        %v5925 = vshll.u32 %v5797, 16
        %v5927 = vrot.slane %v5925, 5
        %v5928 = vsel %vm645, %v5923, %v5927
        %v5930 = vshrl.u32 %v5771, 16
        %v5932 = vrot.slane %v5930, 4
        %v5933 = vshll.u32 %v5771, 16
        %v5935 = vrot.slane %v5933, 5
        %v5936 = vor.u32 %v5932, %v5935
        %v5937 = vrot.slane %v5936, 4
        %v5939 = vshll.u32 %v5772, 16
        %v5941 = vrot.slane %v5939, 5
        %v5942 = vsel %vm645, %v5937, %v5941
        %v5943 = vshrl.u32 %v5772, 16
        %v5945 = vrot.slane %v5943, 4
        %v5946 = vor.u32 %v5945, %v5941
        %v5947 = vrot.slane %v5946, 4
        %v5949 = vshll.u32 %v5798, 16
        %v5951 = vrot.slane %v5949, 5
        %v5952 = vsel %vm645, %v5947, %v5951
        %v5954 = vshrl.u32 %v5773, 16
        %v5956 = vrot.slane %v5954, 4
        %v5957 = vshll.u32 %v5773, 16
        %v5959 = vrot.slane %v5957, 5
        %v5960 = vor.u32 %v5956, %v5959
        %v5961 = vrot.slane %v5960, 4
        %v5963 = vshll.u32 %v5774, 16
        %v5965 = vrot.slane %v5963, 5
        %v5966 = vsel %vm645, %v5961, %v5965
        %v5967 = vshrl.u32 %v5774, 16
        %v5969 = vrot.slane %v5967, 4
        %v5970 = vor.u32 %v5969, %v5965
        %v5971 = vrot.slane %v5970, 4
        %v5973 = vshll.u32 %v5799, 16
        %v5975 = vrot.slane %v5973, 5
        %v5976 = vsel %vm645, %v5971, %v5975
        %v5978 = vshrl.u32 %v5775, 16
        %v5980 = vrot.slane %v5978, 4
        %v5981 = vshll.u32 %v5775, 16
        %v5983 = vrot.slane %v5981, 5
        %v5984 = vor.u32 %v5980, %v5983
        %v5985 = vrot.slane %v5984, 4
        %v5987 = vshll.u32 %v5776, 16
        %v5989 = vrot.slane %v5987, 5
        %v5990 = vsel %vm645, %v5985, %v5989
        %v5991 = vshrl.u32 %v5776, 16
        %v5993 = vrot.slane %v5991, 4
        %v5994 = vor.u32 %v5993, %v5989
        %v5995 = vrot.slane %v5994, 4
        %v5997 = vshll.u32 %v5800, 16
        %v5999 = vrot.slane %v5997, 5
        %v6000 = vsel %vm645, %v5995, %v5999
        %v6002 = vshrl.u32 %v5777, 16
        %v6004 = vrot.slane %v6002, 4
        %v6005 = vshll.u32 %v5777, 16
        %v6007 = vrot.slane %v6005, 5
        %v6008 = vor.u32 %v6004, %v6007
        %v6009 = vrot.slane %v6008, 4
        %v6011 = vshll.u32 %v5778, 16
        %v6013 = vrot.slane %v6011, 5
        %v6014 = vsel %vm645, %v6009, %v6013
        %v6015 = vshrl.u32 %v5778, 16
        %v6017 = vrot.slane %v6015, 4
        %v6018 = vor.u32 %v6017, %v6013
        %v6019 = vrot.slane %v6018, 4
        %v6021 = vshll.u32 %v5801, 16
        %v6023 = vrot.slane %v6021, 5
        %v6024 = vsel %vm645, %v6019, %v6023
        %v6026 = vshrl.u32 %v5779, 16
        %v6028 = vrot.slane %v6026, 4
        %v6029 = vshll.u32 %v5779, 16
        %v6031 = vrot.slane %v6029, 5
        %v6032 = vor.u32 %v6028, %v6031
        %v6033 = vrot.slane %v6032, 4
        %v6035 = vshll.u32 %v5780, 16
        %v6037 = vrot.slane %v6035, 5
        %v6038 = vsel %vm645, %v6033, %v6037
        %v6039 = vshrl.u32 %v5780, 16
        %v6041 = vrot.slane %v6039, 4
        %v6042 = vor.u32 %v6041, %v6037
        %v6043 = vrot.slane %v6042, 4
        %v6045 = vshll.u32 %v5802, 16
        %v6047 = vrot.slane %v6045, 5
        %v6048 = vsel %vm645, %v6043, %v6047
        %v6050 = vshrl.u32 %v5781, 16
        %v6052 = vrot.slane %v6050, 4
        %v6053 = vshll.u32 %v5781, 16
        %v6055 = vrot.slane %v6053, 5
        %v6056 = vor.u32 %v6052, %v6055
        %v6057 = vrot.slane %v6056, 4
        %v6059 = vshll.u32 %v5782, 16
        %v6061 = vrot.slane %v6059, 5
        %v6062 = vsel %vm645, %v6057, %v6061
        %v6063 = vshrl.u32 %v5782, 16
        %v6065 = vrot.slane %v6063, 4
        %v6066 = vor.u32 %v6065, %v6061
        %v6067 = vrot.slane %v6066, 4
        %v6069 = vshll.u32 %v5803, 16
        %v6071 = vrot.slane %v6069, 5
        %v6072 = vsel %vm645, %v6067, %v6071
        %v6074 = vshrl.u32 %v5783, 16
        %v6076 = vrot.slane %v6074, 4
        %v6077 = vshll.u32 %v5783, 16
        %v6079 = vrot.slane %v6077, 5
        %v6080 = vor.u32 %v6076, %v6079
        %v6081 = vrot.slane %v6080, 4
        %v6083 = vshll.u32 %v5784, 16
        %v6085 = vrot.slane %v6083, 5
        %v6086 = vsel %vm645, %v6081, %v6085
        %v6087 = vshrl.u32 %v5784, 16
        %v6089 = vrot.slane %v6087, 4
        %v6090 = vor.u32 %v6089, %v6085
        %v6091 = vrot.slane %v6090, 4
        %v6093 = vshll.u32 %v5804, 16
        %v6095 = vrot.slane %v6093, 5
        %v6096 = vsel %vm645, %v6091, %v6095
        %v6098 = vshrl.u32 %v5785, 16
        %v6100 = vrot.slane %v6098, 4
        %v6101 = vshll.u32 %v5785, 16
        %v6103 = vrot.slane %v6101, 5
        %v6104 = vor.u32 %v6100, %v6103
        %v6105 = vrot.slane %v6104, 4
        %v6107 = vshll.u32 %v5786, 16
        %v6109 = vrot.slane %v6107, 5
        %v6110 = vsel %vm645, %v6105, %v6109
        %v6111 = vshrl.u32 %v5786, 16
        %v6113 = vrot.slane %v6111, 4
        %v6114 = vor.u32 %v6113, %v6109
        %v6115 = vrot.slane %v6114, 4
        %v6117 = vshll.u32 %v5805, 16
        %v6119 = vrot.slane %v6117, 5
        %v6120 = vsel %vm645, %v6115, %v6119
        %v6122 = vshrl.u32 %v5787, 16
        %v6124 = vrot.slane %v6122, 4
        %v6125 = vshll.u32 %v5787, 16
        %v6127 = vrot.slane %v6125, 5
        %v6128 = vor.u32 %v6124, %v6127
        %v6129 = vrot.slane %v6128, 4
        %v6131 = vshll.u32 %v5788, 16
        %v6133 = vrot.slane %v6131, 5
        %v6134 = vsel %vm645, %v6129, %v6133
        %v6135 = vshrl.u32 %v5788, 16
        %v6137 = vrot.slane %v6135, 4
        %v6138 = vor.u32 %v6137, %v6133
        %v6139 = vrot.slane %v6138, 4
        %v6141 = vshll.u32 %v5806, 16
        %v6143 = vrot.slane %v6141, 5
        %v6144 = vsel %vm645, %v6139, %v6143
        %v6146 = vshrl.u32 %v5789, 16
        %v6148 = vrot.slane %v6146, 4
        %v6149 = vshll.u32 %v5789, 16
        %v6151 = vrot.slane %v6149, 5
        %v6152 = vor.u32 %v6148, %v6151
        %v6153 = vrot.slane %v6152, 4
        %v6155 = vshll.u32 %v5790, 16
        %v6157 = vrot.slane %v6155, 5
        %v6158 = vsel %vm645, %v6153, %v6157
        %v6159 = vshrl.u32 %v5790, 16
        %v6161 = vrot.slane %v6159, 4
        %v6162 = vor.u32 %v6161, %v6157
        %v6163 = vrot.slane %v6162, 4
        %v6165 = vshll.u32 %v5807, 16
        %v6167 = vrot.slane %v6165, 5
        %v6168 = vsel %vm645, %v6163, %v6167
        %v6170 = vshrl.u32 %v5791, 16
        %v6172 = vrot.slane %v6170, 4
        %v6173 = vshll.u32 %v5791, 16
        %v6175 = vrot.slane %v6173, 5
        %v6176 = vor.u32 %v6172, %v6175
        %v6177 = vrot.slane %v6176, 4
        %v6179 = vshll.u32 %v5792, 16
        %v6181 = vrot.slane %v6179, 5
        %v6182 = vsel %vm645, %v6177, %v6181
        %v6183 = vshrl.u32 %v5792, 16
        %v6185 = vrot.slane %v6183, 4
        %v6186 = vor.u32 %v6185, %v6181
        %v6187 = vrot.slane %v6186, 4
        %v6189 = vshll.u32 %v5808, 16
        %v6191 = vrot.slane %v6189, 5
        %v6192 = vsel %vm645, %v6187, %v6191
        %v6193 = vld [vmem:[%s5760] sm:$0xe]
        %v6194 = vld [vmem:[%s5760 + $0xc] sm:$0xe]
        %v6195 = vld [vmem:[%s5760 + $0x18] sm:$0xe]
        %v6196 = vld [vmem:[%s5760 + $0x24] sm:$0xe]
        %v6197 = vld [vmem:[%s5760 + $0x30] sm:$0xe]
        %v6198 = vld [vmem:[%s5760 + $0x3c] sm:$0xe]
        %v6199 = vld [vmem:[%s5760 + $0x48] sm:$0xe]
        %v6200 = vld [vmem:[%s5760 + $0x54] sm:$0xe]
        %v6201 = vld [vmem:[%s5760 + $0x60] sm:$0xe]
        %v6202 = vld [vmem:[%s5760 + $0x6c] sm:$0xe]
        %v6203 = vld [vmem:[%s5760 + $0x78] sm:$0xe]
        %v6204 = vld [vmem:[%s5760 + $0x84] sm:$0xe]
        %v6205 = vld [vmem:[%s5760 + $0x90] sm:$0xe]
        %v6206 = vld [vmem:[%s5760 + $0x9c] sm:$0xe]
        %v6207 = vld [vmem:[%s5760 + $0xa8] sm:$0xe]
        %v6208 = vld [vmem:[%s5760 + $0xb4] sm:$0xe]
        %v6257 = vrot.slane %v6193, 5
        %v6258 = vrot.slane %v6257, 4
        %v6259 = vrot.slane %v5762, 5
        %v6260 = vsel %vm1096, %v6258, %v6259
        %v6261 = vrot.slane %v6259, 4
        %v6262 = vrot.slane %v5793, 5
        %v6263 = vsel %vm1096, %v6261, %v6262
        %v6264 = vrot.slane %v6194, 5
        %v6265 = vrot.slane %v6264, 4
        %v6266 = vrot.slane %v5764, 5
        %v6267 = vsel %vm1096, %v6265, %v6266
        %v6268 = vrot.slane %v6266, 4
        %v6269 = vrot.slane %v5794, 5
        %v6270 = vsel %vm1096, %v6268, %v6269
        %v6271 = vrot.slane %v6195, 5
        %v6272 = vrot.slane %v6271, 4
        %v6273 = vrot.slane %v5766, 5
        %v6274 = vsel %vm1096, %v6272, %v6273
        %v6275 = vrot.slane %v6273, 4
        %v6276 = vrot.slane %v5795, 5
        %v6277 = vsel %vm1096, %v6275, %v6276
        %v6278 = vrot.slane %v6196, 5
        %v6279 = vrot.slane %v6278, 4
        %v6280 = vrot.slane %v5768, 5
        %v6281 = vsel %vm1096, %v6279, %v6280
        %v6282 = vrot.slane %v6280, 4
        %v6283 = vrot.slane %v5796, 5
        %v6284 = vsel %vm1096, %v6282, %v6283
        %v6285 = vrot.slane %v6197, 5
        %v6286 = vrot.slane %v6285, 4
        %v6287 = vrot.slane %v5770, 5
        %v6288 = vsel %vm1096, %v6286, %v6287
        %v6289 = vrot.slane %v6287, 4
        %v6290 = vrot.slane %v5797, 5
        %v6291 = vsel %vm1096, %v6289, %v6290
        %v6292 = vrot.slane %v6198, 5
        %v6293 = vrot.slane %v6292, 4
        %v6294 = vrot.slane %v5772, 5
        %v6295 = vsel %vm1096, %v6293, %v6294
        %v6296 = vrot.slane %v6294, 4
        %v6297 = vrot.slane %v5798, 5
        %v6298 = vsel %vm1096, %v6296, %v6297
        %v6299 = vrot.slane %v6199, 5
        %v6300 = vrot.slane %v6299, 4
        %v6301 = vrot.slane %v5774, 5
        %v6302 = vsel %vm1096, %v6300, %v6301
        %v6303 = vrot.slane %v6301, 4
        %v6304 = vrot.slane %v5799, 5
        %v6305 = vsel %vm1096, %v6303, %v6304
        %v6306 = vrot.slane %v6200, 5
        %v6307 = vrot.slane %v6306, 4
        %v6308 = vrot.slane %v5776, 5
        %v6309 = vsel %vm1096, %v6307, %v6308
        %v6310 = vrot.slane %v6308, 4
        %v6311 = vrot.slane %v5800, 5
        %v6312 = vsel %vm1096, %v6310, %v6311
        %v6313 = vrot.slane %v6201, 5
        %v6314 = vrot.slane %v6313, 4
        %v6315 = vrot.slane %v5778, 5
        %v6316 = vsel %vm1096, %v6314, %v6315
        %v6317 = vrot.slane %v6315, 4
        %v6318 = vrot.slane %v5801, 5
        %v6319 = vsel %vm1096, %v6317, %v6318
        %v6320 = vrot.slane %v6202, 5
        %v6321 = vrot.slane %v6320, 4
        %v6322 = vrot.slane %v5780, 5
        %v6323 = vsel %vm1096, %v6321, %v6322
        %v6324 = vrot.slane %v6322, 4
        %v6325 = vrot.slane %v5802, 5
        %v6326 = vsel %vm1096, %v6324, %v6325
        %v6327 = vrot.slane %v6203, 5
        %v6328 = vrot.slane %v6327, 4
        %v6329 = vrot.slane %v5782, 5
        %v6330 = vsel %vm1096, %v6328, %v6329
        %v6331 = vrot.slane %v6329, 4
        %v6332 = vrot.slane %v5803, 5
        %v6333 = vsel %vm1096, %v6331, %v6332
        %v6334 = vrot.slane %v6204, 5
        %v6335 = vrot.slane %v6334, 4
        %v6336 = vrot.slane %v5784, 5
        %v6337 = vsel %vm1096, %v6335, %v6336
        %v6338 = vrot.slane %v6336, 4
        %v6339 = vrot.slane %v5804, 5
        %v6340 = vsel %vm1096, %v6338, %v6339
        %v6341 = vrot.slane %v6205, 5
        %v6342 = vrot.slane %v6341, 4
        %v6343 = vrot.slane %v5786, 5
        %v6344 = vsel %vm1096, %v6342, %v6343
        %v6345 = vrot.slane %v6343, 4
        %v6346 = vrot.slane %v5805, 5
        %v6347 = vsel %vm1096, %v6345, %v6346
        %v6348 = vrot.slane %v6206, 5
        %v6349 = vrot.slane %v6348, 4
        %v6350 = vrot.slane %v5788, 5
        %v6351 = vsel %vm1096, %v6349, %v6350
        %v6352 = vrot.slane %v6350, 4
        %v6353 = vrot.slane %v5806, 5
        %v6354 = vsel %vm1096, %v6352, %v6353
        %v6355 = vrot.slane %v6207, 5
        %v6356 = vrot.slane %v6355, 4
        %v6357 = vrot.slane %v5790, 5
        %v6358 = vsel %vm1096, %v6356, %v6357
        %v6359 = vrot.slane %v6357, 4
        %v6360 = vrot.slane %v5807, 5
        %v6361 = vsel %vm1096, %v6359, %v6360
        %v6362 = vrot.slane %v6208, 5
        %v6363 = vrot.slane %v6362, 4
        %v6364 = vrot.slane %v5792, 5
        %v6365 = vsel %vm1096, %v6363, %v6364
        %v6366 = vrot.slane %v6364, 4
        %v6367 = vrot.slane %v5808, 5
        %v6368 = vsel %vm1096, %v6366, %v6367
        %v6385 = vunpack.c.l.b16 %v4544
        %v6386 = vunpack.c.l.b16 %v4545
        %v6387 = vunpack.c.l.b16 %v4546
        %v6388 = vunpack.c.l.b16 %v4547
        %v6389 = vunpack.c.l.b16 %v4548
        %v6390 = vunpack.c.l.b16 %v4549
        %v6391 = vunpack.c.l.b16 %v4550
        %v6392 = vunpack.c.l.b16 %v4551
        %v6393 = vunpack.c.l.b16 %v4552
        %v6394 = vunpack.c.l.b16 %v4553
        %v6395 = vunpack.c.l.b16 %v4554
        %v6396 = vunpack.c.l.b16 %v4555
        %v6397 = vunpack.c.l.b16 %v4556
        %v6398 = vunpack.c.l.b16 %v4557
        %v6399 = vunpack.c.l.b16 %v4558
        %v6400 = vunpack.c.l.b16 %v4559
        %v6401 = vunpack.c.l.b16 %v4560
        %v6402 = vunpack.c.l.b16 %v4561
        %v6403 = vunpack.c.l.b16 %v4562
        %v6404 = vunpack.c.l.b16 %v4563
        %v6405 = vunpack.c.l.b16 %v4564
        %v6406 = vunpack.c.l.b16 %v4565
        %v6407 = vunpack.c.l.b16 %v4566
        %v6408 = vunpack.c.l.b16 %v4567
        %v6409 = vunpack.c.l.b16 %v4568
        %v6410 = vunpack.c.l.b16 %v4569
        %v6411 = vunpack.c.l.b16 %v4570
        %v6412 = vunpack.c.l.b16 %v4571
        %v6413 = vunpack.c.l.b16 %v4572
        %v6414 = vunpack.c.l.b16 %v4573
        %v6415 = vunpack.c.l.b16 %v4574
        %v6416 = vunpack.c.l.b16 %v4575
        %v6417 = vpack.c.b16 %v6386, %v6385
        %v6418 = vpack.c.b16 %v6388, %v6387
        %v6419 = vpack.c.b16 %v6390, %v6389
        %v6420 = vpack.c.b16 %v6392, %v6391
        %v6421 = vpack.c.b16 %v6394, %v6393
        %v6422 = vpack.c.b16 %v6396, %v6395
        %v6423 = vpack.c.b16 %v6398, %v6397
        %v6424 = vpack.c.b16 %v6400, %v6399
        %v6425 = vpack.c.b16 %v6402, %v6401
        %v6426 = vpack.c.b16 %v6404, %v6403
        %v6427 = vpack.c.b16 %v6406, %v6405
        %v6428 = vpack.c.b16 %v6408, %v6407
        %v6429 = vpack.c.b16 %v6410, %v6409
        %v6430 = vpack.c.b16 %v6412, %v6411
        %v6431 = vpack.c.b16 %v6414, %v6413
        %v6432 = vpack.c.b16 %v6416, %v6415
        %v6433 = vunpack.c.l.b16 %v4605
        %v6434 = vunpack.c.l.b16 %v4615
        %v6435 = vunpack.c.l.b16 %v4629
        %v6436 = vunpack.c.l.b16 %v4639
        %v6437 = vunpack.c.l.b16 %v4653
        %v6438 = vunpack.c.l.b16 %v4663
        %v6439 = vunpack.c.l.b16 %v4677
        %v6440 = vunpack.c.l.b16 %v4687
        %v6441 = vunpack.c.l.b16 %v4701
        %v6442 = vunpack.c.l.b16 %v4711
        %v6443 = vunpack.c.l.b16 %v4725
        %v6444 = vunpack.c.l.b16 %v4735
        %v6445 = vunpack.c.l.b16 %v4749
        %v6446 = vunpack.c.l.b16 %v4759
        %v6447 = vunpack.c.l.b16 %v4773
        %v6448 = vunpack.c.l.b16 %v4783
        %v6449 = vunpack.c.l.b16 %v4797
        %v6450 = vunpack.c.l.b16 %v4807
        %v6451 = vunpack.c.l.b16 %v4821
        %v6452 = vunpack.c.l.b16 %v4831
        %v6453 = vunpack.c.l.b16 %v4845
        %v6454 = vunpack.c.l.b16 %v4855
        %v6455 = vunpack.c.l.b16 %v4869
        %v6456 = vunpack.c.l.b16 %v4879
        %v6457 = vunpack.c.l.b16 %v4893
        %v6458 = vunpack.c.l.b16 %v4903
        %v6459 = vunpack.c.l.b16 %v4917
        %v6460 = vunpack.c.l.b16 %v4927
        %v6461 = vunpack.c.l.b16 %v4941
        %v6462 = vunpack.c.l.b16 %v4951
        %v6463 = vunpack.c.l.b16 %v4965
        %v6464 = vunpack.c.l.b16 %v4975
        %v6465 = vpack.c.b16 %v6434, %v6433
        %v6466 = vpack.c.b16 %v6436, %v6435
        %v6467 = vpack.c.b16 %v6438, %v6437
        %v6468 = vpack.c.b16 %v6440, %v6439
        %v6469 = vpack.c.b16 %v6442, %v6441
        %v6470 = vpack.c.b16 %v6444, %v6443
        %v6471 = vpack.c.b16 %v6446, %v6445
        %v6472 = vpack.c.b16 %v6448, %v6447
        %v6473 = vpack.c.b16 %v6450, %v6449
        %v6474 = vpack.c.b16 %v6452, %v6451
        %v6475 = vpack.c.b16 %v6454, %v6453
        %v6476 = vpack.c.b16 %v6456, %v6455
        %v6477 = vpack.c.b16 %v6458, %v6457
        %v6478 = vpack.c.b16 %v6460, %v6459
        %v6479 = vpack.c.b16 %v6462, %v6461
        %v6480 = vpack.c.b16 %v6464, %v6463
        %6481 = vrot.lane.b32.xlu0 %v6465, 32
        %v6482 = vpop.permute.xlu0 %6481
        %6483 = vrot.lane.b32.xlu0 %v6466, 32
        %v6484 = vpop.permute.xlu0 %6483
        %6485 = vrot.lane.b32.xlu0 %v6467, 32
        %v6486 = vpop.permute.xlu0 %6485
        %6487 = vrot.lane.b32.xlu0 %v6468, 32
        %v6488 = vpop.permute.xlu0 %6487
        %6489 = vrot.lane.b32.xlu0 %v6469, 32
        %v6490 = vpop.permute.xlu0 %6489
        %6491 = vrot.lane.b32.xlu0 %v6470, 32
        %v6492 = vpop.permute.xlu0 %6491
        %6493 = vrot.lane.b32.xlu0 %v6471, 32
        %v6494 = vpop.permute.xlu0 %6493
        %6495 = vrot.lane.b32.xlu0 %v6472, 32
        %v6496 = vpop.permute.xlu0 %6495
        %6497 = vrot.lane.b32.xlu0 %v6473, 32
        %v6498 = vpop.permute.xlu0 %6497
        %6499 = vrot.lane.b32.xlu0 %v6474, 32
        %v6500 = vpop.permute.xlu0 %6499
        %6501 = vrot.lane.b32.xlu0 %v6475, 32
        %v6502 = vpop.permute.xlu0 %6501
        %6503 = vrot.lane.b32.xlu0 %v6476, 32
        %v6504 = vpop.permute.xlu0 %6503
        %6505 = vrot.lane.b32.xlu0 %v6477, 32
        %v6506 = vpop.permute.xlu0 %6505
        %6507 = vrot.lane.b32.xlu0 %v6478, 32
        %v6508 = vpop.permute.xlu0 %6507
        %6509 = vrot.lane.b32.xlu0 %v6479, 32
        %v6510 = vpop.permute.xlu0 %6509
        %6511 = vrot.lane.b32.xlu0 %v6480, 32
        %v6512 = vpop.permute.xlu0 %6511
        %v6513 = vunpack.c.l.b16 %v5043
        %v6514 = vunpack.c.l.b16 %v5046
        %v6515 = vunpack.c.l.b16 %v5050
        %v6516 = vunpack.c.l.b16 %v5053
        %v6517 = vunpack.c.l.b16 %v5057
        %v6518 = vunpack.c.l.b16 %v5060
        %v6519 = vunpack.c.l.b16 %v5064
        %v6520 = vunpack.c.l.b16 %v5067
        %v6521 = vunpack.c.l.b16 %v5071
        %v6522 = vunpack.c.l.b16 %v5074
        %v6523 = vunpack.c.l.b16 %v5078
        %v6524 = vunpack.c.l.b16 %v5081
        %v6525 = vunpack.c.l.b16 %v5085
        %v6526 = vunpack.c.l.b16 %v5088
        %v6527 = vunpack.c.l.b16 %v5092
        %v6528 = vunpack.c.l.b16 %v5095
        %v6529 = vunpack.c.l.b16 %v5099
        %v6530 = vunpack.c.l.b16 %v5102
        %v6531 = vunpack.c.l.b16 %v5106
        %v6532 = vunpack.c.l.b16 %v5109
        %v6533 = vunpack.c.l.b16 %v5113
        %v6534 = vunpack.c.l.b16 %v5116
        %v6535 = vunpack.c.l.b16 %v5120
        %v6536 = vunpack.c.l.b16 %v5123
        %v6537 = vunpack.c.l.b16 %v5127
        %v6538 = vunpack.c.l.b16 %v5130
        %v6539 = vunpack.c.l.b16 %v5134
        %v6540 = vunpack.c.l.b16 %v5137
        %v6541 = vunpack.c.l.b16 %v5141
        %v6542 = vunpack.c.l.b16 %v5144
        %v6543 = vunpack.c.l.b16 %v5148
        %v6544 = vunpack.c.l.b16 %v5151
        %v6545 = vpack.c.b16 %v6514, %v6513
        %v6546 = vpack.c.b16 %v6516, %v6515
        %v6547 = vpack.c.b16 %v6518, %v6517
        %v6548 = vpack.c.b16 %v6520, %v6519
        %v6549 = vpack.c.b16 %v6522, %v6521
        %v6550 = vpack.c.b16 %v6524, %v6523
        %v6551 = vpack.c.b16 %v6526, %v6525
        %v6552 = vpack.c.b16 %v6528, %v6527
        %v6553 = vpack.c.b16 %v6530, %v6529
        %v6554 = vpack.c.b16 %v6532, %v6531
        %v6555 = vpack.c.b16 %v6534, %v6533
        %v6556 = vpack.c.b16 %v6536, %v6535
        %v6557 = vpack.c.b16 %v6538, %v6537
        %v6558 = vpack.c.b16 %v6540, %v6539
        %v6559 = vpack.c.b16 %v6542, %v6541
        %v6560 = vpack.c.b16 %v6544, %v6543
        %6561 = vrot.lane.b32.xlu0 %v6545, 64
        %v6562 = vpop.permute.xlu0 %6561
        %6563 = vrot.lane.b32.xlu0 %v6546, 64
        %v6564 = vpop.permute.xlu0 %6563
        %6565 = vrot.lane.b32.xlu0 %v6547, 64
        %v6566 = vpop.permute.xlu0 %6565
        %6567 = vrot.lane.b32.xlu0 %v6548, 64
        %v6568 = vpop.permute.xlu0 %6567
        %6569 = vrot.lane.b32.xlu0 %v6549, 64
        %v6570 = vpop.permute.xlu0 %6569
        %6571 = vrot.lane.b32.xlu0 %v6550, 64
        %v6572 = vpop.permute.xlu0 %6571
        %6573 = vrot.lane.b32.xlu0 %v6551, 64
        %v6574 = vpop.permute.xlu0 %6573
        %6575 = vrot.lane.b32.xlu0 %v6552, 64
        %v6576 = vpop.permute.xlu0 %6575
        %6577 = vrot.lane.b32.xlu0 %v6553, 64
        %v6578 = vpop.permute.xlu0 %6577
        %6579 = vrot.lane.b32.xlu0 %v6554, 64
        %v6580 = vpop.permute.xlu0 %6579
        %6581 = vrot.lane.b32.xlu0 %v6555, 64
        %v6582 = vpop.permute.xlu0 %6581
        %6583 = vrot.lane.b32.xlu0 %v6556, 64
        %v6584 = vpop.permute.xlu0 %6583
        %6585 = vrot.lane.b32.xlu0 %v6557, 64
        %v6586 = vpop.permute.xlu0 %6585
        %6587 = vrot.lane.b32.xlu0 %v6558, 64
        %v6588 = vpop.permute.xlu0 %6587
        %6589 = vrot.lane.b32.xlu0 %v6559, 64
        %v6590 = vpop.permute.xlu0 %6589
        %6591 = vrot.lane.b32.xlu0 %v6560, 64
        %v6592 = vpop.permute.xlu0 %6591
        %v6609 = vunpack.c.l.b16 %v5152
        %v6610 = vunpack.c.l.b16 %v5153
        %v6611 = vunpack.c.l.b16 %v5154
        %v6612 = vunpack.c.l.b16 %v5155
        %v6613 = vunpack.c.l.b16 %v5156
        %v6614 = vunpack.c.l.b16 %v5157
        %v6615 = vunpack.c.l.b16 %v5158
        %v6616 = vunpack.c.l.b16 %v5159
        %v6617 = vunpack.c.l.b16 %v5160
        %v6618 = vunpack.c.l.b16 %v5161
        %v6619 = vunpack.c.l.b16 %v5162
        %v6620 = vunpack.c.l.b16 %v5163
        %v6621 = vunpack.c.l.b16 %v5164
        %v6622 = vunpack.c.l.b16 %v5165
        %v6623 = vunpack.c.l.b16 %v5166
        %v6624 = vunpack.c.l.b16 %v5167
        %v6625 = vunpack.c.l.b16 %v5168
        %v6626 = vunpack.c.l.b16 %v5169
        %v6627 = vunpack.c.l.b16 %v5170
        %v6628 = vunpack.c.l.b16 %v5171
        %v6629 = vunpack.c.l.b16 %v5172
        %v6630 = vunpack.c.l.b16 %v5173
        %v6631 = vunpack.c.l.b16 %v5174
        %v6632 = vunpack.c.l.b16 %v5175
        %v6633 = vunpack.c.l.b16 %v5176
        %v6634 = vunpack.c.l.b16 %v5177
        %v6635 = vunpack.c.l.b16 %v5178
        %v6636 = vunpack.c.l.b16 %v5179
        %v6637 = vunpack.c.l.b16 %v5180
        %v6638 = vunpack.c.l.b16 %v5181
        %v6639 = vunpack.c.l.b16 %v5182
        %v6640 = vunpack.c.l.b16 %v5183
        %v6641 = vpack.c.b16 %v6610, %v6609
        %v6642 = vpack.c.b16 %v6612, %v6611
        %v6643 = vpack.c.b16 %v6614, %v6613
        %v6644 = vpack.c.b16 %v6616, %v6615
        %v6645 = vpack.c.b16 %v6618, %v6617
        %v6646 = vpack.c.b16 %v6620, %v6619
        %v6647 = vpack.c.b16 %v6622, %v6621
        %v6648 = vpack.c.b16 %v6624, %v6623
        %v6649 = vpack.c.b16 %v6626, %v6625
        %v6650 = vpack.c.b16 %v6628, %v6627
        %v6651 = vpack.c.b16 %v6630, %v6629
        %v6652 = vpack.c.b16 %v6632, %v6631
        %v6653 = vpack.c.b16 %v6634, %v6633
        %v6654 = vpack.c.b16 %v6636, %v6635
        %v6655 = vpack.c.b16 %v6638, %v6637
        %v6656 = vpack.c.b16 %v6640, %v6639
        %6657 = vrot.lane.b32.xlu0 %v6641, 96
        %v6658 = vpop.permute.xlu0 %6657
        %6659 = vrot.lane.b32.xlu0 %v6642, 96
        %v6660 = vpop.permute.xlu0 %6659
        %6661 = vrot.lane.b32.xlu0 %v6643, 96
        %v6662 = vpop.permute.xlu0 %6661
        %6663 = vrot.lane.b32.xlu0 %v6644, 96
        %v6664 = vpop.permute.xlu0 %6663
        %6665 = vrot.lane.b32.xlu0 %v6645, 96
        %v6666 = vpop.permute.xlu0 %6665
        %6667 = vrot.lane.b32.xlu0 %v6646, 96
        %v6668 = vpop.permute.xlu0 %6667
        %6669 = vrot.lane.b32.xlu0 %v6647, 96
        %v6670 = vpop.permute.xlu0 %6669
        %6671 = vrot.lane.b32.xlu0 %v6648, 96
        %v6672 = vpop.permute.xlu0 %6671
        %6673 = vrot.lane.b32.xlu0 %v6649, 96
        %v6674 = vpop.permute.xlu0 %6673
        %6675 = vrot.lane.b32.xlu0 %v6650, 96
        %v6676 = vpop.permute.xlu0 %6675
        %6677 = vrot.lane.b32.xlu0 %v6651, 96
        %v6678 = vpop.permute.xlu0 %6677
        %6679 = vrot.lane.b32.xlu0 %v6652, 96
        %v6680 = vpop.permute.xlu0 %6679
        %6681 = vrot.lane.b32.xlu0 %v6653, 96
        %v6682 = vpop.permute.xlu0 %6681
        %6683 = vrot.lane.b32.xlu0 %v6654, 96
        %v6684 = vpop.permute.xlu0 %6683
        %6685 = vrot.lane.b32.xlu0 %v6655, 96
        %v6686 = vpop.permute.xlu0 %6685
        %6687 = vrot.lane.b32.xlu0 %v6656, 96
        %v6688 = vpop.permute.xlu0 %6687
        %v6689 = vunpack.c.l.b16 %v5213
        %v6690 = vunpack.c.l.b16 %v5223
        %v6691 = vunpack.c.l.b16 %v5237
        %v6692 = vunpack.c.l.b16 %v5247
        %v6693 = vunpack.c.l.b16 %v5261
        %v6694 = vunpack.c.l.b16 %v5271
        %v6695 = vunpack.c.l.b16 %v5285
        %v6696 = vunpack.c.l.b16 %v5295
        %v6697 = vunpack.c.l.b16 %v5309
        %v6698 = vunpack.c.l.b16 %v5319
        %v6699 = vunpack.c.l.b16 %v5333
        %v6700 = vunpack.c.l.b16 %v5343
        %v6701 = vunpack.c.l.b16 %v5357
        %v6702 = vunpack.c.l.b16 %v5367
        %v6703 = vunpack.c.l.b16 %v5381
        %v6704 = vunpack.c.l.b16 %v5391
        %v6705 = vunpack.c.l.b16 %v5405
        %v6706 = vunpack.c.l.b16 %v5415
        %v6707 = vunpack.c.l.b16 %v5429
        %v6708 = vunpack.c.l.b16 %v5439
        %v6709 = vunpack.c.l.b16 %v5453
        %v6710 = vunpack.c.l.b16 %v5463
        %v6711 = vunpack.c.l.b16 %v5477
        %v6712 = vunpack.c.l.b16 %v5487
        %v6713 = vunpack.c.l.b16 %v5501
        %v6714 = vunpack.c.l.b16 %v5511
        %v6715 = vunpack.c.l.b16 %v5525
        %v6716 = vunpack.c.l.b16 %v5535
        %v6717 = vunpack.c.l.b16 %v5549
        %v6718 = vunpack.c.l.b16 %v5559
        %v6719 = vunpack.c.l.b16 %v5573
        %v6720 = vunpack.c.l.b16 %v5583
        %v6721 = vpack.c.b16 %v6690, %v6689
        %v6722 = vpack.c.b16 %v6692, %v6691
        %v6723 = vpack.c.b16 %v6694, %v6693
        %v6724 = vpack.c.b16 %v6696, %v6695
        %v6725 = vpack.c.b16 %v6698, %v6697
        %v6726 = vpack.c.b16 %v6700, %v6699
        %v6727 = vpack.c.b16 %v6702, %v6701
        %v6728 = vpack.c.b16 %v6704, %v6703
        %v6729 = vpack.c.b16 %v6706, %v6705
        %v6730 = vpack.c.b16 %v6708, %v6707
        %v6731 = vpack.c.b16 %v6710, %v6709
        %v6732 = vpack.c.b16 %v6712, %v6711
        %v6733 = vpack.c.b16 %v6714, %v6713
        %v6734 = vpack.c.b16 %v6716, %v6715
        %v6735 = vpack.c.b16 %v6718, %v6717
        %v6736 = vpack.c.b16 %v6720, %v6719
        %v6737 = vunpack.c.l.b16 %v5651
        %v6738 = vunpack.c.l.b16 %v5654
        %v6739 = vunpack.c.l.b16 %v5658
        %v6740 = vunpack.c.l.b16 %v5661
        %v6741 = vunpack.c.l.b16 %v5665
        %v6742 = vunpack.c.l.b16 %v5668
        %v6743 = vunpack.c.l.b16 %v5672
        %v6744 = vunpack.c.l.b16 %v5675
        %v6745 = vunpack.c.l.b16 %v5679
        %v6746 = vunpack.c.l.b16 %v5682
        %v6747 = vunpack.c.l.b16 %v5686
        %v6748 = vunpack.c.l.b16 %v5689
        %v6749 = vunpack.c.l.b16 %v5693
        %v6750 = vunpack.c.l.b16 %v5696
        %v6751 = vunpack.c.l.b16 %v5700
        %v6752 = vunpack.c.l.b16 %v5703
        %v6753 = vunpack.c.l.b16 %v5707
        %v6754 = vunpack.c.l.b16 %v5710
        %v6755 = vunpack.c.l.b16 %v5714
        %v6756 = vunpack.c.l.b16 %v5717
        %v6757 = vunpack.c.l.b16 %v5721
        %v6758 = vunpack.c.l.b16 %v5724
        %v6759 = vunpack.c.l.b16 %v5728
        %v6760 = vunpack.c.l.b16 %v5731
        %v6761 = vunpack.c.l.b16 %v5735
        %v6762 = vunpack.c.l.b16 %v5738
        %v6763 = vunpack.c.l.b16 %v5742
        %v6764 = vunpack.c.l.b16 %v5745
        %v6765 = vunpack.c.l.b16 %v5749
        %v6766 = vunpack.c.l.b16 %v5752
        %v6767 = vunpack.c.l.b16 %v5756
        %v6768 = vunpack.c.l.b16 %v5759
        %v6769 = vpack.c.b16 %v6738, %v6737
        %v6770 = vpack.c.b16 %v6740, %v6739
        %v6771 = vpack.c.b16 %v6742, %v6741
        %v6772 = vpack.c.b16 %v6744, %v6743
        %v6773 = vpack.c.b16 %v6746, %v6745
        %v6774 = vpack.c.b16 %v6748, %v6747
        %v6775 = vpack.c.b16 %v6750, %v6749
        %v6776 = vpack.c.b16 %v6752, %v6751
        %v6777 = vpack.c.b16 %v6754, %v6753
        %v6778 = vpack.c.b16 %v6756, %v6755
        %v6779 = vpack.c.b16 %v6758, %v6757
        %v6780 = vpack.c.b16 %v6760, %v6759
        %v6781 = vpack.c.b16 %v6762, %v6761
        %v6782 = vpack.c.b16 %v6764, %v6763
        %v6783 = vpack.c.b16 %v6766, %v6765
        %v6784 = vpack.c.b16 %v6768, %v6767
        %6785 = vrot.lane.b32.xlu0 %v6769, 32
        %v6786 = vpop.permute.xlu0 %6785
        %6787 = vrot.lane.b32.xlu0 %v6770, 32
        %v6788 = vpop.permute.xlu0 %6787
        %6789 = vrot.lane.b32.xlu0 %v6771, 32
        %v6790 = vpop.permute.xlu0 %6789
        %6791 = vrot.lane.b32.xlu0 %v6772, 32
        %v6792 = vpop.permute.xlu0 %6791
        %6793 = vrot.lane.b32.xlu0 %v6773, 32
        %v6794 = vpop.permute.xlu0 %6793
        %6795 = vrot.lane.b32.xlu0 %v6774, 32
        %v6796 = vpop.permute.xlu0 %6795
        %6797 = vrot.lane.b32.xlu0 %v6775, 32
        %v6798 = vpop.permute.xlu0 %6797
        %6799 = vrot.lane.b32.xlu0 %v6776, 32
        %v6800 = vpop.permute.xlu0 %6799
        %6801 = vrot.lane.b32.xlu0 %v6777, 32
        %v6802 = vpop.permute.xlu0 %6801
        %6803 = vrot.lane.b32.xlu0 %v6778, 32
        %v6804 = vpop.permute.xlu0 %6803
        %6805 = vrot.lane.b32.xlu0 %v6779, 32
        %v6806 = vpop.permute.xlu0 %6805
        %6807 = vrot.lane.b32.xlu0 %v6780, 32
        %v6808 = vpop.permute.xlu0 %6807
        %6809 = vrot.lane.b32.xlu0 %v6781, 32
        %v6810 = vpop.permute.xlu0 %6809
        %6811 = vrot.lane.b32.xlu0 %v6782, 32
        %v6812 = vpop.permute.xlu0 %6811
        %6813 = vrot.lane.b32.xlu0 %v6783, 32
        %v6814 = vpop.permute.xlu0 %6813
        %6815 = vrot.lane.b32.xlu0 %v6784, 32
        %v6816 = vpop.permute.xlu0 %6815
        %v6833 = vunpack.c.l.b16 %v5761
        %v6834 = vunpack.c.l.b16 %v5762
        %v6835 = vunpack.c.l.b16 %v5763
        %v6836 = vunpack.c.l.b16 %v5764
        %v6837 = vunpack.c.l.b16 %v5765
        %v6838 = vunpack.c.l.b16 %v5766
        %v6839 = vunpack.c.l.b16 %v5767
        %v6840 = vunpack.c.l.b16 %v5768
        %v6841 = vunpack.c.l.b16 %v5769
        %v6842 = vunpack.c.l.b16 %v5770
        %v6843 = vunpack.c.l.b16 %v5771
        %v6844 = vunpack.c.l.b16 %v5772
        %v6845 = vunpack.c.l.b16 %v5773
        %v6846 = vunpack.c.l.b16 %v5774
        %v6847 = vunpack.c.l.b16 %v5775
        %v6848 = vunpack.c.l.b16 %v5776
        %v6849 = vunpack.c.l.b16 %v5777
        %v6850 = vunpack.c.l.b16 %v5778
        %v6851 = vunpack.c.l.b16 %v5779
        %v6852 = vunpack.c.l.b16 %v5780
        %v6853 = vunpack.c.l.b16 %v5781
        %v6854 = vunpack.c.l.b16 %v5782
        %v6855 = vunpack.c.l.b16 %v5783
        %v6856 = vunpack.c.l.b16 %v5784
        %v6857 = vunpack.c.l.b16 %v5785
        %v6858 = vunpack.c.l.b16 %v5786
        %v6859 = vunpack.c.l.b16 %v5787
        %v6860 = vunpack.c.l.b16 %v5788
        %v6861 = vunpack.c.l.b16 %v5789
        %v6862 = vunpack.c.l.b16 %v5790
        %v6863 = vunpack.c.l.b16 %v5791
        %v6864 = vunpack.c.l.b16 %v5792
        %v6865 = vpack.c.b16 %v6834, %v6833
        %v6866 = vpack.c.b16 %v6836, %v6835
        %v6867 = vpack.c.b16 %v6838, %v6837
        %v6868 = vpack.c.b16 %v6840, %v6839
        %v6869 = vpack.c.b16 %v6842, %v6841
        %v6870 = vpack.c.b16 %v6844, %v6843
        %v6871 = vpack.c.b16 %v6846, %v6845
        %v6872 = vpack.c.b16 %v6848, %v6847
        %v6873 = vpack.c.b16 %v6850, %v6849
        %v6874 = vpack.c.b16 %v6852, %v6851
        %v6875 = vpack.c.b16 %v6854, %v6853
        %v6876 = vpack.c.b16 %v6856, %v6855
        %v6877 = vpack.c.b16 %v6858, %v6857
        %v6878 = vpack.c.b16 %v6860, %v6859
        %v6879 = vpack.c.b16 %v6862, %v6861
        %v6880 = vpack.c.b16 %v6864, %v6863
        %6881 = vrot.lane.b32.xlu0 %v6865, 64
        %v6882 = vpop.permute.xlu0 %6881
        %6883 = vrot.lane.b32.xlu0 %v6866, 64
        %v6884 = vpop.permute.xlu0 %6883
        %6885 = vrot.lane.b32.xlu0 %v6867, 64
        %v6886 = vpop.permute.xlu0 %6885
        %6887 = vrot.lane.b32.xlu0 %v6868, 64
        %v6888 = vpop.permute.xlu0 %6887
        %6889 = vrot.lane.b32.xlu0 %v6869, 64
        %v6890 = vpop.permute.xlu0 %6889
        %6891 = vrot.lane.b32.xlu0 %v6870, 64
        %v6892 = vpop.permute.xlu0 %6891
        %6893 = vrot.lane.b32.xlu0 %v6871, 64
        %v6894 = vpop.permute.xlu0 %6893
        %6895 = vrot.lane.b32.xlu0 %v6872, 64
        %v6896 = vpop.permute.xlu0 %6895
        %6897 = vrot.lane.b32.xlu0 %v6873, 64
        %v6898 = vpop.permute.xlu0 %6897
        %6899 = vrot.lane.b32.xlu0 %v6874, 64
        %v6900 = vpop.permute.xlu0 %6899
        %6901 = vrot.lane.b32.xlu0 %v6875, 64
        %v6902 = vpop.permute.xlu0 %6901
        %6903 = vrot.lane.b32.xlu0 %v6876, 64
        %v6904 = vpop.permute.xlu0 %6903
        %6905 = vrot.lane.b32.xlu0 %v6877, 64
        %v6906 = vpop.permute.xlu0 %6905
        %6907 = vrot.lane.b32.xlu0 %v6878, 64
        %v6908 = vpop.permute.xlu0 %6907
        %6909 = vrot.lane.b32.xlu0 %v6879, 64
        %v6910 = vpop.permute.xlu0 %6909
        %6911 = vrot.lane.b32.xlu0 %v6880, 64
        %v6912 = vpop.permute.xlu0 %6911
        %v6913 = vunpack.c.l.b16 %v5822
        %v6914 = vunpack.c.l.b16 %v5832
        %v6915 = vunpack.c.l.b16 %v5846
        %v6916 = vunpack.c.l.b16 %v5856
        %v6917 = vunpack.c.l.b16 %v5870
        %v6918 = vunpack.c.l.b16 %v5880
        %v6919 = vunpack.c.l.b16 %v5894
        %v6920 = vunpack.c.l.b16 %v5904
        %v6921 = vunpack.c.l.b16 %v5918
        %v6922 = vunpack.c.l.b16 %v5928
        %v6923 = vunpack.c.l.b16 %v5942
        %v6924 = vunpack.c.l.b16 %v5952
        %v6925 = vunpack.c.l.b16 %v5966
        %v6926 = vunpack.c.l.b16 %v5976
        %v6927 = vunpack.c.l.b16 %v5990
        %v6928 = vunpack.c.l.b16 %v6000
        %v6929 = vunpack.c.l.b16 %v6014
        %v6930 = vunpack.c.l.b16 %v6024
        %v6931 = vunpack.c.l.b16 %v6038
        %v6932 = vunpack.c.l.b16 %v6048
        %v6933 = vunpack.c.l.b16 %v6062
        %v6934 = vunpack.c.l.b16 %v6072
        %v6935 = vunpack.c.l.b16 %v6086
        %v6936 = vunpack.c.l.b16 %v6096
        %v6937 = vunpack.c.l.b16 %v6110
        %v6938 = vunpack.c.l.b16 %v6120
        %v6939 = vunpack.c.l.b16 %v6134
        %v6940 = vunpack.c.l.b16 %v6144
        %v6941 = vunpack.c.l.b16 %v6158
        %v6942 = vunpack.c.l.b16 %v6168
        %v6943 = vunpack.c.l.b16 %v6182
        %v6944 = vunpack.c.l.b16 %v6192
        %v6945 = vpack.c.b16 %v6914, %v6913
        %v6946 = vpack.c.b16 %v6916, %v6915
        %v6947 = vpack.c.b16 %v6918, %v6917
        %v6948 = vpack.c.b16 %v6920, %v6919
        %v6949 = vpack.c.b16 %v6922, %v6921
        %v6950 = vpack.c.b16 %v6924, %v6923
        %v6951 = vpack.c.b16 %v6926, %v6925
        %v6952 = vpack.c.b16 %v6928, %v6927
        %v6953 = vpack.c.b16 %v6930, %v6929
        %v6954 = vpack.c.b16 %v6932, %v6931
        %v6955 = vpack.c.b16 %v6934, %v6933
        %v6956 = vpack.c.b16 %v6936, %v6935
        %v6957 = vpack.c.b16 %v6938, %v6937
        %v6958 = vpack.c.b16 %v6940, %v6939
        %v6959 = vpack.c.b16 %v6942, %v6941
        %v6960 = vpack.c.b16 %v6944, %v6943
        %6961 = vrot.lane.b32.xlu0 %v6945, 96
        %v6962 = vpop.permute.xlu0 %6961
        %6963 = vrot.lane.b32.xlu0 %v6946, 96
        %v6964 = vpop.permute.xlu0 %6963
        %6965 = vrot.lane.b32.xlu0 %v6947, 96
        %v6966 = vpop.permute.xlu0 %6965
        %6967 = vrot.lane.b32.xlu0 %v6948, 96
        %v6968 = vpop.permute.xlu0 %6967
        %6969 = vrot.lane.b32.xlu0 %v6949, 96
        %v6970 = vpop.permute.xlu0 %6969
        %6971 = vrot.lane.b32.xlu0 %v6950, 96
        %v6972 = vpop.permute.xlu0 %6971
        %6973 = vrot.lane.b32.xlu0 %v6951, 96
        %v6974 = vpop.permute.xlu0 %6973
        %6975 = vrot.lane.b32.xlu0 %v6952, 96
        %v6976 = vpop.permute.xlu0 %6975
        %6977 = vrot.lane.b32.xlu0 %v6953, 96
        %v6978 = vpop.permute.xlu0 %6977
        %6979 = vrot.lane.b32.xlu0 %v6954, 96
        %v6980 = vpop.permute.xlu0 %6979
        %6981 = vrot.lane.b32.xlu0 %v6955, 96
        %v6982 = vpop.permute.xlu0 %6981
        %6983 = vrot.lane.b32.xlu0 %v6956, 96
        %v6984 = vpop.permute.xlu0 %6983
        %6985 = vrot.lane.b32.xlu0 %v6957, 96
        %v6986 = vpop.permute.xlu0 %6985
        %6987 = vrot.lane.b32.xlu0 %v6958, 96
        %v6988 = vpop.permute.xlu0 %6987
        %6989 = vrot.lane.b32.xlu0 %v6959, 96
        %v6990 = vpop.permute.xlu0 %6989
        %6991 = vrot.lane.b32.xlu0 %v6960, 96
        %v6992 = vpop.permute.xlu0 %6991
        %v6993 = vunpack.c.l.b16 %v6260
        %v6994 = vunpack.c.l.b16 %v6263
        %v6995 = vunpack.c.l.b16 %v6267
        %v6996 = vunpack.c.l.b16 %v6270
        %v6997 = vunpack.c.l.b16 %v6274
        %v6998 = vunpack.c.l.b16 %v6277
        %v6999 = vunpack.c.l.b16 %v6281
        %v7000 = vunpack.c.l.b16 %v6284
        %v7001 = vunpack.c.l.b16 %v6288
        %v7002 = vunpack.c.l.b16 %v6291
        %v7003 = vunpack.c.l.b16 %v6295
        %v7004 = vunpack.c.l.b16 %v6298
        %v7005 = vunpack.c.l.b16 %v6302
        %v7006 = vunpack.c.l.b16 %v6305
        %v7007 = vunpack.c.l.b16 %v6309
        %v7008 = vunpack.c.l.b16 %v6312
        %v7009 = vunpack.c.l.b16 %v6316
        %v7010 = vunpack.c.l.b16 %v6319
        %v7011 = vunpack.c.l.b16 %v6323
        %v7012 = vunpack.c.l.b16 %v6326
        %v7013 = vunpack.c.l.b16 %v6330
        %v7014 = vunpack.c.l.b16 %v6333
        %v7015 = vunpack.c.l.b16 %v6337
        %v7016 = vunpack.c.l.b16 %v6340
        %v7017 = vunpack.c.l.b16 %v6344
        %v7018 = vunpack.c.l.b16 %v6347
        %v7019 = vunpack.c.l.b16 %v6351
        %v7020 = vunpack.c.l.b16 %v6354
        %v7021 = vunpack.c.l.b16 %v6358
        %v7022 = vunpack.c.l.b16 %v6361
        %v7023 = vunpack.c.l.b16 %v6365
        %v7024 = vunpack.c.l.b16 %v6368
        %v7025 = vpack.c.b16 %v6994, %v6993
        %v7026 = vpack.c.b16 %v6996, %v6995
        %v7027 = vpack.c.b16 %v6998, %v6997
        %v7028 = vpack.c.b16 %v7000, %v6999
        %v7029 = vpack.c.b16 %v7002, %v7001
        %v7030 = vpack.c.b16 %v7004, %v7003
        %v7031 = vpack.c.b16 %v7006, %v7005
        %v7032 = vpack.c.b16 %v7008, %v7007
        %v7033 = vpack.c.b16 %v7010, %v7009
        %v7034 = vpack.c.b16 %v7012, %v7011
        %v7035 = vpack.c.b16 %v7014, %v7013
        %v7036 = vpack.c.b16 %v7016, %v7015
        %v7037 = vpack.c.b16 %v7018, %v7017
        %v7038 = vpack.c.b16 %v7020, %v7019
        %v7039 = vpack.c.b16 %v7022, %v7021
        %v7040 = vpack.c.b16 %v7024, %v7023
        %v7043 = vsel %vm3410, %v6417, %v6482
        %v7046 = vsel %vm3410, %v6418, %v6484
        %v7049 = vsel %vm3410, %v6419, %v6486
        %v7052 = vsel %vm3410, %v6420, %v6488
        %v7055 = vsel %vm3410, %v6421, %v6490
        %v7058 = vsel %vm3410, %v6422, %v6492
        %v7061 = vsel %vm3410, %v6423, %v6494
        %v7064 = vsel %vm3410, %v6424, %v6496
        %v7067 = vsel %vm3410, %v6425, %v6498
        %v7070 = vsel %vm3410, %v6426, %v6500
        %v7073 = vsel %vm3410, %v6427, %v6502
        %v7076 = vsel %vm3410, %v6428, %v6504
        %v7079 = vsel %vm3410, %v6429, %v6506
        %v7082 = vsel %vm3410, %v6430, %v6508
        %v7085 = vsel %vm3410, %v6431, %v6510
        %v7088 = vsel %vm3410, %v6432, %v6512
        %vm7089 = vcmask 523264
        %v7091 = vsel %vm7089, %v7043, %v6562
        %v7093 = vsel %vm7089, %v7046, %v6564
        %v7095 = vsel %vm7089, %v7049, %v6566
        %v7097 = vsel %vm7089, %v7052, %v6568
        %v7099 = vsel %vm7089, %v7055, %v6570
        %v7101 = vsel %vm7089, %v7058, %v6572
        %v7103 = vsel %vm7089, %v7061, %v6574
        %v7105 = vsel %vm7089, %v7064, %v6576
        %v7107 = vsel %vm7089, %v7067, %v6578
        %v7109 = vsel %vm7089, %v7070, %v6580
        %v7111 = vsel %vm7089, %v7073, %v6582
        %v7113 = vsel %vm7089, %v7076, %v6584
        %v7115 = vsel %vm7089, %v7079, %v6586
        %v7117 = vsel %vm7089, %v7082, %v6588
        %v7119 = vsel %vm7089, %v7085, %v6590
        %v7121 = vsel %vm7089, %v7088, %v6592
        %vm7122 = vcmask 785408
        %v7124 = vsel %vm7122, %v7091, %v6658
        %v7127 = vsel %vm7122, %v7093, %v6660
        %v7130 = vsel %vm7122, %v7095, %v6662
        %v7133 = vsel %vm7122, %v7097, %v6664
        %v7136 = vsel %vm7122, %v7099, %v6666
        %v7139 = vsel %vm7122, %v7101, %v6668
        %v7142 = vsel %vm7122, %v7103, %v6670
        %v7145 = vsel %vm7122, %v7105, %v6672
        %v7148 = vsel %vm7122, %v7107, %v6674
        %v7151 = vsel %vm7122, %v7109, %v6676
        %v7154 = vsel %vm7122, %v7111, %v6678
        %v7157 = vsel %vm7122, %v7113, %v6680
        %v7160 = vsel %vm7122, %v7115, %v6682
        %v7163 = vsel %vm7122, %v7117, %v6684
        %v7166 = vsel %vm7122, %v7119, %v6686
        %v7169 = vsel %vm7122, %v7121, %v6688
        %v7173 = vsel %vm3410, %v6721, %v6786
        %v7176 = vsel %vm3410, %v6722, %v6788
        %v7179 = vsel %vm3410, %v6723, %v6790
        %v7182 = vsel %vm3410, %v6724, %v6792
        %v7185 = vsel %vm3410, %v6725, %v6794
        %v7188 = vsel %vm3410, %v6726, %v6796
        %v7191 = vsel %vm3410, %v6727, %v6798
        %v7194 = vsel %vm3410, %v6728, %v6800
        %v7197 = vsel %vm3410, %v6729, %v6802
        %v7200 = vsel %vm3410, %v6730, %v6804
        %v7203 = vsel %vm3410, %v6731, %v6806
        %v7206 = vsel %vm3410, %v6732, %v6808
        %v7209 = vsel %vm3410, %v6733, %v6810
        %v7212 = vsel %vm3410, %v6734, %v6812
        %v7215 = vsel %vm3410, %v6735, %v6814
        %v7218 = vsel %vm3410, %v6736, %v6816
        %v7220 = vsel %vm7089, %v7173, %v6882
        %v7222 = vsel %vm7089, %v7176, %v6884
        %v7224 = vsel %vm7089, %v7179, %v6886
        %v7226 = vsel %vm7089, %v7182, %v6888
        %v7228 = vsel %vm7089, %v7185, %v6890
        %v7230 = vsel %vm7089, %v7188, %v6892
        %v7232 = vsel %vm7089, %v7191, %v6894
        %v7234 = vsel %vm7089, %v7194, %v6896
        %v7236 = vsel %vm7089, %v7197, %v6898
        %v7238 = vsel %vm7089, %v7200, %v6900
        %v7240 = vsel %vm7089, %v7203, %v6902
        %v7242 = vsel %vm7089, %v7206, %v6904
        %v7244 = vsel %vm7089, %v7209, %v6906
        %v7246 = vsel %vm7089, %v7212, %v6908
        %v7248 = vsel %vm7089, %v7215, %v6910
        %v7250 = vsel %vm7089, %v7218, %v6912
        %v7252 = vsel %vm7122, %v7220, %v6962
        %v7255 = vsel %vm7122, %v7222, %v6964
        %v7258 = vsel %vm7122, %v7224, %v6966
        %v7261 = vsel %vm7122, %v7226, %v6968
        %v7264 = vsel %vm7122, %v7228, %v6970
        %v7267 = vsel %vm7122, %v7230, %v6972
        %v7270 = vsel %vm7122, %v7232, %v6974
        %v7273 = vsel %vm7122, %v7234, %v6976
        %v7276 = vsel %vm7122, %v7236, %v6978
        %v7279 = vsel %vm7122, %v7238, %v6980
        %v7282 = vsel %vm7122, %v7240, %v6982
        %v7285 = vsel %vm7122, %v7242, %v6984
        %v7288 = vsel %vm7122, %v7244, %v6986
        %v7291 = vsel %vm7122, %v7246, %v6988
        %v7294 = vsel %vm7122, %v7248, %v6990
        %v7297 = vsel %vm7122, %v7250, %v6992
        %v7299 = vld [vmem:[%s4] sm:$0xf]
        %v7300 = vld [vmem:[%s4 + $0x4] sm:$0xf]
        %v7301 = vld [vmem:[%s4 + $0x8] sm:$0xf]
        %v7302 = vld [vmem:[%s4 + $0xc] sm:$0xf]
        %v7303 = vld [vmem:[%s4 + $0x10] sm:$0xf]
        %v7304 = vld [vmem:[%s4 + $0x14] sm:$0xf]
        %v7305 = vld [vmem:[%s4 + $0x18] sm:$0xf]
        %v7306 = vld [vmem:[%s4 + $0x1c] sm:$0xf]
        %v7307 = vld [vmem:[%s4 + $0x20] sm:$0xf]
        %v7308 = vld [vmem:[%s4 + $0x24] sm:$0xf]
        %v7309 = vld [vmem:[%s4 + $0x28] sm:$0xf]
        %v7310 = vld [vmem:[%s4 + $0x2c] sm:$0xf]
        %v7311 = vld [vmem:[%s4 + $0x30] sm:$0xf]
        %v7312 = vld [vmem:[%s4 + $0x34] sm:$0xf]
        %v7313 = vld [vmem:[%s4 + $0x38] sm:$0xf]
        %v7314 = vld [vmem:[%s4 + $0x3c] sm:$0xf]
        %v7315 = vld [vmem:[%s4 + $0x40] sm:$0xf]
        %v7316 = vld [vmem:[%s4 + $0x44] sm:$0xf]
        %v7317 = vld [vmem:[%s4 + $0x48] sm:$0xf]
        %v7318 = vld [vmem:[%s4 + $0x4c] sm:$0xf]
        %v7319 = vld [vmem:[%s4 + $0x50] sm:$0xf]
        %v7320 = vld [vmem:[%s4 + $0x54] sm:$0xf]
        %v7321 = vld [vmem:[%s4 + $0x58] sm:$0xf]
        %v7322 = vld [vmem:[%s4 + $0x5c] sm:$0xf]
        %v7323 = vld [vmem:[%s4 + $0x60] sm:$0xf]
        %v7324 = vld [vmem:[%s4 + $0x64] sm:$0xf]
        %v7325 = vld [vmem:[%s4 + $0x68] sm:$0xf]
        %v7326 = vld [vmem:[%s4 + $0x6c] sm:$0xf]
        %v7327 = vld [vmem:[%s4 + $0x70] sm:$0xf]
        %v7328 = vld [vmem:[%s4 + $0x74] sm:$0xf]
        %v7329 = vld [vmem:[%s4 + $0x78] sm:$0xf]
        %v7330 = vld [vmem:[%s4 + $0x7c] sm:$0xf]
        %v7331 = vld [vmem:[%s4 + $0x80] sm:$0xf]
        %v7332 = vld [vmem:[%s4 + $0x84] sm:$0xf]
        %v7333 = vld [vmem:[%s4 + $0x88] sm:$0xf]
        %v7334 = vld [vmem:[%s4 + $0x8c] sm:$0xf]
        %v7371 = vunpack.c.l.b16 %v7299
        %v7372 = vunpack.c.l.b16 %v7300
        %v7373 = vunpack.c.l.b16 %v7301
        %v7374 = vunpack.c.l.b16 %v7302
        %v7375 = vunpack.c.l.b16 %v7303
        %v7376 = vunpack.c.l.b16 %v7304
        %v7377 = vunpack.c.l.b16 %v7305
        %v7378 = vunpack.c.l.b16 %v7306
        %v7379 = vunpack.c.l.b16 %v7307
        %v7380 = vunpack.c.l.b16 %v7308
        %v7381 = vunpack.c.l.b16 %v7309
        %v7382 = vunpack.c.l.b16 %v7310
        %v7383 = vunpack.c.l.b16 %v7311
        %v7384 = vunpack.c.l.b16 %v7312
        %v7385 = vunpack.c.l.b16 %v7313
        %v7386 = vunpack.c.l.b16 %v7314
        %v7387 = vunpack.c.l.b16 %v7315
        %v7388 = vunpack.c.l.b16 %v7316
        %v7389 = vunpack.c.l.b16 %v7317
        %v7390 = vunpack.c.l.b16 %v7318
        %v7391 = vunpack.c.l.b16 %v7319
        %v7392 = vunpack.c.l.b16 %v7320
        %v7393 = vunpack.c.l.b16 %v7321
        %v7394 = vunpack.c.l.b16 %v7322
        %v7395 = vunpack.c.l.b16 %v7323
        %v7396 = vunpack.c.l.b16 %v7324
        %v7397 = vunpack.c.l.b16 %v7325
        %v7398 = vunpack.c.l.b16 %v7326
        %v7399 = vunpack.c.l.b16 %v7327
        %v7400 = vunpack.c.l.b16 %v7328
        %v7401 = vunpack.c.l.b16 %v7329
        %v7402 = vunpack.c.l.b16 %v7330
        %v7403 = vunpack.c.l.b16 %v7331
        %v7404 = vunpack.c.l.b16 %v7332
        %v7405 = vunpack.c.l.b16 %v7333
        %v7406 = vunpack.c.l.b16 %v7334
        %v7407 = vpack.c.b16 %v7372, %v7371
        %v7408 = vpack.c.b16 %v7374, %v7373
        %v7409 = vpack.c.b16 %v7376, %v7375
        %v7410 = vpack.c.b16 %v7378, %v7377
        %v7411 = vpack.c.b16 %v7380, %v7379
        %v7412 = vpack.c.b16 %v7382, %v7381
        %v7413 = vpack.c.b16 %v7384, %v7383
        %v7414 = vpack.c.b16 %v7386, %v7385
        %v7415 = vpack.c.b16 %v7388, %v7387
        %v7416 = vpack.c.b16 %v7390, %v7389
        %v7417 = vpack.c.b16 %v7392, %v7391
        %v7418 = vpack.c.b16 %v7394, %v7393
        %v7419 = vpack.c.b16 %v7396, %v7395
        %v7420 = vpack.c.b16 %v7398, %v7397
        %v7421 = vpack.c.b16 %v7400, %v7399
        %v7422 = vpack.c.b16 %v7402, %v7401
        %v7423 = vpack.c.b16 %v7404, %v7403
        %v7424 = vpack.c.b16 %v7406, %v7405
        %v7444 = vsel %vm3410, %v7025, 0
        %v7447 = vsel %vm3410, %v7026, 0
        %v7450 = vsel %vm3410, %v7027, 0
        %v7453 = vsel %vm3410, %v7028, 0
        %v7456 = vsel %vm3410, %v7029, 0
        %v7459 = vsel %vm3410, %v7030, 0
        %v7462 = vsel %vm3410, %v7031, 0
        %v7465 = vsel %vm3410, %v7032, 0
        %v7468 = vsel %vm3410, %v7033, 0
        %v7471 = vsel %vm3410, %v7034, 0
        %v7474 = vsel %vm3410, %v7035, 0
        %v7477 = vsel %vm3410, %v7036, 0
        %v7480 = vsel %vm3410, %v7037, 0
        %v7483 = vsel %vm3410, %v7038, 0
        %v7486 = vsel %vm3410, %v7039, 0
        %v7489 = vsel %vm3410, %v7040, 0
        %7491 = vmatprep.subr.bf16.mxu0 0
        %7492 = vmatpush1.bf16.msra.mxu0 %v7407
        %7493 = vmatprep.subr.bf16.mxu0 0
        %7494 = vmatpush1.bf16.msra.mxu0 %v7408
        %7495 = vmatprep.subr.bf16.mxu0 0
        %7496 = vmatpush1.bf16.msra.mxu0 %v7409
        %7497 = vmatprep.subr.bf16.mxu0 0
        %7498 = vmatpush1.bf16.msra.mxu0 %v7410
        %7499 = vmatprep.subr.bf16.mxu0 0
        %7500 = vmatpush1.bf16.msra.mxu0 %v7411
        %7501 = vmatprep.subr.bf16.mxu0 0
        %7502 = vmatpush1.bf16.msra.mxu0 %v7412
        %7503 = vmatprep.subr.bf16.mxu0 0
        %7504 = vmatpush1.bf16.msra.mxu0 %v7413
        %7505 = vmatprep.subr.bf16.mxu0 0
        %7506 = vmatpush1.bf16.msra.mxu0 %v7414
        %7507 = vmatprep.subr.bf16.mxu0 0
        %7508 = vmatpush1.bf16.msra.mxu0 %v7415
        %7509 = vmatprep.subr.bf16.mxu0 0
        %7510 = vmatpush1.bf16.msra.mxu0 %v7416
        %7511 = vmatprep.subr.bf16.mxu0 0
        %7512 = vmatpush1.bf16.msra.mxu0 %v7417
        %7513 = vmatprep.subr.bf16.mxu0 0
        %7514 = vmatpush1.bf16.msra.mxu0 %v7418
        %7515 = vmatprep.subr.bf16.mxu0 0
        %7516 = vmatpush1.bf16.msra.mxu0 %v7419
        %7517 = vmatprep.subr.bf16.mxu0 0
        %7518 = vmatpush1.bf16.msra.mxu0 %v7420
        %7519 = vmatprep.subr.bf16.mxu0 0
        %7520 = vmatpush1.bf16.msra.mxu0 %v7421
        %7521 = vmatprep.subr.bf16.mxu0 0
        %7522 = vmatpush1.bf16.msra.mxu0 %v7422
        %7523 = vmatprep.mubr.bf16.mxu0 %v7252
        %7524 = vmatmul.mubr.bf16.gmra.mrb[0].mxu0 %v7124
        %v7525 = vpop.f32.mrb[0].mxu0
        %v7526 = vadd.f32 0.0, %v7525
        %v7527 = vpop.f32.mrb[0].mxu0
        %v7528 = vpop.f32.mrb[0].mxu0
        %v7529 = vadd.f32 0.0, %v7528
        %v7530 = vpop.f32.mrb[0].mxu0
        %7531 = vmatprep.mubr.bf16.mxu0 %v7255
        %7532 = vmatmul.mubr.bf16.gmra.mrb[0].mxu0 %v7127
        %v7533 = vpop.f32.mrb[0].mxu0
        %v7534 = vadd.f32 0.0, %v7533
        %v7535 = vpop.f32.mrb[0].mxu0
        %v7536 = vpop.f32.mrb[0].mxu0
        %v7537 = vadd.f32 0.0, %v7536
        %v7538 = vpop.f32.mrb[0].mxu0
        %7539 = vmatprep.mubr.bf16.mxu0 %v7258
        %7540 = vmatmul.mubr.bf16.gmra.mrb[0].mxu0 %v7130
        %v7541 = vpop.f32.mrb[0].mxu0
        %v7542 = vadd.f32 0.0, %v7541
        %v7543 = vpop.f32.mrb[0].mxu0
        %v7544 = vpop.f32.mrb[0].mxu0
        %v7545 = vadd.f32 0.0, %v7544
        %v7546 = vpop.f32.mrb[0].mxu0
        %7547 = vmatprep.mubr.bf16.mxu0 %v7261
        %7548 = vmatmul.mubr.bf16.gmra.mrb[0].mxu0 %v7133
        %v7549 = vpop.f32.mrb[0].mxu0
        %v7550 = vadd.f32 0.0, %v7549
        %v7551 = vpop.f32.mrb[0].mxu0
        %v7552 = vpop.f32.mrb[0].mxu0
        %v7553 = vadd.f32 0.0, %v7552
        %v7554 = vpop.f32.mrb[0].mxu0
        %7555 = vmatprep.mubr.bf16.mxu0 %v7264
        %7556 = vmatmul.mubr.bf16.gmra.mrb[0].mxu0 %v7136
        %v7557 = vpop.f32.mrb[0].mxu0
        %v7558 = vadd.f32 0.0, %v7557
        %v7559 = vpop.f32.mrb[0].mxu0
        %v7560 = vpop.f32.mrb[0].mxu0
        %v7561 = vadd.f32 0.0, %v7560
        %v7562 = vpop.f32.mrb[0].mxu0
        %7563 = vmatprep.mubr.bf16.mxu0 %v7267
        %7564 = vmatmul.mubr.bf16.gmra.mrb[0].mxu0 %v7139
        %v7565 = vpop.f32.mrb[0].mxu0
        %v7566 = vadd.f32 0.0, %v7565
        %v7567 = vpop.f32.mrb[0].mxu0
        %v7568 = vpop.f32.mrb[0].mxu0
        %v7569 = vadd.f32 0.0, %v7568
        %v7570 = vpop.f32.mrb[0].mxu0
        %7571 = vmatprep.mubr.bf16.mxu0 %v7270
        %7572 = vmatmul.mubr.bf16.gmra.mrb[0].mxu0 %v7142
        %v7573 = vpop.f32.mrb[0].mxu0
        %v7574 = vadd.f32 0.0, %v7573
        %v7575 = vpop.f32.mrb[0].mxu0
        %v7576 = vpop.f32.mrb[0].mxu0
        %v7577 = vadd.f32 0.0, %v7576
        %v7578 = vpop.f32.mrb[0].mxu0
        %7579 = vmatprep.mubr.bf16.mxu0 %v7273
        %7580 = vmatmul.mubr.bf16.gmra.mrb[0].mxu0 %v7145
        %v7581 = vpop.f32.mrb[0].mxu0
        %v7582 = vadd.f32 0.0, %v7581
        %v7583 = vpop.f32.mrb[0].mxu0
        %v7584 = vpop.f32.mrb[0].mxu0
        %v7585 = vadd.f32 0.0, %v7584
        %v7586 = vpop.f32.mrb[0].mxu0
        %7587 = vmatprep.mubr.bf16.mxu0 %v7276
        %7588 = vmatmul.mubr.bf16.gmra.mrb[0].mxu0 %v7148
        %v7589 = vpop.f32.mrb[0].mxu0
        %v7590 = vadd.f32 0.0, %v7589
        %v7591 = vpop.f32.mrb[0].mxu0
        %v7592 = vpop.f32.mrb[0].mxu0
        %v7593 = vadd.f32 0.0, %v7592
        %v7594 = vpop.f32.mrb[0].mxu0
        %7595 = vmatprep.mubr.bf16.mxu0 %v7279
        %7596 = vmatmul.mubr.bf16.gmra.mrb[0].mxu0 %v7151
        %v7597 = vpop.f32.mrb[0].mxu0
        %v7598 = vadd.f32 0.0, %v7597
        %v7599 = vpop.f32.mrb[0].mxu0
        %v7600 = vpop.f32.mrb[0].mxu0
        %v7601 = vadd.f32 0.0, %v7600
        %v7602 = vpop.f32.mrb[0].mxu0
        %7603 = vmatprep.mubr.bf16.mxu0 %v7282
        %7604 = vmatmul.mubr.bf16.gmra.mrb[0].mxu0 %v7154
        %v7605 = vpop.f32.mrb[0].mxu0
        %v7606 = vadd.f32 0.0, %v7605
        %v7607 = vpop.f32.mrb[0].mxu0
        %v7608 = vpop.f32.mrb[0].mxu0
        %v7609 = vadd.f32 0.0, %v7608
        %v7610 = vpop.f32.mrb[0].mxu0
        %7611 = vmatprep.mubr.bf16.mxu0 %v7285
        %7612 = vmatmul.mubr.bf16.gmra.mrb[0].mxu0 %v7157
        %v7613 = vpop.f32.mrb[0].mxu0
        %v7614 = vadd.f32 0.0, %v7613
        %v7615 = vpop.f32.mrb[0].mxu0
        %v7616 = vpop.f32.mrb[0].mxu0
        %v7617 = vadd.f32 0.0, %v7616
        %v7618 = vpop.f32.mrb[0].mxu0
        %7619 = vmatprep.mubr.bf16.mxu0 %v7288
        %7620 = vmatmul.mubr.bf16.gmra.mrb[0].mxu0 %v7160
        %v7621 = vpop.f32.mrb[0].mxu0
        %v7622 = vadd.f32 0.0, %v7621
        %v7623 = vpop.f32.mrb[0].mxu0
        %v7624 = vpop.f32.mrb[0].mxu0
        %v7625 = vadd.f32 0.0, %v7624
        %v7626 = vpop.f32.mrb[0].mxu0
        %7627 = vmatprep.mubr.bf16.mxu0 %v7291
        %7628 = vmatmul.mubr.bf16.gmra.mrb[0].mxu0 %v7163
        %v7629 = vpop.f32.mrb[0].mxu0
        %v7630 = vadd.f32 0.0, %v7629
        %v7631 = vpop.f32.mrb[0].mxu0
        %v7632 = vpop.f32.mrb[0].mxu0
        %v7633 = vadd.f32 0.0, %v7632
        %v7634 = vpop.f32.mrb[0].mxu0
        %7635 = vmatprep.mubr.bf16.mxu0 %v7294
        %7636 = vmatmul.mubr.bf16.gmra.mrb[0].mxu0 %v7166
        %v7637 = vpop.f32.mrb[0].mxu0
        %v7638 = vadd.f32 0.0, %v7637
        %v7639 = vpop.f32.mrb[0].mxu0
        %v7640 = vpop.f32.mrb[0].mxu0
        %v7641 = vadd.f32 0.0, %v7640
        %v7642 = vpop.f32.mrb[0].mxu0
        %7643 = vmatprep.mubr.bf16.mxu0 %v7297
        %7644 = vmatmul.mubr.bf16.gmra.mrb[0].mxu0 %v7169
        %v7645 = vpop.f32.mrb[0].mxu0
        %v7646 = vadd.f32 0.0, %v7645
        %v7647 = vpop.f32.mrb[0].mxu0
        %v7648 = vpop.f32.mrb[0].mxu0
        %v7649 = vadd.f32 0.0, %v7648
        %v7650 = vpop.f32.mrb[0].mxu0
        %7651 = vdwg.mxu0
        %7652 = vmatprep.subr.bf16.mxu0 0
        %7653 = vmatpush1.bf16.msra.mxu0 %v7423
        %7654 = vmatprep.subr.bf16.mxu0 0
        %7655 = vmatpush1.bf16.msra.mxu0 %v7424
        %7656 = vmatprep.subr.bf16.mxu0 0
        %7657 = vmatpush1.bf16.msra.mxu0 0
        %7658 = vmatprep.subr.bf16.mxu0 0
        %7659 = vmatpush1.bf16.msra.mxu0 0
        %7660 = vmatprep.subr.bf16.mxu0 0
        %7661 = vmatpush1.bf16.msra.mxu0 0
        %7662 = vmatprep.subr.bf16.mxu0 0
        %7663 = vmatpush1.bf16.msra.mxu0 0
        %7664 = vmatprep.subr.bf16.mxu0 0
        %7665 = vmatpush1.bf16.msra.mxu0 0
        %7666 = vmatprep.subr.bf16.mxu0 0
        %7667 = vmatpush1.bf16.msra.mxu0 0
        %7668 = vmatprep.subr.bf16.mxu0 0
        %7669 = vmatpush1.bf16.msra.mxu0 0
        %7670 = vmatprep.subr.bf16.mxu0 0
        %7671 = vmatpush1.bf16.msra.mxu0 0
        %7672 = vmatprep.subr.bf16.mxu0 0
        %7673 = vmatpush1.bf16.msra.mxu0 0
        %7674 = vmatprep.subr.bf16.mxu0 0
        %7675 = vmatpush1.bf16.msra.mxu0 0
        %7676 = vmatprep.subr.bf16.mxu0 0
        %7677 = vmatpush1.bf16.msra.mxu0 0
        %7678 = vmatprep.subr.bf16.mxu0 0
        %7679 = vmatpush1.bf16.msra.mxu0 0
        %7680 = vmatprep.subr.bf16.mxu0 0
        %7681 = vmatpush1.bf16.msra.mxu0 0
        %7682 = vmatprep.subr.bf16.mxu0 0
        %7683 = vmatpush1.bf16.msra.mxu0 0
        %7684 = vmatprep.mubr.bf16.mxu0 0
        %7685 = vmatmul.mubr.bf16.gmra.mrb[0].mxu0 %v7444
        %v7686 = vpop.f32.mrb[0].mxu0
        %v7687 = vadd.f32 %v7526, %v7686
        %v7688 = vpop.f32.mrb[0].mxu0
        %v7689 = vpop.f32.mrb[0].mxu0
        %v7690 = vadd.f32 %v7529, %v7689
        %v7691 = vpop.f32.mrb[0].mxu0
        %7692 = vmatprep.mubr.bf16.mxu0 0
        %7693 = vmatmul.mubr.bf16.gmra.mrb[0].mxu0 %v7447
        %v7694 = vpop.f32.mrb[0].mxu0
        %v7695 = vadd.f32 %v7534, %v7694
        %v7696 = vpop.f32.mrb[0].mxu0
        %v7697 = vpop.f32.mrb[0].mxu0
        %v7698 = vadd.f32 %v7537, %v7697
        %v7699 = vpop.f32.mrb[0].mxu0
        %7700 = vmatprep.mubr.bf16.mxu0 0
        %7701 = vmatmul.mubr.bf16.gmra.mrb[0].mxu0 %v7450
        %v7702 = vpop.f32.mrb[0].mxu0
        %v7703 = vadd.f32 %v7542, %v7702
        %v7704 = vpop.f32.mrb[0].mxu0
        %v7705 = vpop.f32.mrb[0].mxu0
        %v7706 = vadd.f32 %v7545, %v7705
        %v7707 = vpop.f32.mrb[0].mxu0
        %7708 = vmatprep.mubr.bf16.mxu0 0
        %7709 = vmatmul.mubr.bf16.gmra.mrb[0].mxu0 %v7453
        %v7710 = vpop.f32.mrb[0].mxu0
        %v7711 = vadd.f32 %v7550, %v7710
        %v7712 = vpop.f32.mrb[0].mxu0
        %v7713 = vpop.f32.mrb[0].mxu0
        %v7714 = vadd.f32 %v7553, %v7713
        %v7715 = vpop.f32.mrb[0].mxu0
        %7716 = vmatprep.mubr.bf16.mxu0 0
        %7717 = vmatmul.mubr.bf16.gmra.mrb[0].mxu0 %v7456
        %v7718 = vpop.f32.mrb[0].mxu0
        %v7719 = vadd.f32 %v7558, %v7718
        %v7720 = vpop.f32.mrb[0].mxu0
        %v7721 = vpop.f32.mrb[0].mxu0
        %v7722 = vadd.f32 %v7561, %v7721
        %v7723 = vpop.f32.mrb[0].mxu0
        %7724 = vmatprep.mubr.bf16.mxu0 0
        %7725 = vmatmul.mubr.bf16.gmra.mrb[0].mxu0 %v7459
        %v7726 = vpop.f32.mrb[0].mxu0
        %v7727 = vadd.f32 %v7566, %v7726
        %v7728 = vpop.f32.mrb[0].mxu0
        %v7729 = vpop.f32.mrb[0].mxu0
        %v7730 = vadd.f32 %v7569, %v7729
        %v7731 = vpop.f32.mrb[0].mxu0
        %7732 = vmatprep.mubr.bf16.mxu0 0
        %7733 = vmatmul.mubr.bf16.gmra.mrb[0].mxu0 %v7462
        %v7734 = vpop.f32.mrb[0].mxu0
        %v7735 = vadd.f32 %v7574, %v7734
        %v7736 = vpop.f32.mrb[0].mxu0
        %v7737 = vpop.f32.mrb[0].mxu0
        %v7738 = vadd.f32 %v7577, %v7737
        %v7739 = vpop.f32.mrb[0].mxu0
        %7740 = vmatprep.mubr.bf16.mxu0 0
        %7741 = vmatmul.mubr.bf16.gmra.mrb[0].mxu0 %v7465
        %v7742 = vpop.f32.mrb[0].mxu0
        %v7743 = vadd.f32 %v7582, %v7742
        %v7744 = vpop.f32.mrb[0].mxu0
        %v7745 = vpop.f32.mrb[0].mxu0
        %v7746 = vadd.f32 %v7585, %v7745
        %v7747 = vpop.f32.mrb[0].mxu0
        %7748 = vmatprep.mubr.bf16.mxu0 0
        %7749 = vmatmul.mubr.bf16.gmra.mrb[0].mxu0 %v7468
        %v7750 = vpop.f32.mrb[0].mxu0
        %v7751 = vadd.f32 %v7590, %v7750
        %v7752 = vpop.f32.mrb[0].mxu0
        %v7753 = vpop.f32.mrb[0].mxu0
        %v7754 = vadd.f32 %v7593, %v7753
        %v7755 = vpop.f32.mrb[0].mxu0
        %7756 = vmatprep.mubr.bf16.mxu0 0
        %7757 = vmatmul.mubr.bf16.gmra.mrb[0].mxu0 %v7471
        %v7758 = vpop.f32.mrb[0].mxu0
        %v7759 = vadd.f32 %v7598, %v7758
        %v7760 = vpop.f32.mrb[0].mxu0
        %v7761 = vpop.f32.mrb[0].mxu0
        %v7762 = vadd.f32 %v7601, %v7761
        %v7763 = vpop.f32.mrb[0].mxu0
        %7764 = vmatprep.mubr.bf16.mxu0 0
        %7765 = vmatmul.mubr.bf16.gmra.mrb[0].mxu0 %v7474
        %v7766 = vpop.f32.mrb[0].mxu0
        %v7767 = vadd.f32 %v7606, %v7766
        %v7768 = vpop.f32.mrb[0].mxu0
        %v7769 = vpop.f32.mrb[0].mxu0
        %v7770 = vadd.f32 %v7609, %v7769
        %v7771 = vpop.f32.mrb[0].mxu0
        %7772 = vmatprep.mubr.bf16.mxu0 0
        %7773 = vmatmul.mubr.bf16.gmra.mrb[0].mxu0 %v7477
        %v7774 = vpop.f32.mrb[0].mxu0
        %v7775 = vadd.f32 %v7614, %v7774
        %v7776 = vpop.f32.mrb[0].mxu0
        %v7777 = vpop.f32.mrb[0].mxu0
        %v7778 = vadd.f32 %v7617, %v7777
        %v7779 = vpop.f32.mrb[0].mxu0
        %7780 = vmatprep.mubr.bf16.mxu0 0
        %7781 = vmatmul.mubr.bf16.gmra.mrb[0].mxu0 %v7480
        %v7782 = vpop.f32.mrb[0].mxu0
        %v7783 = vadd.f32 %v7622, %v7782
        %v7784 = vpop.f32.mrb[0].mxu0
        %v7785 = vpop.f32.mrb[0].mxu0
        %v7786 = vadd.f32 %v7625, %v7785
        %v7787 = vpop.f32.mrb[0].mxu0
        %7788 = vmatprep.mubr.bf16.mxu0 0
        %7789 = vmatmul.mubr.bf16.gmra.mrb[0].mxu0 %v7483
        %v7790 = vpop.f32.mrb[0].mxu0
        %v7791 = vadd.f32 %v7630, %v7790
        %v7792 = vpop.f32.mrb[0].mxu0
        %v7793 = vpop.f32.mrb[0].mxu0
        %v7794 = vadd.f32 %v7633, %v7793
        %v7795 = vpop.f32.mrb[0].mxu0
        %7796 = vmatprep.mubr.bf16.mxu0 0
        %7797 = vmatmul.mubr.bf16.gmra.mrb[0].mxu0 %v7486
        %v7798 = vpop.f32.mrb[0].mxu0
        %v7799 = vadd.f32 %v7638, %v7798
        %v7800 = vpop.f32.mrb[0].mxu0
        %v7801 = vpop.f32.mrb[0].mxu0
        %v7802 = vadd.f32 %v7641, %v7801
        %v7803 = vpop.f32.mrb[0].mxu0
        %7804 = vmatprep.mubr.bf16.mxu0 0
        %7805 = vmatmul.mubr.bf16.gmra.mrb[0].mxu0 %v7489
        %v7806 = vpop.f32.mrb[0].mxu0
        %v7807 = vadd.f32 %v7646, %v7806
        %v7808 = vpop.f32.mrb[0].mxu0
        %v7809 = vpop.f32.mrb[0].mxu0
        %v7810 = vadd.f32 %v7649, %v7809
        %v7811 = vpop.f32.mrb[0].mxu0
        %7812 = vdwg.mxu0
        %v7813 = vsel %vm3410, %v7687, 0.0
        %v7814 = vsel %vm3410, %v7690, 0.0
        %v7815 = vadd.f32 %v7813, %v7814
        %v7816 = vsel %vm3410, %v7695, 0.0
        %v7817 = vadd.f32 %v7815, %v7816
        %v7818 = vsel %vm3410, %v7698, 0.0
        %v7819 = vadd.f32 %v7817, %v7818
        %v7820 = vsel %vm3410, %v7703, 0.0
        %v7821 = vadd.f32 %v7819, %v7820
        %v7822 = vsel %vm3410, %v7706, 0.0
        %v7823 = vadd.f32 %v7821, %v7822
        %v7824 = vsel %vm3410, %v7711, 0.0
        %v7825 = vadd.f32 %v7823, %v7824
        %v7826 = vsel %vm3410, %v7714, 0.0
        %v7827 = vadd.f32 %v7825, %v7826
        %v7828 = vsel %vm3410, %v7719, 0.0
        %v7829 = vadd.f32 %v7827, %v7828
        %v7830 = vsel %vm3410, %v7722, 0.0
        %v7831 = vadd.f32 %v7829, %v7830
        %v7832 = vsel %vm3410, %v7727, 0.0
        %v7833 = vadd.f32 %v7831, %v7832
        %v7834 = vsel %vm3410, %v7730, 0.0
        %v7835 = vadd.f32 %v7833, %v7834
        %v7836 = vsel %vm3410, %v7735, 0.0
        %v7837 = vadd.f32 %v7835, %v7836
        %v7838 = vsel %vm3410, %v7738, 0.0
        %v7839 = vadd.f32 %v7837, %v7838
        %v7840 = vsel %vm3410, %v7743, 0.0
        %v7841 = vadd.f32 %v7839, %v7840
        %v7842 = vsel %vm3410, %v7746, 0.0
        %v7843 = vadd.f32 %v7841, %v7842
        %v7844 = vsel %vm3410, %v7751, 0.0
        %v7845 = vadd.f32 %v7843, %v7844
        %v7846 = vsel %vm3410, %v7754, 0.0
        %v7847 = vadd.f32 %v7845, %v7846
        %v7848 = vsel %vm3410, %v7759, 0.0
        %v7849 = vadd.f32 %v7847, %v7848
        %v7850 = vsel %vm3410, %v7762, 0.0
        %v7851 = vadd.f32 %v7849, %v7850
        %v7852 = vsel %vm3410, %v7767, 0.0
        %v7853 = vadd.f32 %v7851, %v7852
        %v7854 = vsel %vm3410, %v7770, 0.0
        %v7855 = vadd.f32 %v7853, %v7854
        %v7856 = vsel %vm3410, %v7775, 0.0
        %v7857 = vadd.f32 %v7855, %v7856
        %v7858 = vsel %vm3410, %v7778, 0.0
        %v7859 = vadd.f32 %v7857, %v7858
        %v7860 = vsel %vm3410, %v7783, 0.0
        %v7861 = vadd.f32 %v7859, %v7860
        %v7862 = vsel %vm3410, %v7786, 0.0
        %v7863 = vadd.f32 %v7861, %v7862
        %v7864 = vsel %vm3410, %v7791, 0.0
        %v7865 = vadd.f32 %v7863, %v7864
        %v7866 = vsel %vm3410, %v7794, 0.0
        %v7867 = vadd.f32 %v7865, %v7866
        %v7868 = vsel %vm3410, %v7799, 0.0
        %v7869 = vadd.f32 %v7867, %v7868
        %v7870 = vsel %vm3410, %v7802, 0.0
        %v7871 = vadd.f32 %v7869, %v7870
        %v7872 = vsel %vm3410, %v7807, 0.0
        %v7873 = vadd.f32 %v7871, %v7872
        %v7874 = vsel %vm3410, %v7810, 0.0
        %v7875 = vadd.f32 %v7873, %v7874
        %v7876 = vrot.slane %v7875, 4
        %v7877 = vadd.f32 %v7875, %v7876
        %v7878 = vrot.slane %v7877, 2
        %v7879 = vadd.f32 %v7877, %v7878
        %v7880 = vrot.slane %v7879, 1
        %v7881 = vadd.f32 %v7879, %v7880
        %v7882 = vmul.f32 %v7881, %v3730
        %v7883 = vsub.f32 %v7687, %v7882
        %v7884 = vsub.f32 %v7690, %v7882
        %v7885 = vsub.f32 %v7695, %v7882
        %v7886 = vsub.f32 %v7698, %v7882
        %v7887 = vsub.f32 %v7703, %v7882
        %v7888 = vsub.f32 %v7706, %v7882
        %v7889 = vsub.f32 %v7711, %v7882
        %v7890 = vsub.f32 %v7714, %v7882
        %v7891 = vsub.f32 %v7719, %v7882
        %v7892 = vsub.f32 %v7722, %v7882
        %v7893 = vsub.f32 %v7727, %v7882
        %v7894 = vsub.f32 %v7730, %v7882
        %v7895 = vsub.f32 %v7735, %v7882
        %v7896 = vsub.f32 %v7738, %v7882
        %v7897 = vsub.f32 %v7743, %v7882
        %v7898 = vsub.f32 %v7746, %v7882
        %v7899 = vsub.f32 %v7751, %v7882
        %v7900 = vsub.f32 %v7754, %v7882
        %v7901 = vsub.f32 %v7759, %v7882
        %v7902 = vsub.f32 %v7762, %v7882
        %v7903 = vsub.f32 %v7767, %v7882
        %v7904 = vsub.f32 %v7770, %v7882
        %v7905 = vsub.f32 %v7775, %v7882
        %v7906 = vsub.f32 %v7778, %v7882
        %v7907 = vsub.f32 %v7783, %v7882
        %v7908 = vsub.f32 %v7786, %v7882
        %v7909 = vsub.f32 %v7791, %v7882
        %v7910 = vsub.f32 %v7794, %v7882
        %v7911 = vsub.f32 %v7799, %v7882
        %v7912 = vsub.f32 %v7802, %v7882
        %v7913 = vsub.f32 %v7807, %v7882
        %v7914 = vsub.f32 %v7810, %v7882
        %v7915 = vmul.f32 %v7883, %v7883
        %v7916 = vmul.f32 %v7884, %v7884
        %v7917 = vmul.f32 %v7885, %v7885
        %v7918 = vmul.f32 %v7886, %v7886
        %v7919 = vmul.f32 %v7887, %v7887
        %v7920 = vmul.f32 %v7888, %v7888
        %v7921 = vmul.f32 %v7889, %v7889
        %v7922 = vmul.f32 %v7890, %v7890
        %v7923 = vmul.f32 %v7891, %v7891
        %v7924 = vmul.f32 %v7892, %v7892
        %v7925 = vmul.f32 %v7893, %v7893
        %v7926 = vmul.f32 %v7894, %v7894
        %v7927 = vmul.f32 %v7895, %v7895
        %v7928 = vmul.f32 %v7896, %v7896
        %v7929 = vmul.f32 %v7897, %v7897
        %v7930 = vmul.f32 %v7898, %v7898
        %v7931 = vmul.f32 %v7899, %v7899
        %v7932 = vmul.f32 %v7900, %v7900
        %v7933 = vmul.f32 %v7901, %v7901
        %v7934 = vmul.f32 %v7902, %v7902
        %v7935 = vmul.f32 %v7903, %v7903
        %v7936 = vmul.f32 %v7904, %v7904
        %v7937 = vmul.f32 %v7905, %v7905
        %v7938 = vmul.f32 %v7906, %v7906
        %v7939 = vmul.f32 %v7907, %v7907
        %v7940 = vmul.f32 %v7908, %v7908
        %v7941 = vmul.f32 %v7909, %v7909
        %v7942 = vmul.f32 %v7910, %v7910
        %v7943 = vmul.f32 %v7911, %v7911
        %v7944 = vmul.f32 %v7912, %v7912
        %v7945 = vmul.f32 %v7913, %v7913
        %v7946 = vmul.f32 %v7914, %v7914
        %v7947 = vsel %vm3410, %v7915, 0.0
        %v7948 = vsel %vm3410, %v7916, 0.0
        %v7949 = vadd.f32 %v7947, %v7948
        %v7950 = vsel %vm3410, %v7917, 0.0
        %v7951 = vadd.f32 %v7949, %v7950
        %v7952 = vsel %vm3410, %v7918, 0.0
        %v7953 = vadd.f32 %v7951, %v7952
        %v7954 = vsel %vm3410, %v7919, 0.0
        %v7955 = vadd.f32 %v7953, %v7954
        %v7956 = vsel %vm3410, %v7920, 0.0
        %v7957 = vadd.f32 %v7955, %v7956
        %v7958 = vsel %vm3410, %v7921, 0.0
        %v7959 = vadd.f32 %v7957, %v7958
        %v7960 = vsel %vm3410, %v7922, 0.0
        %v7961 = vadd.f32 %v7959, %v7960
        %v7962 = vsel %vm3410, %v7923, 0.0
        %v7963 = vadd.f32 %v7961, %v7962
        %v7964 = vsel %vm3410, %v7924, 0.0
        %v7965 = vadd.f32 %v7963, %v7964
        %v7966 = vsel %vm3410, %v7925, 0.0
        %v7967 = vadd.f32 %v7965, %v7966
        %v7968 = vsel %vm3410, %v7926, 0.0
        %v7969 = vadd.f32 %v7967, %v7968
        %v7970 = vsel %vm3410, %v7927, 0.0
        %v7971 = vadd.f32 %v7969, %v7970
        %v7972 = vsel %vm3410, %v7928, 0.0
        %v7973 = vadd.f32 %v7971, %v7972
        %v7974 = vsel %vm3410, %v7929, 0.0
        %v7975 = vadd.f32 %v7973, %v7974
        %v7976 = vsel %vm3410, %v7930, 0.0
        %v7977 = vadd.f32 %v7975, %v7976
        %v7978 = vsel %vm3410, %v7931, 0.0
        %v7979 = vadd.f32 %v7977, %v7978
        %v7980 = vsel %vm3410, %v7932, 0.0
        %v7981 = vadd.f32 %v7979, %v7980
        %v7982 = vsel %vm3410, %v7933, 0.0
        %v7983 = vadd.f32 %v7981, %v7982
        %v7984 = vsel %vm3410, %v7934, 0.0
        %v7985 = vadd.f32 %v7983, %v7984
        %v7986 = vsel %vm3410, %v7935, 0.0
        %v7987 = vadd.f32 %v7985, %v7986
        %v7988 = vsel %vm3410, %v7936, 0.0
        %v7989 = vadd.f32 %v7987, %v7988
        %v7990 = vsel %vm3410, %v7937, 0.0
        %v7991 = vadd.f32 %v7989, %v7990
        %v7992 = vsel %vm3410, %v7938, 0.0
        %v7993 = vadd.f32 %v7991, %v7992
        %v7994 = vsel %vm3410, %v7939, 0.0
        %v7995 = vadd.f32 %v7993, %v7994
        %v7996 = vsel %vm3410, %v7940, 0.0
        %v7997 = vadd.f32 %v7995, %v7996
        %v7998 = vsel %vm3410, %v7941, 0.0
        %v7999 = vadd.f32 %v7997, %v7998
        %v8000 = vsel %vm3410, %v7942, 0.0
        %v8001 = vadd.f32 %v7999, %v8000
        %v8002 = vsel %vm3410, %v7943, 0.0
        %v8003 = vadd.f32 %v8001, %v8002
        %v8004 = vsel %vm3410, %v7944, 0.0
        %v8005 = vadd.f32 %v8003, %v8004
        %v8006 = vsel %vm3410, %v7945, 0.0
        %v8007 = vadd.f32 %v8005, %v8006
        %v8008 = vsel %vm3410, %v7946, 0.0
        %v8009 = vadd.f32 %v8007, %v8008
        %v8010 = vrot.slane %v8009, 4
        %v8011 = vadd.f32 %v8009, %v8010
        %v8012 = vrot.slane %v8011, 2
        %v8013 = vadd.f32 %v8011, %v8012
        %v8014 = vrot.slane %v8013, 1
        %v8015 = vadd.f32 %v8013, %v8014
        %v8016 = vmul.f32 %v8015, %v3730
        %v8017 = vmax.f32 %v8016, 0.0
        %v8018 = vadd.f32 %v8017, 1e-05
        %v8019 = vrsqrt.pop %v8018
        %v8020 = vmul.f32 %v7883, %v8019
        %v8021 = vmul.f32 %v7884, %v8019
        %v8022 = vmul.f32 %v7885, %v8019
        %v8023 = vmul.f32 %v7886, %v8019
        %v8024 = vmul.f32 %v7887, %v8019
        %v8025 = vmul.f32 %v7888, %v8019
        %v8026 = vmul.f32 %v7889, %v8019
        %v8027 = vmul.f32 %v7890, %v8019
        %v8028 = vmul.f32 %v7891, %v8019
        %v8029 = vmul.f32 %v7892, %v8019
        %v8030 = vmul.f32 %v7893, %v8019
        %v8031 = vmul.f32 %v7894, %v8019
        %v8032 = vmul.f32 %v7895, %v8019
        %v8033 = vmul.f32 %v7896, %v8019
        %v8034 = vmul.f32 %v7897, %v8019
        %v8035 = vmul.f32 %v7898, %v8019
        %v8036 = vmul.f32 %v7899, %v8019
        %v8037 = vmul.f32 %v7900, %v8019
        %v8038 = vmul.f32 %v7901, %v8019
        %v8039 = vmul.f32 %v7902, %v8019
        %v8040 = vmul.f32 %v7903, %v8019
        %v8041 = vmul.f32 %v7904, %v8019
        %v8042 = vmul.f32 %v7905, %v8019
        %v8043 = vmul.f32 %v7906, %v8019
        %v8044 = vmul.f32 %v7907, %v8019
        %v8045 = vmul.f32 %v7908, %v8019
        %v8046 = vmul.f32 %v7909, %v8019
        %v8047 = vmul.f32 %v7910, %v8019
        %v8048 = vmul.f32 %v7911, %v8019
        %v8049 = vmul.f32 %v7912, %v8019
        %v8050 = vmul.f32 %v7913, %v8019
        %v8051 = vmul.f32 %v7914, %v8019
        %v8052 = vld [vmem:[%s5] sm:$0x1]
        %v8054 = vlaneseq
        %v8055 = vshrl.u32 %v8054, 7
        %v8056 = vsub.s32 0, %v8055
        %v8057 = vrot.slane %v8052, %v8056
        %v8059 = vmul.f32 %v8020, %v8057
        %v8060 = vmul.f32 %v8021, %v8057
        %v8061 = vmul.f32 %v8022, %v8057
        %v8062 = vmul.f32 %v8023, %v8057
        %v8063 = vmul.f32 %v8024, %v8057
        %v8064 = vmul.f32 %v8025, %v8057
        %v8065 = vmul.f32 %v8026, %v8057
        %v8066 = vmul.f32 %v8027, %v8057
        %v8067 = vmul.f32 %v8028, %v8057
        %v8068 = vmul.f32 %v8029, %v8057
        %v8069 = vmul.f32 %v8030, %v8057
        %v8070 = vmul.f32 %v8031, %v8057
        %v8071 = vmul.f32 %v8032, %v8057
        %v8072 = vmul.f32 %v8033, %v8057
        %v8073 = vmul.f32 %v8034, %v8057
        %v8074 = vmul.f32 %v8035, %v8057
        %v8075 = vmul.f32 %v8036, %v8057
        %v8076 = vmul.f32 %v8037, %v8057
        %v8077 = vmul.f32 %v8038, %v8057
        %v8078 = vmul.f32 %v8039, %v8057
        %v8079 = vmul.f32 %v8040, %v8057
        %v8080 = vmul.f32 %v8041, %v8057
        %v8081 = vmul.f32 %v8042, %v8057
        %v8082 = vmul.f32 %v8043, %v8057
        %v8083 = vmul.f32 %v8044, %v8057
        %v8084 = vmul.f32 %v8045, %v8057
        %v8085 = vmul.f32 %v8046, %v8057
        %v8086 = vmul.f32 %v8047, %v8057
        %v8087 = vmul.f32 %v8048, %v8057
        %v8088 = vmul.f32 %v8049, %v8057
        %v8089 = vmul.f32 %v8050, %v8057
        %v8090 = vmul.f32 %v8051, %v8057
        %v8091 = vld [vmem:[%s6] sm:$0x1]
        %v8093 = vlaneseq
        %v8094 = vshrl.u32 %v8093, 7
        %v8095 = vsub.s32 0, %v8094
        %v8096 = vrot.slane %v8091, %v8095
        %v8098 = vadd.f32 %v8059, %v8096
        %v8099 = vadd.f32 %v8060, %v8096
        %v8100 = vadd.f32 %v8061, %v8096
        %v8101 = vadd.f32 %v8062, %v8096
        %v8102 = vadd.f32 %v8063, %v8096
        %v8103 = vadd.f32 %v8064, %v8096
        %v8104 = vadd.f32 %v8065, %v8096
        %v8105 = vadd.f32 %v8066, %v8096
        %v8106 = vadd.f32 %v8067, %v8096
        %v8107 = vadd.f32 %v8068, %v8096
        %v8108 = vadd.f32 %v8069, %v8096
        %v8109 = vadd.f32 %v8070, %v8096
        %v8110 = vadd.f32 %v8071, %v8096
        %v8111 = vadd.f32 %v8072, %v8096
        %v8112 = vadd.f32 %v8073, %v8096
        %v8113 = vadd.f32 %v8074, %v8096
        %v8114 = vadd.f32 %v8075, %v8096
        %v8115 = vadd.f32 %v8076, %v8096
        %v8116 = vadd.f32 %v8077, %v8096
        %v8117 = vadd.f32 %v8078, %v8096
        %v8118 = vadd.f32 %v8079, %v8096
        %v8119 = vadd.f32 %v8080, %v8096
        %v8120 = vadd.f32 %v8081, %v8096
        %v8121 = vadd.f32 %v8082, %v8096
        %v8122 = vadd.f32 %v8083, %v8096
        %v8123 = vadd.f32 %v8084, %v8096
        %v8124 = vadd.f32 %v8085, %v8096
        %v8125 = vadd.f32 %v8086, %v8096
        %v8126 = vadd.f32 %v8087, %v8096
        %v8127 = vadd.f32 %v8088, %v8096
        %v8128 = vadd.f32 %v8089, %v8096
        %v8129 = vadd.f32 %v8090, %v8096
        %v8130 = vmax.f32 %v8098, 0.0
        %v8131 = vmax.f32 %v8099, 0.0
        %v8132 = vmax.f32 %v8100, 0.0
        %v8133 = vmax.f32 %v8101, 0.0
        %v8134 = vmax.f32 %v8102, 0.0
        %v8135 = vmax.f32 %v8103, 0.0
        %v8136 = vmax.f32 %v8104, 0.0
        %v8137 = vmax.f32 %v8105, 0.0
        %v8138 = vmax.f32 %v8106, 0.0
        %v8139 = vmax.f32 %v8107, 0.0
        %v8140 = vmax.f32 %v8108, 0.0
        %v8141 = vmax.f32 %v8109, 0.0
        %v8142 = vmax.f32 %v8110, 0.0
        %v8143 = vmax.f32 %v8111, 0.0
        %v8144 = vmax.f32 %v8112, 0.0
        %v8145 = vmax.f32 %v8113, 0.0
        %v8146 = vmax.f32 %v8114, 0.0
        %v8147 = vmax.f32 %v8115, 0.0
        %v8148 = vmax.f32 %v8116, 0.0
        %v8149 = vmax.f32 %v8117, 0.0
        %v8150 = vmax.f32 %v8118, 0.0
        %v8151 = vmax.f32 %v8119, 0.0
        %v8152 = vmax.f32 %v8120, 0.0
        %v8153 = vmax.f32 %v8121, 0.0
        %v8154 = vmax.f32 %v8122, 0.0
        %v8155 = vmax.f32 %v8123, 0.0
        %v8156 = vmax.f32 %v8124, 0.0
        %v8157 = vmax.f32 %v8125, 0.0
        %v8158 = vmax.f32 %v8126, 0.0
        %v8159 = vmax.f32 %v8127, 0.0
        %v8160 = vmax.f32 %v8128, 0.0
        %v8161 = vmax.f32 %v8129, 0.0
        %v8162 = vpack.c.bf16 %v8131, %v8130
        %v8163 = vpack.c.bf16 %v8133, %v8132
        %v8164 = vpack.c.bf16 %v8135, %v8134
        %v8165 = vpack.c.bf16 %v8137, %v8136
        %v8166 = vpack.c.bf16 %v8139, %v8138
        %v8167 = vpack.c.bf16 %v8141, %v8140
        %v8168 = vpack.c.bf16 %v8143, %v8142
        %v8169 = vpack.c.bf16 %v8145, %v8144
        %v8170 = vpack.c.bf16 %v8147, %v8146
        %v8171 = vpack.c.bf16 %v8149, %v8148
        %v8172 = vpack.c.bf16 %v8151, %v8150
        %v8173 = vpack.c.bf16 %v8153, %v8152
        %v8174 = vpack.c.bf16 %v8155, %v8154
        %v8175 = vpack.c.bf16 %v8157, %v8156
        %v8176 = vpack.c.bf16 %v8159, %v8158
        %v8177 = vpack.c.bf16 %v8161, %v8160
        %v8194 = vunpack.c.l.b16 %v8162
        %v8195 = vunpack.c.h.b16 %v8162
        %v8196 = vunpack.c.l.b16 %v8163
        %v8197 = vunpack.c.h.b16 %v8163
        %v8198 = vunpack.c.l.b16 %v8164
        %v8199 = vunpack.c.h.b16 %v8164
        %v8200 = vunpack.c.l.b16 %v8165
        %v8201 = vunpack.c.h.b16 %v8165
        %v8202 = vunpack.c.l.b16 %v8166
        %v8203 = vunpack.c.h.b16 %v8166
        %v8204 = vunpack.c.l.b16 %v8167
        %v8205 = vunpack.c.h.b16 %v8167
        %v8206 = vunpack.c.l.b16 %v8168
        %v8207 = vunpack.c.h.b16 %v8168
        %v8208 = vunpack.c.l.b16 %v8169
        %v8209 = vunpack.c.h.b16 %v8169
        %v8210 = vunpack.c.l.b16 %v8170
        %v8211 = vunpack.c.h.b16 %v8170
        %v8212 = vunpack.c.l.b16 %v8171
        %v8213 = vunpack.c.h.b16 %v8171
        %v8214 = vunpack.c.l.b16 %v8172
        %v8215 = vunpack.c.h.b16 %v8172
        %v8216 = vunpack.c.l.b16 %v8173
        %v8217 = vunpack.c.h.b16 %v8173
        %v8218 = vunpack.c.l.b16 %v8174
        %v8219 = vunpack.c.h.b16 %v8174
        %v8220 = vunpack.c.l.b16 %v8175
        %v8221 = vunpack.c.h.b16 %v8175
        %v8222 = vunpack.c.l.b16 %v8176
        %v8223 = vunpack.c.h.b16 %v8176
        %v8224 = vunpack.c.l.b16 %v8177
        %v8225 = vunpack.c.h.b16 %v8177
        %v8226 = vpack.c.b16 %v8194, %v8194
        %v8227 = vpack.c.b16 %v8195, %v8195
        %v8228 = vpack.c.b16 %v8196, %v8196
        %v8229 = vpack.c.b16 %v8197, %v8197
        %v8230 = vpack.c.b16 %v8198, %v8198
        %v8231 = vpack.c.b16 %v8199, %v8199
        %v8232 = vpack.c.b16 %v8200, %v8200
        %v8233 = vpack.c.b16 %v8201, %v8201
        %v8234 = vpack.c.b16 %v8202, %v8202
        %v8235 = vpack.c.b16 %v8203, %v8203
        %v8236 = vpack.c.b16 %v8204, %v8204
        %v8237 = vpack.c.b16 %v8205, %v8205
        %v8238 = vpack.c.b16 %v8206, %v8206
        %v8239 = vpack.c.b16 %v8207, %v8207
        %v8240 = vpack.c.b16 %v8208, %v8208
        %v8241 = vpack.c.b16 %v8209, %v8209
        %v8242 = vpack.c.b16 %v8210, %v8210
        %v8243 = vpack.c.b16 %v8211, %v8211
        %v8244 = vpack.c.b16 %v8212, %v8212
        %v8245 = vpack.c.b16 %v8213, %v8213
        %v8246 = vpack.c.b16 %v8214, %v8214
        %v8247 = vpack.c.b16 %v8215, %v8215
        %v8248 = vpack.c.b16 %v8216, %v8216
        %v8249 = vpack.c.b16 %v8217, %v8217
        %v8250 = vpack.c.b16 %v8218, %v8218
        %v8251 = vpack.c.b16 %v8219, %v8219
        %v8252 = vpack.c.b16 %v8220, %v8220
        %v8253 = vpack.c.b16 %v8221, %v8221
        %v8254 = vpack.c.b16 %v8222, %v8222
        %v8255 = vpack.c.b16 %v8223, %v8223
        %v8256 = vpack.c.b16 %v8224, %v8224
        %v8257 = vpack.c.b16 %v8225, %v8225
        %v8259 = vshrl.u32 %v8226, 16
        %v8261 = vrot.slane %v8259, 7
        %v8262 = vshll.u32 %v8226, 16
        %v8264 = vor.u32 %v8261, %v8262
        %v8265 = vrot.slane %v8261, 4
        %v8267 = vshrl.u32 %v8227, 16
        %v8269 = vrot.slane %v8267, 7
        %v8270 = vshll.u32 %v8227, 16
        %v8272 = vor.u32 %v8269, %v8270
        %v8273 = vsel %vm4108, %v8265, %v8272
        %v8274 = vrot.slane %v8269, 4
        %v8276 = vshrl.u32 %v8228, 16
        %v8278 = vrot.slane %v8276, 7
        %v8279 = vshll.u32 %v8228, 16
        %v8281 = vor.u32 %v8278, %v8279
        %v8282 = vrot.slane %v8278, 4
        %v8284 = vshrl.u32 %v8229, 16
        %v8286 = vrot.slane %v8284, 7
        %v8287 = vshll.u32 %v8229, 16
        %v8289 = vor.u32 %v8286, %v8287
        %v8290 = vsel %vm4108, %v8282, %v8289
        %v8291 = vrot.slane %v8286, 4
        %v8293 = vshrl.u32 %v8230, 16
        %v8295 = vrot.slane %v8293, 7
        %v8296 = vshll.u32 %v8230, 16
        %v8298 = vor.u32 %v8295, %v8296
        %v8299 = vrot.slane %v8295, 4
        %v8301 = vshrl.u32 %v8231, 16
        %v8303 = vrot.slane %v8301, 7
        %v8304 = vshll.u32 %v8231, 16
        %v8306 = vor.u32 %v8303, %v8304
        %v8307 = vsel %vm4108, %v8299, %v8306
        %v8308 = vrot.slane %v8303, 4
        %v8310 = vshrl.u32 %v8232, 16
        %v8312 = vrot.slane %v8310, 7
        %v8313 = vshll.u32 %v8232, 16
        %v8315 = vor.u32 %v8312, %v8313
        %v8316 = vrot.slane %v8312, 4
        %v8318 = vshrl.u32 %v8233, 16
        %v8320 = vrot.slane %v8318, 7
        %v8321 = vshll.u32 %v8233, 16
        %v8323 = vor.u32 %v8320, %v8321
        %v8324 = vsel %vm4108, %v8316, %v8323
        %v8325 = vrot.slane %v8320, 4
        %v8327 = vshrl.u32 %v8234, 16
        %v8329 = vrot.slane %v8327, 7
        %v8330 = vshll.u32 %v8234, 16
        %v8332 = vor.u32 %v8329, %v8330
        %v8333 = vrot.slane %v8329, 4
        %v8335 = vshrl.u32 %v8235, 16
        %v8337 = vrot.slane %v8335, 7
        %v8338 = vshll.u32 %v8235, 16
        %v8340 = vor.u32 %v8337, %v8338
        %v8341 = vsel %vm4108, %v8333, %v8340
        %v8342 = vrot.slane %v8337, 4
        %v8344 = vshrl.u32 %v8236, 16
        %v8346 = vrot.slane %v8344, 7
        %v8347 = vshll.u32 %v8236, 16
        %v8349 = vor.u32 %v8346, %v8347
        %v8350 = vrot.slane %v8346, 4
        %v8352 = vshrl.u32 %v8237, 16
        %v8354 = vrot.slane %v8352, 7
        %v8355 = vshll.u32 %v8237, 16
        %v8357 = vor.u32 %v8354, %v8355
        %v8358 = vsel %vm4108, %v8350, %v8357
        %v8359 = vrot.slane %v8354, 4
        %v8361 = vshrl.u32 %v8238, 16
        %v8363 = vrot.slane %v8361, 7
        %v8364 = vshll.u32 %v8238, 16
        %v8366 = vor.u32 %v8363, %v8364
        %v8367 = vrot.slane %v8363, 4
        %v8369 = vshrl.u32 %v8239, 16
        %v8371 = vrot.slane %v8369, 7
        %v8372 = vshll.u32 %v8239, 16
        %v8374 = vor.u32 %v8371, %v8372
        %v8375 = vsel %vm4108, %v8367, %v8374
        %v8376 = vrot.slane %v8371, 4
        %v8378 = vshrl.u32 %v8240, 16
        %v8380 = vrot.slane %v8378, 7
        %v8381 = vshll.u32 %v8240, 16
        %v8383 = vor.u32 %v8380, %v8381
        %v8384 = vrot.slane %v8380, 4
        %v8386 = vshrl.u32 %v8241, 16
        %v8388 = vrot.slane %v8386, 7
        %v8389 = vshll.u32 %v8241, 16
        %v8391 = vor.u32 %v8388, %v8389
        %v8392 = vsel %vm4108, %v8384, %v8391
        %v8393 = vrot.slane %v8388, 4
        %v8395 = vshrl.u32 %v8242, 16
        %v8397 = vrot.slane %v8395, 7
        %v8398 = vshll.u32 %v8242, 16
        %v8400 = vor.u32 %v8397, %v8398
        %v8401 = vrot.slane %v8397, 4
        %v8403 = vshrl.u32 %v8243, 16
        %v8405 = vrot.slane %v8403, 7
        %v8406 = vshll.u32 %v8243, 16
        %v8408 = vor.u32 %v8405, %v8406
        %v8409 = vsel %vm4108, %v8401, %v8408
        %v8410 = vrot.slane %v8405, 4
        %v8412 = vshrl.u32 %v8244, 16
        %v8414 = vrot.slane %v8412, 7
        %v8415 = vshll.u32 %v8244, 16
        %v8417 = vor.u32 %v8414, %v8415
        %v8418 = vrot.slane %v8414, 4
        %v8420 = vshrl.u32 %v8245, 16
        %v8422 = vrot.slane %v8420, 7
        %v8423 = vshll.u32 %v8245, 16
        %v8425 = vor.u32 %v8422, %v8423
        %v8426 = vsel %vm4108, %v8418, %v8425
        %v8427 = vrot.slane %v8422, 4
        %v8429 = vshrl.u32 %v8246, 16
        %v8431 = vrot.slane %v8429, 7
        %v8432 = vshll.u32 %v8246, 16
        %v8434 = vor.u32 %v8431, %v8432
        %v8435 = vrot.slane %v8431, 4
        %v8437 = vshrl.u32 %v8247, 16
        %v8439 = vrot.slane %v8437, 7
        %v8440 = vshll.u32 %v8247, 16
        %v8442 = vor.u32 %v8439, %v8440
        %v8443 = vsel %vm4108, %v8435, %v8442
        %v8444 = vrot.slane %v8439, 4
        %v8446 = vshrl.u32 %v8248, 16
        %v8448 = vrot.slane %v8446, 7
        %v8449 = vshll.u32 %v8248, 16
        %v8451 = vor.u32 %v8448, %v8449
        %v8452 = vrot.slane %v8448, 4
        %v8454 = vshrl.u32 %v8249, 16
        %v8456 = vrot.slane %v8454, 7
        %v8457 = vshll.u32 %v8249, 16
        %v8459 = vor.u32 %v8456, %v8457
        %v8460 = vsel %vm4108, %v8452, %v8459
        %v8461 = vrot.slane %v8456, 4
        %v8463 = vshrl.u32 %v8250, 16
        %v8465 = vrot.slane %v8463, 7
        %v8466 = vshll.u32 %v8250, 16
        %v8468 = vor.u32 %v8465, %v8466
        %v8469 = vrot.slane %v8465, 4
        %v8471 = vshrl.u32 %v8251, 16
        %v8473 = vrot.slane %v8471, 7
        %v8474 = vshll.u32 %v8251, 16
        %v8476 = vor.u32 %v8473, %v8474
        %v8477 = vsel %vm4108, %v8469, %v8476
        %v8478 = vrot.slane %v8473, 4
        %v8480 = vshrl.u32 %v8252, 16
        %v8482 = vrot.slane %v8480, 7
        %v8483 = vshll.u32 %v8252, 16
        %v8485 = vor.u32 %v8482, %v8483
        %v8486 = vrot.slane %v8482, 4
        %v8488 = vshrl.u32 %v8253, 16
        %v8490 = vrot.slane %v8488, 7
        %v8491 = vshll.u32 %v8253, 16
        %v8493 = vor.u32 %v8490, %v8491
        %v8494 = vsel %vm4108, %v8486, %v8493
        %v8495 = vrot.slane %v8490, 4
        %v8497 = vshrl.u32 %v8254, 16
        %v8499 = vrot.slane %v8497, 7
        %v8500 = vshll.u32 %v8254, 16
        %v8502 = vor.u32 %v8499, %v8500
        %v8503 = vrot.slane %v8499, 4
        %v8505 = vshrl.u32 %v8255, 16
        %v8507 = vrot.slane %v8505, 7
        %v8508 = vshll.u32 %v8255, 16
        %v8510 = vor.u32 %v8507, %v8508
        %v8511 = vsel %vm4108, %v8503, %v8510
        %v8512 = vrot.slane %v8507, 4
        %v8514 = vshrl.u32 %v8256, 16
        %v8516 = vrot.slane %v8514, 7
        %v8517 = vshll.u32 %v8256, 16
        %v8519 = vor.u32 %v8516, %v8517
        %v8520 = vrot.slane %v8516, 4
        %v8522 = vshrl.u32 %v8257, 16
        %v8524 = vrot.slane %v8522, 7
        %v8525 = vshll.u32 %v8257, 16
        %v8527 = vor.u32 %v8524, %v8525
        %v8528 = vsel %vm4108, %v8520, %v8527
        %v8529 = vrot.slane %v8524, 4
        %s8578 = scalar_lea.vmem [#allocation3], 12
        %v8579 = vld [vmem:[%s8578] sm:$0xf]
        %v8580 = vsel %vm4431, %v8264, %v8579
        %8581 = vst [vmem:[%s8578] sm:$0xf] %v8580
        %8582 = vst.msk [vmem:[%s8578 + $0x4] sm:$0xf] %vm358, %v8273
        %v8583 = vld [vmem:[%s8578 + $0x8] sm:$0x1]
        %v8584 = vsel %vm369, %v8274, %v8583
        %8585 = vst [vmem:[%s8578 + $0x8] sm:$0x1] %v8584
        %v8586 = vld [vmem:[%s8578 + $0xc] sm:$0xf]
        %v8587 = vsel %vm4431, %v8281, %v8586
        %8588 = vst [vmem:[%s8578 + $0xc] sm:$0xf] %v8587
        %8589 = vst.msk [vmem:[%s8578 + $0x10] sm:$0xf] %vm358, %v8290
        %v8590 = vld [vmem:[%s8578 + $0x14] sm:$0x1]
        %v8591 = vsel %vm369, %v8291, %v8590
        %8592 = vst [vmem:[%s8578 + $0x14] sm:$0x1] %v8591
        %v8593 = vld [vmem:[%s8578 + $0x18] sm:$0xf]
        %v8594 = vsel %vm4431, %v8298, %v8593
        %8595 = vst [vmem:[%s8578 + $0x18] sm:$0xf] %v8594
        %8596 = vst.msk [vmem:[%s8578 + $0x1c] sm:$0xf] %vm358, %v8307
        %v8597 = vld [vmem:[%s8578 + $0x20] sm:$0x1]
        %v8598 = vsel %vm369, %v8308, %v8597
        %8599 = vst [vmem:[%s8578 + $0x20] sm:$0x1] %v8598
        %v8600 = vld [vmem:[%s8578 + $0x24] sm:$0xf]
        %v8601 = vsel %vm4431, %v8315, %v8600
        %8602 = vst [vmem:[%s8578 + $0x24] sm:$0xf] %v8601
        %8603 = vst.msk [vmem:[%s8578 + $0x28] sm:$0xf] %vm358, %v8324
        %v8604 = vld [vmem:[%s8578 + $0x2c] sm:$0x1]
        %v8605 = vsel %vm369, %v8325, %v8604
        %8606 = vst [vmem:[%s8578 + $0x2c] sm:$0x1] %v8605
        %v8607 = vld [vmem:[%s8578 + $0x30] sm:$0xf]
        %v8608 = vsel %vm4431, %v8332, %v8607
        %8609 = vst [vmem:[%s8578 + $0x30] sm:$0xf] %v8608
        %8610 = vst.msk [vmem:[%s8578 + $0x34] sm:$0xf] %vm358, %v8341
        %v8611 = vld [vmem:[%s8578 + $0x38] sm:$0x1]
        %v8612 = vsel %vm369, %v8342, %v8611
        %8613 = vst [vmem:[%s8578 + $0x38] sm:$0x1] %v8612
        %v8614 = vld [vmem:[%s8578 + $0x3c] sm:$0xf]
        %v8615 = vsel %vm4431, %v8349, %v8614
        %8616 = vst [vmem:[%s8578 + $0x3c] sm:$0xf] %v8615
        %8617 = vst.msk [vmem:[%s8578 + $0x40] sm:$0xf] %vm358, %v8358
        %v8618 = vld [vmem:[%s8578 + $0x44] sm:$0x1]
        %v8619 = vsel %vm369, %v8359, %v8618
        %8620 = vst [vmem:[%s8578 + $0x44] sm:$0x1] %v8619
        %v8621 = vld [vmem:[%s8578 + $0x48] sm:$0xf]
        %v8622 = vsel %vm4431, %v8366, %v8621
        %8623 = vst [vmem:[%s8578 + $0x48] sm:$0xf] %v8622
        %8624 = vst.msk [vmem:[%s8578 + $0x4c] sm:$0xf] %vm358, %v8375
        %v8625 = vld [vmem:[%s8578 + $0x50] sm:$0x1]
        %v8626 = vsel %vm369, %v8376, %v8625
        %8627 = vst [vmem:[%s8578 + $0x50] sm:$0x1] %v8626
        %v8628 = vld [vmem:[%s8578 + $0x54] sm:$0xf]
        %v8629 = vsel %vm4431, %v8383, %v8628
        %8630 = vst [vmem:[%s8578 + $0x54] sm:$0xf] %v8629
        %8631 = vst.msk [vmem:[%s8578 + $0x58] sm:$0xf] %vm358, %v8392
        %v8632 = vld [vmem:[%s8578 + $0x5c] sm:$0x1]
        %v8633 = vsel %vm369, %v8393, %v8632
        %8634 = vst [vmem:[%s8578 + $0x5c] sm:$0x1] %v8633
        %v8635 = vld [vmem:[%s8578 + $0x60] sm:$0xf]
        %v8636 = vsel %vm4431, %v8400, %v8635
        %8637 = vst [vmem:[%s8578 + $0x60] sm:$0xf] %v8636
        %8638 = vst.msk [vmem:[%s8578 + $0x64] sm:$0xf] %vm358, %v8409
        %v8639 = vld [vmem:[%s8578 + $0x68] sm:$0x1]
        %v8640 = vsel %vm369, %v8410, %v8639
        %8641 = vst [vmem:[%s8578 + $0x68] sm:$0x1] %v8640
        %v8642 = vld [vmem:[%s8578 + $0x6c] sm:$0xf]
        %v8643 = vsel %vm4431, %v8417, %v8642
        %8644 = vst [vmem:[%s8578 + $0x6c] sm:$0xf] %v8643
        %8645 = vst.msk [vmem:[%s8578 + $0x70] sm:$0xf] %vm358, %v8426
        %v8646 = vld [vmem:[%s8578 + $0x74] sm:$0x1]
        %v8647 = vsel %vm369, %v8427, %v8646
        %8648 = vst [vmem:[%s8578 + $0x74] sm:$0x1] %v8647
        %v8649 = vld [vmem:[%s8578 + $0x78] sm:$0xf]
        %v8650 = vsel %vm4431, %v8434, %v8649
        %8651 = vst [vmem:[%s8578 + $0x78] sm:$0xf] %v8650
        %8652 = vst.msk [vmem:[%s8578 + $0x7c] sm:$0xf] %vm358, %v8443
        %v8653 = vld [vmem:[%s8578 + $0x80] sm:$0x1]
        %v8654 = vsel %vm369, %v8444, %v8653
        %8655 = vst [vmem:[%s8578 + $0x80] sm:$0x1] %v8654
        %v8656 = vld [vmem:[%s8578 + $0x84] sm:$0xf]
        %v8657 = vsel %vm4431, %v8451, %v8656
        %8658 = vst [vmem:[%s8578 + $0x84] sm:$0xf] %v8657
        %8659 = vst.msk [vmem:[%s8578 + $0x88] sm:$0xf] %vm358, %v8460
        %v8660 = vld [vmem:[%s8578 + $0x8c] sm:$0x1]
        %v8661 = vsel %vm369, %v8461, %v8660
        %8662 = vst [vmem:[%s8578 + $0x8c] sm:$0x1] %v8661
        %v8663 = vld [vmem:[%s8578 + $0x90] sm:$0xf]
        %v8664 = vsel %vm4431, %v8468, %v8663
        %8665 = vst [vmem:[%s8578 + $0x90] sm:$0xf] %v8664
        %8666 = vst.msk [vmem:[%s8578 + $0x94] sm:$0xf] %vm358, %v8477
        %v8667 = vld [vmem:[%s8578 + $0x98] sm:$0x1]
        %v8668 = vsel %vm369, %v8478, %v8667
        %8669 = vst [vmem:[%s8578 + $0x98] sm:$0x1] %v8668
        %v8670 = vld [vmem:[%s8578 + $0x9c] sm:$0xf]
        %v8671 = vsel %vm4431, %v8485, %v8670
        %8672 = vst [vmem:[%s8578 + $0x9c] sm:$0xf] %v8671
        %8673 = vst.msk [vmem:[%s8578 + $0xa0] sm:$0xf] %vm358, %v8494
        %v8674 = vld [vmem:[%s8578 + $0xa4] sm:$0x1]
        %v8675 = vsel %vm369, %v8495, %v8674
        %8676 = vst [vmem:[%s8578 + $0xa4] sm:$0x1] %v8675
        %v8677 = vld [vmem:[%s8578 + $0xa8] sm:$0xf]
        %v8678 = vsel %vm4431, %v8502, %v8677
        %8679 = vst [vmem:[%s8578 + $0xa8] sm:$0xf] %v8678
        %8680 = vst.msk [vmem:[%s8578 + $0xac] sm:$0xf] %vm358, %v8511
        %v8681 = vld [vmem:[%s8578 + $0xb0] sm:$0x1]
        %v8682 = vsel %vm369, %v8512, %v8681
        %8683 = vst [vmem:[%s8578 + $0xb0] sm:$0x1] %v8682
        %v8684 = vld [vmem:[%s8578 + $0xb4] sm:$0xf]
        %v8685 = vsel %vm4431, %v8519, %v8684
        %8686 = vst [vmem:[%s8578 + $0xb4] sm:$0xf] %v8685
        %8687 = vst.msk [vmem:[%s8578 + $0xb8] sm:$0xf] %vm358, %v8528
        %v8688 = vld [vmem:[%s8578 + $0xbc] sm:$0x1]
        %v8689 = vsel %vm369, %v8529, %v8688
        %8690 = vst [vmem:[%s8578 + $0xbc] sm:$0x1] %v8689
        %v8691 = vld [vmem:[#allocation3] sm:$0xf]
        %v8692 = vld [vmem:[#allocation3 + $0x4] sm:$0xf]
        %v8693 = vld [vmem:[#allocation3 + $0xc] sm:$0xf]
        %v8694 = vld [vmem:[#allocation3 + $0x10] sm:$0xf]
        %v8695 = vld [vmem:[#allocation3 + $0x18] sm:$0xf]
        %v8696 = vld [vmem:[#allocation3 + $0x1c] sm:$0xf]
        %v8697 = vld [vmem:[#allocation3 + $0x24] sm:$0xf]
        %v8698 = vld [vmem:[#allocation3 + $0x28] sm:$0xf]
        %v8699 = vld [vmem:[#allocation3 + $0x30] sm:$0xf]
        %v8700 = vld [vmem:[#allocation3 + $0x34] sm:$0xf]
        %v8701 = vld [vmem:[#allocation3 + $0x3c] sm:$0xf]
        %v8702 = vld [vmem:[#allocation3 + $0x40] sm:$0xf]
        %v8703 = vld [vmem:[#allocation3 + $0x48] sm:$0xf]
        %v8704 = vld [vmem:[#allocation3 + $0x4c] sm:$0xf]
        %v8705 = vld [vmem:[#allocation3 + $0x54] sm:$0xf]
        %v8706 = vld [vmem:[#allocation3 + $0x58] sm:$0xf]
        %v8707 = vld [vmem:[#allocation3 + $0x60] sm:$0xf]
        %v8708 = vld [vmem:[#allocation3 + $0x64] sm:$0xf]
        %v8709 = vld [vmem:[#allocation3 + $0x6c] sm:$0xf]
        %v8710 = vld [vmem:[#allocation3 + $0x70] sm:$0xf]
        %v8711 = vld [vmem:[#allocation3 + $0x78] sm:$0xf]
        %v8712 = vld [vmem:[#allocation3 + $0x7c] sm:$0xf]
        %v8713 = vld [vmem:[#allocation3 + $0x84] sm:$0xf]
        %v8714 = vld [vmem:[#allocation3 + $0x88] sm:$0xf]
        %v8715 = vld [vmem:[#allocation3 + $0x90] sm:$0xf]
        %v8716 = vld [vmem:[#allocation3 + $0x94] sm:$0xf]
        %v8717 = vld [vmem:[#allocation3 + $0x9c] sm:$0xf]
        %v8718 = vld [vmem:[#allocation3 + $0xa0] sm:$0xf]
        %v8719 = vld [vmem:[#allocation3 + $0xa8] sm:$0xf]
        %v8720 = vld [vmem:[#allocation3 + $0xac] sm:$0xf]
        %v8721 = vld [vmem:[#allocation3 + $0xb4] sm:$0xf]
        %v8722 = vld [vmem:[#allocation3 + $0xb8] sm:$0xf]
        %v8723 = vld [vmem:[#allocation3 + $0x8] sm:$0x1]
        %v8724 = vld [vmem:[#allocation3 + $0x14] sm:$0x1]
        %v8725 = vld [vmem:[#allocation3 + $0x20] sm:$0x1]
        %v8726 = vld [vmem:[#allocation3 + $0x2c] sm:$0x1]
        %v8727 = vld [vmem:[#allocation3 + $0x38] sm:$0x1]
        %v8728 = vld [vmem:[#allocation3 + $0x44] sm:$0x1]
        %v8729 = vld [vmem:[#allocation3 + $0x50] sm:$0x1]
        %v8730 = vld [vmem:[#allocation3 + $0x5c] sm:$0x1]
        %v8731 = vld [vmem:[#allocation3 + $0x68] sm:$0x1]
        %v8732 = vld [vmem:[#allocation3 + $0x74] sm:$0x1]
        %v8733 = vld [vmem:[#allocation3 + $0x80] sm:$0x1]
        %v8734 = vld [vmem:[#allocation3 + $0x8c] sm:$0x1]
        %v8735 = vld [vmem:[#allocation3 + $0x98] sm:$0x1]
        %v8736 = vld [vmem:[#allocation3 + $0xa4] sm:$0x1]
        %v8737 = vld [vmem:[#allocation3 + $0xb0] sm:$0x1]
        %v8738 = vld [vmem:[#allocation3 + $0xbc] sm:$0x1]
        %v8740 = vshrl.u32 %v8691, 16
        %v8742 = vrot.slane %v8740, 4
        %v8743 = vshll.u32 %v8691, 16
        %v8745 = vrot.slane %v8743, 5
        %v8746 = vor.u32 %v8742, %v8745
        %v8747 = vrot.slane %v8746, 4
        %v8749 = vshll.u32 %v8692, 16
        %v8751 = vrot.slane %v8749, 5
        %v8752 = vsel %vm645, %v8747, %v8751
        %v8753 = vshrl.u32 %v8692, 16
        %v8755 = vrot.slane %v8753, 4
        %v8756 = vor.u32 %v8755, %v8751
        %v8757 = vrot.slane %v8756, 4
        %v8759 = vshll.u32 %v8723, 16
        %v8761 = vrot.slane %v8759, 5
        %v8762 = vsel %vm645, %v8757, %v8761
        %v8764 = vshrl.u32 %v8693, 16
        %v8766 = vrot.slane %v8764, 4
        %v8767 = vshll.u32 %v8693, 16
        %v8769 = vrot.slane %v8767, 5
        %v8770 = vor.u32 %v8766, %v8769
        %v8771 = vrot.slane %v8770, 4
        %v8773 = vshll.u32 %v8694, 16
        %v8775 = vrot.slane %v8773, 5
        %v8776 = vsel %vm645, %v8771, %v8775
        %v8777 = vshrl.u32 %v8694, 16
        %v8779 = vrot.slane %v8777, 4
        %v8780 = vor.u32 %v8779, %v8775
        %v8781 = vrot.slane %v8780, 4
        %v8783 = vshll.u32 %v8724, 16
        %v8785 = vrot.slane %v8783, 5
        %v8786 = vsel %vm645, %v8781, %v8785
        %v8788 = vshrl.u32 %v8695, 16
        %v8790 = vrot.slane %v8788, 4
        %v8791 = vshll.u32 %v8695, 16
        %v8793 = vrot.slane %v8791, 5
        %v8794 = vor.u32 %v8790, %v8793
        %v8795 = vrot.slane %v8794, 4
        %v8797 = vshll.u32 %v8696, 16
        %v8799 = vrot.slane %v8797, 5
        %v8800 = vsel %vm645, %v8795, %v8799
        %v8801 = vshrl.u32 %v8696, 16
        %v8803 = vrot.slane %v8801, 4
        %v8804 = vor.u32 %v8803, %v8799
        %v8805 = vrot.slane %v8804, 4
        %v8807 = vshll.u32 %v8725, 16
        %v8809 = vrot.slane %v8807, 5
        %v8810 = vsel %vm645, %v8805, %v8809
        %v8812 = vshrl.u32 %v8697, 16
        %v8814 = vrot.slane %v8812, 4
        %v8815 = vshll.u32 %v8697, 16
        %v8817 = vrot.slane %v8815, 5
        %v8818 = vor.u32 %v8814, %v8817
        %v8819 = vrot.slane %v8818, 4
        %v8821 = vshll.u32 %v8698, 16
        %v8823 = vrot.slane %v8821, 5
        %v8824 = vsel %vm645, %v8819, %v8823
        %v8825 = vshrl.u32 %v8698, 16
        %v8827 = vrot.slane %v8825, 4
        %v8828 = vor.u32 %v8827, %v8823
        %v8829 = vrot.slane %v8828, 4
        %v8831 = vshll.u32 %v8726, 16
        %v8833 = vrot.slane %v8831, 5
        %v8834 = vsel %vm645, %v8829, %v8833
        %v8836 = vshrl.u32 %v8699, 16
        %v8838 = vrot.slane %v8836, 4
        %v8839 = vshll.u32 %v8699, 16
        %v8841 = vrot.slane %v8839, 5
        %v8842 = vor.u32 %v8838, %v8841
        %v8843 = vrot.slane %v8842, 4
        %v8845 = vshll.u32 %v8700, 16
        %v8847 = vrot.slane %v8845, 5
        %v8848 = vsel %vm645, %v8843, %v8847
        %v8849 = vshrl.u32 %v8700, 16
        %v8851 = vrot.slane %v8849, 4
        %v8852 = vor.u32 %v8851, %v8847
        %v8853 = vrot.slane %v8852, 4
        %v8855 = vshll.u32 %v8727, 16
        %v8857 = vrot.slane %v8855, 5
        %v8858 = vsel %vm645, %v8853, %v8857
        %v8860 = vshrl.u32 %v8701, 16
        %v8862 = vrot.slane %v8860, 4
        %v8863 = vshll.u32 %v8701, 16
        %v8865 = vrot.slane %v8863, 5
        %v8866 = vor.u32 %v8862, %v8865
        %v8867 = vrot.slane %v8866, 4
        %v8869 = vshll.u32 %v8702, 16
        %v8871 = vrot.slane %v8869, 5
        %v8872 = vsel %vm645, %v8867, %v8871
        %v8873 = vshrl.u32 %v8702, 16
        %v8875 = vrot.slane %v8873, 4
        %v8876 = vor.u32 %v8875, %v8871
        %v8877 = vrot.slane %v8876, 4
        %v8879 = vshll.u32 %v8728, 16
        %v8881 = vrot.slane %v8879, 5
        %v8882 = vsel %vm645, %v8877, %v8881
        %v8884 = vshrl.u32 %v8703, 16
        %v8886 = vrot.slane %v8884, 4
        %v8887 = vshll.u32 %v8703, 16
        %v8889 = vrot.slane %v8887, 5
        %v8890 = vor.u32 %v8886, %v8889
        %v8891 = vrot.slane %v8890, 4
        %v8893 = vshll.u32 %v8704, 16
        %v8895 = vrot.slane %v8893, 5
        %v8896 = vsel %vm645, %v8891, %v8895
        %v8897 = vshrl.u32 %v8704, 16
        %v8899 = vrot.slane %v8897, 4
        %v8900 = vor.u32 %v8899, %v8895
        %v8901 = vrot.slane %v8900, 4
        %v8903 = vshll.u32 %v8729, 16
        %v8905 = vrot.slane %v8903, 5
        %v8906 = vsel %vm645, %v8901, %v8905
        %v8908 = vshrl.u32 %v8705, 16
        %v8910 = vrot.slane %v8908, 4
        %v8911 = vshll.u32 %v8705, 16
        %v8913 = vrot.slane %v8911, 5
        %v8914 = vor.u32 %v8910, %v8913
        %v8915 = vrot.slane %v8914, 4
        %v8917 = vshll.u32 %v8706, 16
        %v8919 = vrot.slane %v8917, 5
        %v8920 = vsel %vm645, %v8915, %v8919
        %v8921 = vshrl.u32 %v8706, 16
        %v8923 = vrot.slane %v8921, 4
        %v8924 = vor.u32 %v8923, %v8919
        %v8925 = vrot.slane %v8924, 4
        %v8927 = vshll.u32 %v8730, 16
        %v8929 = vrot.slane %v8927, 5
        %v8930 = vsel %vm645, %v8925, %v8929
        %v8932 = vshrl.u32 %v8707, 16
        %v8934 = vrot.slane %v8932, 4
        %v8935 = vshll.u32 %v8707, 16
        %v8937 = vrot.slane %v8935, 5
        %v8938 = vor.u32 %v8934, %v8937
        %v8939 = vrot.slane %v8938, 4
        %v8941 = vshll.u32 %v8708, 16
        %v8943 = vrot.slane %v8941, 5
        %v8944 = vsel %vm645, %v8939, %v8943
        %v8945 = vshrl.u32 %v8708, 16
        %v8947 = vrot.slane %v8945, 4
        %v8948 = vor.u32 %v8947, %v8943
        %v8949 = vrot.slane %v8948, 4
        %v8951 = vshll.u32 %v8731, 16
        %v8953 = vrot.slane %v8951, 5
        %v8954 = vsel %vm645, %v8949, %v8953
        %v8956 = vshrl.u32 %v8709, 16
        %v8958 = vrot.slane %v8956, 4
        %v8959 = vshll.u32 %v8709, 16
        %v8961 = vrot.slane %v8959, 5
        %v8962 = vor.u32 %v8958, %v8961
        %v8963 = vrot.slane %v8962, 4
        %v8965 = vshll.u32 %v8710, 16
        %v8967 = vrot.slane %v8965, 5
        %v8968 = vsel %vm645, %v8963, %v8967
        %v8969 = vshrl.u32 %v8710, 16
        %v8971 = vrot.slane %v8969, 4
        %v8972 = vor.u32 %v8971, %v8967
        %v8973 = vrot.slane %v8972, 4
        %v8975 = vshll.u32 %v8732, 16
        %v8977 = vrot.slane %v8975, 5
        %v8978 = vsel %vm645, %v8973, %v8977
        %v8980 = vshrl.u32 %v8711, 16
        %v8982 = vrot.slane %v8980, 4
        %v8983 = vshll.u32 %v8711, 16
        %v8985 = vrot.slane %v8983, 5
        %v8986 = vor.u32 %v8982, %v8985
        %v8987 = vrot.slane %v8986, 4
        %v8989 = vshll.u32 %v8712, 16
        %v8991 = vrot.slane %v8989, 5
        %v8992 = vsel %vm645, %v8987, %v8991
        %v8993 = vshrl.u32 %v8712, 16
        %v8995 = vrot.slane %v8993, 4
        %v8996 = vor.u32 %v8995, %v8991
        %v8997 = vrot.slane %v8996, 4
        %v8999 = vshll.u32 %v8733, 16
        %v9001 = vrot.slane %v8999, 5
        %v9002 = vsel %vm645, %v8997, %v9001
        %v9004 = vshrl.u32 %v8713, 16
        %v9006 = vrot.slane %v9004, 4
        %v9007 = vshll.u32 %v8713, 16
        %v9009 = vrot.slane %v9007, 5
        %v9010 = vor.u32 %v9006, %v9009
        %v9011 = vrot.slane %v9010, 4
        %v9013 = vshll.u32 %v8714, 16
        %v9015 = vrot.slane %v9013, 5
        %v9016 = vsel %vm645, %v9011, %v9015
        %v9017 = vshrl.u32 %v8714, 16
        %v9019 = vrot.slane %v9017, 4
        %v9020 = vor.u32 %v9019, %v9015
        %v9021 = vrot.slane %v9020, 4
        %v9023 = vshll.u32 %v8734, 16
        %v9025 = vrot.slane %v9023, 5
        %v9026 = vsel %vm645, %v9021, %v9025
        %v9028 = vshrl.u32 %v8715, 16
        %v9030 = vrot.slane %v9028, 4
        %v9031 = vshll.u32 %v8715, 16
        %v9033 = vrot.slane %v9031, 5
        %v9034 = vor.u32 %v9030, %v9033
        %v9035 = vrot.slane %v9034, 4
        %v9037 = vshll.u32 %v8716, 16
        %v9039 = vrot.slane %v9037, 5
        %v9040 = vsel %vm645, %v9035, %v9039
        %v9041 = vshrl.u32 %v8716, 16
        %v9043 = vrot.slane %v9041, 4
        %v9044 = vor.u32 %v9043, %v9039
        %v9045 = vrot.slane %v9044, 4
        %v9047 = vshll.u32 %v8735, 16
        %v9049 = vrot.slane %v9047, 5
        %v9050 = vsel %vm645, %v9045, %v9049
        %v9052 = vshrl.u32 %v8717, 16
        %v9054 = vrot.slane %v9052, 4
        %v9055 = vshll.u32 %v8717, 16
        %v9057 = vrot.slane %v9055, 5
        %v9058 = vor.u32 %v9054, %v9057
        %v9059 = vrot.slane %v9058, 4
        %v9061 = vshll.u32 %v8718, 16
        %v9063 = vrot.slane %v9061, 5
        %v9064 = vsel %vm645, %v9059, %v9063
        %v9065 = vshrl.u32 %v8718, 16
        %v9067 = vrot.slane %v9065, 4
        %v9068 = vor.u32 %v9067, %v9063
        %v9069 = vrot.slane %v9068, 4
        %v9071 = vshll.u32 %v8736, 16
        %v9073 = vrot.slane %v9071, 5
        %v9074 = vsel %vm645, %v9069, %v9073
        %v9076 = vshrl.u32 %v8719, 16
        %v9078 = vrot.slane %v9076, 4
        %v9079 = vshll.u32 %v8719, 16
        %v9081 = vrot.slane %v9079, 5
        %v9082 = vor.u32 %v9078, %v9081
        %v9083 = vrot.slane %v9082, 4
        %v9085 = vshll.u32 %v8720, 16
        %v9087 = vrot.slane %v9085, 5
        %v9088 = vsel %vm645, %v9083, %v9087
        %v9089 = vshrl.u32 %v8720, 16
        %v9091 = vrot.slane %v9089, 4
        %v9092 = vor.u32 %v9091, %v9087
        %v9093 = vrot.slane %v9092, 4
        %v9095 = vshll.u32 %v8737, 16
        %v9097 = vrot.slane %v9095, 5
        %v9098 = vsel %vm645, %v9093, %v9097
        %v9100 = vshrl.u32 %v8721, 16
        %v9102 = vrot.slane %v9100, 4
        %v9103 = vshll.u32 %v8721, 16
        %v9105 = vrot.slane %v9103, 5
        %v9106 = vor.u32 %v9102, %v9105
        %v9107 = vrot.slane %v9106, 4
        %v9109 = vshll.u32 %v8722, 16
        %v9111 = vrot.slane %v9109, 5
        %v9112 = vsel %vm645, %v9107, %v9111
        %v9113 = vshrl.u32 %v8722, 16
        %v9115 = vrot.slane %v9113, 4
        %v9116 = vor.u32 %v9115, %v9111
        %v9117 = vrot.slane %v9116, 4
        %v9119 = vshll.u32 %v8738, 16
        %v9121 = vrot.slane %v9119, 5
        %v9122 = vsel %vm645, %v9117, %v9121
        %v9123 = vld [vmem:[#allocation3] sm:$0xe]
        %v9124 = vld [vmem:[#allocation3 + $0xc] sm:$0xe]
        %v9125 = vld [vmem:[#allocation3 + $0x18] sm:$0xe]
        %v9126 = vld [vmem:[#allocation3 + $0x24] sm:$0xe]
        %v9127 = vld [vmem:[#allocation3 + $0x30] sm:$0xe]
        %v9128 = vld [vmem:[#allocation3 + $0x3c] sm:$0xe]
        %v9129 = vld [vmem:[#allocation3 + $0x48] sm:$0xe]
        %v9130 = vld [vmem:[#allocation3 + $0x54] sm:$0xe]
        %v9131 = vld [vmem:[#allocation3 + $0x60] sm:$0xe]
        %v9132 = vld [vmem:[#allocation3 + $0x6c] sm:$0xe]
        %v9133 = vld [vmem:[#allocation3 + $0x78] sm:$0xe]
        %v9134 = vld [vmem:[#allocation3 + $0x84] sm:$0xe]
        %v9135 = vld [vmem:[#allocation3 + $0x90] sm:$0xe]
        %v9136 = vld [vmem:[#allocation3 + $0x9c] sm:$0xe]
        %v9137 = vld [vmem:[#allocation3 + $0xa8] sm:$0xe]
        %v9138 = vld [vmem:[#allocation3 + $0xb4] sm:$0xe]
        %v9187 = vrot.slane %v9123, 5
        %v9188 = vrot.slane %v9187, 4
        %v9189 = vrot.slane %v8692, 5
        %v9190 = vsel %vm1096, %v9188, %v9189
        %v9191 = vrot.slane %v9189, 4
        %v9192 = vrot.slane %v8723, 5
        %v9193 = vsel %vm1096, %v9191, %v9192
        %v9194 = vrot.slane %v9124, 5
        %v9195 = vrot.slane %v9194, 4
        %v9196 = vrot.slane %v8694, 5
        %v9197 = vsel %vm1096, %v9195, %v9196
        %v9198 = vrot.slane %v9196, 4
        %v9199 = vrot.slane %v8724, 5
        %v9200 = vsel %vm1096, %v9198, %v9199
        %v9201 = vrot.slane %v9125, 5
        %v9202 = vrot.slane %v9201, 4
        %v9203 = vrot.slane %v8696, 5
        %v9204 = vsel %vm1096, %v9202, %v9203
        %v9205 = vrot.slane %v9203, 4
        %v9206 = vrot.slane %v8725, 5
        %v9207 = vsel %vm1096, %v9205, %v9206
        %v9208 = vrot.slane %v9126, 5
        %v9209 = vrot.slane %v9208, 4
        %v9210 = vrot.slane %v8698, 5
        %v9211 = vsel %vm1096, %v9209, %v9210
        %v9212 = vrot.slane %v9210, 4
        %v9213 = vrot.slane %v8726, 5
        %v9214 = vsel %vm1096, %v9212, %v9213
        %v9215 = vrot.slane %v9127, 5
        %v9216 = vrot.slane %v9215, 4
        %v9217 = vrot.slane %v8700, 5
        %v9218 = vsel %vm1096, %v9216, %v9217
        %v9219 = vrot.slane %v9217, 4
        %v9220 = vrot.slane %v8727, 5
        %v9221 = vsel %vm1096, %v9219, %v9220
        %v9222 = vrot.slane %v9128, 5
        %v9223 = vrot.slane %v9222, 4
        %v9224 = vrot.slane %v8702, 5
        %v9225 = vsel %vm1096, %v9223, %v9224
        %v9226 = vrot.slane %v9224, 4
        %v9227 = vrot.slane %v8728, 5
        %v9228 = vsel %vm1096, %v9226, %v9227
        %v9229 = vrot.slane %v9129, 5
        %v9230 = vrot.slane %v9229, 4
        %v9231 = vrot.slane %v8704, 5
        %v9232 = vsel %vm1096, %v9230, %v9231
        %v9233 = vrot.slane %v9231, 4
        %v9234 = vrot.slane %v8729, 5
        %v9235 = vsel %vm1096, %v9233, %v9234
        %v9236 = vrot.slane %v9130, 5
        %v9237 = vrot.slane %v9236, 4
        %v9238 = vrot.slane %v8706, 5
        %v9239 = vsel %vm1096, %v9237, %v9238
        %v9240 = vrot.slane %v9238, 4
        %v9241 = vrot.slane %v8730, 5
        %v9242 = vsel %vm1096, %v9240, %v9241
        %v9243 = vrot.slane %v9131, 5
        %v9244 = vrot.slane %v9243, 4
        %v9245 = vrot.slane %v8708, 5
        %v9246 = vsel %vm1096, %v9244, %v9245
        %v9247 = vrot.slane %v9245, 4
        %v9248 = vrot.slane %v8731, 5
        %v9249 = vsel %vm1096, %v9247, %v9248
        %v9250 = vrot.slane %v9132, 5
        %v9251 = vrot.slane %v9250, 4
        %v9252 = vrot.slane %v8710, 5
        %v9253 = vsel %vm1096, %v9251, %v9252
        %v9254 = vrot.slane %v9252, 4
        %v9255 = vrot.slane %v8732, 5
        %v9256 = vsel %vm1096, %v9254, %v9255
        %v9257 = vrot.slane %v9133, 5
        %v9258 = vrot.slane %v9257, 4
        %v9259 = vrot.slane %v8712, 5
        %v9260 = vsel %vm1096, %v9258, %v9259
        %v9261 = vrot.slane %v9259, 4
        %v9262 = vrot.slane %v8733, 5
        %v9263 = vsel %vm1096, %v9261, %v9262
        %v9264 = vrot.slane %v9134, 5
        %v9265 = vrot.slane %v9264, 4
        %v9266 = vrot.slane %v8714, 5
        %v9267 = vsel %vm1096, %v9265, %v9266
        %v9268 = vrot.slane %v9266, 4
        %v9269 = vrot.slane %v8734, 5
        %v9270 = vsel %vm1096, %v9268, %v9269
        %v9271 = vrot.slane %v9135, 5
        %v9272 = vrot.slane %v9271, 4
        %v9273 = vrot.slane %v8716, 5
        %v9274 = vsel %vm1096, %v9272, %v9273
        %v9275 = vrot.slane %v9273, 4
        %v9276 = vrot.slane %v8735, 5
        %v9277 = vsel %vm1096, %v9275, %v9276
        %v9278 = vrot.slane %v9136, 5
        %v9279 = vrot.slane %v9278, 4
        %v9280 = vrot.slane %v8718, 5
        %v9281 = vsel %vm1096, %v9279, %v9280
        %v9282 = vrot.slane %v9280, 4
        %v9283 = vrot.slane %v8736, 5
        %v9284 = vsel %vm1096, %v9282, %v9283
        %v9285 = vrot.slane %v9137, 5
        %v9286 = vrot.slane %v9285, 4
        %v9287 = vrot.slane %v8720, 5
        %v9288 = vsel %vm1096, %v9286, %v9287
        %v9289 = vrot.slane %v9287, 4
        %v9290 = vrot.slane %v8737, 5
        %v9291 = vsel %vm1096, %v9289, %v9290
        %v9292 = vrot.slane %v9138, 5
        %v9293 = vrot.slane %v9292, 4
        %v9294 = vrot.slane %v8722, 5
        %v9295 = vsel %vm1096, %v9293, %v9294
        %v9296 = vrot.slane %v9294, 4
        %v9297 = vrot.slane %v8738, 5
        %v9298 = vsel %vm1096, %v9296, %v9297
        %v9299 = vld [vmem:[%s8578] sm:$0xf]
        %v9300 = vld [vmem:[%s8578 + $0x4] sm:$0xf]
        %v9301 = vld [vmem:[%s8578 + $0xc] sm:$0xf]
        %v9302 = vld [vmem:[%s8578 + $0x10] sm:$0xf]
        %v9303 = vld [vmem:[%s8578 + $0x18] sm:$0xf]
        %v9304 = vld [vmem:[%s8578 + $0x1c] sm:$0xf]
        %v9305 = vld [vmem:[%s8578 + $0x24] sm:$0xf]
        %v9306 = vld [vmem:[%s8578 + $0x28] sm:$0xf]
        %v9307 = vld [vmem:[%s8578 + $0x30] sm:$0xf]
        %v9308 = vld [vmem:[%s8578 + $0x34] sm:$0xf]
        %v9309 = vld [vmem:[%s8578 + $0x3c] sm:$0xf]
        %v9310 = vld [vmem:[%s8578 + $0x40] sm:$0xf]
        %v9311 = vld [vmem:[%s8578 + $0x48] sm:$0xf]
        %v9312 = vld [vmem:[%s8578 + $0x4c] sm:$0xf]
        %v9313 = vld [vmem:[%s8578 + $0x54] sm:$0xf]
        %v9314 = vld [vmem:[%s8578 + $0x58] sm:$0xf]
        %v9315 = vld [vmem:[%s8578 + $0x60] sm:$0xf]
        %v9316 = vld [vmem:[%s8578 + $0x64] sm:$0xf]
        %v9317 = vld [vmem:[%s8578 + $0x6c] sm:$0xf]
        %v9318 = vld [vmem:[%s8578 + $0x70] sm:$0xf]
        %v9319 = vld [vmem:[%s8578 + $0x78] sm:$0xf]
        %v9320 = vld [vmem:[%s8578 + $0x7c] sm:$0xf]
        %v9321 = vld [vmem:[%s8578 + $0x84] sm:$0xf]
        %v9322 = vld [vmem:[%s8578 + $0x88] sm:$0xf]
        %v9323 = vld [vmem:[%s8578 + $0x90] sm:$0xf]
        %v9324 = vld [vmem:[%s8578 + $0x94] sm:$0xf]
        %v9325 = vld [vmem:[%s8578 + $0x9c] sm:$0xf]
        %v9326 = vld [vmem:[%s8578 + $0xa0] sm:$0xf]
        %v9327 = vld [vmem:[%s8578 + $0xa8] sm:$0xf]
        %v9328 = vld [vmem:[%s8578 + $0xac] sm:$0xf]
        %v9329 = vld [vmem:[%s8578 + $0xb4] sm:$0xf]
        %v9330 = vld [vmem:[%s8578 + $0xb8] sm:$0xf]
        %v9331 = vld [vmem:[%s8578 + $0x8] sm:$0x1]
        %v9332 = vld [vmem:[%s8578 + $0x14] sm:$0x1]
        %v9333 = vld [vmem:[%s8578 + $0x20] sm:$0x1]
        %v9334 = vld [vmem:[%s8578 + $0x2c] sm:$0x1]
        %v9335 = vld [vmem:[%s8578 + $0x38] sm:$0x1]
        %v9336 = vld [vmem:[%s8578 + $0x44] sm:$0x1]
        %v9337 = vld [vmem:[%s8578 + $0x50] sm:$0x1]
        %v9338 = vld [vmem:[%s8578 + $0x5c] sm:$0x1]
        %v9339 = vld [vmem:[%s8578 + $0x68] sm:$0x1]
        %v9340 = vld [vmem:[%s8578 + $0x74] sm:$0x1]
        %v9341 = vld [vmem:[%s8578 + $0x80] sm:$0x1]
        %v9342 = vld [vmem:[%s8578 + $0x8c] sm:$0x1]
        %v9343 = vld [vmem:[%s8578 + $0x98] sm:$0x1]
        %v9344 = vld [vmem:[%s8578 + $0xa4] sm:$0x1]
        %v9345 = vld [vmem:[%s8578 + $0xb0] sm:$0x1]
        %v9346 = vld [vmem:[%s8578 + $0xbc] sm:$0x1]
        %v9348 = vshrl.u32 %v9299, 16
        %v9350 = vrot.slane %v9348, 4
        %v9351 = vshll.u32 %v9299, 16
        %v9353 = vrot.slane %v9351, 5
        %v9354 = vor.u32 %v9350, %v9353
        %v9355 = vrot.slane %v9354, 4
        %v9357 = vshll.u32 %v9300, 16
        %v9359 = vrot.slane %v9357, 5
        %v9360 = vsel %vm645, %v9355, %v9359
        %v9361 = vshrl.u32 %v9300, 16
        %v9363 = vrot.slane %v9361, 4
        %v9364 = vor.u32 %v9363, %v9359
        %v9365 = vrot.slane %v9364, 4
        %v9367 = vshll.u32 %v9331, 16
        %v9369 = vrot.slane %v9367, 5
        %v9370 = vsel %vm645, %v9365, %v9369
        %v9372 = vshrl.u32 %v9301, 16
        %v9374 = vrot.slane %v9372, 4
        %v9375 = vshll.u32 %v9301, 16
        %v9377 = vrot.slane %v9375, 5
        %v9378 = vor.u32 %v9374, %v9377
        %v9379 = vrot.slane %v9378, 4
        %v9381 = vshll.u32 %v9302, 16
        %v9383 = vrot.slane %v9381, 5
        %v9384 = vsel %vm645, %v9379, %v9383
        %v9385 = vshrl.u32 %v9302, 16
        %v9387 = vrot.slane %v9385, 4
        %v9388 = vor.u32 %v9387, %v9383
        %v9389 = vrot.slane %v9388, 4
        %v9391 = vshll.u32 %v9332, 16
        %v9393 = vrot.slane %v9391, 5
        %v9394 = vsel %vm645, %v9389, %v9393
        %v9396 = vshrl.u32 %v9303, 16
        %v9398 = vrot.slane %v9396, 4
        %v9399 = vshll.u32 %v9303, 16
        %v9401 = vrot.slane %v9399, 5
        %v9402 = vor.u32 %v9398, %v9401
        %v9403 = vrot.slane %v9402, 4
        %v9405 = vshll.u32 %v9304, 16
        %v9407 = vrot.slane %v9405, 5
        %v9408 = vsel %vm645, %v9403, %v9407
        %v9409 = vshrl.u32 %v9304, 16
        %v9411 = vrot.slane %v9409, 4
        %v9412 = vor.u32 %v9411, %v9407
        %v9413 = vrot.slane %v9412, 4
        %v9415 = vshll.u32 %v9333, 16
        %v9417 = vrot.slane %v9415, 5
        %v9418 = vsel %vm645, %v9413, %v9417
        %v9420 = vshrl.u32 %v9305, 16
        %v9422 = vrot.slane %v9420, 4
        %v9423 = vshll.u32 %v9305, 16
        %v9425 = vrot.slane %v9423, 5
        %v9426 = vor.u32 %v9422, %v9425
        %v9427 = vrot.slane %v9426, 4
        %v9429 = vshll.u32 %v9306, 16
        %v9431 = vrot.slane %v9429, 5
        %v9432 = vsel %vm645, %v9427, %v9431
        %v9433 = vshrl.u32 %v9306, 16
        %v9435 = vrot.slane %v9433, 4
        %v9436 = vor.u32 %v9435, %v9431
        %v9437 = vrot.slane %v9436, 4
        %v9439 = vshll.u32 %v9334, 16
        %v9441 = vrot.slane %v9439, 5
        %v9442 = vsel %vm645, %v9437, %v9441
        %v9444 = vshrl.u32 %v9307, 16
        %v9446 = vrot.slane %v9444, 4
        %v9447 = vshll.u32 %v9307, 16
        %v9449 = vrot.slane %v9447, 5
        %v9450 = vor.u32 %v9446, %v9449
        %v9451 = vrot.slane %v9450, 4
        %v9453 = vshll.u32 %v9308, 16
        %v9455 = vrot.slane %v9453, 5
        %v9456 = vsel %vm645, %v9451, %v9455
        %v9457 = vshrl.u32 %v9308, 16
        %v9459 = vrot.slane %v9457, 4
        %v9460 = vor.u32 %v9459, %v9455
        %v9461 = vrot.slane %v9460, 4
        %v9463 = vshll.u32 %v9335, 16
        %v9465 = vrot.slane %v9463, 5
        %v9466 = vsel %vm645, %v9461, %v9465
        %v9468 = vshrl.u32 %v9309, 16
        %v9470 = vrot.slane %v9468, 4
        %v9471 = vshll.u32 %v9309, 16
        %v9473 = vrot.slane %v9471, 5
        %v9474 = vor.u32 %v9470, %v9473
        %v9475 = vrot.slane %v9474, 4
        %v9477 = vshll.u32 %v9310, 16
        %v9479 = vrot.slane %v9477, 5
        %v9480 = vsel %vm645, %v9475, %v9479
        %v9481 = vshrl.u32 %v9310, 16
        %v9483 = vrot.slane %v9481, 4
        %v9484 = vor.u32 %v9483, %v9479
        %v9485 = vrot.slane %v9484, 4
        %v9487 = vshll.u32 %v9336, 16
        %v9489 = vrot.slane %v9487, 5
        %v9490 = vsel %vm645, %v9485, %v9489
        %v9492 = vshrl.u32 %v9311, 16
        %v9494 = vrot.slane %v9492, 4
        %v9495 = vshll.u32 %v9311, 16
        %v9497 = vrot.slane %v9495, 5
        %v9498 = vor.u32 %v9494, %v9497
        %v9499 = vrot.slane %v9498, 4
        %v9501 = vshll.u32 %v9312, 16
        %v9503 = vrot.slane %v9501, 5
        %v9504 = vsel %vm645, %v9499, %v9503
        %v9505 = vshrl.u32 %v9312, 16
        %v9507 = vrot.slane %v9505, 4
        %v9508 = vor.u32 %v9507, %v9503
        %v9509 = vrot.slane %v9508, 4
        %v9511 = vshll.u32 %v9337, 16
        %v9513 = vrot.slane %v9511, 5
        %v9514 = vsel %vm645, %v9509, %v9513
        %v9516 = vshrl.u32 %v9313, 16
        %v9518 = vrot.slane %v9516, 4
        %v9519 = vshll.u32 %v9313, 16
        %v9521 = vrot.slane %v9519, 5
        %v9522 = vor.u32 %v9518, %v9521
        %v9523 = vrot.slane %v9522, 4
        %v9525 = vshll.u32 %v9314, 16
        %v9527 = vrot.slane %v9525, 5
        %v9528 = vsel %vm645, %v9523, %v9527
        %v9529 = vshrl.u32 %v9314, 16
        %v9531 = vrot.slane %v9529, 4
        %v9532 = vor.u32 %v9531, %v9527
        %v9533 = vrot.slane %v9532, 4
        %v9535 = vshll.u32 %v9338, 16
        %v9537 = vrot.slane %v9535, 5
        %v9538 = vsel %vm645, %v9533, %v9537
        %v9540 = vshrl.u32 %v9315, 16
        %v9542 = vrot.slane %v9540, 4
        %v9543 = vshll.u32 %v9315, 16
        %v9545 = vrot.slane %v9543, 5
        %v9546 = vor.u32 %v9542, %v9545
        %v9547 = vrot.slane %v9546, 4
        %v9549 = vshll.u32 %v9316, 16
        %v9551 = vrot.slane %v9549, 5
        %v9552 = vsel %vm645, %v9547, %v9551
        %v9553 = vshrl.u32 %v9316, 16
        %v9555 = vrot.slane %v9553, 4
        %v9556 = vor.u32 %v9555, %v9551
        %v9557 = vrot.slane %v9556, 4
        %v9559 = vshll.u32 %v9339, 16
        %v9561 = vrot.slane %v9559, 5
        %v9562 = vsel %vm645, %v9557, %v9561
        %v9564 = vshrl.u32 %v9317, 16
        %v9566 = vrot.slane %v9564, 4
        %v9567 = vshll.u32 %v9317, 16
        %v9569 = vrot.slane %v9567, 5
        %v9570 = vor.u32 %v9566, %v9569
        %v9571 = vrot.slane %v9570, 4
        %v9573 = vshll.u32 %v9318, 16
        %v9575 = vrot.slane %v9573, 5
        %v9576 = vsel %vm645, %v9571, %v9575
        %v9577 = vshrl.u32 %v9318, 16
        %v9579 = vrot.slane %v9577, 4
        %v9580 = vor.u32 %v9579, %v9575
        %v9581 = vrot.slane %v9580, 4
        %v9583 = vshll.u32 %v9340, 16
        %v9585 = vrot.slane %v9583, 5
        %v9586 = vsel %vm645, %v9581, %v9585
        %v9588 = vshrl.u32 %v9319, 16
        %v9590 = vrot.slane %v9588, 4
        %v9591 = vshll.u32 %v9319, 16
        %v9593 = vrot.slane %v9591, 5
        %v9594 = vor.u32 %v9590, %v9593
        %v9595 = vrot.slane %v9594, 4
        %v9597 = vshll.u32 %v9320, 16
        %v9599 = vrot.slane %v9597, 5
        %v9600 = vsel %vm645, %v9595, %v9599
        %v9601 = vshrl.u32 %v9320, 16
        %v9603 = vrot.slane %v9601, 4
        %v9604 = vor.u32 %v9603, %v9599
        %v9605 = vrot.slane %v9604, 4
        %v9607 = vshll.u32 %v9341, 16
        %v9609 = vrot.slane %v9607, 5
        %v9610 = vsel %vm645, %v9605, %v9609
        %v9612 = vshrl.u32 %v9321, 16
        %v9614 = vrot.slane %v9612, 4
        %v9615 = vshll.u32 %v9321, 16
        %v9617 = vrot.slane %v9615, 5
        %v9618 = vor.u32 %v9614, %v9617
        %v9619 = vrot.slane %v9618, 4
        %v9621 = vshll.u32 %v9322, 16
        %v9623 = vrot.slane %v9621, 5
        %v9624 = vsel %vm645, %v9619, %v9623
        %v9625 = vshrl.u32 %v9322, 16
        %v9627 = vrot.slane %v9625, 4
        %v9628 = vor.u32 %v9627, %v9623
        %v9629 = vrot.slane %v9628, 4
        %v9631 = vshll.u32 %v9342, 16
        %v9633 = vrot.slane %v9631, 5
        %v9634 = vsel %vm645, %v9629, %v9633
        %v9636 = vshrl.u32 %v9323, 16
        %v9638 = vrot.slane %v9636, 4
        %v9639 = vshll.u32 %v9323, 16
        %v9641 = vrot.slane %v9639, 5
        %v9642 = vor.u32 %v9638, %v9641
        %v9643 = vrot.slane %v9642, 4
        %v9645 = vshll.u32 %v9324, 16
        %v9647 = vrot.slane %v9645, 5
        %v9648 = vsel %vm645, %v9643, %v9647
        %v9649 = vshrl.u32 %v9324, 16
        %v9651 = vrot.slane %v9649, 4
        %v9652 = vor.u32 %v9651, %v9647
        %v9653 = vrot.slane %v9652, 4
        %v9655 = vshll.u32 %v9343, 16
        %v9657 = vrot.slane %v9655, 5
        %v9658 = vsel %vm645, %v9653, %v9657
        %v9660 = vshrl.u32 %v9325, 16
        %v9662 = vrot.slane %v9660, 4
        %v9663 = vshll.u32 %v9325, 16
        %v9665 = vrot.slane %v9663, 5
        %v9666 = vor.u32 %v9662, %v9665
        %v9667 = vrot.slane %v9666, 4
        %v9669 = vshll.u32 %v9326, 16
        %v9671 = vrot.slane %v9669, 5
        %v9672 = vsel %vm645, %v9667, %v9671
        %v9673 = vshrl.u32 %v9326, 16
        %v9675 = vrot.slane %v9673, 4
        %v9676 = vor.u32 %v9675, %v9671
        %v9677 = vrot.slane %v9676, 4
        %v9679 = vshll.u32 %v9344, 16
        %v9681 = vrot.slane %v9679, 5
        %v9682 = vsel %vm645, %v9677, %v9681
        %v9684 = vshrl.u32 %v9327, 16
        %v9686 = vrot.slane %v9684, 4
        %v9687 = vshll.u32 %v9327, 16
        %v9689 = vrot.slane %v9687, 5
        %v9690 = vor.u32 %v9686, %v9689
        %v9691 = vrot.slane %v9690, 4
        %v9693 = vshll.u32 %v9328, 16
        %v9695 = vrot.slane %v9693, 5
        %v9696 = vsel %vm645, %v9691, %v9695
        %v9697 = vshrl.u32 %v9328, 16
        %v9699 = vrot.slane %v9697, 4
        %v9700 = vor.u32 %v9699, %v9695
        %v9701 = vrot.slane %v9700, 4
        %v9703 = vshll.u32 %v9345, 16
        %v9705 = vrot.slane %v9703, 5
        %v9706 = vsel %vm645, %v9701, %v9705
        %v9708 = vshrl.u32 %v9329, 16
        %v9710 = vrot.slane %v9708, 4
        %v9711 = vshll.u32 %v9329, 16
        %v9713 = vrot.slane %v9711, 5
        %v9714 = vor.u32 %v9710, %v9713
        %v9715 = vrot.slane %v9714, 4
        %v9717 = vshll.u32 %v9330, 16
        %v9719 = vrot.slane %v9717, 5
        %v9720 = vsel %vm645, %v9715, %v9719
        %v9721 = vshrl.u32 %v9330, 16
        %v9723 = vrot.slane %v9721, 4
        %v9724 = vor.u32 %v9723, %v9719
        %v9725 = vrot.slane %v9724, 4
        %v9727 = vshll.u32 %v9346, 16
        %v9729 = vrot.slane %v9727, 5
        %v9730 = vsel %vm645, %v9725, %v9729
        %v9731 = vld [vmem:[%s8578] sm:$0xe]
        %v9732 = vld [vmem:[%s8578 + $0xc] sm:$0xe]
        %v9733 = vld [vmem:[%s8578 + $0x18] sm:$0xe]
        %v9734 = vld [vmem:[%s8578 + $0x24] sm:$0xe]
        %v9735 = vld [vmem:[%s8578 + $0x30] sm:$0xe]
        %v9736 = vld [vmem:[%s8578 + $0x3c] sm:$0xe]
        %v9737 = vld [vmem:[%s8578 + $0x48] sm:$0xe]
        %v9738 = vld [vmem:[%s8578 + $0x54] sm:$0xe]
        %v9739 = vld [vmem:[%s8578 + $0x60] sm:$0xe]
        %v9740 = vld [vmem:[%s8578 + $0x6c] sm:$0xe]
        %v9741 = vld [vmem:[%s8578 + $0x78] sm:$0xe]
        %v9742 = vld [vmem:[%s8578 + $0x84] sm:$0xe]
        %v9743 = vld [vmem:[%s8578 + $0x90] sm:$0xe]
        %v9744 = vld [vmem:[%s8578 + $0x9c] sm:$0xe]
        %v9745 = vld [vmem:[%s8578 + $0xa8] sm:$0xe]
        %v9746 = vld [vmem:[%s8578 + $0xb4] sm:$0xe]
        %v9795 = vrot.slane %v9731, 5
        %v9796 = vrot.slane %v9795, 4
        %v9797 = vrot.slane %v9300, 5
        %v9798 = vsel %vm1096, %v9796, %v9797
        %v9799 = vrot.slane %v9797, 4
        %v9800 = vrot.slane %v9331, 5
        %v9801 = vsel %vm1096, %v9799, %v9800
        %v9802 = vrot.slane %v9732, 5
        %v9803 = vrot.slane %v9802, 4
        %v9804 = vrot.slane %v9302, 5
        %v9805 = vsel %vm1096, %v9803, %v9804
        %v9806 = vrot.slane %v9804, 4
        %v9807 = vrot.slane %v9332, 5
        %v9808 = vsel %vm1096, %v9806, %v9807
        %v9809 = vrot.slane %v9733, 5
        %v9810 = vrot.slane %v9809, 4
        %v9811 = vrot.slane %v9304, 5
        %v9812 = vsel %vm1096, %v9810, %v9811
        %v9813 = vrot.slane %v9811, 4
        %v9814 = vrot.slane %v9333, 5
        %v9815 = vsel %vm1096, %v9813, %v9814
        %v9816 = vrot.slane %v9734, 5
        %v9817 = vrot.slane %v9816, 4
        %v9818 = vrot.slane %v9306, 5
        %v9819 = vsel %vm1096, %v9817, %v9818
        %v9820 = vrot.slane %v9818, 4
        %v9821 = vrot.slane %v9334, 5
        %v9822 = vsel %vm1096, %v9820, %v9821
        %v9823 = vrot.slane %v9735, 5
        %v9824 = vrot.slane %v9823, 4
        %v9825 = vrot.slane %v9308, 5
        %v9826 = vsel %vm1096, %v9824, %v9825
        %v9827 = vrot.slane %v9825, 4
        %v9828 = vrot.slane %v9335, 5
        %v9829 = vsel %vm1096, %v9827, %v9828
        %v9830 = vrot.slane %v9736, 5
        %v9831 = vrot.slane %v9830, 4
        %v9832 = vrot.slane %v9310, 5
        %v9833 = vsel %vm1096, %v9831, %v9832
        %v9834 = vrot.slane %v9832, 4
        %v9835 = vrot.slane %v9336, 5
        %v9836 = vsel %vm1096, %v9834, %v9835
        %v9837 = vrot.slane %v9737, 5
        %v9838 = vrot.slane %v9837, 4
        %v9839 = vrot.slane %v9312, 5
        %v9840 = vsel %vm1096, %v9838, %v9839
        %v9841 = vrot.slane %v9839, 4
        %v9842 = vrot.slane %v9337, 5
        %v9843 = vsel %vm1096, %v9841, %v9842
        %v9844 = vrot.slane %v9738, 5
        %v9845 = vrot.slane %v9844, 4
        %v9846 = vrot.slane %v9314, 5
        %v9847 = vsel %vm1096, %v9845, %v9846
        %v9848 = vrot.slane %v9846, 4
        %v9849 = vrot.slane %v9338, 5
        %v9850 = vsel %vm1096, %v9848, %v9849
        %v9851 = vrot.slane %v9739, 5
        %v9852 = vrot.slane %v9851, 4
        %v9853 = vrot.slane %v9316, 5
        %v9854 = vsel %vm1096, %v9852, %v9853
        %v9855 = vrot.slane %v9853, 4
        %v9856 = vrot.slane %v9339, 5
        %v9857 = vsel %vm1096, %v9855, %v9856
        %v9858 = vrot.slane %v9740, 5
        %v9859 = vrot.slane %v9858, 4
        %v9860 = vrot.slane %v9318, 5
        %v9861 = vsel %vm1096, %v9859, %v9860
        %v9862 = vrot.slane %v9860, 4
        %v9863 = vrot.slane %v9340, 5
        %v9864 = vsel %vm1096, %v9862, %v9863
        %v9865 = vrot.slane %v9741, 5
        %v9866 = vrot.slane %v9865, 4
        %v9867 = vrot.slane %v9320, 5
        %v9868 = vsel %vm1096, %v9866, %v9867
        %v9869 = vrot.slane %v9867, 4
        %v9870 = vrot.slane %v9341, 5
        %v9871 = vsel %vm1096, %v9869, %v9870
        %v9872 = vrot.slane %v9742, 5
        %v9873 = vrot.slane %v9872, 4
        %v9874 = vrot.slane %v9322, 5
        %v9875 = vsel %vm1096, %v9873, %v9874
        %v9876 = vrot.slane %v9874, 4
        %v9877 = vrot.slane %v9342, 5
        %v9878 = vsel %vm1096, %v9876, %v9877
        %v9879 = vrot.slane %v9743, 5
        %v9880 = vrot.slane %v9879, 4
        %v9881 = vrot.slane %v9324, 5
        %v9882 = vsel %vm1096, %v9880, %v9881
        %v9883 = vrot.slane %v9881, 4
        %v9884 = vrot.slane %v9343, 5
        %v9885 = vsel %vm1096, %v9883, %v9884
        %v9886 = vrot.slane %v9744, 5
        %v9887 = vrot.slane %v9886, 4
        %v9888 = vrot.slane %v9326, 5
        %v9889 = vsel %vm1096, %v9887, %v9888
        %v9890 = vrot.slane %v9888, 4
        %v9891 = vrot.slane %v9344, 5
        %v9892 = vsel %vm1096, %v9890, %v9891
        %v9893 = vrot.slane %v9745, 5
        %v9894 = vrot.slane %v9893, 4
        %v9895 = vrot.slane %v9328, 5
        %v9896 = vsel %vm1096, %v9894, %v9895
        %v9897 = vrot.slane %v9895, 4
        %v9898 = vrot.slane %v9345, 5
        %v9899 = vsel %vm1096, %v9897, %v9898
        %v9900 = vrot.slane %v9746, 5
        %v9901 = vrot.slane %v9900, 4
        %v9902 = vrot.slane %v9330, 5
        %v9903 = vsel %vm1096, %v9901, %v9902
        %v9904 = vrot.slane %v9902, 4
        %v9905 = vrot.slane %v9346, 5
        %v9906 = vsel %vm1096, %v9904, %v9905
        %s9907 = scalar_lea.vmem [#allocation3], 24
        %v9908 = vld [vmem:[%s9907] sm:$0xf]
        %v9909 = vld [vmem:[%s9907 + $0x4] sm:$0xf]
        %v9910 = vld [vmem:[%s9907 + $0xc] sm:$0xf]
        %v9911 = vld [vmem:[%s9907 + $0x10] sm:$0xf]
        %v9912 = vld [vmem:[%s9907 + $0x18] sm:$0xf]
        %v9913 = vld [vmem:[%s9907 + $0x1c] sm:$0xf]
        %v9914 = vld [vmem:[%s9907 + $0x24] sm:$0xf]
        %v9915 = vld [vmem:[%s9907 + $0x28] sm:$0xf]
        %v9916 = vld [vmem:[%s9907 + $0x30] sm:$0xf]
        %v9917 = vld [vmem:[%s9907 + $0x34] sm:$0xf]
        %v9918 = vld [vmem:[%s9907 + $0x3c] sm:$0xf]
        %v9919 = vld [vmem:[%s9907 + $0x40] sm:$0xf]
        %v9920 = vld [vmem:[%s9907 + $0x48] sm:$0xf]
        %v9921 = vld [vmem:[%s9907 + $0x4c] sm:$0xf]
        %v9922 = vld [vmem:[%s9907 + $0x54] sm:$0xf]
        %v9923 = vld [vmem:[%s9907 + $0x58] sm:$0xf]
        %v9924 = vld [vmem:[%s9907 + $0x60] sm:$0xf]
        %v9925 = vld [vmem:[%s9907 + $0x64] sm:$0xf]
        %v9926 = vld [vmem:[%s9907 + $0x6c] sm:$0xf]
        %v9927 = vld [vmem:[%s9907 + $0x70] sm:$0xf]
        %v9928 = vld [vmem:[%s9907 + $0x78] sm:$0xf]
        %v9929 = vld [vmem:[%s9907 + $0x7c] sm:$0xf]
        %v9930 = vld [vmem:[%s9907 + $0x84] sm:$0xf]
        %v9931 = vld [vmem:[%s9907 + $0x88] sm:$0xf]
        %v9932 = vld [vmem:[%s9907 + $0x90] sm:$0xf]
        %v9933 = vld [vmem:[%s9907 + $0x94] sm:$0xf]
        %v9934 = vld [vmem:[%s9907 + $0x9c] sm:$0xf]
        %v9935 = vld [vmem:[%s9907 + $0xa0] sm:$0xf]
        %v9936 = vld [vmem:[%s9907 + $0xa8] sm:$0xf]
        %v9937 = vld [vmem:[%s9907 + $0xac] sm:$0xf]
        %v9938 = vld [vmem:[%s9907 + $0xb4] sm:$0xf]
        %v9939 = vld [vmem:[%s9907 + $0xb8] sm:$0xf]
        %v9940 = vld [vmem:[%s9907 + $0x8] sm:$0x1]
        %v9941 = vld [vmem:[%s9907 + $0x14] sm:$0x1]
        %v9942 = vld [vmem:[%s9907 + $0x20] sm:$0x1]
        %v9943 = vld [vmem:[%s9907 + $0x2c] sm:$0x1]
        %v9944 = vld [vmem:[%s9907 + $0x38] sm:$0x1]
        %v9945 = vld [vmem:[%s9907 + $0x44] sm:$0x1]
        %v9946 = vld [vmem:[%s9907 + $0x50] sm:$0x1]
        %v9947 = vld [vmem:[%s9907 + $0x5c] sm:$0x1]
        %v9948 = vld [vmem:[%s9907 + $0x68] sm:$0x1]
        %v9949 = vld [vmem:[%s9907 + $0x74] sm:$0x1]
        %v9950 = vld [vmem:[%s9907 + $0x80] sm:$0x1]
        %v9951 = vld [vmem:[%s9907 + $0x8c] sm:$0x1]
        %v9952 = vld [vmem:[%s9907 + $0x98] sm:$0x1]
        %v9953 = vld [vmem:[%s9907 + $0xa4] sm:$0x1]
        %v9954 = vld [vmem:[%s9907 + $0xb0] sm:$0x1]
        %v9955 = vld [vmem:[%s9907 + $0xbc] sm:$0x1]
        %v9957 = vshrl.u32 %v9908, 16
        %v9959 = vrot.slane %v9957, 4
        %v9960 = vshll.u32 %v9908, 16
        %v9962 = vrot.slane %v9960, 5
        %v9963 = vor.u32 %v9959, %v9962
        %v9964 = vrot.slane %v9963, 4
        %v9966 = vshll.u32 %v9909, 16
        %v9968 = vrot.slane %v9966, 5
        %v9969 = vsel %vm645, %v9964, %v9968
        %v9970 = vshrl.u32 %v9909, 16
        %v9972 = vrot.slane %v9970, 4
        %v9973 = vor.u32 %v9972, %v9968
        %v9974 = vrot.slane %v9973, 4
        %v9976 = vshll.u32 %v9940, 16
        %v9978 = vrot.slane %v9976, 5
        %v9979 = vsel %vm645, %v9974, %v9978
        %v9981 = vshrl.u32 %v9910, 16
        %v9983 = vrot.slane %v9981, 4
        %v9984 = vshll.u32 %v9910, 16
        %v9986 = vrot.slane %v9984, 5
        %v9987 = vor.u32 %v9983, %v9986
        %v9988 = vrot.slane %v9987, 4
        %v9990 = vshll.u32 %v9911, 16
        %v9992 = vrot.slane %v9990, 5
        %v9993 = vsel %vm645, %v9988, %v9992
        %v9994 = vshrl.u32 %v9911, 16
        %v9996 = vrot.slane %v9994, 4
        %v9997 = vor.u32 %v9996, %v9992
        %v9998 = vrot.slane %v9997, 4
        %v10000 = vshll.u32 %v9941, 16
        %v10002 = vrot.slane %v10000, 5
        %v10003 = vsel %vm645, %v9998, %v10002
        %v10005 = vshrl.u32 %v9912, 16
        %v10007 = vrot.slane %v10005, 4
        %v10008 = vshll.u32 %v9912, 16
        %v10010 = vrot.slane %v10008, 5
        %v10011 = vor.u32 %v10007, %v10010
        %v10012 = vrot.slane %v10011, 4
        %v10014 = vshll.u32 %v9913, 16
        %v10016 = vrot.slane %v10014, 5
        %v10017 = vsel %vm645, %v10012, %v10016
        %v10018 = vshrl.u32 %v9913, 16
        %v10020 = vrot.slane %v10018, 4
        %v10021 = vor.u32 %v10020, %v10016
        %v10022 = vrot.slane %v10021, 4
        %v10024 = vshll.u32 %v9942, 16
        %v10026 = vrot.slane %v10024, 5
        %v10027 = vsel %vm645, %v10022, %v10026
        %v10029 = vshrl.u32 %v9914, 16
        %v10031 = vrot.slane %v10029, 4
        %v10032 = vshll.u32 %v9914, 16
        %v10034 = vrot.slane %v10032, 5
        %v10035 = vor.u32 %v10031, %v10034
        %v10036 = vrot.slane %v10035, 4
        %v10038 = vshll.u32 %v9915, 16
        %v10040 = vrot.slane %v10038, 5
        %v10041 = vsel %vm645, %v10036, %v10040
        %v10042 = vshrl.u32 %v9915, 16
        %v10044 = vrot.slane %v10042, 4
        %v10045 = vor.u32 %v10044, %v10040
        %v10046 = vrot.slane %v10045, 4
        %v10048 = vshll.u32 %v9943, 16
        %v10050 = vrot.slane %v10048, 5
        %v10051 = vsel %vm645, %v10046, %v10050
        %v10053 = vshrl.u32 %v9916, 16
        %v10055 = vrot.slane %v10053, 4
        %v10056 = vshll.u32 %v9916, 16
        %v10058 = vrot.slane %v10056, 5
        %v10059 = vor.u32 %v10055, %v10058
        %v10060 = vrot.slane %v10059, 4
        %v10062 = vshll.u32 %v9917, 16
        %v10064 = vrot.slane %v10062, 5
        %v10065 = vsel %vm645, %v10060, %v10064
        %v10066 = vshrl.u32 %v9917, 16
        %v10068 = vrot.slane %v10066, 4
        %v10069 = vor.u32 %v10068, %v10064
        %v10070 = vrot.slane %v10069, 4
        %v10072 = vshll.u32 %v9944, 16
        %v10074 = vrot.slane %v10072, 5
        %v10075 = vsel %vm645, %v10070, %v10074
        %v10077 = vshrl.u32 %v9918, 16
        %v10079 = vrot.slane %v10077, 4
        %v10080 = vshll.u32 %v9918, 16
        %v10082 = vrot.slane %v10080, 5
        %v10083 = vor.u32 %v10079, %v10082
        %v10084 = vrot.slane %v10083, 4
        %v10086 = vshll.u32 %v9919, 16
        %v10088 = vrot.slane %v10086, 5
        %v10089 = vsel %vm645, %v10084, %v10088
        %v10090 = vshrl.u32 %v9919, 16
        %v10092 = vrot.slane %v10090, 4
        %v10093 = vor.u32 %v10092, %v10088
        %v10094 = vrot.slane %v10093, 4
        %v10096 = vshll.u32 %v9945, 16
        %v10098 = vrot.slane %v10096, 5
        %v10099 = vsel %vm645, %v10094, %v10098
        %v10101 = vshrl.u32 %v9920, 16
        %v10103 = vrot.slane %v10101, 4
        %v10104 = vshll.u32 %v9920, 16
        %v10106 = vrot.slane %v10104, 5
        %v10107 = vor.u32 %v10103, %v10106
        %v10108 = vrot.slane %v10107, 4
        %v10110 = vshll.u32 %v9921, 16
        %v10112 = vrot.slane %v10110, 5
        %v10113 = vsel %vm645, %v10108, %v10112
        %v10114 = vshrl.u32 %v9921, 16
        %v10116 = vrot.slane %v10114, 4
        %v10117 = vor.u32 %v10116, %v10112
        %v10118 = vrot.slane %v10117, 4
        %v10120 = vshll.u32 %v9946, 16
        %v10122 = vrot.slane %v10120, 5
        %v10123 = vsel %vm645, %v10118, %v10122
        %v10125 = vshrl.u32 %v9922, 16
        %v10127 = vrot.slane %v10125, 4
        %v10128 = vshll.u32 %v9922, 16
        %v10130 = vrot.slane %v10128, 5
        %v10131 = vor.u32 %v10127, %v10130
        %v10132 = vrot.slane %v10131, 4
        %v10134 = vshll.u32 %v9923, 16
        %v10136 = vrot.slane %v10134, 5
        %v10137 = vsel %vm645, %v10132, %v10136
        %v10138 = vshrl.u32 %v9923, 16
        %v10140 = vrot.slane %v10138, 4
        %v10141 = vor.u32 %v10140, %v10136
        %v10142 = vrot.slane %v10141, 4
        %v10144 = vshll.u32 %v9947, 16
        %v10146 = vrot.slane %v10144, 5
        %v10147 = vsel %vm645, %v10142, %v10146
        %v10149 = vshrl.u32 %v9924, 16
        %v10151 = vrot.slane %v10149, 4
        %v10152 = vshll.u32 %v9924, 16
        %v10154 = vrot.slane %v10152, 5
        %v10155 = vor.u32 %v10151, %v10154
        %v10156 = vrot.slane %v10155, 4
        %v10158 = vshll.u32 %v9925, 16
        %v10160 = vrot.slane %v10158, 5
        %v10161 = vsel %vm645, %v10156, %v10160
        %v10162 = vshrl.u32 %v9925, 16
        %v10164 = vrot.slane %v10162, 4
        %v10165 = vor.u32 %v10164, %v10160
        %v10166 = vrot.slane %v10165, 4
        %v10168 = vshll.u32 %v9948, 16
        %v10170 = vrot.slane %v10168, 5
        %v10171 = vsel %vm645, %v10166, %v10170
        %v10173 = vshrl.u32 %v9926, 16
        %v10175 = vrot.slane %v10173, 4
        %v10176 = vshll.u32 %v9926, 16
        %v10178 = vrot.slane %v10176, 5
        %v10179 = vor.u32 %v10175, %v10178
        %v10180 = vrot.slane %v10179, 4
        %v10182 = vshll.u32 %v9927, 16
        %v10184 = vrot.slane %v10182, 5
        %v10185 = vsel %vm645, %v10180, %v10184
        %v10186 = vshrl.u32 %v9927, 16
        %v10188 = vrot.slane %v10186, 4
        %v10189 = vor.u32 %v10188, %v10184
        %v10190 = vrot.slane %v10189, 4
        %v10192 = vshll.u32 %v9949, 16
        %v10194 = vrot.slane %v10192, 5
        %v10195 = vsel %vm645, %v10190, %v10194
        %v10197 = vshrl.u32 %v9928, 16
        %v10199 = vrot.slane %v10197, 4
        %v10200 = vshll.u32 %v9928, 16
        %v10202 = vrot.slane %v10200, 5
        %v10203 = vor.u32 %v10199, %v10202
        %v10204 = vrot.slane %v10203, 4
        %v10206 = vshll.u32 %v9929, 16
        %v10208 = vrot.slane %v10206, 5
        %v10209 = vsel %vm645, %v10204, %v10208
        %v10210 = vshrl.u32 %v9929, 16
        %v10212 = vrot.slane %v10210, 4
        %v10213 = vor.u32 %v10212, %v10208
        %v10214 = vrot.slane %v10213, 4
        %v10216 = vshll.u32 %v9950, 16
        %v10218 = vrot.slane %v10216, 5
        %v10219 = vsel %vm645, %v10214, %v10218
        %v10221 = vshrl.u32 %v9930, 16
        %v10223 = vrot.slane %v10221, 4
        %v10224 = vshll.u32 %v9930, 16
        %v10226 = vrot.slane %v10224, 5
        %v10227 = vor.u32 %v10223, %v10226
        %v10228 = vrot.slane %v10227, 4
        %v10230 = vshll.u32 %v9931, 16
        %v10232 = vrot.slane %v10230, 5
        %v10233 = vsel %vm645, %v10228, %v10232
        %v10234 = vshrl.u32 %v9931, 16
        %v10236 = vrot.slane %v10234, 4
        %v10237 = vor.u32 %v10236, %v10232
        %v10238 = vrot.slane %v10237, 4
        %v10240 = vshll.u32 %v9951, 16
        %v10242 = vrot.slane %v10240, 5
        %v10243 = vsel %vm645, %v10238, %v10242
        %v10245 = vshrl.u32 %v9932, 16
        %v10247 = vrot.slane %v10245, 4
        %v10248 = vshll.u32 %v9932, 16
        %v10250 = vrot.slane %v10248, 5
        %v10251 = vor.u32 %v10247, %v10250
        %v10252 = vrot.slane %v10251, 4
        %v10254 = vshll.u32 %v9933, 16
        %v10256 = vrot.slane %v10254, 5
        %v10257 = vsel %vm645, %v10252, %v10256
        %v10258 = vshrl.u32 %v9933, 16
        %v10260 = vrot.slane %v10258, 4
        %v10261 = vor.u32 %v10260, %v10256
        %v10262 = vrot.slane %v10261, 4
        %v10264 = vshll.u32 %v9952, 16
        %v10266 = vrot.slane %v10264, 5
        %v10267 = vsel %vm645, %v10262, %v10266
        %v10269 = vshrl.u32 %v9934, 16
        %v10271 = vrot.slane %v10269, 4
        %v10272 = vshll.u32 %v9934, 16
        %v10274 = vrot.slane %v10272, 5
        %v10275 = vor.u32 %v10271, %v10274
        %v10276 = vrot.slane %v10275, 4
        %v10278 = vshll.u32 %v9935, 16
        %v10280 = vrot.slane %v10278, 5
        %v10281 = vsel %vm645, %v10276, %v10280
        %v10282 = vshrl.u32 %v9935, 16
        %v10284 = vrot.slane %v10282, 4
        %v10285 = vor.u32 %v10284, %v10280
        %v10286 = vrot.slane %v10285, 4
        %v10288 = vshll.u32 %v9953, 16
        %v10290 = vrot.slane %v10288, 5
        %v10291 = vsel %vm645, %v10286, %v10290
        %v10293 = vshrl.u32 %v9936, 16
        %v10295 = vrot.slane %v10293, 4
        %v10296 = vshll.u32 %v9936, 16
        %v10298 = vrot.slane %v10296, 5
        %v10299 = vor.u32 %v10295, %v10298
        %v10300 = vrot.slane %v10299, 4
        %v10302 = vshll.u32 %v9937, 16
        %v10304 = vrot.slane %v10302, 5
        %v10305 = vsel %vm645, %v10300, %v10304
        %v10306 = vshrl.u32 %v9937, 16
        %v10308 = vrot.slane %v10306, 4
        %v10309 = vor.u32 %v10308, %v10304
        %v10310 = vrot.slane %v10309, 4
        %v10312 = vshll.u32 %v9954, 16
        %v10314 = vrot.slane %v10312, 5
        %v10315 = vsel %vm645, %v10310, %v10314
        %v10317 = vshrl.u32 %v9938, 16
        %v10319 = vrot.slane %v10317, 4
        %v10320 = vshll.u32 %v9938, 16
        %v10322 = vrot.slane %v10320, 5
        %v10323 = vor.u32 %v10319, %v10322
        %v10324 = vrot.slane %v10323, 4
        %v10326 = vshll.u32 %v9939, 16
        %v10328 = vrot.slane %v10326, 5
        %v10329 = vsel %vm645, %v10324, %v10328
        %v10330 = vshrl.u32 %v9939, 16
        %v10332 = vrot.slane %v10330, 4
        %v10333 = vor.u32 %v10332, %v10328
        %v10334 = vrot.slane %v10333, 4
        %v10336 = vshll.u32 %v9955, 16
        %v10338 = vrot.slane %v10336, 5
        %v10339 = vsel %vm645, %v10334, %v10338
        %v10340 = vld [vmem:[%s9907] sm:$0xe]
        %v10341 = vld [vmem:[%s9907 + $0xc] sm:$0xe]
        %v10342 = vld [vmem:[%s9907 + $0x18] sm:$0xe]
        %v10343 = vld [vmem:[%s9907 + $0x24] sm:$0xe]
        %v10344 = vld [vmem:[%s9907 + $0x30] sm:$0xe]
        %v10345 = vld [vmem:[%s9907 + $0x3c] sm:$0xe]
        %v10346 = vld [vmem:[%s9907 + $0x48] sm:$0xe]
        %v10347 = vld [vmem:[%s9907 + $0x54] sm:$0xe]
        %v10348 = vld [vmem:[%s9907 + $0x60] sm:$0xe]
        %v10349 = vld [vmem:[%s9907 + $0x6c] sm:$0xe]
        %v10350 = vld [vmem:[%s9907 + $0x78] sm:$0xe]
        %v10351 = vld [vmem:[%s9907 + $0x84] sm:$0xe]
        %v10352 = vld [vmem:[%s9907 + $0x90] sm:$0xe]
        %v10353 = vld [vmem:[%s9907 + $0x9c] sm:$0xe]
        %v10354 = vld [vmem:[%s9907 + $0xa8] sm:$0xe]
        %v10355 = vld [vmem:[%s9907 + $0xb4] sm:$0xe]
        %v10404 = vrot.slane %v10340, 5
        %v10405 = vrot.slane %v10404, 4
        %v10406 = vrot.slane %v9909, 5
        %v10407 = vsel %vm1096, %v10405, %v10406
        %v10408 = vrot.slane %v10406, 4
        %v10409 = vrot.slane %v9940, 5
        %v10410 = vsel %vm1096, %v10408, %v10409
        %v10411 = vrot.slane %v10341, 5
        %v10412 = vrot.slane %v10411, 4
        %v10413 = vrot.slane %v9911, 5
        %v10414 = vsel %vm1096, %v10412, %v10413
        %v10415 = vrot.slane %v10413, 4
        %v10416 = vrot.slane %v9941, 5
        %v10417 = vsel %vm1096, %v10415, %v10416
        %v10418 = vrot.slane %v10342, 5
        %v10419 = vrot.slane %v10418, 4
        %v10420 = vrot.slane %v9913, 5
        %v10421 = vsel %vm1096, %v10419, %v10420
        %v10422 = vrot.slane %v10420, 4
        %v10423 = vrot.slane %v9942, 5
        %v10424 = vsel %vm1096, %v10422, %v10423
        %v10425 = vrot.slane %v10343, 5
        %v10426 = vrot.slane %v10425, 4
        %v10427 = vrot.slane %v9915, 5
        %v10428 = vsel %vm1096, %v10426, %v10427
        %v10429 = vrot.slane %v10427, 4
        %v10430 = vrot.slane %v9943, 5
        %v10431 = vsel %vm1096, %v10429, %v10430
        %v10432 = vrot.slane %v10344, 5
        %v10433 = vrot.slane %v10432, 4
        %v10434 = vrot.slane %v9917, 5
        %v10435 = vsel %vm1096, %v10433, %v10434
        %v10436 = vrot.slane %v10434, 4
        %v10437 = vrot.slane %v9944, 5
        %v10438 = vsel %vm1096, %v10436, %v10437
        %v10439 = vrot.slane %v10345, 5
        %v10440 = vrot.slane %v10439, 4
        %v10441 = vrot.slane %v9919, 5
        %v10442 = vsel %vm1096, %v10440, %v10441
        %v10443 = vrot.slane %v10441, 4
        %v10444 = vrot.slane %v9945, 5
        %v10445 = vsel %vm1096, %v10443, %v10444
        %v10446 = vrot.slane %v10346, 5
        %v10447 = vrot.slane %v10446, 4
        %v10448 = vrot.slane %v9921, 5
        %v10449 = vsel %vm1096, %v10447, %v10448
        %v10450 = vrot.slane %v10448, 4
        %v10451 = vrot.slane %v9946, 5
        %v10452 = vsel %vm1096, %v10450, %v10451
        %v10453 = vrot.slane %v10347, 5
        %v10454 = vrot.slane %v10453, 4
        %v10455 = vrot.slane %v9923, 5
        %v10456 = vsel %vm1096, %v10454, %v10455
        %v10457 = vrot.slane %v10455, 4
        %v10458 = vrot.slane %v9947, 5
        %v10459 = vsel %vm1096, %v10457, %v10458
        %v10460 = vrot.slane %v10348, 5
        %v10461 = vrot.slane %v10460, 4
        %v10462 = vrot.slane %v9925, 5
        %v10463 = vsel %vm1096, %v10461, %v10462
        %v10464 = vrot.slane %v10462, 4
        %v10465 = vrot.slane %v9948, 5
        %v10466 = vsel %vm1096, %v10464, %v10465
        %v10467 = vrot.slane %v10349, 5
        %v10468 = vrot.slane %v10467, 4
        %v10469 = vrot.slane %v9927, 5
        %v10470 = vsel %vm1096, %v10468, %v10469
        %v10471 = vrot.slane %v10469, 4
        %v10472 = vrot.slane %v9949, 5
        %v10473 = vsel %vm1096, %v10471, %v10472
        %v10474 = vrot.slane %v10350, 5
        %v10475 = vrot.slane %v10474, 4
        %v10476 = vrot.slane %v9929, 5
        %v10477 = vsel %vm1096, %v10475, %v10476
        %v10478 = vrot.slane %v10476, 4
        %v10479 = vrot.slane %v9950, 5
        %v10480 = vsel %vm1096, %v10478, %v10479
        %v10481 = vrot.slane %v10351, 5
        %v10482 = vrot.slane %v10481, 4
        %v10483 = vrot.slane %v9931, 5
        %v10484 = vsel %vm1096, %v10482, %v10483
        %v10485 = vrot.slane %v10483, 4
        %v10486 = vrot.slane %v9951, 5
        %v10487 = vsel %vm1096, %v10485, %v10486
        %v10488 = vrot.slane %v10352, 5
        %v10489 = vrot.slane %v10488, 4
        %v10490 = vrot.slane %v9933, 5
        %v10491 = vsel %vm1096, %v10489, %v10490
        %v10492 = vrot.slane %v10490, 4
        %v10493 = vrot.slane %v9952, 5
        %v10494 = vsel %vm1096, %v10492, %v10493
        %v10495 = vrot.slane %v10353, 5
        %v10496 = vrot.slane %v10495, 4
        %v10497 = vrot.slane %v9935, 5
        %v10498 = vsel %vm1096, %v10496, %v10497
        %v10499 = vrot.slane %v10497, 4
        %v10500 = vrot.slane %v9953, 5
        %v10501 = vsel %vm1096, %v10499, %v10500
        %v10502 = vrot.slane %v10354, 5
        %v10503 = vrot.slane %v10502, 4
        %v10504 = vrot.slane %v9937, 5
        %v10505 = vsel %vm1096, %v10503, %v10504
        %v10506 = vrot.slane %v10504, 4
        %v10507 = vrot.slane %v9954, 5
        %v10508 = vsel %vm1096, %v10506, %v10507
        %v10509 = vrot.slane %v10355, 5
        %v10510 = vrot.slane %v10509, 4
        %v10511 = vrot.slane %v9939, 5
        %v10512 = vsel %vm1096, %v10510, %v10511
        %v10513 = vrot.slane %v10511, 4
        %v10514 = vrot.slane %v9955, 5
        %v10515 = vsel %vm1096, %v10513, %v10514
        %v10532 = vunpack.c.l.b16 %v8691
        %v10533 = vunpack.c.l.b16 %v8692
        %v10534 = vunpack.c.l.b16 %v8693
        %v10535 = vunpack.c.l.b16 %v8694
        %v10536 = vunpack.c.l.b16 %v8695
        %v10537 = vunpack.c.l.b16 %v8696
        %v10538 = vunpack.c.l.b16 %v8697
        %v10539 = vunpack.c.l.b16 %v8698
        %v10540 = vunpack.c.l.b16 %v8699
        %v10541 = vunpack.c.l.b16 %v8700
        %v10542 = vunpack.c.l.b16 %v8701
        %v10543 = vunpack.c.l.b16 %v8702
        %v10544 = vunpack.c.l.b16 %v8703
        %v10545 = vunpack.c.l.b16 %v8704
        %v10546 = vunpack.c.l.b16 %v8705
        %v10547 = vunpack.c.l.b16 %v8706
        %v10548 = vunpack.c.l.b16 %v8707
        %v10549 = vunpack.c.l.b16 %v8708
        %v10550 = vunpack.c.l.b16 %v8709
        %v10551 = vunpack.c.l.b16 %v8710
        %v10552 = vunpack.c.l.b16 %v8711
        %v10553 = vunpack.c.l.b16 %v8712
        %v10554 = vunpack.c.l.b16 %v8713
        %v10555 = vunpack.c.l.b16 %v8714
        %v10556 = vunpack.c.l.b16 %v8715
        %v10557 = vunpack.c.l.b16 %v8716
        %v10558 = vunpack.c.l.b16 %v8717
        %v10559 = vunpack.c.l.b16 %v8718
        %v10560 = vunpack.c.l.b16 %v8719
        %v10561 = vunpack.c.l.b16 %v8720
        %v10562 = vunpack.c.l.b16 %v8721
        %v10563 = vunpack.c.l.b16 %v8722
        %v10564 = vpack.c.b16 %v10533, %v10532
        %v10565 = vpack.c.b16 %v10535, %v10534
        %v10566 = vpack.c.b16 %v10537, %v10536
        %v10567 = vpack.c.b16 %v10539, %v10538
        %v10568 = vpack.c.b16 %v10541, %v10540
        %v10569 = vpack.c.b16 %v10543, %v10542
        %v10570 = vpack.c.b16 %v10545, %v10544
        %v10571 = vpack.c.b16 %v10547, %v10546
        %v10572 = vpack.c.b16 %v10549, %v10548
        %v10573 = vpack.c.b16 %v10551, %v10550
        %v10574 = vpack.c.b16 %v10553, %v10552
        %v10575 = vpack.c.b16 %v10555, %v10554
        %v10576 = vpack.c.b16 %v10557, %v10556
        %v10577 = vpack.c.b16 %v10559, %v10558
        %v10578 = vpack.c.b16 %v10561, %v10560
        %v10579 = vpack.c.b16 %v10563, %v10562
        %v10580 = vunpack.c.l.b16 %v8752
        %v10581 = vunpack.c.l.b16 %v8762
        %v10582 = vunpack.c.l.b16 %v8776
        %v10583 = vunpack.c.l.b16 %v8786
        %v10584 = vunpack.c.l.b16 %v8800
        %v10585 = vunpack.c.l.b16 %v8810
        %v10586 = vunpack.c.l.b16 %v8824
        %v10587 = vunpack.c.l.b16 %v8834
        %v10588 = vunpack.c.l.b16 %v8848
        %v10589 = vunpack.c.l.b16 %v8858
        %v10590 = vunpack.c.l.b16 %v8872
        %v10591 = vunpack.c.l.b16 %v8882
        %v10592 = vunpack.c.l.b16 %v8896
        %v10593 = vunpack.c.l.b16 %v8906
        %v10594 = vunpack.c.l.b16 %v8920
        %v10595 = vunpack.c.l.b16 %v8930
        %v10596 = vunpack.c.l.b16 %v8944
        %v10597 = vunpack.c.l.b16 %v8954
        %v10598 = vunpack.c.l.b16 %v8968
        %v10599 = vunpack.c.l.b16 %v8978
        %v10600 = vunpack.c.l.b16 %v8992
        %v10601 = vunpack.c.l.b16 %v9002
        %v10602 = vunpack.c.l.b16 %v9016
        %v10603 = vunpack.c.l.b16 %v9026
        %v10604 = vunpack.c.l.b16 %v9040
        %v10605 = vunpack.c.l.b16 %v9050
        %v10606 = vunpack.c.l.b16 %v9064
        %v10607 = vunpack.c.l.b16 %v9074
        %v10608 = vunpack.c.l.b16 %v9088
        %v10609 = vunpack.c.l.b16 %v9098
        %v10610 = vunpack.c.l.b16 %v9112
        %v10611 = vunpack.c.l.b16 %v9122
        %v10612 = vpack.c.b16 %v10581, %v10580
        %v10613 = vpack.c.b16 %v10583, %v10582
        %v10614 = vpack.c.b16 %v10585, %v10584
        %v10615 = vpack.c.b16 %v10587, %v10586
        %v10616 = vpack.c.b16 %v10589, %v10588
        %v10617 = vpack.c.b16 %v10591, %v10590
        %v10618 = vpack.c.b16 %v10593, %v10592
        %v10619 = vpack.c.b16 %v10595, %v10594
        %v10620 = vpack.c.b16 %v10597, %v10596
        %v10621 = vpack.c.b16 %v10599, %v10598
        %v10622 = vpack.c.b16 %v10601, %v10600
        %v10623 = vpack.c.b16 %v10603, %v10602
        %v10624 = vpack.c.b16 %v10605, %v10604
        %v10625 = vpack.c.b16 %v10607, %v10606
        %v10626 = vpack.c.b16 %v10609, %v10608
        %v10627 = vpack.c.b16 %v10611, %v10610
        %10628 = vrot.lane.b32.xlu0 %v10612, 32
        %v10629 = vpop.permute.xlu0 %10628
        %10630 = vrot.lane.b32.xlu0 %v10613, 32
        %v10631 = vpop.permute.xlu0 %10630
        %10632 = vrot.lane.b32.xlu0 %v10614, 32
        %v10633 = vpop.permute.xlu0 %10632
        %10634 = vrot.lane.b32.xlu0 %v10615, 32
        %v10635 = vpop.permute.xlu0 %10634
        %10636 = vrot.lane.b32.xlu0 %v10616, 32
        %v10637 = vpop.permute.xlu0 %10636
        %10638 = vrot.lane.b32.xlu0 %v10617, 32
        %v10639 = vpop.permute.xlu0 %10638
        %10640 = vrot.lane.b32.xlu0 %v10618, 32
        %v10641 = vpop.permute.xlu0 %10640
        %10642 = vrot.lane.b32.xlu0 %v10619, 32
        %v10643 = vpop.permute.xlu0 %10642
        %10644 = vrot.lane.b32.xlu0 %v10620, 32
        %v10645 = vpop.permute.xlu0 %10644
        %10646 = vrot.lane.b32.xlu0 %v10621, 32
        %v10647 = vpop.permute.xlu0 %10646
        %10648 = vrot.lane.b32.xlu0 %v10622, 32
        %v10649 = vpop.permute.xlu0 %10648
        %10650 = vrot.lane.b32.xlu0 %v10623, 32
        %v10651 = vpop.permute.xlu0 %10650
        %10652 = vrot.lane.b32.xlu0 %v10624, 32
        %v10653 = vpop.permute.xlu0 %10652
        %10654 = vrot.lane.b32.xlu0 %v10625, 32
        %v10655 = vpop.permute.xlu0 %10654
        %10656 = vrot.lane.b32.xlu0 %v10626, 32
        %v10657 = vpop.permute.xlu0 %10656
        %10658 = vrot.lane.b32.xlu0 %v10627, 32
        %v10659 = vpop.permute.xlu0 %10658
        %v10660 = vunpack.c.l.b16 %v9190
        %v10661 = vunpack.c.l.b16 %v9193
        %v10662 = vunpack.c.l.b16 %v9197
        %v10663 = vunpack.c.l.b16 %v9200
        %v10664 = vunpack.c.l.b16 %v9204
        %v10665 = vunpack.c.l.b16 %v9207
        %v10666 = vunpack.c.l.b16 %v9211
        %v10667 = vunpack.c.l.b16 %v9214
        %v10668 = vunpack.c.l.b16 %v9218
        %v10669 = vunpack.c.l.b16 %v9221
        %v10670 = vunpack.c.l.b16 %v9225
        %v10671 = vunpack.c.l.b16 %v9228
        %v10672 = vunpack.c.l.b16 %v9232
        %v10673 = vunpack.c.l.b16 %v9235
        %v10674 = vunpack.c.l.b16 %v9239
        %v10675 = vunpack.c.l.b16 %v9242
        %v10676 = vunpack.c.l.b16 %v9246
        %v10677 = vunpack.c.l.b16 %v9249
        %v10678 = vunpack.c.l.b16 %v9253
        %v10679 = vunpack.c.l.b16 %v9256
        %v10680 = vunpack.c.l.b16 %v9260
        %v10681 = vunpack.c.l.b16 %v9263
        %v10682 = vunpack.c.l.b16 %v9267
        %v10683 = vunpack.c.l.b16 %v9270
        %v10684 = vunpack.c.l.b16 %v9274
        %v10685 = vunpack.c.l.b16 %v9277
        %v10686 = vunpack.c.l.b16 %v9281
        %v10687 = vunpack.c.l.b16 %v9284
        %v10688 = vunpack.c.l.b16 %v9288
        %v10689 = vunpack.c.l.b16 %v9291
        %v10690 = vunpack.c.l.b16 %v9295
        %v10691 = vunpack.c.l.b16 %v9298
        %v10692 = vpack.c.b16 %v10661, %v10660
        %v10693 = vpack.c.b16 %v10663, %v10662
        %v10694 = vpack.c.b16 %v10665, %v10664
        %v10695 = vpack.c.b16 %v10667, %v10666
        %v10696 = vpack.c.b16 %v10669, %v10668
        %v10697 = vpack.c.b16 %v10671, %v10670
        %v10698 = vpack.c.b16 %v10673, %v10672
        %v10699 = vpack.c.b16 %v10675, %v10674
        %v10700 = vpack.c.b16 %v10677, %v10676
        %v10701 = vpack.c.b16 %v10679, %v10678
        %v10702 = vpack.c.b16 %v10681, %v10680
        %v10703 = vpack.c.b16 %v10683, %v10682
        %v10704 = vpack.c.b16 %v10685, %v10684
        %v10705 = vpack.c.b16 %v10687, %v10686
        %v10706 = vpack.c.b16 %v10689, %v10688
        %v10707 = vpack.c.b16 %v10691, %v10690
        %10708 = vrot.lane.b32.xlu0 %v10692, 64
        %v10709 = vpop.permute.xlu0 %10708
        %10710 = vrot.lane.b32.xlu0 %v10693, 64
        %v10711 = vpop.permute.xlu0 %10710
        %10712 = vrot.lane.b32.xlu0 %v10694, 64
        %v10713 = vpop.permute.xlu0 %10712
        %10714 = vrot.lane.b32.xlu0 %v10695, 64
        %v10715 = vpop.permute.xlu0 %10714
        %10716 = vrot.lane.b32.xlu0 %v10696, 64
        %v10717 = vpop.permute.xlu0 %10716
        %10718 = vrot.lane.b32.xlu0 %v10697, 64
        %v10719 = vpop.permute.xlu0 %10718
        %10720 = vrot.lane.b32.xlu0 %v10698, 64
        %v10721 = vpop.permute.xlu0 %10720
        %10722 = vrot.lane.b32.xlu0 %v10699, 64
        %v10723 = vpop.permute.xlu0 %10722
        %10724 = vrot.lane.b32.xlu0 %v10700, 64
        %v10725 = vpop.permute.xlu0 %10724
        %10726 = vrot.lane.b32.xlu0 %v10701, 64
        %v10727 = vpop.permute.xlu0 %10726
        %10728 = vrot.lane.b32.xlu0 %v10702, 64
        %v10729 = vpop.permute.xlu0 %10728
        %10730 = vrot.lane.b32.xlu0 %v10703, 64
        %v10731 = vpop.permute.xlu0 %10730
        %10732 = vrot.lane.b32.xlu0 %v10704, 64
        %v10733 = vpop.permute.xlu0 %10732
        %10734 = vrot.lane.b32.xlu0 %v10705, 64
        %v10735 = vpop.permute.xlu0 %10734
        %10736 = vrot.lane.b32.xlu0 %v10706, 64
        %v10737 = vpop.permute.xlu0 %10736
        %10738 = vrot.lane.b32.xlu0 %v10707, 64
        %v10739 = vpop.permute.xlu0 %10738
        %v10756 = vunpack.c.l.b16 %v9299
        %v10757 = vunpack.c.l.b16 %v9300
        %v10758 = vunpack.c.l.b16 %v9301
        %v10759 = vunpack.c.l.b16 %v9302
        %v10760 = vunpack.c.l.b16 %v9303
        %v10761 = vunpack.c.l.b16 %v9304
        %v10762 = vunpack.c.l.b16 %v9305
        %v10763 = vunpack.c.l.b16 %v9306
        %v10764 = vunpack.c.l.b16 %v9307
        %v10765 = vunpack.c.l.b16 %v9308
        %v10766 = vunpack.c.l.b16 %v9309
        %v10767 = vunpack.c.l.b16 %v9310
        %v10768 = vunpack.c.l.b16 %v9311
        %v10769 = vunpack.c.l.b16 %v9312
        %v10770 = vunpack.c.l.b16 %v9313
        %v10771 = vunpack.c.l.b16 %v9314
        %v10772 = vunpack.c.l.b16 %v9315
        %v10773 = vunpack.c.l.b16 %v9316
        %v10774 = vunpack.c.l.b16 %v9317
        %v10775 = vunpack.c.l.b16 %v9318
        %v10776 = vunpack.c.l.b16 %v9319
        %v10777 = vunpack.c.l.b16 %v9320
        %v10778 = vunpack.c.l.b16 %v9321
        %v10779 = vunpack.c.l.b16 %v9322
        %v10780 = vunpack.c.l.b16 %v9323
        %v10781 = vunpack.c.l.b16 %v9324
        %v10782 = vunpack.c.l.b16 %v9325
        %v10783 = vunpack.c.l.b16 %v9326
        %v10784 = vunpack.c.l.b16 %v9327
        %v10785 = vunpack.c.l.b16 %v9328
        %v10786 = vunpack.c.l.b16 %v9329
        %v10787 = vunpack.c.l.b16 %v9330
        %v10788 = vpack.c.b16 %v10757, %v10756
        %v10789 = vpack.c.b16 %v10759, %v10758
        %v10790 = vpack.c.b16 %v10761, %v10760
        %v10791 = vpack.c.b16 %v10763, %v10762
        %v10792 = vpack.c.b16 %v10765, %v10764
        %v10793 = vpack.c.b16 %v10767, %v10766
        %v10794 = vpack.c.b16 %v10769, %v10768
        %v10795 = vpack.c.b16 %v10771, %v10770
        %v10796 = vpack.c.b16 %v10773, %v10772
        %v10797 = vpack.c.b16 %v10775, %v10774
        %v10798 = vpack.c.b16 %v10777, %v10776
        %v10799 = vpack.c.b16 %v10779, %v10778
        %v10800 = vpack.c.b16 %v10781, %v10780
        %v10801 = vpack.c.b16 %v10783, %v10782
        %v10802 = vpack.c.b16 %v10785, %v10784
        %v10803 = vpack.c.b16 %v10787, %v10786
        %10804 = vrot.lane.b32.xlu0 %v10788, 96
        %v10805 = vpop.permute.xlu0 %10804
        %10806 = vrot.lane.b32.xlu0 %v10789, 96
        %v10807 = vpop.permute.xlu0 %10806
        %10808 = vrot.lane.b32.xlu0 %v10790, 96
        %v10809 = vpop.permute.xlu0 %10808
        %10810 = vrot.lane.b32.xlu0 %v10791, 96
        %v10811 = vpop.permute.xlu0 %10810
        %10812 = vrot.lane.b32.xlu0 %v10792, 96
        %v10813 = vpop.permute.xlu0 %10812
        %10814 = vrot.lane.b32.xlu0 %v10793, 96
        %v10815 = vpop.permute.xlu0 %10814
        %10816 = vrot.lane.b32.xlu0 %v10794, 96
        %v10817 = vpop.permute.xlu0 %10816
        %10818 = vrot.lane.b32.xlu0 %v10795, 96
        %v10819 = vpop.permute.xlu0 %10818
        %10820 = vrot.lane.b32.xlu0 %v10796, 96
        %v10821 = vpop.permute.xlu0 %10820
        %10822 = vrot.lane.b32.xlu0 %v10797, 96
        %v10823 = vpop.permute.xlu0 %10822
        %10824 = vrot.lane.b32.xlu0 %v10798, 96
        %v10825 = vpop.permute.xlu0 %10824
        %10826 = vrot.lane.b32.xlu0 %v10799, 96
        %v10827 = vpop.permute.xlu0 %10826
        %10828 = vrot.lane.b32.xlu0 %v10800, 96
        %v10829 = vpop.permute.xlu0 %10828
        %10830 = vrot.lane.b32.xlu0 %v10801, 96
        %v10831 = vpop.permute.xlu0 %10830
        %10832 = vrot.lane.b32.xlu0 %v10802, 96
        %v10833 = vpop.permute.xlu0 %10832
        %10834 = vrot.lane.b32.xlu0 %v10803, 96
        %v10835 = vpop.permute.xlu0 %10834
        %v10836 = vunpack.c.l.b16 %v9360
        %v10837 = vunpack.c.l.b16 %v9370
        %v10838 = vunpack.c.l.b16 %v9384
        %v10839 = vunpack.c.l.b16 %v9394
        %v10840 = vunpack.c.l.b16 %v9408
        %v10841 = vunpack.c.l.b16 %v9418
        %v10842 = vunpack.c.l.b16 %v9432
        %v10843 = vunpack.c.l.b16 %v9442
        %v10844 = vunpack.c.l.b16 %v9456
        %v10845 = vunpack.c.l.b16 %v9466
        %v10846 = vunpack.c.l.b16 %v9480
        %v10847 = vunpack.c.l.b16 %v9490
        %v10848 = vunpack.c.l.b16 %v9504
        %v10849 = vunpack.c.l.b16 %v9514
        %v10850 = vunpack.c.l.b16 %v9528
        %v10851 = vunpack.c.l.b16 %v9538
        %v10852 = vunpack.c.l.b16 %v9552
        %v10853 = vunpack.c.l.b16 %v9562
        %v10854 = vunpack.c.l.b16 %v9576
        %v10855 = vunpack.c.l.b16 %v9586
        %v10856 = vunpack.c.l.b16 %v9600
        %v10857 = vunpack.c.l.b16 %v9610
        %v10858 = vunpack.c.l.b16 %v9624
        %v10859 = vunpack.c.l.b16 %v9634
        %v10860 = vunpack.c.l.b16 %v9648
        %v10861 = vunpack.c.l.b16 %v9658
        %v10862 = vunpack.c.l.b16 %v9672
        %v10863 = vunpack.c.l.b16 %v9682
        %v10864 = vunpack.c.l.b16 %v9696
        %v10865 = vunpack.c.l.b16 %v9706
        %v10866 = vunpack.c.l.b16 %v9720
        %v10867 = vunpack.c.l.b16 %v9730
        %v10868 = vpack.c.b16 %v10837, %v10836
        %v10869 = vpack.c.b16 %v10839, %v10838
        %v10870 = vpack.c.b16 %v10841, %v10840
        %v10871 = vpack.c.b16 %v10843, %v10842
        %v10872 = vpack.c.b16 %v10845, %v10844
        %v10873 = vpack.c.b16 %v10847, %v10846
        %v10874 = vpack.c.b16 %v10849, %v10848
        %v10875 = vpack.c.b16 %v10851, %v10850
        %v10876 = vpack.c.b16 %v10853, %v10852
        %v10877 = vpack.c.b16 %v10855, %v10854
        %v10878 = vpack.c.b16 %v10857, %v10856
        %v10879 = vpack.c.b16 %v10859, %v10858
        %v10880 = vpack.c.b16 %v10861, %v10860
        %v10881 = vpack.c.b16 %v10863, %v10862
        %v10882 = vpack.c.b16 %v10865, %v10864
        %v10883 = vpack.c.b16 %v10867, %v10866
        %v10884 = vunpack.c.l.b16 %v9798
        %v10885 = vunpack.c.l.b16 %v9801
        %v10886 = vunpack.c.l.b16 %v9805
        %v10887 = vunpack.c.l.b16 %v9808
        %v10888 = vunpack.c.l.b16 %v9812
        %v10889 = vunpack.c.l.b16 %v9815
        %v10890 = vunpack.c.l.b16 %v9819
        %v10891 = vunpack.c.l.b16 %v9822
        %v10892 = vunpack.c.l.b16 %v9826
        %v10893 = vunpack.c.l.b16 %v9829
        %v10894 = vunpack.c.l.b16 %v9833
        %v10895 = vunpack.c.l.b16 %v9836
        %v10896 = vunpack.c.l.b16 %v9840
        %v10897 = vunpack.c.l.b16 %v9843
        %v10898 = vunpack.c.l.b16 %v9847
        %v10899 = vunpack.c.l.b16 %v9850
        %v10900 = vunpack.c.l.b16 %v9854
        %v10901 = vunpack.c.l.b16 %v9857
        %v10902 = vunpack.c.l.b16 %v9861
        %v10903 = vunpack.c.l.b16 %v9864
        %v10904 = vunpack.c.l.b16 %v9868
        %v10905 = vunpack.c.l.b16 %v9871
        %v10906 = vunpack.c.l.b16 %v9875
        %v10907 = vunpack.c.l.b16 %v9878
        %v10908 = vunpack.c.l.b16 %v9882
        %v10909 = vunpack.c.l.b16 %v9885
        %v10910 = vunpack.c.l.b16 %v9889
        %v10911 = vunpack.c.l.b16 %v9892
        %v10912 = vunpack.c.l.b16 %v9896
        %v10913 = vunpack.c.l.b16 %v9899
        %v10914 = vunpack.c.l.b16 %v9903
        %v10915 = vunpack.c.l.b16 %v9906
        %v10916 = vpack.c.b16 %v10885, %v10884
        %v10917 = vpack.c.b16 %v10887, %v10886
        %v10918 = vpack.c.b16 %v10889, %v10888
        %v10919 = vpack.c.b16 %v10891, %v10890
        %v10920 = vpack.c.b16 %v10893, %v10892
        %v10921 = vpack.c.b16 %v10895, %v10894
        %v10922 = vpack.c.b16 %v10897, %v10896
        %v10923 = vpack.c.b16 %v10899, %v10898
        %v10924 = vpack.c.b16 %v10901, %v10900
        %v10925 = vpack.c.b16 %v10903, %v10902
        %v10926 = vpack.c.b16 %v10905, %v10904
        %v10927 = vpack.c.b16 %v10907, %v10906
        %v10928 = vpack.c.b16 %v10909, %v10908
        %v10929 = vpack.c.b16 %v10911, %v10910
        %v10930 = vpack.c.b16 %v10913, %v10912
        %v10931 = vpack.c.b16 %v10915, %v10914
        %10932 = vrot.lane.b32.xlu0 %v10916, 32
        %v10933 = vpop.permute.xlu0 %10932
        %10934 = vrot.lane.b32.xlu0 %v10917, 32
        %v10935 = vpop.permute.xlu0 %10934
        %10936 = vrot.lane.b32.xlu0 %v10918, 32
        %v10937 = vpop.permute.xlu0 %10936
        %10938 = vrot.lane.b32.xlu0 %v10919, 32
        %v10939 = vpop.permute.xlu0 %10938
        %10940 = vrot.lane.b32.xlu0 %v10920, 32
        %v10941 = vpop.permute.xlu0 %10940
        %10942 = vrot.lane.b32.xlu0 %v10921, 32
        %v10943 = vpop.permute.xlu0 %10942
        %10944 = vrot.lane.b32.xlu0 %v10922, 32
        %v10945 = vpop.permute.xlu0 %10944
        %10946 = vrot.lane.b32.xlu0 %v10923, 32
        %v10947 = vpop.permute.xlu0 %10946
        %10948 = vrot.lane.b32.xlu0 %v10924, 32
        %v10949 = vpop.permute.xlu0 %10948
        %10950 = vrot.lane.b32.xlu0 %v10925, 32
        %v10951 = vpop.permute.xlu0 %10950
        %10952 = vrot.lane.b32.xlu0 %v10926, 32
        %v10953 = vpop.permute.xlu0 %10952
        %10954 = vrot.lane.b32.xlu0 %v10927, 32
        %v10955 = vpop.permute.xlu0 %10954
        %10956 = vrot.lane.b32.xlu0 %v10928, 32
        %v10957 = vpop.permute.xlu0 %10956
        %10958 = vrot.lane.b32.xlu0 %v10929, 32
        %v10959 = vpop.permute.xlu0 %10958
        %10960 = vrot.lane.b32.xlu0 %v10930, 32
        %v10961 = vpop.permute.xlu0 %10960
        %10962 = vrot.lane.b32.xlu0 %v10931, 32
        %v10963 = vpop.permute.xlu0 %10962
        %v10980 = vunpack.c.l.b16 %v9908
        %v10981 = vunpack.c.l.b16 %v9909
        %v10982 = vunpack.c.l.b16 %v9910
        %v10983 = vunpack.c.l.b16 %v9911
        %v10984 = vunpack.c.l.b16 %v9912
        %v10985 = vunpack.c.l.b16 %v9913
        %v10986 = vunpack.c.l.b16 %v9914
        %v10987 = vunpack.c.l.b16 %v9915
        %v10988 = vunpack.c.l.b16 %v9916
        %v10989 = vunpack.c.l.b16 %v9917
        %v10990 = vunpack.c.l.b16 %v9918
        %v10991 = vunpack.c.l.b16 %v9919
        %v10992 = vunpack.c.l.b16 %v9920
        %v10993 = vunpack.c.l.b16 %v9921
        %v10994 = vunpack.c.l.b16 %v9922
        %v10995 = vunpack.c.l.b16 %v9923
        %v10996 = vunpack.c.l.b16 %v9924
        %v10997 = vunpack.c.l.b16 %v9925
        %v10998 = vunpack.c.l.b16 %v9926
        %v10999 = vunpack.c.l.b16 %v9927
        %v11000 = vunpack.c.l.b16 %v9928
        %v11001 = vunpack.c.l.b16 %v9929
        %v11002 = vunpack.c.l.b16 %v9930
        %v11003 = vunpack.c.l.b16 %v9931
        %v11004 = vunpack.c.l.b16 %v9932
        %v11005 = vunpack.c.l.b16 %v9933
        %v11006 = vunpack.c.l.b16 %v9934
        %v11007 = vunpack.c.l.b16 %v9935
        %v11008 = vunpack.c.l.b16 %v9936
        %v11009 = vunpack.c.l.b16 %v9937
        %v11010 = vunpack.c.l.b16 %v9938
        %v11011 = vunpack.c.l.b16 %v9939
        %v11012 = vpack.c.b16 %v10981, %v10980
        %v11013 = vpack.c.b16 %v10983, %v10982
        %v11014 = vpack.c.b16 %v10985, %v10984
        %v11015 = vpack.c.b16 %v10987, %v10986
        %v11016 = vpack.c.b16 %v10989, %v10988
        %v11017 = vpack.c.b16 %v10991, %v10990
        %v11018 = vpack.c.b16 %v10993, %v10992
        %v11019 = vpack.c.b16 %v10995, %v10994
        %v11020 = vpack.c.b16 %v10997, %v10996
        %v11021 = vpack.c.b16 %v10999, %v10998
        %v11022 = vpack.c.b16 %v11001, %v11000
        %v11023 = vpack.c.b16 %v11003, %v11002
        %v11024 = vpack.c.b16 %v11005, %v11004
        %v11025 = vpack.c.b16 %v11007, %v11006
        %v11026 = vpack.c.b16 %v11009, %v11008
        %v11027 = vpack.c.b16 %v11011, %v11010
        %11028 = vrot.lane.b32.xlu0 %v11012, 64
        %v11029 = vpop.permute.xlu0 %11028
        %11030 = vrot.lane.b32.xlu0 %v11013, 64
        %v11031 = vpop.permute.xlu0 %11030
        %11032 = vrot.lane.b32.xlu0 %v11014, 64
        %v11033 = vpop.permute.xlu0 %11032
        %11034 = vrot.lane.b32.xlu0 %v11015, 64
        %v11035 = vpop.permute.xlu0 %11034
        %11036 = vrot.lane.b32.xlu0 %v11016, 64
        %v11037 = vpop.permute.xlu0 %11036
        %11038 = vrot.lane.b32.xlu0 %v11017, 64
        %v11039 = vpop.permute.xlu0 %11038
        %11040 = vrot.lane.b32.xlu0 %v11018, 64
        %v11041 = vpop.permute.xlu0 %11040
        %11042 = vrot.lane.b32.xlu0 %v11019, 64
        %v11043 = vpop.permute.xlu0 %11042
        %11044 = vrot.lane.b32.xlu0 %v11020, 64
        %v11045 = vpop.permute.xlu0 %11044
        %11046 = vrot.lane.b32.xlu0 %v11021, 64
        %v11047 = vpop.permute.xlu0 %11046
        %11048 = vrot.lane.b32.xlu0 %v11022, 64
        %v11049 = vpop.permute.xlu0 %11048
        %11050 = vrot.lane.b32.xlu0 %v11023, 64
        %v11051 = vpop.permute.xlu0 %11050
        %11052 = vrot.lane.b32.xlu0 %v11024, 64
        %v11053 = vpop.permute.xlu0 %11052
        %11054 = vrot.lane.b32.xlu0 %v11025, 64
        %v11055 = vpop.permute.xlu0 %11054
        %11056 = vrot.lane.b32.xlu0 %v11026, 64
        %v11057 = vpop.permute.xlu0 %11056
        %11058 = vrot.lane.b32.xlu0 %v11027, 64
        %v11059 = vpop.permute.xlu0 %11058
        %v11060 = vunpack.c.l.b16 %v9969
        %v11061 = vunpack.c.l.b16 %v9979
        %v11062 = vunpack.c.l.b16 %v9993
        %v11063 = vunpack.c.l.b16 %v10003
        %v11064 = vunpack.c.l.b16 %v10017
        %v11065 = vunpack.c.l.b16 %v10027
        %v11066 = vunpack.c.l.b16 %v10041
        %v11067 = vunpack.c.l.b16 %v10051
        %v11068 = vunpack.c.l.b16 %v10065
        %v11069 = vunpack.c.l.b16 %v10075
        %v11070 = vunpack.c.l.b16 %v10089
        %v11071 = vunpack.c.l.b16 %v10099
        %v11072 = vunpack.c.l.b16 %v10113
        %v11073 = vunpack.c.l.b16 %v10123
        %v11074 = vunpack.c.l.b16 %v10137
        %v11075 = vunpack.c.l.b16 %v10147
        %v11076 = vunpack.c.l.b16 %v10161
        %v11077 = vunpack.c.l.b16 %v10171
        %v11078 = vunpack.c.l.b16 %v10185
        %v11079 = vunpack.c.l.b16 %v10195
        %v11080 = vunpack.c.l.b16 %v10209
        %v11081 = vunpack.c.l.b16 %v10219
        %v11082 = vunpack.c.l.b16 %v10233
        %v11083 = vunpack.c.l.b16 %v10243
        %v11084 = vunpack.c.l.b16 %v10257
        %v11085 = vunpack.c.l.b16 %v10267
        %v11086 = vunpack.c.l.b16 %v10281
        %v11087 = vunpack.c.l.b16 %v10291
        %v11088 = vunpack.c.l.b16 %v10305
        %v11089 = vunpack.c.l.b16 %v10315
        %v11090 = vunpack.c.l.b16 %v10329
        %v11091 = vunpack.c.l.b16 %v10339
        %v11092 = vpack.c.b16 %v11061, %v11060
        %v11093 = vpack.c.b16 %v11063, %v11062
        %v11094 = vpack.c.b16 %v11065, %v11064
        %v11095 = vpack.c.b16 %v11067, %v11066
        %v11096 = vpack.c.b16 %v11069, %v11068
        %v11097 = vpack.c.b16 %v11071, %v11070
        %v11098 = vpack.c.b16 %v11073, %v11072
        %v11099 = vpack.c.b16 %v11075, %v11074
        %v11100 = vpack.c.b16 %v11077, %v11076
        %v11101 = vpack.c.b16 %v11079, %v11078
        %v11102 = vpack.c.b16 %v11081, %v11080
        %v11103 = vpack.c.b16 %v11083, %v11082
        %v11104 = vpack.c.b16 %v11085, %v11084
        %v11105 = vpack.c.b16 %v11087, %v11086
        %v11106 = vpack.c.b16 %v11089, %v11088
        %v11107 = vpack.c.b16 %v11091, %v11090
        %11108 = vrot.lane.b32.xlu0 %v11092, 96
        %v11109 = vpop.permute.xlu0 %11108
        %11110 = vrot.lane.b32.xlu0 %v11093, 96
        %v11111 = vpop.permute.xlu0 %11110
        %11112 = vrot.lane.b32.xlu0 %v11094, 96
        %v11113 = vpop.permute.xlu0 %11112
        %11114 = vrot.lane.b32.xlu0 %v11095, 96
        %v11115 = vpop.permute.xlu0 %11114
        %11116 = vrot.lane.b32.xlu0 %v11096, 96
        %v11117 = vpop.permute.xlu0 %11116
        %11118 = vrot.lane.b32.xlu0 %v11097, 96
        %v11119 = vpop.permute.xlu0 %11118
        %11120 = vrot.lane.b32.xlu0 %v11098, 96
        %v11121 = vpop.permute.xlu0 %11120
        %11122 = vrot.lane.b32.xlu0 %v11099, 96
        %v11123 = vpop.permute.xlu0 %11122
        %11124 = vrot.lane.b32.xlu0 %v11100, 96
        %v11125 = vpop.permute.xlu0 %11124
        %11126 = vrot.lane.b32.xlu0 %v11101, 96
        %v11127 = vpop.permute.xlu0 %11126
        %11128 = vrot.lane.b32.xlu0 %v11102, 96
        %v11129 = vpop.permute.xlu0 %11128
        %11130 = vrot.lane.b32.xlu0 %v11103, 96
        %v11131 = vpop.permute.xlu0 %11130
        %11132 = vrot.lane.b32.xlu0 %v11104, 96
        %v11133 = vpop.permute.xlu0 %11132
        %11134 = vrot.lane.b32.xlu0 %v11105, 96
        %v11135 = vpop.permute.xlu0 %11134
        %11136 = vrot.lane.b32.xlu0 %v11106, 96
        %v11137 = vpop.permute.xlu0 %11136
        %11138 = vrot.lane.b32.xlu0 %v11107, 96
        %v11139 = vpop.permute.xlu0 %11138
        %v11140 = vunpack.c.l.b16 %v10407
        %v11141 = vunpack.c.l.b16 %v10410
        %v11142 = vunpack.c.l.b16 %v10414
        %v11143 = vunpack.c.l.b16 %v10417
        %v11144 = vunpack.c.l.b16 %v10421
        %v11145 = vunpack.c.l.b16 %v10424
        %v11146 = vunpack.c.l.b16 %v10428
        %v11147 = vunpack.c.l.b16 %v10431
        %v11148 = vunpack.c.l.b16 %v10435
        %v11149 = vunpack.c.l.b16 %v10438
        %v11150 = vunpack.c.l.b16 %v10442
        %v11151 = vunpack.c.l.b16 %v10445
        %v11152 = vunpack.c.l.b16 %v10449
        %v11153 = vunpack.c.l.b16 %v10452
        %v11154 = vunpack.c.l.b16 %v10456
        %v11155 = vunpack.c.l.b16 %v10459
        %v11156 = vunpack.c.l.b16 %v10463
        %v11157 = vunpack.c.l.b16 %v10466
        %v11158 = vunpack.c.l.b16 %v10470
        %v11159 = vunpack.c.l.b16 %v10473
        %v11160 = vunpack.c.l.b16 %v10477
        %v11161 = vunpack.c.l.b16 %v10480
        %v11162 = vunpack.c.l.b16 %v10484
        %v11163 = vunpack.c.l.b16 %v10487
        %v11164 = vunpack.c.l.b16 %v10491
        %v11165 = vunpack.c.l.b16 %v10494
        %v11166 = vunpack.c.l.b16 %v10498
        %v11167 = vunpack.c.l.b16 %v10501
        %v11168 = vunpack.c.l.b16 %v10505
        %v11169 = vunpack.c.l.b16 %v10508
        %v11170 = vunpack.c.l.b16 %v10512
        %v11171 = vunpack.c.l.b16 %v10515
        %v11172 = vpack.c.b16 %v11141, %v11140
        %v11173 = vpack.c.b16 %v11143, %v11142
        %v11174 = vpack.c.b16 %v11145, %v11144
        %v11175 = vpack.c.b16 %v11147, %v11146
        %v11176 = vpack.c.b16 %v11149, %v11148
        %v11177 = vpack.c.b16 %v11151, %v11150
        %v11178 = vpack.c.b16 %v11153, %v11152
        %v11179 = vpack.c.b16 %v11155, %v11154
        %v11180 = vpack.c.b16 %v11157, %v11156
        %v11181 = vpack.c.b16 %v11159, %v11158
        %v11182 = vpack.c.b16 %v11161, %v11160
        %v11183 = vpack.c.b16 %v11163, %v11162
        %v11184 = vpack.c.b16 %v11165, %v11164
        %v11185 = vpack.c.b16 %v11167, %v11166
        %v11186 = vpack.c.b16 %v11169, %v11168
        %v11187 = vpack.c.b16 %v11171, %v11170
        %v11190 = vsel %vm3410, %v10564, %v10629
        %v11193 = vsel %vm3410, %v10565, %v10631
        %v11196 = vsel %vm3410, %v10566, %v10633
        %v11199 = vsel %vm3410, %v10567, %v10635
        %v11202 = vsel %vm3410, %v10568, %v10637
        %v11205 = vsel %vm3410, %v10569, %v10639
        %v11208 = vsel %vm3410, %v10570, %v10641
        %v11211 = vsel %vm3410, %v10571, %v10643
        %v11214 = vsel %vm3410, %v10572, %v10645
        %v11217 = vsel %vm3410, %v10573, %v10647
        %v11220 = vsel %vm3410, %v10574, %v10649
        %v11223 = vsel %vm3410, %v10575, %v10651
        %v11226 = vsel %vm3410, %v10576, %v10653
        %v11229 = vsel %vm3410, %v10577, %v10655
        %v11232 = vsel %vm3410, %v10578, %v10657
        %v11235 = vsel %vm3410, %v10579, %v10659
        %v11237 = vsel %vm7089, %v11190, %v10709
        %v11239 = vsel %vm7089, %v11193, %v10711
        %v11241 = vsel %vm7089, %v11196, %v10713
        %v11243 = vsel %vm7089, %v11199, %v10715
        %v11245 = vsel %vm7089, %v11202, %v10717
        %v11247 = vsel %vm7089, %v11205, %v10719
        %v11249 = vsel %vm7089, %v11208, %v10721
        %v11251 = vsel %vm7089, %v11211, %v10723
        %v11253 = vsel %vm7089, %v11214, %v10725
        %v11255 = vsel %vm7089, %v11217, %v10727
        %v11257 = vsel %vm7089, %v11220, %v10729
        %v11259 = vsel %vm7089, %v11223, %v10731
        %v11261 = vsel %vm7089, %v11226, %v10733
        %v11263 = vsel %vm7089, %v11229, %v10735
        %v11265 = vsel %vm7089, %v11232, %v10737
        %v11267 = vsel %vm7089, %v11235, %v10739
        %v11269 = vsel %vm7122, %v11237, %v10805
        %v11272 = vsel %vm7122, %v11239, %v10807
        %v11275 = vsel %vm7122, %v11241, %v10809
        %v11278 = vsel %vm7122, %v11243, %v10811
        %v11281 = vsel %vm7122, %v11245, %v10813
        %v11284 = vsel %vm7122, %v11247, %v10815
        %v11287 = vsel %vm7122, %v11249, %v10817
        %v11290 = vsel %vm7122, %v11251, %v10819
        %v11293 = vsel %vm7122, %v11253, %v10821
        %v11296 = vsel %vm7122, %v11255, %v10823
        %v11299 = vsel %vm7122, %v11257, %v10825
        %v11302 = vsel %vm7122, %v11259, %v10827
        %v11305 = vsel %vm7122, %v11261, %v10829
        %v11308 = vsel %vm7122, %v11263, %v10831
        %v11311 = vsel %vm7122, %v11265, %v10833
        %v11314 = vsel %vm7122, %v11267, %v10835
        %v11318 = vsel %vm3410, %v10868, %v10933
        %v11321 = vsel %vm3410, %v10869, %v10935
        %v11324 = vsel %vm3410, %v10870, %v10937
        %v11327 = vsel %vm3410, %v10871, %v10939
        %v11330 = vsel %vm3410, %v10872, %v10941
        %v11333 = vsel %vm3410, %v10873, %v10943
        %v11336 = vsel %vm3410, %v10874, %v10945
        %v11339 = vsel %vm3410, %v10875, %v10947
        %v11342 = vsel %vm3410, %v10876, %v10949
        %v11345 = vsel %vm3410, %v10877, %v10951
        %v11348 = vsel %vm3410, %v10878, %v10953
        %v11351 = vsel %vm3410, %v10879, %v10955
        %v11354 = vsel %vm3410, %v10880, %v10957
        %v11357 = vsel %vm3410, %v10881, %v10959
        %v11360 = vsel %vm3410, %v10882, %v10961
        %v11363 = vsel %vm3410, %v10883, %v10963
        %v11365 = vsel %vm7089, %v11318, %v11029
        %v11367 = vsel %vm7089, %v11321, %v11031
        %v11369 = vsel %vm7089, %v11324, %v11033
        %v11371 = vsel %vm7089, %v11327, %v11035
        %v11373 = vsel %vm7089, %v11330, %v11037
        %v11375 = vsel %vm7089, %v11333, %v11039
        %v11377 = vsel %vm7089, %v11336, %v11041
        %v11379 = vsel %vm7089, %v11339, %v11043
        %v11381 = vsel %vm7089, %v11342, %v11045
        %v11383 = vsel %vm7089, %v11345, %v11047
        %v11385 = vsel %vm7089, %v11348, %v11049
        %v11387 = vsel %vm7089, %v11351, %v11051
        %v11389 = vsel %vm7089, %v11354, %v11053
        %v11391 = vsel %vm7089, %v11357, %v11055
        %v11393 = vsel %vm7089, %v11360, %v11057
        %v11395 = vsel %vm7089, %v11363, %v11059
        %v11397 = vsel %vm7122, %v11365, %v11109
        %v11400 = vsel %vm7122, %v11367, %v11111
        %v11403 = vsel %vm7122, %v11369, %v11113
        %v11406 = vsel %vm7122, %v11371, %v11115
        %v11409 = vsel %vm7122, %v11373, %v11117
        %v11412 = vsel %vm7122, %v11375, %v11119
        %v11415 = vsel %vm7122, %v11377, %v11121
        %v11418 = vsel %vm7122, %v11379, %v11123
        %v11421 = vsel %vm7122, %v11381, %v11125
        %v11424 = vsel %vm7122, %v11383, %v11127
        %v11427 = vsel %vm7122, %v11385, %v11129
        %v11430 = vsel %vm7122, %v11387, %v11131
        %v11433 = vsel %vm7122, %v11389, %v11133
        %v11436 = vsel %vm7122, %v11391, %v11135
        %v11439 = vsel %vm7122, %v11393, %v11137
        %v11442 = vsel %vm7122, %v11395, %v11139
        %v11444 = vld [vmem:[%s7] sm:$0xf]
        %v11445 = vld [vmem:[%s7 + $0x4] sm:$0xf]
        %v11446 = vld [vmem:[%s7 + $0x8] sm:$0xf]
        %v11447 = vld [vmem:[%s7 + $0xc] sm:$0xf]
        %v11448 = vld [vmem:[%s7 + $0x10] sm:$0xf]
        %v11449 = vld [vmem:[%s7 + $0x14] sm:$0xf]
        %v11450 = vld [vmem:[%s7 + $0x18] sm:$0xf]
        %v11451 = vld [vmem:[%s7 + $0x1c] sm:$0xf]
        %v11452 = vld [vmem:[%s7 + $0x20] sm:$0xf]
        %v11453 = vld [vmem:[%s7 + $0x24] sm:$0xf]
        %v11454 = vld [vmem:[%s7 + $0x28] sm:$0xf]
        %v11455 = vld [vmem:[%s7 + $0x2c] sm:$0xf]
        %v11456 = vld [vmem:[%s7 + $0x30] sm:$0xf]
        %v11457 = vld [vmem:[%s7 + $0x34] sm:$0xf]
        %v11458 = vld [vmem:[%s7 + $0x38] sm:$0xf]
        %v11459 = vld [vmem:[%s7 + $0x3c] sm:$0xf]
        %v11460 = vld [vmem:[%s7 + $0x40] sm:$0xf]
        %v11461 = vld [vmem:[%s7 + $0x44] sm:$0xf]
        %v11462 = vld [vmem:[%s7 + $0x48] sm:$0xf]
        %v11463 = vld [vmem:[%s7 + $0x4c] sm:$0xf]
        %v11464 = vld [vmem:[%s7 + $0x50] sm:$0xf]
        %v11465 = vld [vmem:[%s7 + $0x54] sm:$0xf]
        %v11466 = vld [vmem:[%s7 + $0x58] sm:$0xf]
        %v11467 = vld [vmem:[%s7 + $0x5c] sm:$0xf]
        %v11468 = vld [vmem:[%s7 + $0x60] sm:$0xf]
        %v11469 = vld [vmem:[%s7 + $0x64] sm:$0xf]
        %v11470 = vld [vmem:[%s7 + $0x68] sm:$0xf]
        %v11471 = vld [vmem:[%s7 + $0x6c] sm:$0xf]
        %v11472 = vld [vmem:[%s7 + $0x70] sm:$0xf]
        %v11473 = vld [vmem:[%s7 + $0x74] sm:$0xf]
        %v11474 = vld [vmem:[%s7 + $0x78] sm:$0xf]
        %v11475 = vld [vmem:[%s7 + $0x7c] sm:$0xf]
        %v11476 = vld [vmem:[%s7 + $0x80] sm:$0xf]
        %v11477 = vld [vmem:[%s7 + $0x84] sm:$0xf]
        %v11478 = vld [vmem:[%s7 + $0x88] sm:$0xf]
        %v11479 = vld [vmem:[%s7 + $0x8c] sm:$0xf]
        %v11516 = vunpack.c.l.b16 %v11444
        %v11517 = vunpack.c.l.b16 %v11445
        %v11518 = vunpack.c.l.b16 %v11446
        %v11519 = vunpack.c.l.b16 %v11447
        %v11520 = vunpack.c.l.b16 %v11448
        %v11521 = vunpack.c.l.b16 %v11449
        %v11522 = vunpack.c.l.b16 %v11450
        %v11523 = vunpack.c.l.b16 %v11451
        %v11524 = vunpack.c.l.b16 %v11452
        %v11525 = vunpack.c.l.b16 %v11453
        %v11526 = vunpack.c.l.b16 %v11454
        %v11527 = vunpack.c.l.b16 %v11455
        %v11528 = vunpack.c.l.b16 %v11456
        %v11529 = vunpack.c.l.b16 %v11457
        %v11530 = vunpack.c.l.b16 %v11458
        %v11531 = vunpack.c.l.b16 %v11459
        %v11532 = vunpack.c.l.b16 %v11460
        %v11533 = vunpack.c.l.b16 %v11461
        %v11534 = vunpack.c.l.b16 %v11462
        %v11535 = vunpack.c.l.b16 %v11463
        %v11536 = vunpack.c.l.b16 %v11464
        %v11537 = vunpack.c.l.b16 %v11465
        %v11538 = vunpack.c.l.b16 %v11466
        %v11539 = vunpack.c.l.b16 %v11467
        %v11540 = vunpack.c.l.b16 %v11468
        %v11541 = vunpack.c.l.b16 %v11469
        %v11542 = vunpack.c.l.b16 %v11470
        %v11543 = vunpack.c.l.b16 %v11471
        %v11544 = vunpack.c.l.b16 %v11472
        %v11545 = vunpack.c.l.b16 %v11473
        %v11546 = vunpack.c.l.b16 %v11474
        %v11547 = vunpack.c.l.b16 %v11475
        %v11548 = vunpack.c.l.b16 %v11476
        %v11549 = vunpack.c.l.b16 %v11477
        %v11550 = vunpack.c.l.b16 %v11478
        %v11551 = vunpack.c.l.b16 %v11479
        %v11552 = vpack.c.b16 %v11517, %v11516
        %v11553 = vpack.c.b16 %v11519, %v11518
        %v11554 = vpack.c.b16 %v11521, %v11520
        %v11555 = vpack.c.b16 %v11523, %v11522
        %v11556 = vpack.c.b16 %v11525, %v11524
        %v11557 = vpack.c.b16 %v11527, %v11526
        %v11558 = vpack.c.b16 %v11529, %v11528
        %v11559 = vpack.c.b16 %v11531, %v11530
        %v11560 = vpack.c.b16 %v11533, %v11532
        %v11561 = vpack.c.b16 %v11535, %v11534
        %v11562 = vpack.c.b16 %v11537, %v11536
        %v11563 = vpack.c.b16 %v11539, %v11538
        %v11564 = vpack.c.b16 %v11541, %v11540
        %v11565 = vpack.c.b16 %v11543, %v11542
        %v11566 = vpack.c.b16 %v11545, %v11544
        %v11567 = vpack.c.b16 %v11547, %v11546
        %v11568 = vpack.c.b16 %v11549, %v11548
        %v11569 = vpack.c.b16 %v11551, %v11550
        %v11589 = vsel %vm3410, %v11172, 0
        %v11592 = vsel %vm3410, %v11173, 0
        %v11595 = vsel %vm3410, %v11174, 0
        %v11598 = vsel %vm3410, %v11175, 0
        %v11601 = vsel %vm3410, %v11176, 0
        %v11604 = vsel %vm3410, %v11177, 0
        %v11607 = vsel %vm3410, %v11178, 0
        %v11610 = vsel %vm3410, %v11179, 0
        %v11613 = vsel %vm3410, %v11180, 0
        %v11616 = vsel %vm3410, %v11181, 0
        %v11619 = vsel %vm3410, %v11182, 0
        %v11622 = vsel %vm3410, %v11183, 0
        %v11625 = vsel %vm3410, %v11184, 0
        %v11628 = vsel %vm3410, %v11185, 0
        %v11631 = vsel %vm3410, %v11186, 0
        %v11634 = vsel %vm3410, %v11187, 0
        %11636 = vmatprep.subr.bf16.mxu0 0
        %11637 = vmatpush1.bf16.msra.mxu0 %v11552
        %11638 = vmatprep.subr.bf16.mxu0 0
        %11639 = vmatpush1.bf16.msra.mxu0 %v11553
        %11640 = vmatprep.subr.bf16.mxu0 0
        %11641 = vmatpush1.bf16.msra.mxu0 %v11554
        %11642 = vmatprep.subr.bf16.mxu0 0
        %11643 = vmatpush1.bf16.msra.mxu0 %v11555
        %11644 = vmatprep.subr.bf16.mxu0 0
        %11645 = vmatpush1.bf16.msra.mxu0 %v11556
        %11646 = vmatprep.subr.bf16.mxu0 0
        %11647 = vmatpush1.bf16.msra.mxu0 %v11557
        %11648 = vmatprep.subr.bf16.mxu0 0
        %11649 = vmatpush1.bf16.msra.mxu0 %v11558
        %11650 = vmatprep.subr.bf16.mxu0 0
        %11651 = vmatpush1.bf16.msra.mxu0 %v11559
        %11652 = vmatprep.subr.bf16.mxu0 0
        %11653 = vmatpush1.bf16.msra.mxu0 %v11560
        %11654 = vmatprep.subr.bf16.mxu0 0
        %11655 = vmatpush1.bf16.msra.mxu0 %v11561
        %11656 = vmatprep.subr.bf16.mxu0 0
        %11657 = vmatpush1.bf16.msra.mxu0 %v11562
        %11658 = vmatprep.subr.bf16.mxu0 0
        %11659 = vmatpush1.bf16.msra.mxu0 %v11563
        %11660 = vmatprep.subr.bf16.mxu0 0
        %11661 = vmatpush1.bf16.msra.mxu0 %v11564
        %11662 = vmatprep.subr.bf16.mxu0 0
        %11663 = vmatpush1.bf16.msra.mxu0 %v11565
        %11664 = vmatprep.subr.bf16.mxu0 0
        %11665 = vmatpush1.bf16.msra.mxu0 %v11566
        %11666 = vmatprep.subr.bf16.mxu0 0
        %11667 = vmatpush1.bf16.msra.mxu0 %v11567
        %11668 = vmatprep.mubr.bf16.mxu0 %v11397
        %11669 = vmatmul.mubr.bf16.gmra.mrb[0].mxu0 %v11269
        %v11670 = vpop.f32.mrb[0].mxu0
        %v11671 = vadd.f32 0.0, %v11670
        %v11672 = vpop.f32.mrb[0].mxu0
        %v11673 = vpop.f32.mrb[0].mxu0
        %v11674 = vadd.f32 0.0, %v11673
        %v11675 = vpop.f32.mrb[0].mxu0
        %11676 = vmatprep.mubr.bf16.mxu0 %v11400
        %11677 = vmatmul.mubr.bf16.gmra.mrb[0].mxu0 %v11272
        %v11678 = vpop.f32.mrb[0].mxu0
        %v11679 = vadd.f32 0.0, %v11678
        %v11680 = vpop.f32.mrb[0].mxu0
        %v11681 = vpop.f32.mrb[0].mxu0
        %v11682 = vadd.f32 0.0, %v11681
        %v11683 = vpop.f32.mrb[0].mxu0
        %11684 = vmatprep.mubr.bf16.mxu0 %v11403
        %11685 = vmatmul.mubr.bf16.gmra.mrb[0].mxu0 %v11275
        %v11686 = vpop.f32.mrb[0].mxu0
        %v11687 = vadd.f32 0.0, %v11686
        %v11688 = vpop.f32.mrb[0].mxu0
        %v11689 = vpop.f32.mrb[0].mxu0
        %v11690 = vadd.f32 0.0, %v11689
        %v11691 = vpop.f32.mrb[0].mxu0
        %11692 = vmatprep.mubr.bf16.mxu0 %v11406
        %11693 = vmatmul.mubr.bf16.gmra.mrb[0].mxu0 %v11278
        %v11694 = vpop.f32.mrb[0].mxu0
        %v11695 = vadd.f32 0.0, %v11694
        %v11696 = vpop.f32.mrb[0].mxu0
        %v11697 = vpop.f32.mrb[0].mxu0
        %v11698 = vadd.f32 0.0, %v11697
        %v11699 = vpop.f32.mrb[0].mxu0
        %11700 = vmatprep.mubr.bf16.mxu0 %v11409
        %11701 = vmatmul.mubr.bf16.gmra.mrb[0].mxu0 %v11281
        %v11702 = vpop.f32.mrb[0].mxu0
        %v11703 = vadd.f32 0.0, %v11702
        %v11704 = vpop.f32.mrb[0].mxu0
        %v11705 = vpop.f32.mrb[0].mxu0
        %v11706 = vadd.f32 0.0, %v11705
        %v11707 = vpop.f32.mrb[0].mxu0
        %11708 = vmatprep.mubr.bf16.mxu0 %v11412
        %11709 = vmatmul.mubr.bf16.gmra.mrb[0].mxu0 %v11284
        %v11710 = vpop.f32.mrb[0].mxu0
        %v11711 = vadd.f32 0.0, %v11710
        %v11712 = vpop.f32.mrb[0].mxu0
        %v11713 = vpop.f32.mrb[0].mxu0
        %v11714 = vadd.f32 0.0, %v11713
        %v11715 = vpop.f32.mrb[0].mxu0
        %11716 = vmatprep.mubr.bf16.mxu0 %v11415
        %11717 = vmatmul.mubr.bf16.gmra.mrb[0].mxu0 %v11287
        %v11718 = vpop.f32.mrb[0].mxu0
        %v11719 = vadd.f32 0.0, %v11718
        %v11720 = vpop.f32.mrb[0].mxu0
        %v11721 = vpop.f32.mrb[0].mxu0
        %v11722 = vadd.f32 0.0, %v11721
        %v11723 = vpop.f32.mrb[0].mxu0
        %11724 = vmatprep.mubr.bf16.mxu0 %v11418
        %11725 = vmatmul.mubr.bf16.gmra.mrb[0].mxu0 %v11290
        %v11726 = vpop.f32.mrb[0].mxu0
        %v11727 = vadd.f32 0.0, %v11726
        %v11728 = vpop.f32.mrb[0].mxu0
        %v11729 = vpop.f32.mrb[0].mxu0
        %v11730 = vadd.f32 0.0, %v11729
        %v11731 = vpop.f32.mrb[0].mxu0
        %11732 = vmatprep.mubr.bf16.mxu0 %v11421
        %11733 = vmatmul.mubr.bf16.gmra.mrb[0].mxu0 %v11293
        %v11734 = vpop.f32.mrb[0].mxu0
        %v11735 = vadd.f32 0.0, %v11734
        %v11736 = vpop.f32.mrb[0].mxu0
        %v11737 = vpop.f32.mrb[0].mxu0
        %v11738 = vadd.f32 0.0, %v11737
        %v11739 = vpop.f32.mrb[0].mxu0
        %11740 = vmatprep.mubr.bf16.mxu0 %v11424
        %11741 = vmatmul.mubr.bf16.gmra.mrb[0].mxu0 %v11296
        %v11742 = vpop.f32.mrb[0].mxu0
        %v11743 = vadd.f32 0.0, %v11742
        %v11744 = vpop.f32.mrb[0].mxu0
        %v11745 = vpop.f32.mrb[0].mxu0
        %v11746 = vadd.f32 0.0, %v11745
        %v11747 = vpop.f32.mrb[0].mxu0
        %11748 = vmatprep.mubr.bf16.mxu0 %v11427
        %11749 = vmatmul.mubr.bf16.gmra.mrb[0].mxu0 %v11299
        %v11750 = vpop.f32.mrb[0].mxu0
        %v11751 = vadd.f32 0.0, %v11750
        %v11752 = vpop.f32.mrb[0].mxu0
        %v11753 = vpop.f32.mrb[0].mxu0
        %v11754 = vadd.f32 0.0, %v11753
        %v11755 = vpop.f32.mrb[0].mxu0
        %11756 = vmatprep.mubr.bf16.mxu0 %v11430
        %11757 = vmatmul.mubr.bf16.gmra.mrb[0].mxu0 %v11302
        %v11758 = vpop.f32.mrb[0].mxu0
        %v11759 = vadd.f32 0.0, %v11758
        %v11760 = vpop.f32.mrb[0].mxu0
        %v11761 = vpop.f32.mrb[0].mxu0
        %v11762 = vadd.f32 0.0, %v11761
        %v11763 = vpop.f32.mrb[0].mxu0
        %11764 = vmatprep.mubr.bf16.mxu0 %v11433
        %11765 = vmatmul.mubr.bf16.gmra.mrb[0].mxu0 %v11305
        %v11766 = vpop.f32.mrb[0].mxu0
        %v11767 = vadd.f32 0.0, %v11766
        %v11768 = vpop.f32.mrb[0].mxu0
        %v11769 = vpop.f32.mrb[0].mxu0
        %v11770 = vadd.f32 0.0, %v11769
        %v11771 = vpop.f32.mrb[0].mxu0
        %11772 = vmatprep.mubr.bf16.mxu0 %v11436
        %11773 = vmatmul.mubr.bf16.gmra.mrb[0].mxu0 %v11308
        %v11774 = vpop.f32.mrb[0].mxu0
        %v11775 = vadd.f32 0.0, %v11774
        %v11776 = vpop.f32.mrb[0].mxu0
        %v11777 = vpop.f32.mrb[0].mxu0
        %v11778 = vadd.f32 0.0, %v11777
        %v11779 = vpop.f32.mrb[0].mxu0
        %11780 = vmatprep.mubr.bf16.mxu0 %v11439
        %11781 = vmatmul.mubr.bf16.gmra.mrb[0].mxu0 %v11311
        %v11782 = vpop.f32.mrb[0].mxu0
        %v11783 = vadd.f32 0.0, %v11782
        %v11784 = vpop.f32.mrb[0].mxu0
        %v11785 = vpop.f32.mrb[0].mxu0
        %v11786 = vadd.f32 0.0, %v11785
        %v11787 = vpop.f32.mrb[0].mxu0
        %11788 = vmatprep.mubr.bf16.mxu0 %v11442
        %11789 = vmatmul.mubr.bf16.gmra.mrb[0].mxu0 %v11314
        %v11790 = vpop.f32.mrb[0].mxu0
        %v11791 = vadd.f32 0.0, %v11790
        %v11792 = vpop.f32.mrb[0].mxu0
        %v11793 = vpop.f32.mrb[0].mxu0
        %v11794 = vadd.f32 0.0, %v11793
        %v11795 = vpop.f32.mrb[0].mxu0
        %11796 = vdwg.mxu0
        %11797 = vmatprep.subr.bf16.mxu0 0
        %11798 = vmatpush1.bf16.msra.mxu0 %v11568
        %11799 = vmatprep.subr.bf16.mxu0 0
        %11800 = vmatpush1.bf16.msra.mxu0 %v11569
        %11801 = vmatprep.subr.bf16.mxu0 0
        %11802 = vmatpush1.bf16.msra.mxu0 0
        %11803 = vmatprep.subr.bf16.mxu0 0
        %11804 = vmatpush1.bf16.msra.mxu0 0
        %11805 = vmatprep.subr.bf16.mxu0 0
        %11806 = vmatpush1.bf16.msra.mxu0 0
        %11807 = vmatprep.subr.bf16.mxu0 0
        %11808 = vmatpush1.bf16.msra.mxu0 0
        %11809 = vmatprep.subr.bf16.mxu0 0
        %11810 = vmatpush1.bf16.msra.mxu0 0
        %11811 = vmatprep.subr.bf16.mxu0 0
        %11812 = vmatpush1.bf16.msra.mxu0 0
        %11813 = vmatprep.subr.bf16.mxu0 0
        %11814 = vmatpush1.bf16.msra.mxu0 0
        %11815 = vmatprep.subr.bf16.mxu0 0
        %11816 = vmatpush1.bf16.msra.mxu0 0
        %11817 = vmatprep.subr.bf16.mxu0 0
        %11818 = vmatpush1.bf16.msra.mxu0 0
        %11819 = vmatprep.subr.bf16.mxu0 0
        %11820 = vmatpush1.bf16.msra.mxu0 0
        %11821 = vmatprep.subr.bf16.mxu0 0
        %11822 = vmatpush1.bf16.msra.mxu0 0
        %11823 = vmatprep.subr.bf16.mxu0 0
        %11824 = vmatpush1.bf16.msra.mxu0 0
        %11825 = vmatprep.subr.bf16.mxu0 0
        %11826 = vmatpush1.bf16.msra.mxu0 0
        %11827 = vmatprep.subr.bf16.mxu0 0
        %11828 = vmatpush1.bf16.msra.mxu0 0
        %11829 = vmatprep.mubr.bf16.mxu0 0
        %11830 = vmatmul.mubr.bf16.gmra.mrb[0].mxu0 %v11589
        %v11831 = vpop.f32.mrb[0].mxu0
        %v11832 = vadd.f32 %v11671, %v11831
        %v11833 = vpop.f32.mrb[0].mxu0
        %v11834 = vpop.f32.mrb[0].mxu0
        %v11835 = vadd.f32 %v11674, %v11834
        %v11836 = vpop.f32.mrb[0].mxu0
        %11837 = vmatprep.mubr.bf16.mxu0 0
        %11838 = vmatmul.mubr.bf16.gmra.mrb[0].mxu0 %v11592
        %v11839 = vpop.f32.mrb[0].mxu0
        %v11840 = vadd.f32 %v11679, %v11839
        %v11841 = vpop.f32.mrb[0].mxu0
        %v11842 = vpop.f32.mrb[0].mxu0
        %v11843 = vadd.f32 %v11682, %v11842
        %v11844 = vpop.f32.mrb[0].mxu0
        %11845 = vmatprep.mubr.bf16.mxu0 0
        %11846 = vmatmul.mubr.bf16.gmra.mrb[0].mxu0 %v11595
        %v11847 = vpop.f32.mrb[0].mxu0
        %v11848 = vadd.f32 %v11687, %v11847
        %v11849 = vpop.f32.mrb[0].mxu0
        %v11850 = vpop.f32.mrb[0].mxu0
        %v11851 = vadd.f32 %v11690, %v11850
        %v11852 = vpop.f32.mrb[0].mxu0
        %11853 = vmatprep.mubr.bf16.mxu0 0
        %11854 = vmatmul.mubr.bf16.gmra.mrb[0].mxu0 %v11598
        %v11855 = vpop.f32.mrb[0].mxu0
        %v11856 = vadd.f32 %v11695, %v11855
        %v11857 = vpop.f32.mrb[0].mxu0
        %v11858 = vpop.f32.mrb[0].mxu0
        %v11859 = vadd.f32 %v11698, %v11858
        %v11860 = vpop.f32.mrb[0].mxu0
        %11861 = vmatprep.mubr.bf16.mxu0 0
        %11862 = vmatmul.mubr.bf16.gmra.mrb[0].mxu0 %v11601
        %v11863 = vpop.f32.mrb[0].mxu0
        %v11864 = vadd.f32 %v11703, %v11863
        %v11865 = vpop.f32.mrb[0].mxu0
        %v11866 = vpop.f32.mrb[0].mxu0
        %v11867 = vadd.f32 %v11706, %v11866
        %v11868 = vpop.f32.mrb[0].mxu0
        %11869 = vmatprep.mubr.bf16.mxu0 0
        %11870 = vmatmul.mubr.bf16.gmra.mrb[0].mxu0 %v11604
        %v11871 = vpop.f32.mrb[0].mxu0
        %v11872 = vadd.f32 %v11711, %v11871
        %v11873 = vpop.f32.mrb[0].mxu0
        %v11874 = vpop.f32.mrb[0].mxu0
        %v11875 = vadd.f32 %v11714, %v11874
        %v11876 = vpop.f32.mrb[0].mxu0
        %11877 = vmatprep.mubr.bf16.mxu0 0
        %11878 = vmatmul.mubr.bf16.gmra.mrb[0].mxu0 %v11607
        %v11879 = vpop.f32.mrb[0].mxu0
        %v11880 = vadd.f32 %v11719, %v11879
        %v11881 = vpop.f32.mrb[0].mxu0
        %v11882 = vpop.f32.mrb[0].mxu0
        %v11883 = vadd.f32 %v11722, %v11882
        %v11884 = vpop.f32.mrb[0].mxu0
        %11885 = vmatprep.mubr.bf16.mxu0 0
        %11886 = vmatmul.mubr.bf16.gmra.mrb[0].mxu0 %v11610
        %v11887 = vpop.f32.mrb[0].mxu0
        %v11888 = vadd.f32 %v11727, %v11887
        %v11889 = vpop.f32.mrb[0].mxu0
        %v11890 = vpop.f32.mrb[0].mxu0
        %v11891 = vadd.f32 %v11730, %v11890
        %v11892 = vpop.f32.mrb[0].mxu0
        %11893 = vmatprep.mubr.bf16.mxu0 0
        %11894 = vmatmul.mubr.bf16.gmra.mrb[0].mxu0 %v11613
        %v11895 = vpop.f32.mrb[0].mxu0
        %v11896 = vadd.f32 %v11735, %v11895
        %v11897 = vpop.f32.mrb[0].mxu0
        %v11898 = vpop.f32.mrb[0].mxu0
        %v11899 = vadd.f32 %v11738, %v11898
        %v11900 = vpop.f32.mrb[0].mxu0
        %11901 = vmatprep.mubr.bf16.mxu0 0
        %11902 = vmatmul.mubr.bf16.gmra.mrb[0].mxu0 %v11616
        %v11903 = vpop.f32.mrb[0].mxu0
        %v11904 = vadd.f32 %v11743, %v11903
        %v11905 = vpop.f32.mrb[0].mxu0
        %v11906 = vpop.f32.mrb[0].mxu0
        %v11907 = vadd.f32 %v11746, %v11906
        %v11908 = vpop.f32.mrb[0].mxu0
        %11909 = vmatprep.mubr.bf16.mxu0 0
        %11910 = vmatmul.mubr.bf16.gmra.mrb[0].mxu0 %v11619
        %v11911 = vpop.f32.mrb[0].mxu0
        %v11912 = vadd.f32 %v11751, %v11911
        %v11913 = vpop.f32.mrb[0].mxu0
        %v11914 = vpop.f32.mrb[0].mxu0
        %v11915 = vadd.f32 %v11754, %v11914
        %v11916 = vpop.f32.mrb[0].mxu0
        %11917 = vmatprep.mubr.bf16.mxu0 0
        %11918 = vmatmul.mubr.bf16.gmra.mrb[0].mxu0 %v11622
        %v11919 = vpop.f32.mrb[0].mxu0
        %v11920 = vadd.f32 %v11759, %v11919
        %v11921 = vpop.f32.mrb[0].mxu0
        %v11922 = vpop.f32.mrb[0].mxu0
        %v11923 = vadd.f32 %v11762, %v11922
        %v11924 = vpop.f32.mrb[0].mxu0
        %11925 = vmatprep.mubr.bf16.mxu0 0
        %11926 = vmatmul.mubr.bf16.gmra.mrb[0].mxu0 %v11625
        %v11927 = vpop.f32.mrb[0].mxu0
        %v11928 = vadd.f32 %v11767, %v11927
        %v11929 = vpop.f32.mrb[0].mxu0
        %v11930 = vpop.f32.mrb[0].mxu0
        %v11931 = vadd.f32 %v11770, %v11930
        %v11932 = vpop.f32.mrb[0].mxu0
        %11933 = vmatprep.mubr.bf16.mxu0 0
        %11934 = vmatmul.mubr.bf16.gmra.mrb[0].mxu0 %v11628
        %v11935 = vpop.f32.mrb[0].mxu0
        %v11936 = vadd.f32 %v11775, %v11935
        %v11937 = vpop.f32.mrb[0].mxu0
        %v11938 = vpop.f32.mrb[0].mxu0
        %v11939 = vadd.f32 %v11778, %v11938
        %v11940 = vpop.f32.mrb[0].mxu0
        %11941 = vmatprep.mubr.bf16.mxu0 0
        %11942 = vmatmul.mubr.bf16.gmra.mrb[0].mxu0 %v11631
        %v11943 = vpop.f32.mrb[0].mxu0
        %v11944 = vadd.f32 %v11783, %v11943
        %v11945 = vpop.f32.mrb[0].mxu0
        %v11946 = vpop.f32.mrb[0].mxu0
        %v11947 = vadd.f32 %v11786, %v11946
        %v11948 = vpop.f32.mrb[0].mxu0
        %11949 = vmatprep.mubr.bf16.mxu0 0
        %11950 = vmatmul.mubr.bf16.gmra.mrb[0].mxu0 %v11634
        %v11951 = vpop.f32.mrb[0].mxu0
        %v11952 = vadd.f32 %v11791, %v11951
        %v11953 = vpop.f32.mrb[0].mxu0
        %v11954 = vpop.f32.mrb[0].mxu0
        %v11955 = vadd.f32 %v11794, %v11954
        %v11956 = vpop.f32.mrb[0].mxu0
        %11957 = vdwg.mxu0
        %v11958 = vsel %vm3410, %v11832, 0.0
        %v11959 = vsel %vm3410, %v11835, 0.0
        %v11960 = vadd.f32 %v11958, %v11959
        %v11961 = vsel %vm3410, %v11840, 0.0
        %v11962 = vadd.f32 %v11960, %v11961
        %v11963 = vsel %vm3410, %v11843, 0.0
        %v11964 = vadd.f32 %v11962, %v11963
        %v11965 = vsel %vm3410, %v11848, 0.0
        %v11966 = vadd.f32 %v11964, %v11965
        %v11967 = vsel %vm3410, %v11851, 0.0
        %v11968 = vadd.f32 %v11966, %v11967
        %v11969 = vsel %vm3410, %v11856, 0.0
        %v11970 = vadd.f32 %v11968, %v11969
        %v11971 = vsel %vm3410, %v11859, 0.0
        %v11972 = vadd.f32 %v11970, %v11971
        %v11973 = vsel %vm3410, %v11864, 0.0
        %v11974 = vadd.f32 %v11972, %v11973
        %v11975 = vsel %vm3410, %v11867, 0.0
        %v11976 = vadd.f32 %v11974, %v11975
        %v11977 = vsel %vm3410, %v11872, 0.0
        %v11978 = vadd.f32 %v11976, %v11977
        %v11979 = vsel %vm3410, %v11875, 0.0
        %v11980 = vadd.f32 %v11978, %v11979
        %v11981 = vsel %vm3410, %v11880, 0.0
        %v11982 = vadd.f32 %v11980, %v11981
        %v11983 = vsel %vm3410, %v11883, 0.0
        %v11984 = vadd.f32 %v11982, %v11983
        %v11985 = vsel %vm3410, %v11888, 0.0
        %v11986 = vadd.f32 %v11984, %v11985
        %v11987 = vsel %vm3410, %v11891, 0.0
        %v11988 = vadd.f32 %v11986, %v11987
        %v11989 = vsel %vm3410, %v11896, 0.0
        %v11990 = vadd.f32 %v11988, %v11989
        %v11991 = vsel %vm3410, %v11899, 0.0
        %v11992 = vadd.f32 %v11990, %v11991
        %v11993 = vsel %vm3410, %v11904, 0.0
        %v11994 = vadd.f32 %v11992, %v11993
        %v11995 = vsel %vm3410, %v11907, 0.0
        %v11996 = vadd.f32 %v11994, %v11995
        %v11997 = vsel %vm3410, %v11912, 0.0
        %v11998 = vadd.f32 %v11996, %v11997
        %v11999 = vsel %vm3410, %v11915, 0.0
        %v12000 = vadd.f32 %v11998, %v11999
        %v12001 = vsel %vm3410, %v11920, 0.0
        %v12002 = vadd.f32 %v12000, %v12001
        %v12003 = vsel %vm3410, %v11923, 0.0
        %v12004 = vadd.f32 %v12002, %v12003
        %v12005 = vsel %vm3410, %v11928, 0.0
        %v12006 = vadd.f32 %v12004, %v12005
        %v12007 = vsel %vm3410, %v11931, 0.0
        %v12008 = vadd.f32 %v12006, %v12007
        %v12009 = vsel %vm3410, %v11936, 0.0
        %v12010 = vadd.f32 %v12008, %v12009
        %v12011 = vsel %vm3410, %v11939, 0.0
        %v12012 = vadd.f32 %v12010, %v12011
        %v12013 = vsel %vm3410, %v11944, 0.0
        %v12014 = vadd.f32 %v12012, %v12013
        %v12015 = vsel %vm3410, %v11947, 0.0
        %v12016 = vadd.f32 %v12014, %v12015
        %v12017 = vsel %vm3410, %v11952, 0.0
        %v12018 = vadd.f32 %v12016, %v12017
        %v12019 = vsel %vm3410, %v11955, 0.0
        %v12020 = vadd.f32 %v12018, %v12019
        %v12021 = vrot.slane %v12020, 4
        %v12022 = vadd.f32 %v12020, %v12021
        %v12023 = vrot.slane %v12022, 2
        %v12024 = vadd.f32 %v12022, %v12023
        %v12025 = vrot.slane %v12024, 1
        %v12026 = vadd.f32 %v12024, %v12025
        %v12027 = vmul.f32 %v12026, %v3730
        %v12028 = vsub.f32 %v11832, %v12027
        %v12029 = vsub.f32 %v11835, %v12027
        %v12030 = vsub.f32 %v11840, %v12027
        %v12031 = vsub.f32 %v11843, %v12027
        %v12032 = vsub.f32 %v11848, %v12027
        %v12033 = vsub.f32 %v11851, %v12027
        %v12034 = vsub.f32 %v11856, %v12027
        %v12035 = vsub.f32 %v11859, %v12027
        %v12036 = vsub.f32 %v11864, %v12027
        %v12037 = vsub.f32 %v11867, %v12027
        %v12038 = vsub.f32 %v11872, %v12027
        %v12039 = vsub.f32 %v11875, %v12027
        %v12040 = vsub.f32 %v11880, %v12027
        %v12041 = vsub.f32 %v11883, %v12027
        %v12042 = vsub.f32 %v11888, %v12027
        %v12043 = vsub.f32 %v11891, %v12027
        %v12044 = vsub.f32 %v11896, %v12027
        %v12045 = vsub.f32 %v11899, %v12027
        %v12046 = vsub.f32 %v11904, %v12027
        %v12047 = vsub.f32 %v11907, %v12027
        %v12048 = vsub.f32 %v11912, %v12027
        %v12049 = vsub.f32 %v11915, %v12027
        %v12050 = vsub.f32 %v11920, %v12027
        %v12051 = vsub.f32 %v11923, %v12027
        %v12052 = vsub.f32 %v11928, %v12027
        %v12053 = vsub.f32 %v11931, %v12027
        %v12054 = vsub.f32 %v11936, %v12027
        %v12055 = vsub.f32 %v11939, %v12027
        %v12056 = vsub.f32 %v11944, %v12027
        %v12057 = vsub.f32 %v11947, %v12027
        %v12058 = vsub.f32 %v11952, %v12027
        %v12059 = vsub.f32 %v11955, %v12027
        %v12060 = vmul.f32 %v12028, %v12028
        %v12061 = vmul.f32 %v12029, %v12029
        %v12062 = vmul.f32 %v12030, %v12030
        %v12063 = vmul.f32 %v12031, %v12031
        %v12064 = vmul.f32 %v12032, %v12032
        %v12065 = vmul.f32 %v12033, %v12033
        %v12066 = vmul.f32 %v12034, %v12034
        %v12067 = vmul.f32 %v12035, %v12035
        %v12068 = vmul.f32 %v12036, %v12036
        %v12069 = vmul.f32 %v12037, %v12037
        %v12070 = vmul.f32 %v12038, %v12038
        %v12071 = vmul.f32 %v12039, %v12039
        %v12072 = vmul.f32 %v12040, %v12040
        %v12073 = vmul.f32 %v12041, %v12041
        %v12074 = vmul.f32 %v12042, %v12042
        %v12075 = vmul.f32 %v12043, %v12043
        %v12076 = vmul.f32 %v12044, %v12044
        %v12077 = vmul.f32 %v12045, %v12045
        %v12078 = vmul.f32 %v12046, %v12046
        %v12079 = vmul.f32 %v12047, %v12047
        %v12080 = vmul.f32 %v12048, %v12048
        %v12081 = vmul.f32 %v12049, %v12049
        %v12082 = vmul.f32 %v12050, %v12050
        %v12083 = vmul.f32 %v12051, %v12051
        %v12084 = vmul.f32 %v12052, %v12052
        %v12085 = vmul.f32 %v12053, %v12053
        %v12086 = vmul.f32 %v12054, %v12054
        %v12087 = vmul.f32 %v12055, %v12055
        %v12088 = vmul.f32 %v12056, %v12056
        %v12089 = vmul.f32 %v12057, %v12057
        %v12090 = vmul.f32 %v12058, %v12058
        %v12091 = vmul.f32 %v12059, %v12059
        %v12092 = vsel %vm3410, %v12060, 0.0
        %v12093 = vsel %vm3410, %v12061, 0.0
        %v12094 = vadd.f32 %v12092, %v12093
        %v12095 = vsel %vm3410, %v12062, 0.0
        %v12096 = vadd.f32 %v12094, %v12095
        %v12097 = vsel %vm3410, %v12063, 0.0
        %v12098 = vadd.f32 %v12096, %v12097
        %v12099 = vsel %vm3410, %v12064, 0.0
        %v12100 = vadd.f32 %v12098, %v12099
        %v12101 = vsel %vm3410, %v12065, 0.0
        %v12102 = vadd.f32 %v12100, %v12101
        %v12103 = vsel %vm3410, %v12066, 0.0
        %v12104 = vadd.f32 %v12102, %v12103
        %v12105 = vsel %vm3410, %v12067, 0.0
        %v12106 = vadd.f32 %v12104, %v12105
        %v12107 = vsel %vm3410, %v12068, 0.0
        %v12108 = vadd.f32 %v12106, %v12107
        %v12109 = vsel %vm3410, %v12069, 0.0
        %v12110 = vadd.f32 %v12108, %v12109
        %v12111 = vsel %vm3410, %v12070, 0.0
        %v12112 = vadd.f32 %v12110, %v12111
        %v12113 = vsel %vm3410, %v12071, 0.0
        %v12114 = vadd.f32 %v12112, %v12113
        %v12115 = vsel %vm3410, %v12072, 0.0
        %v12116 = vadd.f32 %v12114, %v12115
        %v12117 = vsel %vm3410, %v12073, 0.0
        %v12118 = vadd.f32 %v12116, %v12117
        %v12119 = vsel %vm3410, %v12074, 0.0
        %v12120 = vadd.f32 %v12118, %v12119
        %v12121 = vsel %vm3410, %v12075, 0.0
        %v12122 = vadd.f32 %v12120, %v12121
        %v12123 = vsel %vm3410, %v12076, 0.0
        %v12124 = vadd.f32 %v12122, %v12123
        %v12125 = vsel %vm3410, %v12077, 0.0
        %v12126 = vadd.f32 %v12124, %v12125
        %v12127 = vsel %vm3410, %v12078, 0.0
        %v12128 = vadd.f32 %v12126, %v12127
        %v12129 = vsel %vm3410, %v12079, 0.0
        %v12130 = vadd.f32 %v12128, %v12129
        %v12131 = vsel %vm3410, %v12080, 0.0
        %v12132 = vadd.f32 %v12130, %v12131
        %v12133 = vsel %vm3410, %v12081, 0.0
        %v12134 = vadd.f32 %v12132, %v12133
        %v12135 = vsel %vm3410, %v12082, 0.0
        %v12136 = vadd.f32 %v12134, %v12135
        %v12137 = vsel %vm3410, %v12083, 0.0
        %v12138 = vadd.f32 %v12136, %v12137
        %v12139 = vsel %vm3410, %v12084, 0.0
        %v12140 = vadd.f32 %v12138, %v12139
        %v12141 = vsel %vm3410, %v12085, 0.0
        %v12142 = vadd.f32 %v12140, %v12141
        %v12143 = vsel %vm3410, %v12086, 0.0
        %v12144 = vadd.f32 %v12142, %v12143
        %v12145 = vsel %vm3410, %v12087, 0.0
        %v12146 = vadd.f32 %v12144, %v12145
        %v12147 = vsel %vm3410, %v12088, 0.0
        %v12148 = vadd.f32 %v12146, %v12147
        %v12149 = vsel %vm3410, %v12089, 0.0
        %v12150 = vadd.f32 %v12148, %v12149
        %v12151 = vsel %vm3410, %v12090, 0.0
        %v12152 = vadd.f32 %v12150, %v12151
        %v12153 = vsel %vm3410, %v12091, 0.0
        %v12154 = vadd.f32 %v12152, %v12153
        %v12155 = vrot.slane %v12154, 4
        %v12156 = vadd.f32 %v12154, %v12155
        %v12157 = vrot.slane %v12156, 2
        %v12158 = vadd.f32 %v12156, %v12157
        %v12159 = vrot.slane %v12158, 1
        %v12160 = vadd.f32 %v12158, %v12159
        %v12161 = vmul.f32 %v12160, %v3730
        %v12162 = vmax.f32 %v12161, 0.0
        %v12163 = vadd.f32 %v12162, 1e-05
        %v12164 = vrsqrt.pop %v12163
        %v12165 = vmul.f32 %v12028, %v12164
        %v12166 = vmul.f32 %v12029, %v12164
        %v12167 = vmul.f32 %v12030, %v12164
        %v12168 = vmul.f32 %v12031, %v12164
        %v12169 = vmul.f32 %v12032, %v12164
        %v12170 = vmul.f32 %v12033, %v12164
        %v12171 = vmul.f32 %v12034, %v12164
        %v12172 = vmul.f32 %v12035, %v12164
        %v12173 = vmul.f32 %v12036, %v12164
        %v12174 = vmul.f32 %v12037, %v12164
        %v12175 = vmul.f32 %v12038, %v12164
        %v12176 = vmul.f32 %v12039, %v12164
        %v12177 = vmul.f32 %v12040, %v12164
        %v12178 = vmul.f32 %v12041, %v12164
        %v12179 = vmul.f32 %v12042, %v12164
        %v12180 = vmul.f32 %v12043, %v12164
        %v12181 = vmul.f32 %v12044, %v12164
        %v12182 = vmul.f32 %v12045, %v12164
        %v12183 = vmul.f32 %v12046, %v12164
        %v12184 = vmul.f32 %v12047, %v12164
        %v12185 = vmul.f32 %v12048, %v12164
        %v12186 = vmul.f32 %v12049, %v12164
        %v12187 = vmul.f32 %v12050, %v12164
        %v12188 = vmul.f32 %v12051, %v12164
        %v12189 = vmul.f32 %v12052, %v12164
        %v12190 = vmul.f32 %v12053, %v12164
        %v12191 = vmul.f32 %v12054, %v12164
        %v12192 = vmul.f32 %v12055, %v12164
        %v12193 = vmul.f32 %v12056, %v12164
        %v12194 = vmul.f32 %v12057, %v12164
        %v12195 = vmul.f32 %v12058, %v12164
        %v12196 = vmul.f32 %v12059, %v12164
        %v12197 = vld [vmem:[%s8] sm:$0x1]
        %v12199 = vlaneseq
        %v12200 = vshrl.u32 %v12199, 7
        %v12201 = vsub.s32 0, %v12200
        %v12202 = vrot.slane %v12197, %v12201
        %v12204 = vmul.f32 %v12165, %v12202
        %v12205 = vmul.f32 %v12166, %v12202
        %v12206 = vmul.f32 %v12167, %v12202
        %v12207 = vmul.f32 %v12168, %v12202
        %v12208 = vmul.f32 %v12169, %v12202
        %v12209 = vmul.f32 %v12170, %v12202
        %v12210 = vmul.f32 %v12171, %v12202
        %v12211 = vmul.f32 %v12172, %v12202
        %v12212 = vmul.f32 %v12173, %v12202
        %v12213 = vmul.f32 %v12174, %v12202
        %v12214 = vmul.f32 %v12175, %v12202
        %v12215 = vmul.f32 %v12176, %v12202
        %v12216 = vmul.f32 %v12177, %v12202
        %v12217 = vmul.f32 %v12178, %v12202
        %v12218 = vmul.f32 %v12179, %v12202
        %v12219 = vmul.f32 %v12180, %v12202
        %v12220 = vmul.f32 %v12181, %v12202
        %v12221 = vmul.f32 %v12182, %v12202
        %v12222 = vmul.f32 %v12183, %v12202
        %v12223 = vmul.f32 %v12184, %v12202
        %v12224 = vmul.f32 %v12185, %v12202
        %v12225 = vmul.f32 %v12186, %v12202
        %v12226 = vmul.f32 %v12187, %v12202
        %v12227 = vmul.f32 %v12188, %v12202
        %v12228 = vmul.f32 %v12189, %v12202
        %v12229 = vmul.f32 %v12190, %v12202
        %v12230 = vmul.f32 %v12191, %v12202
        %v12231 = vmul.f32 %v12192, %v12202
        %v12232 = vmul.f32 %v12193, %v12202
        %v12233 = vmul.f32 %v12194, %v12202
        %v12234 = vmul.f32 %v12195, %v12202
        %v12235 = vmul.f32 %v12196, %v12202
        %v12236 = vld [vmem:[%s9] sm:$0x1]
        %v12238 = vlaneseq
        %v12239 = vshrl.u32 %v12238, 7
        %v12240 = vsub.s32 0, %v12239
        %v12241 = vrot.slane %v12236, %v12240
        %v12243 = vadd.f32 %v12204, %v12241
        %v12244 = vadd.f32 %v12205, %v12241
        %v12245 = vadd.f32 %v12206, %v12241
        %v12246 = vadd.f32 %v12207, %v12241
        %v12247 = vadd.f32 %v12208, %v12241
        %v12248 = vadd.f32 %v12209, %v12241
        %v12249 = vadd.f32 %v12210, %v12241
        %v12250 = vadd.f32 %v12211, %v12241
        %v12251 = vadd.f32 %v12212, %v12241
        %v12252 = vadd.f32 %v12213, %v12241
        %v12253 = vadd.f32 %v12214, %v12241
        %v12254 = vadd.f32 %v12215, %v12241
        %v12255 = vadd.f32 %v12216, %v12241
        %v12256 = vadd.f32 %v12217, %v12241
        %v12257 = vadd.f32 %v12218, %v12241
        %v12258 = vadd.f32 %v12219, %v12241
        %v12259 = vadd.f32 %v12220, %v12241
        %v12260 = vadd.f32 %v12221, %v12241
        %v12261 = vadd.f32 %v12222, %v12241
        %v12262 = vadd.f32 %v12223, %v12241
        %v12263 = vadd.f32 %v12224, %v12241
        %v12264 = vadd.f32 %v12225, %v12241
        %v12265 = vadd.f32 %v12226, %v12241
        %v12266 = vadd.f32 %v12227, %v12241
        %v12267 = vadd.f32 %v12228, %v12241
        %v12268 = vadd.f32 %v12229, %v12241
        %v12269 = vadd.f32 %v12230, %v12241
        %v12270 = vadd.f32 %v12231, %v12241
        %v12271 = vadd.f32 %v12232, %v12241
        %v12272 = vadd.f32 %v12233, %v12241
        %v12273 = vadd.f32 %v12234, %v12241
        %v12274 = vadd.f32 %v12235, %v12241
        %v12275 = vmax.f32 %v12243, 0.0
        %v12276 = vmax.f32 %v12244, 0.0
        %v12277 = vmax.f32 %v12245, 0.0
        %v12278 = vmax.f32 %v12246, 0.0
        %v12279 = vmax.f32 %v12247, 0.0
        %v12280 = vmax.f32 %v12248, 0.0
        %v12281 = vmax.f32 %v12249, 0.0
        %v12282 = vmax.f32 %v12250, 0.0
        %v12283 = vmax.f32 %v12251, 0.0
        %v12284 = vmax.f32 %v12252, 0.0
        %v12285 = vmax.f32 %v12253, 0.0
        %v12286 = vmax.f32 %v12254, 0.0
        %v12287 = vmax.f32 %v12255, 0.0
        %v12288 = vmax.f32 %v12256, 0.0
        %v12289 = vmax.f32 %v12257, 0.0
        %v12290 = vmax.f32 %v12258, 0.0
        %v12291 = vmax.f32 %v12259, 0.0
        %v12292 = vmax.f32 %v12260, 0.0
        %v12293 = vmax.f32 %v12261, 0.0
        %v12294 = vmax.f32 %v12262, 0.0
        %v12295 = vmax.f32 %v12263, 0.0
        %v12296 = vmax.f32 %v12264, 0.0
        %v12297 = vmax.f32 %v12265, 0.0
        %v12298 = vmax.f32 %v12266, 0.0
        %v12299 = vmax.f32 %v12267, 0.0
        %v12300 = vmax.f32 %v12268, 0.0
        %v12301 = vmax.f32 %v12269, 0.0
        %v12302 = vmax.f32 %v12270, 0.0
        %v12303 = vmax.f32 %v12271, 0.0
        %v12304 = vmax.f32 %v12272, 0.0
        %v12305 = vmax.f32 %v12273, 0.0
        %v12306 = vmax.f32 %v12274, 0.0
        %v12307 = vsel %vm3410, %v12275, 0.0
        %v12308 = vsel %vm3410, %v12276, 0.0
        %v12309 = vadd.f32 %v12307, %v12308
        %v12310 = vsel %vm3410, %v12277, 0.0
        %v12311 = vadd.f32 %v12309, %v12310
        %v12312 = vsel %vm3410, %v12278, 0.0
        %v12313 = vadd.f32 %v12311, %v12312
        %v12314 = vsel %vm3410, %v12279, 0.0
        %v12315 = vadd.f32 %v12313, %v12314
        %v12316 = vsel %vm3410, %v12280, 0.0
        %v12317 = vadd.f32 %v12315, %v12316
        %v12318 = vsel %vm3410, %v12281, 0.0
        %v12319 = vadd.f32 %v12317, %v12318
        %v12320 = vsel %vm3410, %v12282, 0.0
        %v12321 = vadd.f32 %v12319, %v12320
        %v12322 = vsel %vm3410, %v12283, 0.0
        %v12323 = vadd.f32 %v12321, %v12322
        %v12324 = vsel %vm3410, %v12284, 0.0
        %v12325 = vadd.f32 %v12323, %v12324
        %v12326 = vsel %vm3410, %v12285, 0.0
        %v12327 = vadd.f32 %v12325, %v12326
        %v12328 = vsel %vm3410, %v12286, 0.0
        %v12329 = vadd.f32 %v12327, %v12328
        %v12330 = vsel %vm3410, %v12287, 0.0
        %v12331 = vadd.f32 %v12329, %v12330
        %v12332 = vsel %vm3410, %v12288, 0.0
        %v12333 = vadd.f32 %v12331, %v12332
        %v12334 = vsel %vm3410, %v12289, 0.0
        %v12335 = vadd.f32 %v12333, %v12334
        %v12336 = vsel %vm3410, %v12290, 0.0
        %v12337 = vadd.f32 %v12335, %v12336
        %v12338 = vsel %vm3410, %v12291, 0.0
        %v12339 = vadd.f32 %v12337, %v12338
        %v12340 = vsel %vm3410, %v12292, 0.0
        %v12341 = vadd.f32 %v12339, %v12340
        %v12342 = vsel %vm3410, %v12293, 0.0
        %v12343 = vadd.f32 %v12341, %v12342
        %v12344 = vsel %vm3410, %v12294, 0.0
        %v12345 = vadd.f32 %v12343, %v12344
        %v12346 = vsel %vm3410, %v12295, 0.0
        %v12347 = vadd.f32 %v12345, %v12346
        %v12348 = vsel %vm3410, %v12296, 0.0
        %v12349 = vadd.f32 %v12347, %v12348
        %v12350 = vsel %vm3410, %v12297, 0.0
        %v12351 = vadd.f32 %v12349, %v12350
        %v12352 = vsel %vm3410, %v12298, 0.0
        %v12353 = vadd.f32 %v12351, %v12352
        %v12354 = vsel %vm3410, %v12299, 0.0
        %v12355 = vadd.f32 %v12353, %v12354
        %v12356 = vsel %vm3410, %v12300, 0.0
        %v12357 = vadd.f32 %v12355, %v12356
        %v12358 = vsel %vm3410, %v12301, 0.0
        %v12359 = vadd.f32 %v12357, %v12358
        %v12360 = vsel %vm3410, %v12302, 0.0
        %v12361 = vadd.f32 %v12359, %v12360
        %v12362 = vsel %vm3410, %v12303, 0.0
        %v12363 = vadd.f32 %v12361, %v12362
        %v12364 = vsel %vm3410, %v12304, 0.0
        %v12365 = vadd.f32 %v12363, %v12364
        %v12366 = vsel %vm3410, %v12305, 0.0
        %v12367 = vadd.f32 %v12365, %v12366
        %v12368 = vsel %vm3410, %v12306, 0.0
        %v12369 = vadd.f32 %v12367, %v12368
        %v12370 = vrot.slane %v12369, 4
        %v12371 = vadd.f32 %v12369, %v12370
        %v12372 = vrot.slane %v12371, 2
        %v12373 = vadd.f32 %v12371, %v12372
        %v12374 = vrot.slane %v12373, 1
        %v12375 = vadd.f32 %v12373, %v12374
        %v12376 = vmul.f32 %v12375, %v3730
        %12377 = vst.msk [vmem:[%s351] sm:$0x1] %vm361, %v12376
        %s12378 = sand.u32 %s247, 1
        %s12379 = scalar_lea.sflag [#allocation5], %s12378
        %s12380 = sand.u32 %s247, 1
        %s12381 = scalar_lea.vmem [#allocation4], %s12380
        // Predicated region
        $region61: #{tpu_custom_call.1} parent=59 // pred_check
          %p12382 = pneg %p257
        $region62: #{tpu_custom_call.1} parent=59 // pred_check_branch
          %12384 = sbr.rel (%p12382) target = $region64
        $region63: #{tpu_custom_call.1} parent=59 // pred_region
          %s12386 = ssub.s32 16, 16
          %12387 = vsyncadd %s12379, %s12386
          %s12388 = smul.addr %s24, 16
          %s12389 = scalar_lea.hbm %s10, %s12388
          %s12391 = sshll.u32 %s12381, 4
          %s12392 = int_to_ptr.vmem [resolvable:$true] %s12391
          %12394 = dma.vmem_to_hbm [thread:$0]  %s12392, 16, %s12389, %s12379
        $region64: #{tpu_custom_call.1} parent=59 // pred_fallthru
          _
      $region60: #{tpu_custom_call.1} parent=5 // pred_fallthru
        _
      %p12395 = scmp.le.s32.totalorder 2, %s19
      // Predicated region
      $region65: #{tpu_custom_call.1} parent=5 // pred_check
        %p12396 = pneg %p12395
      $region66: #{tpu_custom_call.1} parent=5 // pred_check_branch
        %12398 = sbr.rel (%p12396) target = $region68
      $region67: #{tpu_custom_call.1} parent=5 // pred_region
        %s12399 = ssub.s32 %s19, 2
        // Predicated region
        $region69: #{tpu_custom_call.1} parent=67 // pred_check
          %p12400 = pneg %p263
        $region70: #{tpu_custom_call.1} parent=67 // pred_check_branch
          %12402 = sbr.rel (%p12400) target = $region72
        $region71: #{tpu_custom_call.1} parent=67 // pred_region
          %s12403 = sand.u32 %s248, 1
          %s12404 = scalar_lea.sflag [#allocation5], %s12403
          %s12405 = sand.u32 %s248, 1
          %s12406 = scalar_lea.vmem [#allocation4], %s12405
          %12407 = dma.done %s12404, 16
        $region72: #{tpu_custom_call.1} parent=67 // pred_fallthru
          _
      $region68: #{tpu_custom_call.1} parent=5 // pred_fallthru
        _
    $region6: #{tpu_custom_call.1} parent=1 // loop_footer
      %s23 = sadd.s32 1, %s19
    $region7: #{tpu_custom_call.1} parent=1 // loop_footer_branch
      %18 = sbr.rel target = $region3
    $region8: #{tpu_custom_call.1} parent=1 // loop_exit
      _
    %12408 = vsyncpa [#allocation5], 1
    %s12409 = scalar_lea.sflag [#allocation5], 1
    %12410 = vsyncpa %s12409, 1

</llo_original>
